<compile_context>
chip_gen: v7x
topology: tpu7x:2x2x1
jax: 0.10.0
libtpu: 0.0.40
codegen_flags: <defaults>
</compile_context>

<pallas_src>
import math

import jax
import jax.numpy as jnp
import numpy as np
from jax import lax
from jax.experimental import pallas as pl
from jax.experimental.pallas import tpu as pltpu


def _round_up(x, m):
    return ((x + m - 1) // m) * m


# ----------------------------------------------------------------------------- #
# Host-side packing of all conv/linear layers into VMEM-resident arrays
# ----------------------------------------------------------------------------- #
def _pack_w(w, cmax, kmax):
    """w: (K, Cout, Cin) -> (kmax, cmax, cmax) bf16; real taps fill the LAST K slots."""
    K, cout, cin = w.shape
    wm = jnp.zeros((kmax, cmax, cmax), jnp.float32)
    wm = wm.at[kmax - K:, :cout, :cin].set(w)
    return wm.astype(jnp.bfloat16)          # MXU-native operands (v6e/v7x)


def _pack_b(b, cmax):
    """b: (Cout, 1) -> (cmax, 1) zero-padded, kept f32 (VPU path)."""
    return jnp.zeros((cmax, 1), jnp.float32).at[:b.shape[0], :].set(b)


# ----------------------------------------------------------------------------- #
# Fused Pallas kernel for the whole MS_TCN forward
# ----------------------------------------------------------------------------- #
def _make_fused_kernel(schedule, B, C0, T, OUTP, CMAX, KMAX,
                       GOFF, PADZ, TP, WDATA, WTOT, NSTAGE):

    def kernel(x_ref, w_ref, b_ref, out_ref, slab, res_ref):
        # One-time slab init: zero everything, drop the input at each batch's
        # data offset; guard / per-batch pad columns stay zero from here on.
        slab[...] = jnp.zeros((CMAX, WTOT), jnp.float32)
        for bi in range(B):
            off = GOFF + bi * TP + PADZ
            slab[0:C0, off:off + T] = x_ref[bi]

        # Lane mask over the computed region: re-zero each batch's causal pad
        # columns after every layer so later taps read true zeros.
        cols = lax.broadcasted_iota(jnp.int32, (1, WDATA), 1)
        valid = jnp.broadcast_to(
            ((cols % TP) >= PADZ).astype(jnp.float32), (CMAX, WDATA))

        def conv(layer, dil, kreal, relu):
            # kreal==1 (downsample / per-stage last layer) -> single aligned dot
            # (1x1 fast path).  kreal>1 -> accumulate one small dot per real tap
            # directly on the shifted slab slices (no im2col concatenate).
            y = None
            for kk in range(kreal):
                slot = KMAX - kreal + kk                 # real taps live in last slots
                s = GOFF - (kreal - 1 - kk) * dil
                part = jnp.dot(
                    w_ref[layer, slot],                                   # bf16
                    slab[:, s:s + WDATA].astype(jnp.bfloat16),            # bf16 just for MXU
                    preferred_element_type=jnp.float32)                   # f32 accumulate
                y = part if y is None else y + part
            y = y + b_ref[layer]
            if relu:
                y = jnp.maximum(y, 0.0)
            return y * valid

        for si, st in enumerate(schedule):
            for blk in st["blocks"]:
                dil = blk["dilation"]
                # Residual stashed in VMEM scratch (frees vregs across the convs).
                if blk["down"] is not None:              # 1x1 downsample residual
                    res_ref[...] = conv(blk["down"], 1, 1, relu=False)
                else:                                    # identity residual snapshot
                    res_ref[...] = slab[:, GOFF:GOFF + WDATA]
                nconv = len(blk["convs"])
                for j, (li, kr) in enumerate(blk["convs"]):
                    y = conv(li, dil, kr, relu=True)     # relu(conv(h))
                    if j == nconv - 1:
                        y = jnp.maximum(y + res_ref[...], 0.0)   # relu(h + res)
                    slab[:, GOFF:GOFF + WDATA] = y
            # Per-stage last layer (Linear over channels == 1x1 conv).
            y = conv(st["last"], 1, 1, relu=False)
            out_ref[si] = y[0:OUTP, :]                   # one lane-dense store per stage
            if si < NSTAGE - 1:                          # feeds the next refinement stage
                slab[:, GOFF:GOFF + WDATA] = y

    return kernel


def build_fused_mstcn(params, batch, T):
    """Pack weights once and return a jitted forward: x (B, Cin, T) -> list[(B, T, OUT)]."""
    stage_list = [params["stage1"]] + list(params["stages"])

    # ---- static dims ----
    chans, ksizes, max_dil = set(), set(), 1
    for sp in stage_list:
        for blk in sp["blocks"]:
            max_dil = max(max_dil, blk["dilation"])
            for (w, _) in blk["convs"]:
                K, cout, cin = w.shape
                ksizes.add(K)
                chans.update((cout, cin))
            if blk["down"] is not None:
                _, cout, cin = blk["down"][0].shape
                chans.update((cout, cin))
        _, out_sz, cf = sp["last_w"].shape
        chans.update((out_sz, cf))
    CMAX = _round_up(max(chans), 8)
    KMAX = max(max(ksizes), 1)
    OUT = stage_list[0]["last_w"].shape[1]
    OUTP = _round_up(OUT, 8)             # sublane-friendly output store
    C0 = stage_list[0]["blocks"][0]["convs"][0][0].shape[2]
    NSTAGE = len(stage_list)

    max_shift = max((KMAX - 1) * max_dil, 1)
    PADZ = max_shift                     # minimal per-batch causal zero zone (perf review)
    GOFF = _round_up(max_shift, 128)     # 128-aligned left guard: per-layer writes stay aligned
    TP = PADZ + T                        # per-batch segment width
    WDATA = batch * TP                   # computed (data) region width
    WTOT = GOFF + WDATA                  # slab width

    # ---- pack all layers (packing order defines the layer index) + schedule ----
    ws, bs, schedule = [], [], []
    for sp in stage_list:
        st = {"blocks": [], "last": None}
        for blk in sp["blocks"]:
            entry = {"dilation": blk["dilation"], "down": None, "convs": []}
            if blk["down"] is not None:
                entry["down"] = len(ws)
                ws.append(_pack_w(blk["down"][0], CMAX, KMAX))
                bs.append(_pack_b(blk["down"][1], CMAX))
            for (w, b) in blk["convs"]:
                entry["convs"].append((len(ws), w.shape[0]))   # (layer index, real K)
                ws.append(_pack_w(w, CMAX, KMAX))
                bs.append(_pack_b(b, CMAX))
            st["blocks"].append(entry)
        st["last"] = len(ws)
        ws.append(_pack_w(sp["last_w"], CMAX, KMAX))
        bs.append(_pack_b(sp["last_b"], CMAX))
        schedule.append(st)
    w_pack = jnp.stack(ws)               # (L, KMAX, CMAX, CMAX) bf16 -- VMEM resident
    b_pack = jnp.stack(bs)               # (L, CMAX, 1) f32           -- VMEM resident

    kernel = _make_fused_kernel(schedule, batch, C0, T, OUTP, CMAX, KMAX,
                                GOFF, PADZ, TP, WDATA, WTOT, NSTAGE)

    # Explicit VMEM budget: slab + residual scratch + packed params + in/out.
    est = (CMAX * WTOT * 4 + CMAX * WDATA * 4
           + int(w_pack.size) * 2 + int(b_pack.size) * 4
           + batch * C0 * T * 4 + NSTAGE * OUTP * WDATA * 4)
    vmem_limit = int(min(64 << 20, max(32 << 20, 4 * est)))

    fused = pl.pallas_call(
        kernel,
        out_shape=jax.ShapeDtypeStruct((NSTAGE, OUTP, WDATA), jnp.float32),
        in_specs=[pl.BlockSpec(memory_space=pltpu.MemorySpace.VMEM)] * 3,
        out_specs=pl.BlockSpec(memory_space=pltpu.MemorySpace.VMEM),
        scratch_shapes=[pltpu.VMEM((CMAX, WTOT), jnp.float32),    # activation slab
                        pltpu.VMEM((CMAX, WDATA), jnp.float32)],  # residual stash
        compiler_params=pltpu.CompilerParams(vmem_limit_bytes=vmem_limit),
    )

    @jax.jit
    def forward(x):
        stacked = fused(x, w_pack, b_pack)                 # (NSTAGE, OUTP, WDATA)
        # strip per-batch causal pads / channel padding outside the kernel
        r = stacked.reshape(NSTAGE, OUTP, batch, TP)[:, :OUT, :, PADZ:]
        return [jnp.transpose(r[s], (1, 2, 0)) for s in range(NSTAGE)]

    return forward


# ----------------------------------------------------------------------------- #
# Pure-JAX reference (lax.conv_general_dilated) for correctness cross-check
# ----------------------------------------------------------------------------- #
def ref_causal_conv(x, w, b, dilation):
    K = w.shape[0]
    wt = jnp.transpose(w, (1, 2, 0))  # (Cout, Cin, K)  (torch Conv1d layout)
    y = lax.conv_general_dilated(
        x, wt, window_strides=(1,), padding=[((K - 1) * dilation, 0)],
        rhs_dilation=(dilation,), dimension_numbers=("NCH", "OIH", "NCH"),
        precision=lax.Precision.HIGHEST)
    return y + b[None, :, :]


def ref_tcn_forward(params, x):
    h = x
    for blk in params["blocks"]:
        inp = h
        d = blk["dilation"]
        if blk["down"] is not None:
            wd, bd = blk["down"]
            res = ref_causal_conv(inp, wd, bd, 1)
        else:
            res = inp
        for (w, b) in blk["convs"]:
            h = jax.nn.relu(ref_causal_conv(h, w, b, d))
        h = jax.nn.relu(h + res)
    y = ref_causal_conv(h, params["last_w"], params["last_b"], 1)
    return jnp.transpose(y, (0, 2, 1))


def ref_mstcn_forward(params, x):
    out = ref_tcn_forward(params["stage1"], x)
    outputs = [out]
    for sp in params["stages"]:
        xs = jnp.transpose(out, (0, 2, 1))
        out = ref_tcn_forward(sp, xs)
        outputs.append(out)
    return outputs


# ----------------------------------------------------------------------------- #
# Deterministic parameter init (shapes implied by the PyTorch __init__)
# ----------------------------------------------------------------------------- #
def init_tcn_params(key, input_size, output_size, num_channels, kernel_size, num_of_convs):
    blocks = []
    for i, out_ch in enumerate(num_channels):
        in_ch = input_size if i == 0 else num_channels[i - 1]
        convs = []
        cin = in_ch
        for _ in range(num_of_convs):
            key, kw, kb = jax.random.split(key, 3)
            scale = 1.0 / math.sqrt(cin * kernel_size)
            w = scale * jax.random.normal(kw, (kernel_size, out_ch, cin), jnp.float32)
            b = 0.01 * jax.random.normal(kb, (out_ch, 1), jnp.float32)
            convs.append((w, b))
            cin = out_ch
        down = None
        if in_ch != out_ch:
            key, kw, kb = jax.random.split(key, 3)
            scale = 1.0 / math.sqrt(in_ch)
            wd = scale * jax.random.normal(kw, (1, out_ch, in_ch), jnp.float32)
            bd = 0.01 * jax.random.normal(kb, (out_ch, 1), jnp.float32)
            down = (wd, bd)
        blocks.append({"dilation": 2 ** i, "convs": convs, "down": down})
    key, kw, kb = jax.random.split(key, 3)
    cf = num_channels[-1]
    last_w = (1.0 / math.sqrt(cf)) * jax.random.normal(kw, (1, output_size, cf), jnp.float32)
    last_b = 0.01 * jax.random.normal(kb, (output_size, 1), jnp.float32)
    return {"blocks": blocks, "last_w": last_w, "last_b": last_b}, key


# ----------------------------------------------------------------------------- #
if __name__ == "__main__":
    # MS_TCN config (causal convs, residual blocks, linear last layer, 2 refinement stages)
    B, T = 2, 128
    INPUT_SIZE = 8
    OUTPUT_SIZE = 4
    FEATURES = [16, 16]          # list_of_features_sizes
    KSIZE = 3                    # kernel_size
    NUM_CONVS = 2                # num_of_convs
    NUM_STAGES = 2               # mstcn_num_stages
    MSTCN_FEATURES = [16, 16]    # mstcn_list_of_features_sizes
    MSTCN_KSIZE = 3              # mstcn_kernel_size
    MSTCN_NUM_CONVS = 2          # mstcn_num_of_convs

    key = jax.random.PRNGKey(0)
    key, kx = jax.random.split(key)
    x = jax.random.normal(kx, (B, INPUT_SIZE, T), jnp.float32)   # (B, C, T)

    stage1, key = init_tcn_params(key, INPUT_SIZE, OUTPUT_SIZE, FEATURES, KSIZE, NUM_CONVS)
    stages = []
    for _ in range(NUM_STAGES):
        p, key = init_tcn_params(key, OUTPUT_SIZE, OUTPUT_SIZE, MSTCN_FEATURES,
                                 MSTCN_KSIZE, MSTCN_NUM_CONVS)
        stages.append(p)
    params = {"stage1": stage1, "stages": stages}

    forward = build_fused_mstcn(params, B, T)       # weights packed once, VMEM-resident
    outs = forward(x)                               # list of (B, T, OUTPUT_SIZE), per stage
    outs = jax.block_until_ready(outs)

    # Reference runs f32/HIGHEST; kernel uses bf16 MXU operands with f32
    # accumulation (per perf review), hence the slightly looser tolerance.
    refs = ref_mstcn_forward(params, x)
    for o, r in zip(outs, refs):
        assert o.shape == (B, T, OUTPUT_SIZE)
        np.testing.assert_allclose(np.asarray(o), np.asarray(r), rtol=5e-2, atol=5e-2)

    print("KERNEL_OK")
</pallas_src>

<mosaic_0001>
module attributes {stable_mosaic.version = 11 : i64} {
  func.func @kernel(%arg0: memref<2x8x128xf32, #tpu.memory_space<vmem>>, %arg1: memref<18x3x16x16xbf16, #tpu.memory_space<vmem>>, %arg2: memref<18x16x1xf32, #tpu.memory_space<vmem>>, %arg3: memref<3x8x264xf32, #tpu.memory_space<vmem>>, %arg4: memref<16x392xf32, #tpu.memory_space<vmem>>, %arg5: memref<16x264xf32, #tpu.memory_space<vmem>>) attributes {dimension_semantics = [], scalar_prefetch = 0 : i64, scratch_operands = 2 : i64, tpu.core_type = #tpu.core_type<tc>} {
    %cst = arith.constant 0.000000e+00 : f32
    %0 = vector.broadcast %cst : f32 to vector<16x392xf32>
    %c0 = arith.constant 0 : index
    %c0_0 = arith.constant 0 : index
    %1 = vector.load %arg4[%c0, %c0_0] : memref<16x392xf32, #tpu.memory_space<vmem>>, vector<16x392xf32>
    tpu.vector_store %arg4[%c0, %c0_0], %0 {strides = array<i32>} : memref<16x392xf32, #tpu.memory_space<vmem>>, vector<16x392xf32>,
    %c0_1 = arith.constant 0 : index
    %c0_2 = arith.constant 0 : index
    %c0_3 = arith.constant 0 : index
    %2 = vector.load %arg0[%c0_1, %c0_2, %c0_3] : memref<2x8x128xf32, #tpu.memory_space<vmem>>, vector<1x8x128xf32>
    %3 = vector.shape_cast %2 : vector<1x8x128xf32> to vector<8x128xf32>
    %c0_4 = arith.constant 0 : index
    %c132 = arith.constant 132 : index
    %4 = vector.load %arg4[%c0_4, %c132] : memref<16x392xf32, #tpu.memory_space<vmem>>, vector<8x128xf32>
    tpu.vector_store %arg4[%c0_4, %c132], %3 {strides = array<i32>} : memref<16x392xf32, #tpu.memory_space<vmem>>, vector<8x128xf32>,
    %c1 = arith.constant 1 : index
    %c0_5 = arith.constant 0 : index
    %c0_6 = arith.constant 0 : index
    %5 = vector.load %arg0[%c1, %c0_5, %c0_6] : memref<2x8x128xf32, #tpu.memory_space<vmem>>, vector<1x8x128xf32>
    %6 = vector.shape_cast %5 : vector<1x8x128xf32> to vector<8x128xf32>
    %c0_7 = arith.constant 0 : index
    %c264 = arith.constant 264 : index
    %7 = vector.load %arg4[%c0_7, %c264] : memref<16x392xf32, #tpu.memory_space<vmem>>, vector<8x128xf32>
    tpu.vector_store %arg4[%c0_7, %c264], %6 {strides = array<i32>} : memref<16x392xf32, #tpu.memory_space<vmem>>, vector<8x128xf32>,
    %8 = tpu.iota {dimensions = array<i32: 1>} : vector<1x264xi32>
    %c132_i32 = arith.constant 132 : i32
    %c0_i32 = arith.constant 0 : i32
    %9 = arith.cmpi eq, %c132_i32, %c0_i32 : i32
    %c1_i32 = arith.constant 1 : i32
    %10 = arith.select %9, %c1_i32, %c132_i32 : i32
    %11 = vector.broadcast %10 : i32 to vector<1x264xi32>
    %12 = arith.remsi %8, %11 : vector<1x264xi32>
    %c0_i32_8 = arith.constant 0 : i32
    %13 = vector.broadcast %c0_i32_8 : i32 to vector<1x264xi32>
    %14 = arith.cmpi ne, %12, %13 : vector<1x264xi32>
    %c0_i32_9 = arith.constant 0 : i32
    %15 = vector.broadcast %c0_i32_9 : i32 to vector<1x264xi32>
    %16 = arith.cmpi slt, %12, %15 : vector<1x264xi32>
    %c0_i32_10 = arith.constant 0 : i32
    %17 = arith.cmpi slt, %10, %c0_i32_10 : i32
    %18 = vector.broadcast %17 : i1 to vector<1x264xi1>
    %19 = vector.broadcast %18 : vector<1x264xi1> to vector<1x264xi1>
    %20 = arith.xori %16, %19 : vector<1x264xi1>
    %21 = arith.andi %20, %14 : vector<1x264xi1>
    %22 = vector.broadcast %10 : i32 to vector<1x264xi32>
    %23 = arith.addi %12, %22 : vector<1x264xi32>
    %24 = arith.select %21, %23, %12 : vector<1x264xi1>, vector<1x264xi32>
    %c4_i32 = arith.constant 4 : i32
    %25 = vector.broadcast %c4_i32 : i32 to vector<1x264xi32>
    %26 = arith.cmpi sge, %24, %25 : vector<1x264xi32>
    %27 = arith.extui %26 : vector<1x264xi1> to vector<1x264xi32>
    %28 = arith.sitofp %27 : vector<1x264xi32> to vector<1x264xf32>
    %29 = vector.shape_cast %28 : vector<1x264xf32> to vector<1x264xf32>
    %30 = vector.broadcast %29 : vector<1x264xf32> to vector<16x264xf32>
    %c0_11 = arith.constant 0 : index
    %c2 = arith.constant 2 : index
    %c0_12 = arith.constant 0 : index
    %c0_13 = arith.constant 0 : index
    %31 = vector.load %arg1[%c0_11, %c2, %c0_12, %c0_13] : memref<18x3x16x16xbf16, #tpu.memory_space<vmem>>, vector<1x1x16x16xbf16>
    %32 = vector.shape_cast %31 : vector<1x1x16x16xbf16> to vector<16x16xbf16>
    %c0_14 = arith.constant 0 : index
    %c128 = arith.constant 128 : index
    %33 = vector.load %arg4[%c0_14, %c128] : memref<16x392xf32, #tpu.memory_space<vmem>>, vector<16x264xf32>
    %34 = arith.truncf %33 : vector<16x264xf32> to vector<16x264xbf16>
    %cst_15 = arith.constant dense<0.000000e+00> : vector<16x264xf32>
    %35 = tpu.matmul %32, %34, %cst_15 {dimension_numbers = #tpu.dot_dimension_numbers<[1], [0], [0], [1], [0, 0, 1, 1], [], []>} : vector<16x16xbf16>, vector<16x264xbf16>, vector<16x264xf32> -> vector<16x264xf32>
    %c0_16 = arith.constant 0 : index
    %c0_17 = arith.constant 0 : index
    %c0_18 = arith.constant 0 : index
    %36 = vector.load %arg2[%c0_16, %c0_17, %c0_18] : memref<18x16x1xf32, #tpu.memory_space<vmem>>, vector<1x16x1xf32>
    %37 = vector.shape_cast %36 : vector<1x16x1xf32> to vector<16x1xf32>
    %38 = vector.broadcast %37 : vector<16x1xf32> to vector<16x264xf32>
    %39 = arith.addf %35, %38 : vector<16x264xf32>
    %40 = arith.mulf %39, %30 : vector<16x264xf32>
    %c0_19 = arith.constant 0 : index
    %c0_20 = arith.constant 0 : index
    %41 = vector.load %arg5[%c0_19, %c0_20] : memref<16x264xf32, #tpu.memory_space<vmem>>, vector<16x264xf32>
    tpu.vector_store %arg5[%c0_19, %c0_20], %40 {strides = array<i32>} : memref<16x264xf32, #tpu.memory_space<vmem>>, vector<16x264xf32>,
    %c1_21 = arith.constant 1 : index
    %c0_22 = arith.constant 0 : index
    %c0_23 = arith.constant 0 : index
    %c0_24 = arith.constant 0 : index
    %42 = vector.load %arg1[%c1_21, %c0_22, %c0_23, %c0_24] : memref<18x3x16x16xbf16, #tpu.memory_space<vmem>>, vector<1x1x16x16xbf16>
    %43 = vector.shape_cast %42 : vector<1x1x16x16xbf16> to vector<16x16xbf16>
    %c0_25 = arith.constant 0 : index
    %c126 = arith.constant 126 : index
    %44 = vector.load %arg4[%c0_25, %c126] : memref<16x392xf32, #tpu.memory_space<vmem>>, vector<16x264xf32>
    %45 = arith.truncf %44 : vector<16x264xf32> to vector<16x264xbf16>
    %cst_26 = arith.constant dense<0.000000e+00> : vector<16x264xf32>
    %46 = tpu.matmul %43, %45, %cst_26 {dimension_numbers = #tpu.dot_dimension_numbers<[1], [0], [0], [1], [0, 0, 1, 1], [], []>} : vector<16x16xbf16>, vector<16x264xbf16>, vector<16x264xf32> -> vector<16x264xf32>
    %c1_27 = arith.constant 1 : index
    %c1_28 = arith.constant 1 : index
    %c0_29 = arith.constant 0 : index
    %c0_30 = arith.constant 0 : index
    %47 = vector.load %arg1[%c1_27, %c1_28, %c0_29, %c0_30] : memref<18x3x16x16xbf16, #tpu.memory_space<vmem>>, vector<1x1x16x16xbf16>
    %48 = vector.shape_cast %47 : vector<1x1x16x16xbf16> to vector<16x16xbf16>
    %c0_31 = arith.constant 0 : index
    %c127 = arith.constant 127 : index
    %49 = vector.load %arg4[%c0_31, %c127] : memref<16x392xf32, #tpu.memory_space<vmem>>, vector<16x264xf32>
    %50 = arith.truncf %49 : vector<16x264xf32> to vector<16x264xbf16>
    %cst_32 = arith.constant dense<0.000000e+00> : vector<16x264xf32>
    %51 = tpu.matmul %48, %50, %cst_32 {dimension_numbers = #tpu.dot_dimension_numbers<[1], [0], [0], [1], [0, 0, 1, 1], [], []>} : vector<16x16xbf16>, vector<16x264xbf16>, vector<16x264xf32> -> vector<16x264xf32>
    %52 = arith.addf %46, %51 : vector<16x264xf32>
    %c1_33 = arith.constant 1 : index
    %c2_34 = arith.constant 2 : index
    %c0_35 = arith.constant 0 : index
    %c0_36 = arith.constant 0 : index
    %53 = vector.load %arg1[%c1_33, %c2_34, %c0_35, %c0_36] : memref<18x3x16x16xbf16, #tpu.memory_space<vmem>>, vector<1x1x16x16xbf16>
    %54 = vector.shape_cast %53 : vector<1x1x16x16xbf16> to vector<16x16xbf16>
    %c0_37 = arith.constant 0 : index
    %c128_38 = arith.constant 128 : index
    %55 = vector.load %arg4[%c0_37, %c128_38] : memref<16x392xf32, #tpu.memory_space<vmem>>, vector<16x264xf32>
    %56 = arith.truncf %55 : vector<16x264xf32> to vector<16x264xbf16>
    %cst_39 = arith.constant dense<0.000000e+00> : vector<16x264xf32>
    %57 = tpu.matmul %54, %56, %cst_39 {dimension_numbers = #tpu.dot_dimension_numbers<[1], [0], [0], [1], [0, 0, 1, 1], [], []>} : vector<16x16xbf16>, vector<16x264xbf16>, vector<16x264xf32> -> vector<16x264xf32>
    %58 = arith.addf %52, %57 : vector<16x264xf32>
    %c1_40 = arith.constant 1 : index
    %c0_41 = arith.constant 0 : index
    %c0_42 = arith.constant 0 : index
    %59 = vector.load %arg2[%c1_40, %c0_41, %c0_42] : memref<18x16x1xf32, #tpu.memory_space<vmem>>, vector<1x16x1xf32>
    %60 = vector.shape_cast %59 : vector<1x16x1xf32> to vector<16x1xf32>
    %61 = vector.broadcast %60 : vector<16x1xf32> to vector<16x264xf32>
    %62 = arith.addf %58, %61 : vector<16x264xf32>
    %cst_43 = arith.constant 0.000000e+00 : f32
    %63 = vector.broadcast %cst_43 : f32 to vector<16x264xf32>
    %64 = arith.maximumf %62, %63 : vector<16x264xf32>
    %65 = arith.mulf %64, %30 : vector<16x264xf32>
    %c0_44 = arith.constant 0 : index
    %c128_45 = arith.constant 128 : index
    %66 = vector.load %arg4[%c0_44, %c128_45] : memref<16x392xf32, #tpu.memory_space<vmem>>, vector<16x264xf32>
    tpu.vector_store %arg4[%c0_44, %c128_45], %65 {strides = array<i32>} : memref<16x392xf32, #tpu.memory_space<vmem>>, vector<16x264xf32>,
    %c2_46 = arith.constant 2 : index
    %c0_47 = arith.constant 0 : index
    %c0_48 = arith.constant 0 : index
    %c0_49 = arith.constant 0 : index
    %67 = vector.load %arg1[%c2_46, %c0_47, %c0_48, %c0_49] : memref<18x3x16x16xbf16, #tpu.memory_space<vmem>>, vector<1x1x16x16xbf16>
    %68 = vector.shape_cast %67 : vector<1x1x16x16xbf16> to vector<16x16xbf16>
    %c0_50 = arith.constant 0 : index
    %c126_51 = arith.constant 126 : index
    %69 = vector.load %arg4[%c0_50, %c126_51] : memref<16x392xf32, #tpu.memory_space<vmem>>, vector<16x264xf32>
    %70 = arith.truncf %69 : vector<16x264xf32> to vector<16x264xbf16>
    %cst_52 = arith.constant dense<0.000000e+00> : vector<16x264xf32>
    %71 = tpu.matmul %68, %70, %cst_52 {dimension_numbers = #tpu.dot_dimension_numbers<[1], [0], [0], [1], [0, 0, 1, 1], [], []>} : vector<16x16xbf16>, vector<16x264xbf16>, vector<16x264xf32> -> vector<16x264xf32>
    %c2_53 = arith.constant 2 : index
    %c1_54 = arith.constant 1 : index
    %c0_55 = arith.constant 0 : index
    %c0_56 = arith.constant 0 : index
    %72 = vector.load %arg1[%c2_53, %c1_54, %c0_55, %c0_56] : memref<18x3x16x16xbf16, #tpu.memory_space<vmem>>, vector<1x1x16x16xbf16>
    %73 = vector.shape_cast %72 : vector<1x1x16x16xbf16> to vector<16x16xbf16>
    %c0_57 = arith.constant 0 : index
    %c127_58 = arith.constant 127 : index
    %74 = vector.load %arg4[%c0_57, %c127_58] : memref<16x392xf32, #tpu.memory_space<vmem>>, vector<16x264xf32>
    %75 = arith.truncf %74 : vector<16x264xf32> to vector<16x264xbf16>
    %cst_59 = arith.constant dense<0.000000e+00> : vector<16x264xf32>
    %76 = tpu.matmul %73, %75, %cst_59 {dimension_numbers = #tpu.dot_dimension_numbers<[1], [0], [0], [1], [0, 0, 1, 1], [], []>} : vector<16x16xbf16>, vector<16x264xbf16>, vector<16x264xf32> -> vector<16x264xf32>
    %77 = arith.addf %71, %76 : vector<16x264xf32>
    %c2_60 = arith.constant 2 : index
    %c2_61 = arith.constant 2 : index
    %c0_62 = arith.constant 0 : index
    %c0_63 = arith.constant 0 : index
    %78 = vector.load %arg1[%c2_60, %c2_61, %c0_62, %c0_63] : memref<18x3x16x16xbf16, #tpu.memory_space<vmem>>, vector<1x1x16x16xbf16>
    %79 = vector.shape_cast %78 : vector<1x1x16x16xbf16> to vector<16x16xbf16>
    %c0_64 = arith.constant 0 : index
    %c128_65 = arith.constant 128 : index
    %80 = vector.load %arg4[%c0_64, %c128_65] : memref<16x392xf32, #tpu.memory_space<vmem>>, vector<16x264xf32>
    %81 = arith.truncf %80 : vector<16x264xf32> to vector<16x264xbf16>
    %cst_66 = arith.constant dense<0.000000e+00> : vector<16x264xf32>
    %82 = tpu.matmul %79, %81, %cst_66 {dimension_numbers = #tpu.dot_dimension_numbers<[1], [0], [0], [1], [0, 0, 1, 1], [], []>} : vector<16x16xbf16>, vector<16x264xbf16>, vector<16x264xf32> -> vector<16x264xf32>
    %83 = arith.addf %77, %82 : vector<16x264xf32>
    %c2_67 = arith.constant 2 : index
    %c0_68 = arith.constant 0 : index
    %c0_69 = arith.constant 0 : index
    %84 = vector.load %arg2[%c2_67, %c0_68, %c0_69] : memref<18x16x1xf32, #tpu.memory_space<vmem>>, vector<1x16x1xf32>
    %85 = vector.shape_cast %84 : vector<1x16x1xf32> to vector<16x1xf32>
    %86 = vector.broadcast %85 : vector<16x1xf32> to vector<16x264xf32>
    %87 = arith.addf %83, %86 : vector<16x264xf32>
    %cst_70 = arith.constant 0.000000e+00 : f32
    %88 = vector.broadcast %cst_70 : f32 to vector<16x264xf32>
    %89 = arith.maximumf %87, %88 : vector<16x264xf32>
    %90 = arith.mulf %89, %30 : vector<16x264xf32>
    %c0_71 = arith.constant 0 : index
    %c0_72 = arith.constant 0 : index
    %91 = vector.load %arg5[%c0_71, %c0_72] : memref<16x264xf32, #tpu.memory_space<vmem>>, vector<16x264xf32>
    %92 = arith.addf %90, %91 : vector<16x264xf32>
    %cst_73 = arith.constant 0.000000e+00 : f32
    %93 = vector.broadcast %cst_73 : f32 to vector<16x264xf32>
    %94 = arith.maximumf %92, %93 : vector<16x264xf32>
    %c0_74 = arith.constant 0 : index
    %c128_75 = arith.constant 128 : index
    %95 = vector.load %arg4[%c0_74, %c128_75] : memref<16x392xf32, #tpu.memory_space<vmem>>, vector<16x264xf32>
    tpu.vector_store %arg4[%c0_74, %c128_75], %94 {strides = array<i32>} : memref<16x392xf32, #tpu.memory_space<vmem>>, vector<16x264xf32>,
    %c0_76 = arith.constant 0 : index
    %c128_77 = arith.constant 128 : index
    %96 = vector.load %arg4[%c0_76, %c128_77] : memref<16x392xf32, #tpu.memory_space<vmem>>, vector<16x264xf32>
    %c0_78 = arith.constant 0 : index
    %c0_79 = arith.constant 0 : index
    %97 = vector.load %arg5[%c0_78, %c0_79] : memref<16x264xf32, #tpu.memory_space<vmem>>, vector<16x264xf32>
    tpu.vector_store %arg5[%c0_78, %c0_79], %96 {strides = array<i32>} : memref<16x264xf32, #tpu.memory_space<vmem>>, vector<16x264xf32>,
    %c3 = arith.constant 3 : index
    %c0_80 = arith.constant 0 : index
    %c0_81 = arith.constant 0 : index
    %c0_82 = arith.constant 0 : index
    %98 = vector.load %arg1[%c3, %c0_80, %c0_81, %c0_82] : memref<18x3x16x16xbf16, #tpu.memory_space<vmem>>, vector<1x1x16x16xbf16>
    %99 = vector.shape_cast %98 : vector<1x1x16x16xbf16> to vector<16x16xbf16>
    %c0_83 = arith.constant 0 : index
    %c124 = arith.constant 124 : index
    %100 = vector.load %arg4[%c0_83, %c124] : memref<16x392xf32, #tpu.memory_space<vmem>>, vector<16x264xf32>
    %101 = arith.truncf %100 : vector<16x264xf32> to vector<16x264xbf16>
    %cst_84 = arith.constant dense<0.000000e+00> : vector<16x264xf32>
    %102 = tpu.matmul %99, %101, %cst_84 {dimension_numbers = #tpu.dot_dimension_numbers<[1], [0], [0], [1], [0, 0, 1, 1], [], []>} : vector<16x16xbf16>, vector<16x264xbf16>, vector<16x264xf32> -> vector<16x264xf32>
    %c3_85 = arith.constant 3 : index
    %c1_86 = arith.constant 1 : index
    %c0_87 = arith.constant 0 : index
    %c0_88 = arith.constant 0 : index
    %103 = vector.load %arg1[%c3_85, %c1_86, %c0_87, %c0_88] : memref<18x3x16x16xbf16, #tpu.memory_space<vmem>>, vector<1x1x16x16xbf16>
    %104 = vector.shape_cast %103 : vector<1x1x16x16xbf16> to vector<16x16xbf16>
    %c0_89 = arith.constant 0 : index
    %c126_90 = arith.constant 126 : index
    %105 = vector.load %arg4[%c0_89, %c126_90] : memref<16x392xf32, #tpu.memory_space<vmem>>, vector<16x264xf32>
    %106 = arith.truncf %105 : vector<16x264xf32> to vector<16x264xbf16>
    %cst_91 = arith.constant dense<0.000000e+00> : vector<16x264xf32>
    %107 = tpu.matmul %104, %106, %cst_91 {dimension_numbers = #tpu.dot_dimension_numbers<[1], [0], [0], [1], [0, 0, 1, 1], [], []>} : vector<16x16xbf16>, vector<16x264xbf16>, vector<16x264xf32> -> vector<16x264xf32>
    %108 = arith.addf %102, %107 : vector<16x264xf32>
    %c3_92 = arith.constant 3 : index
    %c2_93 = arith.constant 2 : index
    %c0_94 = arith.constant 0 : index
    %c0_95 = arith.constant 0 : index
    %109 = vector.load %arg1[%c3_92, %c2_93, %c0_94, %c0_95] : memref<18x3x16x16xbf16, #tpu.memory_space<vmem>>, vector<1x1x16x16xbf16>
    %110 = vector.shape_cast %109 : vector<1x1x16x16xbf16> to vector<16x16xbf16>
    %c0_96 = arith.constant 0 : index
    %c128_97 = arith.constant 128 : index
    %111 = vector.load %arg4[%c0_96, %c128_97] : memref<16x392xf32, #tpu.memory_space<vmem>>, vector<16x264xf32>
    %112 = arith.truncf %111 : vector<16x264xf32> to vector<16x264xbf16>
    %cst_98 = arith.constant dense<0.000000e+00> : vector<16x264xf32>
    %113 = tpu.matmul %110, %112, %cst_98 {dimension_numbers = #tpu.dot_dimension_numbers<[1], [0], [0], [1], [0, 0, 1, 1], [], []>} : vector<16x16xbf16>, vector<16x264xbf16>, vector<16x264xf32> -> vector<16x264xf32>
    %114 = arith.addf %108, %113 : vector<16x264xf32>
    %c3_99 = arith.constant 3 : index
    %c0_100 = arith.constant 0 : index
    %c0_101 = arith.constant 0 : index
    %115 = vector.load %arg2[%c3_99, %c0_100, %c0_101] : memref<18x16x1xf32, #tpu.memory_space<vmem>>, vector<1x16x1xf32>
    %116 = vector.shape_cast %115 : vector<1x16x1xf32> to vector<16x1xf32>
    %117 = vector.broadcast %116 : vector<16x1xf32> to vector<16x264xf32>
    %118 = arith.addf %114, %117 : vector<16x264xf32>
    %cst_102 = arith.constant 0.000000e+00 : f32
    %119 = vector.broadcast %cst_102 : f32 to vector<16x264xf32>
    %120 = arith.maximumf %118, %119 : vector<16x264xf32>
    %121 = arith.mulf %120, %30 : vector<16x264xf32>
    %c0_103 = arith.constant 0 : index
    %c128_104 = arith.constant 128 : index
    %122 = vector.load %arg4[%c0_103, %c128_104] : memref<16x392xf32, #tpu.memory_space<vmem>>, vector<16x264xf32>
    tpu.vector_store %arg4[%c0_103, %c128_104], %121 {strides = array<i32>} : memref<16x392xf32, #tpu.memory_space<vmem>>, vector<16x264xf32>,
    %c4 = arith.constant 4 : index
    %c0_105 = arith.constant 0 : index
    %c0_106 = arith.constant 0 : index
    %c0_107 = arith.constant 0 : index
    %123 = vector.load %arg1[%c4, %c0_105, %c0_106, %c0_107] : memref<18x3x16x16xbf16, #tpu.memory_space<vmem>>, vector<1x1x16x16xbf16>
    %124 = vector.shape_cast %123 : vector<1x1x16x16xbf16> to vector<16x16xbf16>
    %c0_108 = arith.constant 0 : index
    %c124_109 = arith.constant 124 : index
    %125 = vector.load %arg4[%c0_108, %c124_109] : memref<16x392xf32, #tpu.memory_space<vmem>>, vector<16x264xf32>
    %126 = arith.truncf %125 : vector<16x264xf32> to vector<16x264xbf16>
    %cst_110 = arith.constant dense<0.000000e+00> : vector<16x264xf32>
    %127 = tpu.matmul %124, %126, %cst_110 {dimension_numbers = #tpu.dot_dimension_numbers<[1], [0], [0], [1], [0, 0, 1, 1], [], []>} : vector<16x16xbf16>, vector<16x264xbf16>, vector<16x264xf32> -> vector<16x264xf32>
    %c4_111 = arith.constant 4 : index
    %c1_112 = arith.constant 1 : index
    %c0_113 = arith.constant 0 : index
    %c0_114 = arith.constant 0 : index
    %128 = vector.load %arg1[%c4_111, %c1_112, %c0_113, %c0_114] : memref<18x3x16x16xbf16, #tpu.memory_space<vmem>>, vector<1x1x16x16xbf16>
    %129 = vector.shape_cast %128 : vector<1x1x16x16xbf16> to vector<16x16xbf16>
    %c0_115 = arith.constant 0 : index
    %c126_116 = arith.constant 126 : index
    %130 = vector.load %arg4[%c0_115, %c126_116] : memref<16x392xf32, #tpu.memory_space<vmem>>, vector<16x264xf32>
    %131 = arith.truncf %130 : vector<16x264xf32> to vector<16x264xbf16>
    %cst_117 = arith.constant dense<0.000000e+00> : vector<16x264xf32>
    %132 = tpu.matmul %129, %131, %cst_117 {dimension_numbers = #tpu.dot_dimension_numbers<[1], [0], [0], [1], [0, 0, 1, 1], [], []>} : vector<16x16xbf16>, vector<16x264xbf16>, vector<16x264xf32> -> vector<16x264xf32>
    %133 = arith.addf %127, %132 : vector<16x264xf32>
    %c4_118 = arith.constant 4 : index
    %c2_119 = arith.constant 2 : index
    %c0_120 = arith.constant 0 : index
    %c0_121 = arith.constant 0 : index
    %134 = vector.load %arg1[%c4_118, %c2_119, %c0_120, %c0_121] : memref<18x3x16x16xbf16, #tpu.memory_space<vmem>>, vector<1x1x16x16xbf16>
    %135 = vector.shape_cast %134 : vector<1x1x16x16xbf16> to vector<16x16xbf16>
    %c0_122 = arith.constant 0 : index
    %c128_123 = arith.constant 128 : index
    %136 = vector.load %arg4[%c0_122, %c128_123] : memref<16x392xf32, #tpu.memory_space<vmem>>, vector<16x264xf32>
    %137 = arith.truncf %136 : vector<16x264xf32> to vector<16x264xbf16>
    %cst_124 = arith.constant dense<0.000000e+00> : vector<16x264xf32>
    %138 = tpu.matmul %135, %137, %cst_124 {dimension_numbers = #tpu.dot_dimension_numbers<[1], [0], [0], [1], [0, 0, 1, 1], [], []>} : vector<16x16xbf16>, vector<16x264xbf16>, vector<16x264xf32> -> vector<16x264xf32>
    %139 = arith.addf %133, %138 : vector<16x264xf32>
    %c4_125 = arith.constant 4 : index
    %c0_126 = arith.constant 0 : index
    %c0_127 = arith.constant 0 : index
    %140 = vector.load %arg2[%c4_125, %c0_126, %c0_127] : memref<18x16x1xf32, #tpu.memory_space<vmem>>, vector<1x16x1xf32>
    %141 = vector.shape_cast %140 : vector<1x16x1xf32> to vector<16x1xf32>
    %142 = vector.broadcast %141 : vector<16x1xf32> to vector<16x264xf32>
    %143 = arith.addf %139, %142 : vector<16x264xf32>
    %cst_128 = arith.constant 0.000000e+00 : f32
    %144 = vector.broadcast %cst_128 : f32 to vector<16x264xf32>
    %145 = arith.maximumf %143, %144 : vector<16x264xf32>
    %146 = arith.mulf %145, %30 : vector<16x264xf32>
    %c0_129 = arith.constant 0 : index
    %c0_130 = arith.constant 0 : index
    %147 = vector.load %arg5[%c0_129, %c0_130] : memref<16x264xf32, #tpu.memory_space<vmem>>, vector<16x264xf32>
    %148 = arith.addf %146, %147 : vector<16x264xf32>
    %cst_131 = arith.constant 0.000000e+00 : f32
    %149 = vector.broadcast %cst_131 : f32 to vector<16x264xf32>
    %150 = arith.maximumf %148, %149 : vector<16x264xf32>
    %c0_132 = arith.constant 0 : index
    %c128_133 = arith.constant 128 : index
    %151 = vector.load %arg4[%c0_132, %c128_133] : memref<16x392xf32, #tpu.memory_space<vmem>>, vector<16x264xf32>
    tpu.vector_store %arg4[%c0_132, %c128_133], %150 {strides = array<i32>} : memref<16x392xf32, #tpu.memory_space<vmem>>, vector<16x264xf32>,
    %c5 = arith.constant 5 : index
    %c2_134 = arith.constant 2 : index
    %c0_135 = arith.constant 0 : index
    %c0_136 = arith.constant 0 : index
    %152 = vector.load %arg1[%c5, %c2_134, %c0_135, %c0_136] : memref<18x3x16x16xbf16, #tpu.memory_space<vmem>>, vector<1x1x16x16xbf16>
    %153 = vector.shape_cast %152 : vector<1x1x16x16xbf16> to vector<16x16xbf16>
    %c0_137 = arith.constant 0 : index
    %c128_138 = arith.constant 128 : index
    %154 = vector.load %arg4[%c0_137, %c128_138] : memref<16x392xf32, #tpu.memory_space<vmem>>, vector<16x264xf32>
    %155 = arith.truncf %154 : vector<16x264xf32> to vector<16x264xbf16>
    %cst_139 = arith.constant dense<0.000000e+00> : vector<16x264xf32>
    %156 = tpu.matmul %153, %155, %cst_139 {dimension_numbers = #tpu.dot_dimension_numbers<[1], [0], [0], [1], [0, 0, 1, 1], [], []>} : vector<16x16xbf16>, vector<16x264xbf16>, vector<16x264xf32> -> vector<16x264xf32>
    %c5_140 = arith.constant 5 : index
    %c0_141 = arith.constant 0 : index
    %c0_142 = arith.constant 0 : index
    %157 = vector.load %arg2[%c5_140, %c0_141, %c0_142] : memref<18x16x1xf32, #tpu.memory_space<vmem>>, vector<1x16x1xf32>
    %158 = vector.shape_cast %157 : vector<1x16x1xf32> to vector<16x1xf32>
    %159 = vector.broadcast %158 : vector<16x1xf32> to vector<16x264xf32>
    %160 = arith.addf %156, %159 : vector<16x264xf32>
    %161 = arith.mulf %160, %30 : vector<16x264xf32>
    %162 = vector.extract_strided_slice %161 {offsets = [0, 0], sizes = [8, 264], strides = [1, 1]} : vector<16x264xf32> to vector<8x264xf32>
    %c0_143 = arith.constant 0 : index
    %c0_144 = arith.constant 0 : index
    %c0_145 = arith.constant 0 : index
    %163 = vector.load %arg3[%c0_143, %c0_144, %c0_145] : memref<3x8x264xf32, #tpu.memory_space<vmem>>, vector<1x8x264xf32>
    %164 = vector.shape_cast %163 : vector<1x8x264xf32> to vector<8x264xf32>
    %165 = vector.shape_cast %162 : vector<8x264xf32> to vector<1x8x264xf32>
    tpu.vector_store %arg3[%c0_143, %c0_144, %c0_145], %165 {strides = array<i32>} : memref<3x8x264xf32, #tpu.memory_space<vmem>>, vector<1x8x264xf32>,
    %c0_146 = arith.constant 0 : index
    %c128_147 = arith.constant 128 : index
    %166 = vector.load %arg4[%c0_146, %c128_147] : memref<16x392xf32, #tpu.memory_space<vmem>>, vector<16x264xf32>
    tpu.vector_store %arg4[%c0_146, %c128_147], %161 {strides = array<i32>} : memref<16x392xf32, #tpu.memory_space<vmem>>, vector<16x264xf32>,
    %c6 = arith.constant 6 : index
    %c2_148 = arith.constant 2 : index
    %c0_149 = arith.constant 0 : index
    %c0_150 = arith.constant 0 : index
    %167 = vector.load %arg1[%c6, %c2_148, %c0_149, %c0_150] : memref<18x3x16x16xbf16, #tpu.memory_space<vmem>>, vector<1x1x16x16xbf16>
    %168 = vector.shape_cast %167 : vector<1x1x16x16xbf16> to vector<16x16xbf16>
    %c0_151 = arith.constant 0 : index
    %c128_152 = arith.constant 128 : index
    %169 = vector.load %arg4[%c0_151, %c128_152] : memref<16x392xf32, #tpu.memory_space<vmem>>, vector<16x264xf32>
    %170 = arith.truncf %169 : vector<16x264xf32> to vector<16x264xbf16>
    %cst_153 = arith.constant dense<0.000000e+00> : vector<16x264xf32>
    %171 = tpu.matmul %168, %170, %cst_153 {dimension_numbers = #tpu.dot_dimension_numbers<[1], [0], [0], [1], [0, 0, 1, 1], [], []>} : vector<16x16xbf16>, vector<16x264xbf16>, vector<16x264xf32> -> vector<16x264xf32>
    %c6_154 = arith.constant 6 : index
    %c0_155 = arith.constant 0 : index
    %c0_156 = arith.constant 0 : index
    %172 = vector.load %arg2[%c6_154, %c0_155, %c0_156] : memref<18x16x1xf32, #tpu.memory_space<vmem>>, vector<1x16x1xf32>
    %173 = vector.shape_cast %172 : vector<1x16x1xf32> to vector<16x1xf32>
    %174 = vector.broadcast %173 : vector<16x1xf32> to vector<16x264xf32>
    %175 = arith.addf %171, %174 : vector<16x264xf32>
    %176 = arith.mulf %175, %30 : vector<16x264xf32>
    %c0_157 = arith.constant 0 : index
    %c0_158 = arith.constant 0 : index
    %177 = vector.load %arg5[%c0_157, %c0_158] : memref<16x264xf32, #tpu.memory_space<vmem>>, vector<16x264xf32>
    tpu.vector_store %arg5[%c0_157, %c0_158], %176 {strides = array<i32>} : memref<16x264xf32, #tpu.memory_space<vmem>>, vector<16x264xf32>,
    %c7 = arith.constant 7 : index
    %c0_159 = arith.constant 0 : index
    %c0_160 = arith.constant 0 : index
    %c0_161 = arith.constant 0 : index
    %178 = vector.load %arg1[%c7, %c0_159, %c0_160, %c0_161] : memref<18x3x16x16xbf16, #tpu.memory_space<vmem>>, vector<1x1x16x16xbf16>
    %179 = vector.shape_cast %178 : vector<1x1x16x16xbf16> to vector<16x16xbf16>
    %c0_162 = arith.constant 0 : index
    %c126_163 = arith.constant 126 : index
    %180 = vector.load %arg4[%c0_162, %c126_163] : memref<16x392xf32, #tpu.memory_space<vmem>>, vector<16x264xf32>
    %181 = arith.truncf %180 : vector<16x264xf32> to vector<16x264xbf16>
    %cst_164 = arith.constant dense<0.000000e+00> : vector<16x264xf32>
    %182 = tpu.matmul %179, %181, %cst_164 {dimension_numbers = #tpu.dot_dimension_numbers<[1], [0], [0], [1], [0, 0, 1, 1], [], []>} : vector<16x16xbf16>, vector<16x264xbf16>, vector<16x264xf32> -> vector<16x264xf32>
    %c7_165 = arith.constant 7 : index
    %c1_166 = arith.constant 1 : index
    %c0_167 = arith.constant 0 : index
    %c0_168 = arith.constant 0 : index
    %183 = vector.load %arg1[%c7_165, %c1_166, %c0_167, %c0_168] : memref<18x3x16x16xbf16, #tpu.memory_space<vmem>>, vector<1x1x16x16xbf16>
    %184 = vector.shape_cast %183 : vector<1x1x16x16xbf16> to vector<16x16xbf16>
    %c0_169 = arith.constant 0 : index
    %c127_170 = arith.constant 127 : index
    %185 = vector.load %arg4[%c0_169, %c127_170] : memref<16x392xf32, #tpu.memory_space<vmem>>, vector<16x264xf32>
    %186 = arith.truncf %185 : vector<16x264xf32> to vector<16x264xbf16>
    %cst_171 = arith.constant dense<0.000000e+00> : vector<16x264xf32>
    %187 = tpu.matmul %184, %186, %cst_171 {dimension_numbers = #tpu.dot_dimension_numbers<[1], [0], [0], [1], [0, 0, 1, 1], [], []>} : vector<16x16xbf16>, vector<16x264xbf16>, vector<16x264xf32> -> vector<16x264xf32>
    %188 = arith.addf %182, %187 : vector<16x264xf32>
    %c7_172 = arith.constant 7 : index
    %c2_173 = arith.constant 2 : index
    %c0_174 = arith.constant 0 : index
    %c0_175 = arith.constant 0 : index
    %189 = vector.load %arg1[%c7_172, %c2_173, %c0_174, %c0_175] : memref<18x3x16x16xbf16, #tpu.memory_space<vmem>>, vector<1x1x16x16xbf16>
    %190 = vector.shape_cast %189 : vector<1x1x16x16xbf16> to vector<16x16xbf16>
    %c0_176 = arith.constant 0 : index
    %c128_177 = arith.constant 128 : index
    %191 = vector.load %arg4[%c0_176, %c128_177] : memref<16x392xf32, #tpu.memory_space<vmem>>, vector<16x264xf32>
    %192 = arith.truncf %191 : vector<16x264xf32> to vector<16x264xbf16>
    %cst_178 = arith.constant dense<0.000000e+00> : vector<16x264xf32>
    %193 = tpu.matmul %190, %192, %cst_178 {dimension_numbers = #tpu.dot_dimension_numbers<[1], [0], [0], [1], [0, 0, 1, 1], [], []>} : vector<16x16xbf16>, vector<16x264xbf16>, vector<16x264xf32> -> vector<16x264xf32>
    %194 = arith.addf %188, %193 : vector<16x264xf32>
    %c7_179 = arith.constant 7 : index
    %c0_180 = arith.constant 0 : index
    %c0_181 = arith.constant 0 : index
    %195 = vector.load %arg2[%c7_179, %c0_180, %c0_181] : memref<18x16x1xf32, #tpu.memory_space<vmem>>, vector<1x16x1xf32>
    %196 = vector.shape_cast %195 : vector<1x16x1xf32> to vector<16x1xf32>
    %197 = vector.broadcast %196 : vector<16x1xf32> to vector<16x264xf32>
    %198 = arith.addf %194, %197 : vector<16x264xf32>
    %cst_182 = arith.constant 0.000000e+00 : f32
    %199 = vector.broadcast %cst_182 : f32 to vector<16x264xf32>
    %200 = arith.maximumf %198, %199 : vector<16x264xf32>
    %201 = arith.mulf %200, %30 : vector<16x264xf32>
    %c0_183 = arith.constant 0 : index
    %c128_184 = arith.constant 128 : index
    %202 = vector.load %arg4[%c0_183, %c128_184] : memref<16x392xf32, #tpu.memory_space<vmem>>, vector<16x264xf32>
    tpu.vector_store %arg4[%c0_183, %c128_184], %201 {strides = array<i32>} : memref<16x392xf32, #tpu.memory_space<vmem>>, vector<16x264xf32>,
    %c8 = arith.constant 8 : index
    %c0_185 = arith.constant 0 : index
    %c0_186 = arith.constant 0 : index
    %c0_187 = arith.constant 0 : index
    %203 = vector.load %arg1[%c8, %c0_185, %c0_186, %c0_187] : memref<18x3x16x16xbf16, #tpu.memory_space<vmem>>, vector<1x1x16x16xbf16>
    %204 = vector.shape_cast %203 : vector<1x1x16x16xbf16> to vector<16x16xbf16>
    %c0_188 = arith.constant 0 : index
    %c126_189 = arith.constant 126 : index
    %205 = vector.load %arg4[%c0_188, %c126_189] : memref<16x392xf32, #tpu.memory_space<vmem>>, vector<16x264xf32>
    %206 = arith.truncf %205 : vector<16x264xf32> to vector<16x264xbf16>
    %cst_190 = arith.constant dense<0.000000e+00> : vector<16x264xf32>
    %207 = tpu.matmul %204, %206, %cst_190 {dimension_numbers = #tpu.dot_dimension_numbers<[1], [0], [0], [1], [0, 0, 1, 1], [], []>} : vector<16x16xbf16>, vector<16x264xbf16>, vector<16x264xf32> -> vector<16x264xf32>
    %c8_191 = arith.constant 8 : index
    %c1_192 = arith.constant 1 : index
    %c0_193 = arith.constant 0 : index
    %c0_194 = arith.constant 0 : index
    %208 = vector.load %arg1[%c8_191, %c1_192, %c0_193, %c0_194] : memref<18x3x16x16xbf16, #tpu.memory_space<vmem>>, vector<1x1x16x16xbf16>
    %209 = vector.shape_cast %208 : vector<1x1x16x16xbf16> to vector<16x16xbf16>
    %c0_195 = arith.constant 0 : index
    %c127_196 = arith.constant 127 : index
    %210 = vector.load %arg4[%c0_195, %c127_196] : memref<16x392xf32, #tpu.memory_space<vmem>>, vector<16x264xf32>
    %211 = arith.truncf %210 : vector<16x264xf32> to vector<16x264xbf16>
    %cst_197 = arith.constant dense<0.000000e+00> : vector<16x264xf32>
    %212 = tpu.matmul %209, %211, %cst_197 {dimension_numbers = #tpu.dot_dimension_numbers<[1], [0], [0], [1], [0, 0, 1, 1], [], []>} : vector<16x16xbf16>, vector<16x264xbf16>, vector<16x264xf32> -> vector<16x264xf32>
    %213 = arith.addf %207, %212 : vector<16x264xf32>
    %c8_198 = arith.constant 8 : index
    %c2_199 = arith.constant 2 : index
    %c0_200 = arith.constant 0 : index
    %c0_201 = arith.constant 0 : index
    %214 = vector.load %arg1[%c8_198, %c2_199, %c0_200, %c0_201] : memref<18x3x16x16xbf16, #tpu.memory_space<vmem>>, vector<1x1x16x16xbf16>
    %215 = vector.shape_cast %214 : vector<1x1x16x16xbf16> to vector<16x16xbf16>
    %c0_202 = arith.constant 0 : index
    %c128_203 = arith.constant 128 : index
    %216 = vector.load %arg4[%c0_202, %c128_203] : memref<16x392xf32, #tpu.memory_space<vmem>>, vector<16x264xf32>
    %217 = arith.truncf %216 : vector<16x264xf32> to vector<16x264xbf16>
    %cst_204 = arith.constant dense<0.000000e+00> : vector<16x264xf32>
    %218 = tpu.matmul %215, %217, %cst_204 {dimension_numbers = #tpu.dot_dimension_numbers<[1], [0], [0], [1], [0, 0, 1, 1], [], []>} : vector<16x16xbf16>, vector<16x264xbf16>, vector<16x264xf32> -> vector<16x264xf32>
    %219 = arith.addf %213, %218 : vector<16x264xf32>
    %c8_205 = arith.constant 8 : index
    %c0_206 = arith.constant 0 : index
    %c0_207 = arith.constant 0 : index
    %220 = vector.load %arg2[%c8_205, %c0_206, %c0_207] : memref<18x16x1xf32, #tpu.memory_space<vmem>>, vector<1x16x1xf32>
    %221 = vector.shape_cast %220 : vector<1x16x1xf32> to vector<16x1xf32>
    %222 = vector.broadcast %221 : vector<16x1xf32> to vector<16x264xf32>
    %223 = arith.addf %219, %222 : vector<16x264xf32>
    %cst_208 = arith.constant 0.000000e+00 : f32
    %224 = vector.broadcast %cst_208 : f32 to vector<16x264xf32>
    %225 = arith.maximumf %223, %224 : vector<16x264xf32>
    %226 = arith.mulf %225, %30 : vector<16x264xf32>
    %c0_209 = arith.constant 0 : index
    %c0_210 = arith.constant 0 : index
    %227 = vector.load %arg5[%c0_209, %c0_210] : memref<16x264xf32, #tpu.memory_space<vmem>>, vector<16x264xf32>
    %228 = arith.addf %226, %227 : vector<16x264xf32>
    %cst_211 = arith.constant 0.000000e+00 : f32
    %229 = vector.broadcast %cst_211 : f32 to vector<16x264xf32>
    %230 = arith.maximumf %228, %229 : vector<16x264xf32>
    %c0_212 = arith.constant 0 : index
    %c128_213 = arith.constant 128 : index
    %231 = vector.load %arg4[%c0_212, %c128_213] : memref<16x392xf32, #tpu.memory_space<vmem>>, vector<16x264xf32>
    tpu.vector_store %arg4[%c0_212, %c128_213], %230 {strides = array<i32>} : memref<16x392xf32, #tpu.memory_space<vmem>>, vector<16x264xf32>,
    %c0_214 = arith.constant 0 : index
    %c128_215 = arith.constant 128 : index
    %232 = vector.load %arg4[%c0_214, %c128_215] : memref<16x392xf32, #tpu.memory_space<vmem>>, vector<16x264xf32>
    %c0_216 = arith.constant 0 : index
    %c0_217 = arith.constant 0 : index
    %233 = vector.load %arg5[%c0_216, %c0_217] : memref<16x264xf32, #tpu.memory_space<vmem>>, vector<16x264xf32>
    tpu.vector_store %arg5[%c0_216, %c0_217], %232 {strides = array<i32>} : memref<16x264xf32, #tpu.memory_space<vmem>>, vector<16x264xf32>,
    %c9 = arith.constant 9 : index
    %c0_218 = arith.constant 0 : index
    %c0_219 = arith.constant 0 : index
    %c0_220 = arith.constant 0 : index
    %234 = vector.load %arg1[%c9, %c0_218, %c0_219, %c0_220] : memref<18x3x16x16xbf16, #tpu.memory_space<vmem>>, vector<1x1x16x16xbf16>
    %235 = vector.shape_cast %234 : vector<1x1x16x16xbf16> to vector<16x16xbf16>
    %c0_221 = arith.constant 0 : index
    %c124_222 = arith.constant 124 : index
    %236 = vector.load %arg4[%c0_221, %c124_222] : memref<16x392xf32, #tpu.memory_space<vmem>>, vector<16x264xf32>
    %237 = arith.truncf %236 : vector<16x264xf32> to vector<16x264xbf16>
    %cst_223 = arith.constant dense<0.000000e+00> : vector<16x264xf32>
    %238 = tpu.matmul %235, %237, %cst_223 {dimension_numbers = #tpu.dot_dimension_numbers<[1], [0], [0], [1], [0, 0, 1, 1], [], []>} : vector<16x16xbf16>, vector<16x264xbf16>, vector<16x264xf32> -> vector<16x264xf32>
    %c9_224 = arith.constant 9 : index
    %c1_225 = arith.constant 1 : index
    %c0_226 = arith.constant 0 : index
    %c0_227 = arith.constant 0 : index
    %239 = vector.load %arg1[%c9_224, %c1_225, %c0_226, %c0_227] : memref<18x3x16x16xbf16, #tpu.memory_space<vmem>>, vector<1x1x16x16xbf16>
    %240 = vector.shape_cast %239 : vector<1x1x16x16xbf16> to vector<16x16xbf16>
    %c0_228 = arith.constant 0 : index
    %c126_229 = arith.constant 126 : index
    %241 = vector.load %arg4[%c0_228, %c126_229] : memref<16x392xf32, #tpu.memory_space<vmem>>, vector<16x264xf32>
    %242 = arith.truncf %241 : vector<16x264xf32> to vector<16x264xbf16>
    %cst_230 = arith.constant dense<0.000000e+00> : vector<16x264xf32>
    %243 = tpu.matmul %240, %242, %cst_230 {dimension_numbers = #tpu.dot_dimension_numbers<[1], [0], [0], [1], [0, 0, 1, 1], [], []>} : vector<16x16xbf16>, vector<16x264xbf16>, vector<16x264xf32> -> vector<16x264xf32>
    %244 = arith.addf %238, %243 : vector<16x264xf32>
    %c9_231 = arith.constant 9 : index
    %c2_232 = arith.constant 2 : index
    %c0_233 = arith.constant 0 : index
    %c0_234 = arith.constant 0 : index
    %245 = vector.load %arg1[%c9_231, %c2_232, %c0_233, %c0_234] : memref<18x3x16x16xbf16, #tpu.memory_space<vmem>>, vector<1x1x16x16xbf16>
    %246 = vector.shape_cast %245 : vector<1x1x16x16xbf16> to vector<16x16xbf16>
    %c0_235 = arith.constant 0 : index
    %c128_236 = arith.constant 128 : index
    %247 = vector.load %arg4[%c0_235, %c128_236] : memref<16x392xf32, #tpu.memory_space<vmem>>, vector<16x264xf32>
    %248 = arith.truncf %247 : vector<16x264xf32> to vector<16x264xbf16>
    %cst_237 = arith.constant dense<0.000000e+00> : vector<16x264xf32>
    %249 = tpu.matmul %246, %248, %cst_237 {dimension_numbers = #tpu.dot_dimension_numbers<[1], [0], [0], [1], [0, 0, 1, 1], [], []>} : vector<16x16xbf16>, vector<16x264xbf16>, vector<16x264xf32> -> vector<16x264xf32>
    %250 = arith.addf %244, %249 : vector<16x264xf32>
    %c9_238 = arith.constant 9 : index
    %c0_239 = arith.constant 0 : index
    %c0_240 = arith.constant 0 : index
    %251 = vector.load %arg2[%c9_238, %c0_239, %c0_240] : memref<18x16x1xf32, #tpu.memory_space<vmem>>, vector<1x16x1xf32>
    %252 = vector.shape_cast %251 : vector<1x16x1xf32> to vector<16x1xf32>
    %253 = vector.broadcast %252 : vector<16x1xf32> to vector<16x264xf32>
    %254 = arith.addf %250, %253 : vector<16x264xf32>
    %cst_241 = arith.constant 0.000000e+00 : f32
    %255 = vector.broadcast %cst_241 : f32 to vector<16x264xf32>
    %256 = arith.maximumf %254, %255 : vector<16x264xf32>
    %257 = arith.mulf %256, %30 : vector<16x264xf32>
    %c0_242 = arith.constant 0 : index
    %c128_243 = arith.constant 128 : index
    %258 = vector.load %arg4[%c0_242, %c128_243] : memref<16x392xf32, #tpu.memory_space<vmem>>, vector<16x264xf32>
    tpu.vector_store %arg4[%c0_242, %c128_243], %257 {strides = array<i32>} : memref<16x392xf32, #tpu.memory_space<vmem>>, vector<16x264xf32>,
    %c10 = arith.constant 10 : index
    %c0_244 = arith.constant 0 : index
    %c0_245 = arith.constant 0 : index
    %c0_246 = arith.constant 0 : index
    %259 = vector.load %arg1[%c10, %c0_244, %c0_245, %c0_246] : memref<18x3x16x16xbf16, #tpu.memory_space<vmem>>, vector<1x1x16x16xbf16>
    %260 = vector.shape_cast %259 : vector<1x1x16x16xbf16> to vector<16x16xbf16>
    %c0_247 = arith.constant 0 : index
    %c124_248 = arith.constant 124 : index
    %261 = vector.load %arg4[%c0_247, %c124_248] : memref<16x392xf32, #tpu.memory_space<vmem>>, vector<16x264xf32>
    %262 = arith.truncf %261 : vector<16x264xf32> to vector<16x264xbf16>
    %cst_249 = arith.constant dense<0.000000e+00> : vector<16x264xf32>
    %263 = tpu.matmul %260, %262, %cst_249 {dimension_numbers = #tpu.dot_dimension_numbers<[1], [0], [0], [1], [0, 0, 1, 1], [], []>} : vector<16x16xbf16>, vector<16x264xbf16>, vector<16x264xf32> -> vector<16x264xf32>
    %c10_250 = arith.constant 10 : index
    %c1_251 = arith.constant 1 : index
    %c0_252 = arith.constant 0 : index
    %c0_253 = arith.constant 0 : index
    %264 = vector.load %arg1[%c10_250, %c1_251, %c0_252, %c0_253] : memref<18x3x16x16xbf16, #tpu.memory_space<vmem>>, vector<1x1x16x16xbf16>
    %265 = vector.shape_cast %264 : vector<1x1x16x16xbf16> to vector<16x16xbf16>
    %c0_254 = arith.constant 0 : index
    %c126_255 = arith.constant 126 : index
    %266 = vector.load %arg4[%c0_254, %c126_255] : memref<16x392xf32, #tpu.memory_space<vmem>>, vector<16x264xf32>
    %267 = arith.truncf %266 : vector<16x264xf32> to vector<16x264xbf16>
    %cst_256 = arith.constant dense<0.000000e+00> : vector<16x264xf32>
    %268 = tpu.matmul %265, %267, %cst_256 {dimension_numbers = #tpu.dot_dimension_numbers<[1], [0], [0], [1], [0, 0, 1, 1], [], []>} : vector<16x16xbf16>, vector<16x264xbf16>, vector<16x264xf32> -> vector<16x264xf32>
    %269 = arith.addf %263, %268 : vector<16x264xf32>
    %c10_257 = arith.constant 10 : index
    %c2_258 = arith.constant 2 : index
    %c0_259 = arith.constant 0 : index
    %c0_260 = arith.constant 0 : index
    %270 = vector.load %arg1[%c10_257, %c2_258, %c0_259, %c0_260] : memref<18x3x16x16xbf16, #tpu.memory_space<vmem>>, vector<1x1x16x16xbf16>
    %271 = vector.shape_cast %270 : vector<1x1x16x16xbf16> to vector<16x16xbf16>
    %c0_261 = arith.constant 0 : index
    %c128_262 = arith.constant 128 : index
    %272 = vector.load %arg4[%c0_261, %c128_262] : memref<16x392xf32, #tpu.memory_space<vmem>>, vector<16x264xf32>
    %273 = arith.truncf %272 : vector<16x264xf32> to vector<16x264xbf16>
    %cst_263 = arith.constant dense<0.000000e+00> : vector<16x264xf32>
    %274 = tpu.matmul %271, %273, %cst_263 {dimension_numbers = #tpu.dot_dimension_numbers<[1], [0], [0], [1], [0, 0, 1, 1], [], []>} : vector<16x16xbf16>, vector<16x264xbf16>, vector<16x264xf32> -> vector<16x264xf32>
    %275 = arith.addf %269, %274 : vector<16x264xf32>
    %c10_264 = arith.constant 10 : index
    %c0_265 = arith.constant 0 : index
    %c0_266 = arith.constant 0 : index
    %276 = vector.load %arg2[%c10_264, %c0_265, %c0_266] : memref<18x16x1xf32, #tpu.memory_space<vmem>>, vector<1x16x1xf32>
    %277 = vector.shape_cast %276 : vector<1x16x1xf32> to vector<16x1xf32>
    %278 = vector.broadcast %277 : vector<16x1xf32> to vector<16x264xf32>
    %279 = arith.addf %275, %278 : vector<16x264xf32>
    %cst_267 = arith.constant 0.000000e+00 : f32
    %280 = vector.broadcast %cst_267 : f32 to vector<16x264xf32>
    %281 = arith.maximumf %279, %280 : vector<16x264xf32>
    %282 = arith.mulf %281, %30 : vector<16x264xf32>
    %c0_268 = arith.constant 0 : index
    %c0_269 = arith.constant 0 : index
    %283 = vector.load %arg5[%c0_268, %c0_269] : memref<16x264xf32, #tpu.memory_space<vmem>>, vector<16x264xf32>
    %284 = arith.addf %282, %283 : vector<16x264xf32>
    %cst_270 = arith.constant 0.000000e+00 : f32
    %285 = vector.broadcast %cst_270 : f32 to vector<16x264xf32>
    %286 = arith.maximumf %284, %285 : vector<16x264xf32>
    %c0_271 = arith.constant 0 : index
    %c128_272 = arith.constant 128 : index
    %287 = vector.load %arg4[%c0_271, %c128_272] : memref<16x392xf32, #tpu.memory_space<vmem>>, vector<16x264xf32>
    tpu.vector_store %arg4[%c0_271, %c128_272], %286 {strides = array<i32>} : memref<16x392xf32, #tpu.memory_space<vmem>>, vector<16x264xf32>,
    %c11 = arith.constant 11 : index
    %c2_273 = arith.constant 2 : index
    %c0_274 = arith.constant 0 : index
    %c0_275 = arith.constant 0 : index
    %288 = vector.load %arg1[%c11, %c2_273, %c0_274, %c0_275] : memref<18x3x16x16xbf16, #tpu.memory_space<vmem>>, vector<1x1x16x16xbf16>
    %289 = vector.shape_cast %288 : vector<1x1x16x16xbf16> to vector<16x16xbf16>
    %c0_276 = arith.constant 0 : index
    %c128_277 = arith.constant 128 : index
    %290 = vector.load %arg4[%c0_276, %c128_277] : memref<16x392xf32, #tpu.memory_space<vmem>>, vector<16x264xf32>
    %291 = arith.truncf %290 : vector<16x264xf32> to vector<16x264xbf16>
    %cst_278 = arith.constant dense<0.000000e+00> : vector<16x264xf32>
    %292 = tpu.matmul %289, %291, %cst_278 {dimension_numbers = #tpu.dot_dimension_numbers<[1], [0], [0], [1], [0, 0, 1, 1], [], []>} : vector<16x16xbf16>, vector<16x264xbf16>, vector<16x264xf32> -> vector<16x264xf32>
    %c11_279 = arith.constant 11 : index
    %c0_280 = arith.constant 0 : index
    %c0_281 = arith.constant 0 : index
    %293 = vector.load %arg2[%c11_279, %c0_280, %c0_281] : memref<18x16x1xf32, #tpu.memory_space<vmem>>, vector<1x16x1xf32>
    %294 = vector.shape_cast %293 : vector<1x16x1xf32> to vector<16x1xf32>
    %295 = vector.broadcast %294 : vector<16x1xf32> to vector<16x264xf32>
    %296 = arith.addf %292, %295 : vector<16x264xf32>
    %297 = arith.mulf %296, %30 : vector<16x264xf32>
    %298 = vector.extract_strided_slice %297 {offsets = [0, 0], sizes = [8, 264], strides = [1, 1]} : vector<16x264xf32> to vector<8x264xf32>
    %c1_282 = arith.constant 1 : index
    %c0_283 = arith.constant 0 : index
    %c0_284 = arith.constant 0 : index
    %299 = vector.load %arg3[%c1_282, %c0_283, %c0_284] : memref<3x8x264xf32, #tpu.memory_space<vmem>>, vector<1x8x264xf32>
    %300 = vector.shape_cast %299 : vector<1x8x264xf32> to vector<8x264xf32>
    %301 = vector.shape_cast %298 : vector<8x264xf32> to vector<1x8x264xf32>
    tpu.vector_store %arg3[%c1_282, %c0_283, %c0_284], %301 {strides = array<i32>} : memref<3x8x264xf32, #tpu.memory_space<vmem>>, vector<1x8x264xf32>,
    %c0_285 = arith.constant 0 : index
    %c128_286 = arith.constant 128 : index
    %302 = vector.load %arg4[%c0_285, %c128_286] : memref<16x392xf32, #tpu.memory_space<vmem>>, vector<16x264xf32>
    tpu.vector_store %arg4[%c0_285, %c128_286], %297 {strides = array<i32>} : memref<16x392xf32, #tpu.memory_space<vmem>>, vector<16x264xf32>,
    %c12 = arith.constant 12 : index
    %c2_287 = arith.constant 2 : index
    %c0_288 = arith.constant 0 : index
    %c0_289 = arith.constant 0 : index
    %303 = vector.load %arg1[%c12, %c2_287, %c0_288, %c0_289] : memref<18x3x16x16xbf16, #tpu.memory_space<vmem>>, vector<1x1x16x16xbf16>
    %304 = vector.shape_cast %303 : vector<1x1x16x16xbf16> to vector<16x16xbf16>
    %c0_290 = arith.constant 0 : index
    %c128_291 = arith.constant 128 : index
    %305 = vector.load %arg4[%c0_290, %c128_291] : memref<16x392xf32, #tpu.memory_space<vmem>>, vector<16x264xf32>
    %306 = arith.truncf %305 : vector<16x264xf32> to vector<16x264xbf16>
    %cst_292 = arith.constant dense<0.000000e+00> : vector<16x264xf32>
    %307 = tpu.matmul %304, %306, %cst_292 {dimension_numbers = #tpu.dot_dimension_numbers<[1], [0], [0], [1], [0, 0, 1, 1], [], []>} : vector<16x16xbf16>, vector<16x264xbf16>, vector<16x264xf32> -> vector<16x264xf32>
    %c12_293 = arith.constant 12 : index
    %c0_294 = arith.constant 0 : index
    %c0_295 = arith.constant 0 : index
    %308 = vector.load %arg2[%c12_293, %c0_294, %c0_295] : memref<18x16x1xf32, #tpu.memory_space<vmem>>, vector<1x16x1xf32>
    %309 = vector.shape_cast %308 : vector<1x16x1xf32> to vector<16x1xf32>
    %310 = vector.broadcast %309 : vector<16x1xf32> to vector<16x264xf32>
    %311 = arith.addf %307, %310 : vector<16x264xf32>
    %312 = arith.mulf %311, %30 : vector<16x264xf32>
    %c0_296 = arith.constant 0 : index
    %c0_297 = arith.constant 0 : index
    %313 = vector.load %arg5[%c0_296, %c0_297] : memref<16x264xf32, #tpu.memory_space<vmem>>, vector<16x264xf32>
    tpu.vector_store %arg5[%c0_296, %c0_297], %312 {strides = array<i32>} : memref<16x264xf32, #tpu.memory_space<vmem>>, vector<16x264xf32>,
    %c13 = arith.constant 13 : index
    %c0_298 = arith.constant 0 : index
    %c0_299 = arith.constant 0 : index
    %c0_300 = arith.constant 0 : index
    %314 = vector.load %arg1[%c13, %c0_298, %c0_299, %c0_300] : memref<18x3x16x16xbf16, #tpu.memory_space<vmem>>, vector<1x1x16x16xbf16>
    %315 = vector.shape_cast %314 : vector<1x1x16x16xbf16> to vector<16x16xbf16>
    %c0_301 = arith.constant 0 : index
    %c126_302 = arith.constant 126 : index
    %316 = vector.load %arg4[%c0_301, %c126_302] : memref<16x392xf32, #tpu.memory_space<vmem>>, vector<16x264xf32>
    %317 = arith.truncf %316 : vector<16x264xf32> to vector<16x264xbf16>
    %cst_303 = arith.constant dense<0.000000e+00> : vector<16x264xf32>
    %318 = tpu.matmul %315, %317, %cst_303 {dimension_numbers = #tpu.dot_dimension_numbers<[1], [0], [0], [1], [0, 0, 1, 1], [], []>} : vector<16x16xbf16>, vector<16x264xbf16>, vector<16x264xf32> -> vector<16x264xf32>
    %c13_304 = arith.constant 13 : index
    %c1_305 = arith.constant 1 : index
    %c0_306 = arith.constant 0 : index
    %c0_307 = arith.constant 0 : index
    %319 = vector.load %arg1[%c13_304, %c1_305, %c0_306, %c0_307] : memref<18x3x16x16xbf16, #tpu.memory_space<vmem>>, vector<1x1x16x16xbf16>
    %320 = vector.shape_cast %319 : vector<1x1x16x16xbf16> to vector<16x16xbf16>
    %c0_308 = arith.constant 0 : index
    %c127_309 = arith.constant 127 : index
    %321 = vector.load %arg4[%c0_308, %c127_309] : memref<16x392xf32, #tpu.memory_space<vmem>>, vector<16x264xf32>
    %322 = arith.truncf %321 : vector<16x264xf32> to vector<16x264xbf16>
    %cst_310 = arith.constant dense<0.000000e+00> : vector<16x264xf32>
    %323 = tpu.matmul %320, %322, %cst_310 {dimension_numbers = #tpu.dot_dimension_numbers<[1], [0], [0], [1], [0, 0, 1, 1], [], []>} : vector<16x16xbf16>, vector<16x264xbf16>, vector<16x264xf32> -> vector<16x264xf32>
    %324 = arith.addf %318, %323 : vector<16x264xf32>
    %c13_311 = arith.constant 13 : index
    %c2_312 = arith.constant 2 : index
    %c0_313 = arith.constant 0 : index
    %c0_314 = arith.constant 0 : index
    %325 = vector.load %arg1[%c13_311, %c2_312, %c0_313, %c0_314] : memref<18x3x16x16xbf16, #tpu.memory_space<vmem>>, vector<1x1x16x16xbf16>
    %326 = vector.shape_cast %325 : vector<1x1x16x16xbf16> to vector<16x16xbf16>
    %c0_315 = arith.constant 0 : index
    %c128_316 = arith.constant 128 : index
    %327 = vector.load %arg4[%c0_315, %c128_316] : memref<16x392xf32, #tpu.memory_space<vmem>>, vector<16x264xf32>
    %328 = arith.truncf %327 : vector<16x264xf32> to vector<16x264xbf16>
    %cst_317 = arith.constant dense<0.000000e+00> : vector<16x264xf32>
    %329 = tpu.matmul %326, %328, %cst_317 {dimension_numbers = #tpu.dot_dimension_numbers<[1], [0], [0], [1], [0, 0, 1, 1], [], []>} : vector<16x16xbf16>, vector<16x264xbf16>, vector<16x264xf32> -> vector<16x264xf32>
    %330 = arith.addf %324, %329 : vector<16x264xf32>
    %c13_318 = arith.constant 13 : index
    %c0_319 = arith.constant 0 : index
    %c0_320 = arith.constant 0 : index
    %331 = vector.load %arg2[%c13_318, %c0_319, %c0_320] : memref<18x16x1xf32, #tpu.memory_space<vmem>>, vector<1x16x1xf32>
    %332 = vector.shape_cast %331 : vector<1x16x1xf32> to vector<16x1xf32>
    %333 = vector.broadcast %332 : vector<16x1xf32> to vector<16x264xf32>
    %334 = arith.addf %330, %333 : vector<16x264xf32>
    %cst_321 = arith.constant 0.000000e+00 : f32
    %335 = vector.broadcast %cst_321 : f32 to vector<16x264xf32>
    %336 = arith.maximumf %334, %335 : vector<16x264xf32>
    %337 = arith.mulf %336, %30 : vector<16x264xf32>
    %c0_322 = arith.constant 0 : index
    %c128_323 = arith.constant 128 : index
    %338 = vector.load %arg4[%c0_322, %c128_323] : memref<16x392xf32, #tpu.memory_space<vmem>>, vector<16x264xf32>
    tpu.vector_store %arg4[%c0_322, %c128_323], %337 {strides = array<i32>} : memref<16x392xf32, #tpu.memory_space<vmem>>, vector<16x264xf32>,
    %c14 = arith.constant 14 : index
    %c0_324 = arith.constant 0 : index
    %c0_325 = arith.constant 0 : index
    %c0_326 = arith.constant 0 : index
    %339 = vector.load %arg1[%c14, %c0_324, %c0_325, %c0_326] : memref<18x3x16x16xbf16, #tpu.memory_space<vmem>>, vector<1x1x16x16xbf16>
    %340 = vector.shape_cast %339 : vector<1x1x16x16xbf16> to vector<16x16xbf16>
    %c0_327 = arith.constant 0 : index
    %c126_328 = arith.constant 126 : index
    %341 = vector.load %arg4[%c0_327, %c126_328] : memref<16x392xf32, #tpu.memory_space<vmem>>, vector<16x264xf32>
    %342 = arith.truncf %341 : vector<16x264xf32> to vector<16x264xbf16>
    %cst_329 = arith.constant dense<0.000000e+00> : vector<16x264xf32>
    %343 = tpu.matmul %340, %342, %cst_329 {dimension_numbers = #tpu.dot_dimension_numbers<[1], [0], [0], [1], [0, 0, 1, 1], [], []>} : vector<16x16xbf16>, vector<16x264xbf16>, vector<16x264xf32> -> vector<16x264xf32>
    %c14_330 = arith.constant 14 : index
    %c1_331 = arith.constant 1 : index
    %c0_332 = arith.constant 0 : index
    %c0_333 = arith.constant 0 : index
    %344 = vector.load %arg1[%c14_330, %c1_331, %c0_332, %c0_333] : memref<18x3x16x16xbf16, #tpu.memory_space<vmem>>, vector<1x1x16x16xbf16>
    %345 = vector.shape_cast %344 : vector<1x1x16x16xbf16> to vector<16x16xbf16>
    %c0_334 = arith.constant 0 : index
    %c127_335 = arith.constant 127 : index
    %346 = vector.load %arg4[%c0_334, %c127_335] : memref<16x392xf32, #tpu.memory_space<vmem>>, vector<16x264xf32>
    %347 = arith.truncf %346 : vector<16x264xf32> to vector<16x264xbf16>
    %cst_336 = arith.constant dense<0.000000e+00> : vector<16x264xf32>
    %348 = tpu.matmul %345, %347, %cst_336 {dimension_numbers = #tpu.dot_dimension_numbers<[1], [0], [0], [1], [0, 0, 1, 1], [], []>} : vector<16x16xbf16>, vector<16x264xbf16>, vector<16x264xf32> -> vector<16x264xf32>
    %349 = arith.addf %343, %348 : vector<16x264xf32>
    %c14_337 = arith.constant 14 : index
    %c2_338 = arith.constant 2 : index
    %c0_339 = arith.constant 0 : index
    %c0_340 = arith.constant 0 : index
    %350 = vector.load %arg1[%c14_337, %c2_338, %c0_339, %c0_340] : memref<18x3x16x16xbf16, #tpu.memory_space<vmem>>, vector<1x1x16x16xbf16>
    %351 = vector.shape_cast %350 : vector<1x1x16x16xbf16> to vector<16x16xbf16>
    %c0_341 = arith.constant 0 : index
    %c128_342 = arith.constant 128 : index
    %352 = vector.load %arg4[%c0_341, %c128_342] : memref<16x392xf32, #tpu.memory_space<vmem>>, vector<16x264xf32>
    %353 = arith.truncf %352 : vector<16x264xf32> to vector<16x264xbf16>
    %cst_343 = arith.constant dense<0.000000e+00> : vector<16x264xf32>
    %354 = tpu.matmul %351, %353, %cst_343 {dimension_numbers = #tpu.dot_dimension_numbers<[1], [0], [0], [1], [0, 0, 1, 1], [], []>} : vector<16x16xbf16>, vector<16x264xbf16>, vector<16x264xf32> -> vector<16x264xf32>
    %355 = arith.addf %349, %354 : vector<16x264xf32>
    %c14_344 = arith.constant 14 : index
    %c0_345 = arith.constant 0 : index
    %c0_346 = arith.constant 0 : index
    %356 = vector.load %arg2[%c14_344, %c0_345, %c0_346] : memref<18x16x1xf32, #tpu.memory_space<vmem>>, vector<1x16x1xf32>
    %357 = vector.shape_cast %356 : vector<1x16x1xf32> to vector<16x1xf32>
    %358 = vector.broadcast %357 : vector<16x1xf32> to vector<16x264xf32>
    %359 = arith.addf %355, %358 : vector<16x264xf32>
    %cst_347 = arith.constant 0.000000e+00 : f32
    %360 = vector.broadcast %cst_347 : f32 to vector<16x264xf32>
    %361 = arith.maximumf %359, %360 : vector<16x264xf32>
    %362 = arith.mulf %361, %30 : vector<16x264xf32>
    %c0_348 = arith.constant 0 : index
    %c0_349 = arith.constant 0 : index
    %363 = vector.load %arg5[%c0_348, %c0_349] : memref<16x264xf32, #tpu.memory_space<vmem>>, vector<16x264xf32>
    %364 = arith.addf %362, %363 : vector<16x264xf32>
    %cst_350 = arith.constant 0.000000e+00 : f32
    %365 = vector.broadcast %cst_350 : f32 to vector<16x264xf32>
    %366 = arith.maximumf %364, %365 : vector<16x264xf32>
    %c0_351 = arith.constant 0 : index
    %c128_352 = arith.constant 128 : index
    %367 = vector.load %arg4[%c0_351, %c128_352] : memref<16x392xf32, #tpu.memory_space<vmem>>, vector<16x264xf32>
    tpu.vector_store %arg4[%c0_351, %c128_352], %366 {strides = array<i32>} : memref<16x392xf32, #tpu.memory_space<vmem>>, vector<16x264xf32>,
    %c0_353 = arith.constant 0 : index
    %c128_354 = arith.constant 128 : index
    %368 = vector.load %arg4[%c0_353, %c128_354] : memref<16x392xf32, #tpu.memory_space<vmem>>, vector<16x264xf32>
    %c0_355 = arith.constant 0 : index
    %c0_356 = arith.constant 0 : index
    %369 = vector.load %arg5[%c0_355, %c0_356] : memref<16x264xf32, #tpu.memory_space<vmem>>, vector<16x264xf32>
    tpu.vector_store %arg5[%c0_355, %c0_356], %368 {strides = array<i32>} : memref<16x264xf32, #tpu.memory_space<vmem>>, vector<16x264xf32>,
    %c15 = arith.constant 15 : index
    %c0_357 = arith.constant 0 : index
    %c0_358 = arith.constant 0 : index
    %c0_359 = arith.constant 0 : index
    %370 = vector.load %arg1[%c15, %c0_357, %c0_358, %c0_359] : memref<18x3x16x16xbf16, #tpu.memory_space<vmem>>, vector<1x1x16x16xbf16>
    %371 = vector.shape_cast %370 : vector<1x1x16x16xbf16> to vector<16x16xbf16>
    %c0_360 = arith.constant 0 : index
    %c124_361 = arith.constant 124 : index
    %372 = vector.load %arg4[%c0_360, %c124_361] : memref<16x392xf32, #tpu.memory_space<vmem>>, vector<16x264xf32>
    %373 = arith.truncf %372 : vector<16x264xf32> to vector<16x264xbf16>
    %cst_362 = arith.constant dense<0.000000e+00> : vector<16x264xf32>
    %374 = tpu.matmul %371, %373, %cst_362 {dimension_numbers = #tpu.dot_dimension_numbers<[1], [0], [0], [1], [0, 0, 1, 1], [], []>} : vector<16x16xbf16>, vector<16x264xbf16>, vector<16x264xf32> -> vector<16x264xf32>
    %c15_363 = arith.constant 15 : index
    %c1_364 = arith.constant 1 : index
    %c0_365 = arith.constant 0 : index
    %c0_366 = arith.constant 0 : index
    %375 = vector.load %arg1[%c15_363, %c1_364, %c0_365, %c0_366] : memref<18x3x16x16xbf16, #tpu.memory_space<vmem>>, vector<1x1x16x16xbf16>
    %376 = vector.shape_cast %375 : vector<1x1x16x16xbf16> to vector<16x16xbf16>
    %c0_367 = arith.constant 0 : index
    %c126_368 = arith.constant 126 : index
    %377 = vector.load %arg4[%c0_367, %c126_368] : memref<16x392xf32, #tpu.memory_space<vmem>>, vector<16x264xf32>
    %378 = arith.truncf %377 : vector<16x264xf32> to vector<16x264xbf16>
    %cst_369 = arith.constant dense<0.000000e+00> : vector<16x264xf32>
    %379 = tpu.matmul %376, %378, %cst_369 {dimension_numbers = #tpu.dot_dimension_numbers<[1], [0], [0], [1], [0, 0, 1, 1], [], []>} : vector<16x16xbf16>, vector<16x264xbf16>, vector<16x264xf32> -> vector<16x264xf32>
    %380 = arith.addf %374, %379 : vector<16x264xf32>
    %c15_370 = arith.constant 15 : index
    %c2_371 = arith.constant 2 : index
    %c0_372 = arith.constant 0 : index
    %c0_373 = arith.constant 0 : index
    %381 = vector.load %arg1[%c15_370, %c2_371, %c0_372, %c0_373] : memref<18x3x16x16xbf16, #tpu.memory_space<vmem>>, vector<1x1x16x16xbf16>
    %382 = vector.shape_cast %381 : vector<1x1x16x16xbf16> to vector<16x16xbf16>
    %c0_374 = arith.constant 0 : index
    %c128_375 = arith.constant 128 : index
    %383 = vector.load %arg4[%c0_374, %c128_375] : memref<16x392xf32, #tpu.memory_space<vmem>>, vector<16x264xf32>
    %384 = arith.truncf %383 : vector<16x264xf32> to vector<16x264xbf16>
    %cst_376 = arith.constant dense<0.000000e+00> : vector<16x264xf32>
    %385 = tpu.matmul %382, %384, %cst_376 {dimension_numbers = #tpu.dot_dimension_numbers<[1], [0], [0], [1], [0, 0, 1, 1], [], []>} : vector<16x16xbf16>, vector<16x264xbf16>, vector<16x264xf32> -> vector<16x264xf32>
    %386 = arith.addf %380, %385 : vector<16x264xf32>
    %c15_377 = arith.constant 15 : index
    %c0_378 = arith.constant 0 : index
    %c0_379 = arith.constant 0 : index
    %387 = vector.load %arg2[%c15_377, %c0_378, %c0_379] : memref<18x16x1xf32, #tpu.memory_space<vmem>>, vector<1x16x1xf32>
    %388 = vector.shape_cast %387 : vector<1x16x1xf32> to vector<16x1xf32>
    %389 = vector.broadcast %388 : vector<16x1xf32> to vector<16x264xf32>
    %390 = arith.addf %386, %389 : vector<16x264xf32>
    %cst_380 = arith.constant 0.000000e+00 : f32
    %391 = vector.broadcast %cst_380 : f32 to vector<16x264xf32>
    %392 = arith.maximumf %390, %391 : vector<16x264xf32>
    %393 = arith.mulf %392, %30 : vector<16x264xf32>
    %c0_381 = arith.constant 0 : index
    %c128_382 = arith.constant 128 : index
    %394 = vector.load %arg4[%c0_381, %c128_382] : memref<16x392xf32, #tpu.memory_space<vmem>>, vector<16x264xf32>
    tpu.vector_store %arg4[%c0_381, %c128_382], %393 {strides = array<i32>} : memref<16x392xf32, #tpu.memory_space<vmem>>, vector<16x264xf32>,
    %c16 = arith.constant 16 : index
    %c0_383 = arith.constant 0 : index
    %c0_384 = arith.constant 0 : index
    %c0_385 = arith.constant 0 : index
    %395 = vector.load %arg1[%c16, %c0_383, %c0_384, %c0_385] : memref<18x3x16x16xbf16, #tpu.memory_space<vmem>>, vector<1x1x16x16xbf16>
    %396 = vector.shape_cast %395 : vector<1x1x16x16xbf16> to vector<16x16xbf16>
    %c0_386 = arith.constant 0 : index
    %c124_387 = arith.constant 124 : index
    %397 = vector.load %arg4[%c0_386, %c124_387] : memref<16x392xf32, #tpu.memory_space<vmem>>, vector<16x264xf32>
    %398 = arith.truncf %397 : vector<16x264xf32> to vector<16x264xbf16>
    %cst_388 = arith.constant dense<0.000000e+00> : vector<16x264xf32>
    %399 = tpu.matmul %396, %398, %cst_388 {dimension_numbers = #tpu.dot_dimension_numbers<[1], [0], [0], [1], [0, 0, 1, 1], [], []>} : vector<16x16xbf16>, vector<16x264xbf16>, vector<16x264xf32> -> vector<16x264xf32>
    %c16_389 = arith.constant 16 : index
    %c1_390 = arith.constant 1 : index
    %c0_391 = arith.constant 0 : index
    %c0_392 = arith.constant 0 : index
    %400 = vector.load %arg1[%c16_389, %c1_390, %c0_391, %c0_392] : memref<18x3x16x16xbf16, #tpu.memory_space<vmem>>, vector<1x1x16x16xbf16>
    %401 = vector.shape_cast %400 : vector<1x1x16x16xbf16> to vector<16x16xbf16>
    %c0_393 = arith.constant 0 : index
    %c126_394 = arith.constant 126 : index
    %402 = vector.load %arg4[%c0_393, %c126_394] : memref<16x392xf32, #tpu.memory_space<vmem>>, vector<16x264xf32>
    %403 = arith.truncf %402 : vector<16x264xf32> to vector<16x264xbf16>
    %cst_395 = arith.constant dense<0.000000e+00> : vector<16x264xf32>
    %404 = tpu.matmul %401, %403, %cst_395 {dimension_numbers = #tpu.dot_dimension_numbers<[1], [0], [0], [1], [0, 0, 1, 1], [], []>} : vector<16x16xbf16>, vector<16x264xbf16>, vector<16x264xf32> -> vector<16x264xf32>
    %405 = arith.addf %399, %404 : vector<16x264xf32>
    %c16_396 = arith.constant 16 : index
    %c2_397 = arith.constant 2 : index
    %c0_398 = arith.constant 0 : index
    %c0_399 = arith.constant 0 : index
    %406 = vector.load %arg1[%c16_396, %c2_397, %c0_398, %c0_399] : memref<18x3x16x16xbf16, #tpu.memory_space<vmem>>, vector<1x1x16x16xbf16>
    %407 = vector.shape_cast %406 : vector<1x1x16x16xbf16> to vector<16x16xbf16>
    %c0_400 = arith.constant 0 : index
    %c128_401 = arith.constant 128 : index
    %408 = vector.load %arg4[%c0_400, %c128_401] : memref<16x392xf32, #tpu.memory_space<vmem>>, vector<16x264xf32>
    %409 = arith.truncf %408 : vector<16x264xf32> to vector<16x264xbf16>
    %cst_402 = arith.constant dense<0.000000e+00> : vector<16x264xf32>
    %410 = tpu.matmul %407, %409, %cst_402 {dimension_numbers = #tpu.dot_dimension_numbers<[1], [0], [0], [1], [0, 0, 1, 1], [], []>} : vector<16x16xbf16>, vector<16x264xbf16>, vector<16x264xf32> -> vector<16x264xf32>
    %411 = arith.addf %405, %410 : vector<16x264xf32>
    %c16_403 = arith.constant 16 : index
    %c0_404 = arith.constant 0 : index
    %c0_405 = arith.constant 0 : index
    %412 = vector.load %arg2[%c16_403, %c0_404, %c0_405] : memref<18x16x1xf32, #tpu.memory_space<vmem>>, vector<1x16x1xf32>
    %413 = vector.shape_cast %412 : vector<1x16x1xf32> to vector<16x1xf32>
    %414 = vector.broadcast %413 : vector<16x1xf32> to vector<16x264xf32>
    %415 = arith.addf %411, %414 : vector<16x264xf32>
    %cst_406 = arith.constant 0.000000e+00 : f32
    %416 = vector.broadcast %cst_406 : f32 to vector<16x264xf32>
    %417 = arith.maximumf %415, %416 : vector<16x264xf32>
    %418 = arith.mulf %417, %30 : vector<16x264xf32>
    %c0_407 = arith.constant 0 : index
    %c0_408 = arith.constant 0 : index
    %419 = vector.load %arg5[%c0_407, %c0_408] : memref<16x264xf32, #tpu.memory_space<vmem>>, vector<16x264xf32>
    %420 = arith.addf %418, %419 : vector<16x264xf32>
    %cst_409 = arith.constant 0.000000e+00 : f32
    %421 = vector.broadcast %cst_409 : f32 to vector<16x264xf32>
    %422 = arith.maximumf %420, %421 : vector<16x264xf32>
    %c0_410 = arith.constant 0 : index
    %c128_411 = arith.constant 128 : index
    %423 = vector.load %arg4[%c0_410, %c128_411] : memref<16x392xf32, #tpu.memory_space<vmem>>, vector<16x264xf32>
    tpu.vector_store %arg4[%c0_410, %c128_411], %422 {strides = array<i32>} : memref<16x392xf32, #tpu.memory_space<vmem>>, vector<16x264xf32>,
    %c17 = arith.constant 17 : index
    %c2_412 = arith.constant 2 : index
    %c0_413 = arith.constant 0 : index
    %c0_414 = arith.constant 0 : index
    %424 = vector.load %arg1[%c17, %c2_412, %c0_413, %c0_414] : memref<18x3x16x16xbf16, #tpu.memory_space<vmem>>, vector<1x1x16x16xbf16>
    %425 = vector.shape_cast %424 : vector<1x1x16x16xbf16> to vector<16x16xbf16>
    %c0_415 = arith.constant 0 : index
    %c128_416 = arith.constant 128 : index
    %426 = vector.load %arg4[%c0_415, %c128_416] : memref<16x392xf32, #tpu.memory_space<vmem>>, vector<16x264xf32>
    %427 = arith.truncf %426 : vector<16x264xf32> to vector<16x264xbf16>
    %cst_417 = arith.constant dense<0.000000e+00> : vector<16x264xf32>
    %428 = tpu.matmul %425, %427, %cst_417 {dimension_numbers = #tpu.dot_dimension_numbers<[1], [0], [0], [1], [0, 0, 1, 1], [], []>} : vector<16x16xbf16>, vector<16x264xbf16>, vector<16x264xf32> -> vector<16x264xf32>
    %c17_418 = arith.constant 17 : index
    %c0_419 = arith.constant 0 : index
    %c0_420 = arith.constant 0 : index
    %429 = vector.load %arg2[%c17_418, %c0_419, %c0_420] : memref<18x16x1xf32, #tpu.memory_space<vmem>>, vector<1x16x1xf32>
    %430 = vector.shape_cast %429 : vector<1x16x1xf32> to vector<16x1xf32>
    %431 = vector.broadcast %430 : vector<16x1xf32> to vector<16x264xf32>
    %432 = arith.addf %428, %431 : vector<16x264xf32>
    %433 = arith.mulf %432, %30 : vector<16x264xf32>
    %434 = vector.extract_strided_slice %433 {offsets = [0, 0], sizes = [8, 264], strides = [1, 1]} : vector<16x264xf32> to vector<8x264xf32>
    %c2_421 = arith.constant 2 : index
    %c0_422 = arith.constant 0 : index
    %c0_423 = arith.constant 0 : index
    %435 = vector.load %arg3[%c2_421, %c0_422, %c0_423] : memref<3x8x264xf32, #tpu.memory_space<vmem>>, vector<1x8x264xf32>
    %436 = vector.shape_cast %435 : vector<1x8x264xf32> to vector<8x264xf32>
    %437 = vector.shape_cast %434 : vector<8x264xf32> to vector<1x8x264xf32>
    tpu.vector_store %arg3[%c2_421, %c0_422, %c0_423], %437 {strides = array<i32>} : memref<3x8x264xf32, #tpu.memory_space<vmem>>, vector<1x8x264xf32>,
    return
  }
}

</mosaic_0001>

<llo_original>
// kernel: forward.1
$region0: #{forward.1}
  #allocation0 [shape = 'u32[]', space=smem, size = 0x4, offset = 0x4, fixed_abs, tag = 'smem constant byte address 0x4 - core index']
  #allocation1 [shape = 'u32[144,128]{1,0:T(1,128)}', space=vmem, size = 0x12000, scoped, tag = 'internal scratch']
  #allocation2 [shape = 'f32[16,392]{1,0:T(8,128)}', space=vmem, size = 0x8000, scoped, tag = 'scratch operand']
  #allocation3 [shape = 'f32[16,264]{1,0:T(8,128)}', space=vmem, size = 0x6000, scoped, tag = 'scratch operand']
  %s0 = inlined_call_operand.hbm [shape: f32[2,8,128], index: 0, kind: input, shape index: {}]
  %s1 = inlined_call_operand.hbm [shape: bf16[18,3,16,16], index: 1, kind: input, shape index: {}]
  %s2 = inlined_call_operand.hbm [shape: f32[18,16,1], index: 2, kind: input, shape index: {}]
  %s3 = inlined_call_operand.vmem [shape: f32[3,8,264], index: 3, kind: output, shape index: {}]
  %s4 = sld [smem:[#allocation0]]
  $region34: #{forward.1} parent=0
    _
  %s6 = ssub.s32 1, %s4
  %s7 = scalar_select 0, %s6, %s4
  $region1: #{forward.1} parent=0
    #allocation4 [shape = 'u8[8192]{0}', space=vmem, size = 0x2000, scoped, tag = 'input window, operand 0, single buffered']
    #allocation5 [shape = 's32[1]{0}', space=sflag, size = 0x4, scoped, tag = 'scoped memory for forward.1']
    #allocation6 [shape = 'u8[221184]{0}', space=vmem, size = 0x36000, scoped, tag = 'input window, operand 1, single buffered']
    #allocation7 [shape = 's32[1]{0}', space=sflag, size = 0x4, scoped, tag = 'scoped memory for forward.1']
    #allocation8 [shape = 'u8[147456]{0}', space=vmem, size = 0x24000, scoped, tag = 'input window, operand 2, single buffered']
    %8 = vsyncpa [#allocation5], 0
    %9 = vsyncpa [#allocation7], 0
    // Predicated region
    $region2: #{forward.1} parent=1 // pred_check
      _
    $region3: #{forward.1} parent=1 // pred_check_branch
      %11 = sbr.rel (0) target = $region5
    $region4: #{forward.1} parent=1 // pred_region
      %s13 = ssub.s32 256, 256
      %14 = vsyncadd [#allocation5], %s13
      %s15 = sshll.u32 [#allocation4], 4
      %s16 = int_to_ptr.vmem [resolvable:$true] %s15
      %21 = dma.hbm_to_vmem [thread:$0]  %s0, 256, %s16, [#allocation5], 128, 128, 8
    $region5: #{forward.1} parent=1 // pred_fallthru
      _
    // Predicated region
    $region6: #{forward.1} parent=1 // pred_check
      _
    $region7: #{forward.1} parent=1 // pred_check_branch
      %23 = sbr.rel (0) target = $region9
    $region8: #{forward.1} parent=1 // pred_region
      %s25 = ssub.s32 6912, 6912
      %26 = vsyncadd [#allocation7], %s25
      %s27 = sshll.u32 [#allocation6], 4
      %s28 = int_to_ptr.vmem [resolvable:$true] %s27
      %33 = dma.hbm_to_vmem [thread:$0]  %s1, 6912, %s28, [#allocation7], 64, 64, 4
    $region9: #{forward.1} parent=1 // pred_fallthru
      _
    // Predicated region
    $region10: #{forward.1} parent=1 // pred_check
      _
    $region11: #{forward.1} parent=1 // pred_check_branch
      %35 = sbr.rel (0) target = $region13
    $region12: #{forward.1} parent=1 // pred_region
      %s37 = ssub.s32 4608, 4608
      %38 = vsyncadd [#allocation7], %s37
      %s39 = sshll.u32 [#allocation8], 4
      %s40 = int_to_ptr.vmem [resolvable:$true] %s39
      %45 = dma.hbm_to_vmem [thread:$0]  %s2, 4608, %s40, [#allocation7], 128, 128, 8
    $region13: #{forward.1} parent=1 // pred_fallthru
      _
    // Predicated region
    $region14: #{forward.1} parent=1 // pred_check
      _
    $region15: #{forward.1} parent=1 // pred_check_branch
      %47 = sbr.rel (0) target = $region17
    $region16: #{forward.1} parent=1 // pred_region
      %48 = dma.done [#allocation5], 256
    $region17: #{forward.1} parent=1 // pred_fallthru
      _
    // Predicated region
    $region18: #{forward.1} parent=1 // pred_check
      _
    $region19: #{forward.1} parent=1 // pred_check_branch
      %50 = sbr.rel (0) target = $region21
    $region20: #{forward.1} parent=1 // pred_region
      %51 = dma.done [#allocation7], 6912
    $region21: #{forward.1} parent=1 // pred_fallthru
      _
    // Predicated region
    $region22: #{forward.1} parent=1 // pred_check
      _
    $region23: #{forward.1} parent=1 // pred_check_branch
      %53 = sbr.rel (0) target = $region25
    $region24: #{forward.1} parent=1 // pred_region
      %54 = dma.done [#allocation7], 4608
    $region25: #{forward.1} parent=1 // pred_fallthru
      _
    %56 = vst [vmem:[#allocation2] sm:$0xff] 0.0
    %57 = vst [vmem:[#allocation2 + $0x8] sm:$0xff] 0.0
    %58 = vst [vmem:[#allocation2 + $0x10] sm:$0xff] 0.0
    %vm59 = vcmask 64512
    %60 = vst.msk [vmem:[#allocation2 + $0x18] sm:$0xff] %vm59, 0.0
    %61 = vst [vmem:[#allocation2 + $0x20] sm:$0xff] 0.0
    %62 = vst [vmem:[#allocation2 + $0x28] sm:$0xff] 0.0
    %63 = vst [vmem:[#allocation2 + $0x30] sm:$0xff] 0.0
    %64 = vst.msk [vmem:[#allocation2 + $0x38] sm:$0xff] %vm59, 0.0
    %v65 = vld [vmem:[#allocation4] sm:$0xff]
    %67 = vrot.lane.b32.xlu0 %v65, 4
    %v68 = vpop.permute.xlu0 %67
    %vm70 = vcmask 1047584
    %71 = vst.msk [vmem:[#allocation2 + $0x8] sm:$0xff] %vm70, %v68
    %vm72 = vcmask 31744
    %73 = vst.msk [vmem:[#allocation2 + $0x10] sm:$0xff] %vm72, %v68
    %s74 = scalar_lea.vmem [#allocation4], 8
    %v75 = vld [vmem:[%s74] sm:$0xff]
    %77 = vrot.lane.b32.xlu0 %v75, 8
    %v78 = vpop.permute.xlu0 %77
    %vm80 = vcmask 1047616
    %81 = vst.msk [vmem:[#allocation2 + $0x10] sm:$0xff] %vm80, %v78
    %82 = vst.msk [vmem:[#allocation2 + $0x18] sm:$0xff] %vm59, %v78
    %v83 = vlaneseq
    %v84 = vand.u32 %v83, 127
    %v85 = vadd.s32 %v84, 128
    %v86 = vadd.s32 %v84, 256
    %vm87 = vcmp.lt.s32.totalorder %v84, 0
    %v88 = vsub.s32 0, %v84
    %v89 = vsel %vm87, %v88, %v84
    %v90 = vmul.u32.u64.compose %v89, 4164816772
    %v91 = vextract.low.u32 %v90
    %v92 = vextract.high.u32 %v90
    %v93 = vshrl.u32 %v92, 7
    %v94 = vmul.u32 %v93, 132
    %v95 = vsub.s32 %v89, %v94
    %v96 = vsub.s32 0, %v95
    %v97 = vsel %vm87, %v96, %v95
    %vm98 = vcmp.lt.s32.totalorder %v85, 0
    %v99 = vsub.s32 0, %v85
    %v100 = vsel %vm98, %v99, %v85
    %v101 = vmul.u32.u64.compose %v100, 4164816772
    %v102 = vextract.low.u32 %v101
    %v103 = vextract.high.u32 %v101
    %v104 = vshrl.u32 %v103, 7
    %v105 = vmul.u32 %v104, 132
    %v106 = vsub.s32 %v100, %v105
    %v107 = vsub.s32 0, %v106
    %v108 = vsel %vm98, %v107, %v106
    %vm109 = vcmp.lt.s32.totalorder %v86, 0
    %v110 = vsub.s32 0, %v86
    %v111 = vsel %vm109, %v110, %v86
    %v112 = vmul.u32.u64.compose %v111, 4164816772
    %v113 = vextract.low.u32 %v112
    %v114 = vextract.high.u32 %v112
    %v115 = vshrl.u32 %v114, 7
    %v116 = vmul.u32 %v115, 132
    %v117 = vsub.s32 %v111, %v116
    %v118 = vsub.s32 0, %v117
    %v119 = vsel %vm109, %v118, %v117
    %vm120 = vcmp.ne.s32.totalorder %v97, 0
    %vm121 = vcmp.ne.s32.totalorder %v108, 0
    %vm122 = vcmp.ne.s32.totalorder %v119, 0
    %vm123 = vcmp.lt.s32.totalorder %v97, 0
    %vm124 = vcmp.lt.s32.totalorder %v108, 0
    %vm125 = vcmp.lt.s32.totalorder %v119, 0
    %vm126 = vmand %vm123, %vm120
    %vm127 = vmand %vm124, %vm121
    %vm128 = vmand %vm125, %vm122
    %v129 = vadd.s32 %v97, 132
    %v130 = vadd.s32 %v108, 132
    %v131 = vadd.s32 %v119, 132
    %v132 = vsel %vm126, %v129, %v97
    %v133 = vsel %vm127, %v130, %v108
    %v134 = vsel %vm128, %v131, %v119
    %vm135 = vcmp.ge.s32.totalorder %v132, 4
    %vm136 = vcmp.ge.s32.totalorder %v133, 4
    %vm137 = vcmp.ge.s32.totalorder %v134, 4
    %v138 = vsel %vm135, 1, 0
    %v139 = vsel %vm136, 1, 0
    %v140 = vsel %vm137, 1, 0
    %v141 = vcvt.s32.f32 %v138
    %v142 = vcvt.s32.f32 %v139
    %v143 = vcvt.s32.f32 %v140
    %s144 = scalar_lea.vmem [#allocation6], 16
    %v145 = vld [vmem:[%s144] sm:$0xf]
    %v146 = vld [vmem:[%s144 + $0x4] sm:$0xf]
    %v147 = vld [vmem:[#allocation2 + $0x8] sm:$0xff]
    %v148 = vld [vmem:[#allocation2 + $0x10] sm:$0xff]
    %v149 = vld [vmem:[#allocation2 + $0x18] sm:$0xff]
    %v150 = vld [vmem:[#allocation2 + $0x28] sm:$0xff]
    %v151 = vld [vmem:[#allocation2 + $0x30] sm:$0xff]
    %v152 = vld [vmem:[#allocation2 + $0x38] sm:$0xff]
    %v153 = vpack.c.bf16 %v150, %v147
    %v154 = vpack.c.bf16 %v151, %v148
    %v155 = vpack.c.bf16 %v152, %v149
    %v156 = vld [vmem:[#allocation8] sm:$0xff]
    %v157 = vld [vmem:[#allocation8 + $0x8] sm:$0xff]
    %159 = vset.pattern.permute.xlu0 0
    %160 = vperm.xlu0 %159, %v156
    %v161 = vpop.permute.xlu0 %160
    %164 = vset.pattern.permute.xlu0 0
    %165 = vperm.xlu0 %164, %v157
    %v166 = vpop.permute.xlu0 %165
    %v170 = vunpack.c.l.b16 %v145
    %v171 = vunpack.c.l.b16 %v146
    %v172 = vpack.c.b16 %v171, %v170
    %vm173 = vcmask 130048
    %v175 = vsel %vm173, %v172, 0
    %177 = vmatprep.subr.bf16.mxu0 %v154
    %178 = vmatpush1.bf16.msra.mxu0 %v153
    %179 = vmatprep.subr.bf16.mxu0 0
    %180 = vmatpush1.bf16.msra.mxu0 0
    %181 = vmatprep.subr.bf16.mxu0 0
    %182 = vmatpush1.bf16.msra.mxu0 0
    %183 = vmatprep.subr.bf16.mxu0 0
    %184 = vmatpush1.bf16.msra.mxu0 0
    %185 = vmatprep.subr.bf16.mxu0 0
    %186 = vmatpush1.bf16.msra.mxu0 0
    %187 = vmatprep.subr.bf16.mxu0 0
    %188 = vmatpush1.bf16.msra.mxu0 0
    %189 = vmatprep.subr.bf16.mxu0 0
    %190 = vmatpush1.bf16.msra.mxu0 0
    %191 = vmatprep.subr.bf16.mxu0 0
    %192 = vmatpush1.bf16.msra.mxu0 0
    %193 = vmatprep.subr.bf16.mxu0 0
    %194 = vmatpush1.bf16.msra.mxu0 0
    %195 = vmatprep.subr.bf16.mxu0 0
    %196 = vmatpush1.bf16.msra.mxu0 0
    %197 = vmatprep.subr.bf16.mxu0 0
    %198 = vmatpush1.bf16.msra.mxu0 0
    %199 = vmatprep.subr.bf16.mxu0 0
    %200 = vmatpush1.bf16.msra.mxu0 0
    %201 = vmatprep.subr.bf16.mxu0 0
    %202 = vmatpush1.bf16.msra.mxu0 0
    %203 = vmatprep.subr.bf16.mxu0 0
    %204 = vmatpush1.bf16.msra.mxu0 0
    %205 = vmatprep.subr.bf16.mxu0 0
    %206 = vmatpush1.bf16.msra.mxu0 0
    %207 = vmatprep.subr.bf16.mxu0 0
    %208 = vmatpush1.bf16.msra.mxu0 0
    %209 = vmatprep.mubr.bf16.mxu0 0
    %210 = vmatmul.mubr.bf16.gmra.mrb[0].mxu0 %v175
    %v211 = vpop.f32.mrb[0].mxu0
    %v212 = vadd.f32 %v161, %v211
    %v213 = vpop.f32.mrb[0].mxu0
    %v214 = vadd.f32 %v161, %v213
    %v215 = vpop.f32.mrb[0].mxu0
    %v216 = vadd.f32 %v166, %v215
    %v217 = vpop.f32.mrb[0].mxu0
    %v218 = vadd.f32 %v166, %v217
    %219 = vdwg.mxu0
    %220 = vmatprep.subr.bf16.mxu0 0
    %221 = vmatpush1.bf16.msra.mxu0 %v155
    %222 = vmatprep.subr.bf16.mxu0 0
    %223 = vmatpush1.bf16.msra.mxu0 0
    %224 = vmatprep.subr.bf16.mxu0 0
    %225 = vmatpush1.bf16.msra.mxu0 0
    %226 = vmatprep.subr.bf16.mxu0 0
    %227 = vmatpush1.bf16.msra.mxu0 0
    %228 = vmatprep.subr.bf16.mxu0 0
    %229 = vmatpush1.bf16.msra.mxu0 0
    %230 = vmatprep.subr.bf16.mxu0 0
    %231 = vmatpush1.bf16.msra.mxu0 0
    %232 = vmatprep.subr.bf16.mxu0 0
    %233 = vmatpush1.bf16.msra.mxu0 0
    %234 = vmatprep.subr.bf16.mxu0 0
    %235 = vmatpush1.bf16.msra.mxu0 0
    %236 = vmatprep.subr.bf16.mxu0 0
    %237 = vmatpush1.bf16.msra.mxu0 0
    %238 = vmatprep.subr.bf16.mxu0 0
    %239 = vmatpush1.bf16.msra.mxu0 0
    %240 = vmatprep.subr.bf16.mxu0 0
    %241 = vmatpush1.bf16.msra.mxu0 0
    %242 = vmatprep.subr.bf16.mxu0 0
    %243 = vmatpush1.bf16.msra.mxu0 0
    %244 = vmatprep.subr.bf16.mxu0 0
    %245 = vmatpush1.bf16.msra.mxu0 0
    %246 = vmatprep.subr.bf16.mxu0 0
    %247 = vmatpush1.bf16.msra.mxu0 0
    %248 = vmatprep.subr.bf16.mxu0 0
    %249 = vmatpush1.bf16.msra.mxu0 0
    %250 = vmatprep.subr.bf16.mxu0 0
    %251 = vmatpush1.bf16.msra.mxu0 0
    %252 = vmatprep.mubr.bf16.mxu0 0
    %253 = vmatmul.mubr.bf16.gmra.mrb[0].mxu0 %v175
    %v254 = vpop.f32.mrb[0].mxu0
    %v255 = vadd.f32 %v161, %v254
    %v256 = vpop.f32.mrb[0].mxu0
    %v257 = vpop.f32.mrb[0].mxu0
    %v258 = vadd.f32 %v166, %v257
    %v259 = vpop.f32.mrb[0].mxu0
    %260 = vdwg.mxu0
    %v261 = vmul.f32 %v212, %v141
    %v262 = vmul.f32 %v214, %v142
    %v263 = vmul.f32 %v255, %v143
    %v264 = vmul.f32 %v216, %v141
    %v265 = vmul.f32 %v218, %v142
    %v266 = vmul.f32 %v258, %v143
    %267 = vst [vmem:[#allocation3] sm:$0xff] %v261
    %268 = vst [vmem:[#allocation3 + $0x8] sm:$0xff] %v262
    %269 = vst.msk [vmem:[#allocation3 + $0x10] sm:$0xff] %vm59, %v263
    %270 = vst [vmem:[#allocation3 + $0x18] sm:$0xff] %v264
    %271 = vst [vmem:[#allocation3 + $0x20] sm:$0xff] %v265
    %272 = vst.msk [vmem:[#allocation3 + $0x28] sm:$0xff] %vm59, %v266
    %s273 = scalar_lea.vmem [#allocation6], 24
    %v274 = vld [vmem:[%s273] sm:$0xf]
    %v275 = vld [vmem:[%s273 + $0x4] sm:$0xf]
    %v276 = vld [vmem:[#allocation2] sm:$0xff]
    %v277 = vld [vmem:[#allocation2 + $0x8] sm:$0xff]
    %v278 = vld [vmem:[#allocation2 + $0x10] sm:$0xff]
    %v279 = vld [vmem:[#allocation2 + $0x18] sm:$0xff]
    %v280 = vld [vmem:[#allocation2 + $0x20] sm:$0xff]
    %v281 = vld [vmem:[#allocation2 + $0x28] sm:$0xff]
    %v282 = vld [vmem:[#allocation2 + $0x30] sm:$0xff]
    %v283 = vld [vmem:[#allocation2 + $0x38] sm:$0xff]
    %v284 = vpack.c.bf16 %v280, %v276
    %v285 = vpack.c.bf16 %v281, %v277
    %v286 = vpack.c.bf16 %v282, %v278
    %v287 = vpack.c.bf16 %v283, %v279
    %s288 = scalar_lea.vmem [#allocation6], 32
    %v289 = vld [vmem:[%s288] sm:$0xf]
    %v290 = vld [vmem:[%s288 + $0x4] sm:$0xf]
    %v293 = vunpack.c.l.b16 %v289
    %v294 = vunpack.c.l.b16 %v290
    %v295 = vpack.c.b16 %v294, %v293
    %300 = vrot.lane.b32.xlu0 %v284, 1
    %v301 = vpop.permute.xlu0 %300
    %302 = vrot.lane.b32.xlu0 %v285, 1
    %v303 = vpop.permute.xlu0 %302
    %304 = vrot.lane.b32.xlu0 %v286, 1
    %v305 = vpop.permute.xlu0 %304
    %306 = vrot.lane.b32.xlu0 %v287, 1
    %v307 = vpop.permute.xlu0 %306
    %vm308 = vcmask 7168
    %v309 = vsel %vm308, %v301, %v303
    %v310 = vsel %vm308, %v303, %v305
    %v311 = vsel %vm308, %v305, %v307
    %v316 = vsel %vm173, %v295, 0
    %318 = vmatprep.subr.bf16.mxu0 %v310
    %319 = vmatpush1.bf16.msra.mxu0 %v309
    %320 = vmatprep.subr.bf16.mxu0 0
    %321 = vmatpush1.bf16.msra.mxu0 0
    %322 = vmatprep.subr.bf16.mxu0 0
    %323 = vmatpush1.bf16.msra.mxu0 0
    %324 = vmatprep.subr.bf16.mxu0 0
    %325 = vmatpush1.bf16.msra.mxu0 0
    %326 = vmatprep.subr.bf16.mxu0 0
    %327 = vmatpush1.bf16.msra.mxu0 0
    %328 = vmatprep.subr.bf16.mxu0 0
    %329 = vmatpush1.bf16.msra.mxu0 0
    %330 = vmatprep.subr.bf16.mxu0 0
    %331 = vmatpush1.bf16.msra.mxu0 0
    %332 = vmatprep.subr.bf16.mxu0 0
    %333 = vmatpush1.bf16.msra.mxu0 0
    %334 = vmatprep.subr.bf16.mxu0 0
    %335 = vmatpush1.bf16.msra.mxu0 0
    %336 = vmatprep.subr.bf16.mxu0 0
    %337 = vmatpush1.bf16.msra.mxu0 0
    %338 = vmatprep.subr.bf16.mxu0 0
    %339 = vmatpush1.bf16.msra.mxu0 0
    %340 = vmatprep.subr.bf16.mxu0 0
    %341 = vmatpush1.bf16.msra.mxu0 0
    %342 = vmatprep.subr.bf16.mxu0 0
    %343 = vmatpush1.bf16.msra.mxu0 0
    %344 = vmatprep.subr.bf16.mxu0 0
    %345 = vmatpush1.bf16.msra.mxu0 0
    %346 = vmatprep.subr.bf16.mxu0 0
    %347 = vmatpush1.bf16.msra.mxu0 0
    %348 = vmatprep.subr.bf16.mxu0 0
    %349 = vmatpush1.bf16.msra.mxu0 0
    %350 = vmatprep.mubr.bf16.mxu0 0
    %351 = vmatmul.mubr.bf16.gmra.mrb[0].mxu0 %v316
    %v352 = vpop.f32.mrb[0].mxu0
    %v353 = vadd.f32 0.0, %v352
    %v354 = vpop.f32.mrb[0].mxu0
    %v355 = vadd.f32 0.0, %v354
    %v356 = vpop.f32.mrb[0].mxu0
    %v357 = vadd.f32 0.0, %v356
    %v358 = vpop.f32.mrb[0].mxu0
    %v359 = vadd.f32 0.0, %v358
    %360 = vdwg.mxu0
    %361 = vmatprep.subr.bf16.mxu0 0
    %362 = vmatpush1.bf16.msra.mxu0 %v311
    %363 = vmatprep.subr.bf16.mxu0 0
    %364 = vmatpush1.bf16.msra.mxu0 0
    %365 = vmatprep.subr.bf16.mxu0 0
    %366 = vmatpush1.bf16.msra.mxu0 0
    %367 = vmatprep.subr.bf16.mxu0 0
    %368 = vmatpush1.bf16.msra.mxu0 0
    %369 = vmatprep.subr.bf16.mxu0 0
    %370 = vmatpush1.bf16.msra.mxu0 0
    %371 = vmatprep.subr.bf16.mxu0 0
    %372 = vmatpush1.bf16.msra.mxu0 0
    %373 = vmatprep.subr.bf16.mxu0 0
    %374 = vmatpush1.bf16.msra.mxu0 0
    %375 = vmatprep.subr.bf16.mxu0 0
    %376 = vmatpush1.bf16.msra.mxu0 0
    %377 = vmatprep.subr.bf16.mxu0 0
    %378 = vmatpush1.bf16.msra.mxu0 0
    %379 = vmatprep.subr.bf16.mxu0 0
    %380 = vmatpush1.bf16.msra.mxu0 0
    %381 = vmatprep.subr.bf16.mxu0 0
    %382 = vmatpush1.bf16.msra.mxu0 0
    %383 = vmatprep.subr.bf16.mxu0 0
    %384 = vmatpush1.bf16.msra.mxu0 0
    %385 = vmatprep.subr.bf16.mxu0 0
    %386 = vmatpush1.bf16.msra.mxu0 0
    %387 = vmatprep.subr.bf16.mxu0 0
    %388 = vmatpush1.bf16.msra.mxu0 0
    %389 = vmatprep.subr.bf16.mxu0 0
    %390 = vmatpush1.bf16.msra.mxu0 0
    %391 = vmatprep.subr.bf16.mxu0 0
    %392 = vmatpush1.bf16.msra.mxu0 0
    %393 = vmatprep.mubr.bf16.mxu0 0
    %394 = vmatmul.mubr.bf16.gmra.mrb[0].mxu0 %v316
    %v395 = vpop.f32.mrb[0].mxu0
    %v396 = vadd.f32 0.0, %v395
    %v397 = vpop.f32.mrb[0].mxu0
    %v398 = vpop.f32.mrb[0].mxu0
    %v399 = vadd.f32 0.0, %v398
    %v400 = vpop.f32.mrb[0].mxu0
    %401 = vdwg.mxu0
    %v404 = vunpack.c.l.b16 %v274
    %v405 = vunpack.c.l.b16 %v275
    %v406 = vpack.c.b16 %v405, %v404
    %407 = vrot.lane.b32.xlu0 %v284, 2
    %v408 = vpop.permute.xlu0 %407
    %409 = vrot.lane.b32.xlu0 %v285, 2
    %v410 = vpop.permute.xlu0 %409
    %411 = vrot.lane.b32.xlu0 %v286, 2
    %v412 = vpop.permute.xlu0 %411
    %413 = vrot.lane.b32.xlu0 %v287, 2
    %v414 = vpop.permute.xlu0 %413
    %vm415 = vcmask 15360
    %v416 = vsel %vm415, %v408, %v410
    %v417 = vsel %vm415, %v410, %v412
    %v418 = vsel %vm415, %v412, %v414
    %v423 = vsel %vm173, %v406, 0
    %425 = vmatprep.subr.bf16.mxu0 %v417
    %426 = vmatpush1.bf16.msra.mxu0 %v416
    %427 = vmatprep.subr.bf16.mxu0 0
    %428 = vmatpush1.bf16.msra.mxu0 0
    %429 = vmatprep.subr.bf16.mxu0 0
    %430 = vmatpush1.bf16.msra.mxu0 0
    %431 = vmatprep.subr.bf16.mxu0 0
    %432 = vmatpush1.bf16.msra.mxu0 0
    %433 = vmatprep.subr.bf16.mxu0 0
    %434 = vmatpush1.bf16.msra.mxu0 0
    %435 = vmatprep.subr.bf16.mxu0 0
    %436 = vmatpush1.bf16.msra.mxu0 0
    %437 = vmatprep.subr.bf16.mxu0 0
    %438 = vmatpush1.bf16.msra.mxu0 0
    %439 = vmatprep.subr.bf16.mxu0 0
    %440 = vmatpush1.bf16.msra.mxu0 0
    %441 = vmatprep.subr.bf16.mxu0 0
    %442 = vmatpush1.bf16.msra.mxu0 0
    %443 = vmatprep.subr.bf16.mxu0 0
    %444 = vmatpush1.bf16.msra.mxu0 0
    %445 = vmatprep.subr.bf16.mxu0 0
    %446 = vmatpush1.bf16.msra.mxu0 0
    %447 = vmatprep.subr.bf16.mxu0 0
    %448 = vmatpush1.bf16.msra.mxu0 0
    %449 = vmatprep.subr.bf16.mxu0 0
    %450 = vmatpush1.bf16.msra.mxu0 0
    %451 = vmatprep.subr.bf16.mxu0 0
    %452 = vmatpush1.bf16.msra.mxu0 0
    %453 = vmatprep.subr.bf16.mxu0 0
    %454 = vmatpush1.bf16.msra.mxu0 0
    %455 = vmatprep.subr.bf16.mxu0 0
    %456 = vmatpush1.bf16.msra.mxu0 0
    %457 = vmatprep.mubr.bf16.mxu0 0
    %458 = vmatmul.mubr.bf16.gmra.mrb[0].mxu0 %v423
    %v459 = vpop.f32.mrb[0].mxu0
    %v460 = vadd.f32 %v353, %v459
    %v461 = vpop.f32.mrb[0].mxu0
    %v462 = vadd.f32 %v355, %v461
    %v463 = vpop.f32.mrb[0].mxu0
    %v464 = vadd.f32 %v357, %v463
    %v465 = vpop.f32.mrb[0].mxu0
    %v466 = vadd.f32 %v359, %v465
    %467 = vdwg.mxu0
    %468 = vmatprep.subr.bf16.mxu0 0
    %469 = vmatpush1.bf16.msra.mxu0 %v418
    %470 = vmatprep.subr.bf16.mxu0 0
    %471 = vmatpush1.bf16.msra.mxu0 0
    %472 = vmatprep.subr.bf16.mxu0 0
    %473 = vmatpush1.bf16.msra.mxu0 0
    %474 = vmatprep.subr.bf16.mxu0 0
    %475 = vmatpush1.bf16.msra.mxu0 0
    %476 = vmatprep.subr.bf16.mxu0 0
    %477 = vmatpush1.bf16.msra.mxu0 0
    %478 = vmatprep.subr.bf16.mxu0 0
    %479 = vmatpush1.bf16.msra.mxu0 0
    %480 = vmatprep.subr.bf16.mxu0 0
    %481 = vmatpush1.bf16.msra.mxu0 0
    %482 = vmatprep.subr.bf16.mxu0 0
    %483 = vmatpush1.bf16.msra.mxu0 0
    %484 = vmatprep.subr.bf16.mxu0 0
    %485 = vmatpush1.bf16.msra.mxu0 0
    %486 = vmatprep.subr.bf16.mxu0 0
    %487 = vmatpush1.bf16.msra.mxu0 0
    %488 = vmatprep.subr.bf16.mxu0 0
    %489 = vmatpush1.bf16.msra.mxu0 0
    %490 = vmatprep.subr.bf16.mxu0 0
    %491 = vmatpush1.bf16.msra.mxu0 0
    %492 = vmatprep.subr.bf16.mxu0 0
    %493 = vmatpush1.bf16.msra.mxu0 0
    %494 = vmatprep.subr.bf16.mxu0 0
    %495 = vmatpush1.bf16.msra.mxu0 0
    %496 = vmatprep.subr.bf16.mxu0 0
    %497 = vmatpush1.bf16.msra.mxu0 0
    %498 = vmatprep.subr.bf16.mxu0 0
    %499 = vmatpush1.bf16.msra.mxu0 0
    %500 = vmatprep.mubr.bf16.mxu0 0
    %501 = vmatmul.mubr.bf16.gmra.mrb[0].mxu0 %v423
    %v502 = vpop.f32.mrb[0].mxu0
    %v503 = vadd.f32 %v396, %v502
    %v504 = vpop.f32.mrb[0].mxu0
    %v505 = vpop.f32.mrb[0].mxu0
    %v506 = vadd.f32 %v399, %v505
    %v507 = vpop.f32.mrb[0].mxu0
    %508 = vdwg.mxu0
    %s509 = scalar_lea.vmem [#allocation6], 40
    %v510 = vld [vmem:[%s509] sm:$0xf]
    %v511 = vld [vmem:[%s509 + $0x4] sm:$0xf]
    %v514 = vunpack.c.l.b16 %v510
    %v515 = vunpack.c.l.b16 %v511
    %v516 = vpack.c.b16 %v515, %v514
    %v518 = vsel %vm173, %v516, 0
    %520 = vmatprep.subr.bf16.mxu0 %v286
    %521 = vmatpush1.bf16.msra.mxu0 %v285
    %522 = vmatprep.subr.bf16.mxu0 0
    %523 = vmatpush1.bf16.msra.mxu0 0
    %524 = vmatprep.subr.bf16.mxu0 0
    %525 = vmatpush1.bf16.msra.mxu0 0
    %526 = vmatprep.subr.bf16.mxu0 0
    %527 = vmatpush1.bf16.msra.mxu0 0
    %528 = vmatprep.subr.bf16.mxu0 0
    %529 = vmatpush1.bf16.msra.mxu0 0
    %530 = vmatprep.subr.bf16.mxu0 0
    %531 = vmatpush1.bf16.msra.mxu0 0
    %532 = vmatprep.subr.bf16.mxu0 0
    %533 = vmatpush1.bf16.msra.mxu0 0
    %534 = vmatprep.subr.bf16.mxu0 0
    %535 = vmatpush1.bf16.msra.mxu0 0
    %536 = vmatprep.subr.bf16.mxu0 0
    %537 = vmatpush1.bf16.msra.mxu0 0
    %538 = vmatprep.subr.bf16.mxu0 0
    %539 = vmatpush1.bf16.msra.mxu0 0
    %540 = vmatprep.subr.bf16.mxu0 0
    %541 = vmatpush1.bf16.msra.mxu0 0
    %542 = vmatprep.subr.bf16.mxu0 0
    %543 = vmatpush1.bf16.msra.mxu0 0
    %544 = vmatprep.subr.bf16.mxu0 0
    %545 = vmatpush1.bf16.msra.mxu0 0
    %546 = vmatprep.subr.bf16.mxu0 0
    %547 = vmatpush1.bf16.msra.mxu0 0
    %548 = vmatprep.subr.bf16.mxu0 0
    %549 = vmatpush1.bf16.msra.mxu0 0
    %550 = vmatprep.subr.bf16.mxu0 0
    %551 = vmatpush1.bf16.msra.mxu0 0
    %552 = vmatprep.mubr.bf16.mxu0 0
    %553 = vmatmul.mubr.bf16.gmra.mrb[0].mxu0 %v518
    %v554 = vpop.f32.mrb[0].mxu0
    %v555 = vadd.f32 0.0, %v554
    %v556 = vpop.f32.mrb[0].mxu0
    %v557 = vadd.f32 0.0, %v556
    %v558 = vpop.f32.mrb[0].mxu0
    %v559 = vadd.f32 0.0, %v558
    %v560 = vpop.f32.mrb[0].mxu0
    %v561 = vadd.f32 0.0, %v560
    %562 = vdwg.mxu0
    %563 = vmatprep.subr.bf16.mxu0 0
    %564 = vmatpush1.bf16.msra.mxu0 %v287
    %565 = vmatprep.subr.bf16.mxu0 0
    %566 = vmatpush1.bf16.msra.mxu0 0
    %567 = vmatprep.subr.bf16.mxu0 0
    %568 = vmatpush1.bf16.msra.mxu0 0
    %569 = vmatprep.subr.bf16.mxu0 0
    %570 = vmatpush1.bf16.msra.mxu0 0
    %571 = vmatprep.subr.bf16.mxu0 0
    %572 = vmatpush1.bf16.msra.mxu0 0
    %573 = vmatprep.subr.bf16.mxu0 0
    %574 = vmatpush1.bf16.msra.mxu0 0
    %575 = vmatprep.subr.bf16.mxu0 0
    %576 = vmatpush1.bf16.msra.mxu0 0
    %577 = vmatprep.subr.bf16.mxu0 0
    %578 = vmatpush1.bf16.msra.mxu0 0
    %579 = vmatprep.subr.bf16.mxu0 0
    %580 = vmatpush1.bf16.msra.mxu0 0
    %581 = vmatprep.subr.bf16.mxu0 0
    %582 = vmatpush1.bf16.msra.mxu0 0
    %583 = vmatprep.subr.bf16.mxu0 0
    %584 = vmatpush1.bf16.msra.mxu0 0
    %585 = vmatprep.subr.bf16.mxu0 0
    %586 = vmatpush1.bf16.msra.mxu0 0
    %587 = vmatprep.subr.bf16.mxu0 0
    %588 = vmatpush1.bf16.msra.mxu0 0
    %589 = vmatprep.subr.bf16.mxu0 0
    %590 = vmatpush1.bf16.msra.mxu0 0
    %591 = vmatprep.subr.bf16.mxu0 0
    %592 = vmatpush1.bf16.msra.mxu0 0
    %593 = vmatprep.subr.bf16.mxu0 0
    %594 = vmatpush1.bf16.msra.mxu0 0
    %595 = vmatprep.mubr.bf16.mxu0 0
    %596 = vmatmul.mubr.bf16.gmra.mrb[0].mxu0 %v518
    %v597 = vpop.f32.mrb[0].mxu0
    %v598 = vadd.f32 0.0, %v597
    %v599 = vpop.f32.mrb[0].mxu0
    %v600 = vpop.f32.mrb[0].mxu0
    %v601 = vadd.f32 0.0, %v600
    %v602 = vpop.f32.mrb[0].mxu0
    %603 = vdwg.mxu0
    %v604 = vadd.f32 %v460, %v555
    %v605 = vadd.f32 %v462, %v557
    %v606 = vadd.f32 %v503, %v598
    %v607 = vadd.f32 %v464, %v559
    %v608 = vadd.f32 %v466, %v561
    %v609 = vadd.f32 %v506, %v601
    %s610 = scalar_lea.vmem [#allocation8], 16
    %v611 = vld [vmem:[%s610] sm:$0xff]
    %v612 = vld [vmem:[%s610 + $0x8] sm:$0xff]
    %614 = vset.pattern.permute.xlu0 0
    %615 = vperm.xlu0 %614, %v611
    %v616 = vpop.permute.xlu0 %615
    %619 = vset.pattern.permute.xlu0 0
    %620 = vperm.xlu0 %619, %v612
    %v621 = vpop.permute.xlu0 %620
    %v623 = vadd.f32 %v604, %v616
    %v624 = vadd.f32 %v605, %v616
    %v625 = vadd.f32 %v606, %v616
    %v626 = vadd.f32 %v607, %v621
    %v627 = vadd.f32 %v608, %v621
    %v628 = vadd.f32 %v609, %v621
    %v629 = vmax.f32 %v623, 0.0
    %v630 = vmax.f32 %v624, 0.0
    %v631 = vmax.f32 %v625, 0.0
    %v632 = vmax.f32 %v626, 0.0
    %v633 = vmax.f32 %v627, 0.0
    %v634 = vmax.f32 %v628, 0.0
    %v635 = vmul.f32 %v629, %v141
    %v636 = vmul.f32 %v630, %v142
    %v637 = vmul.f32 %v631, %v143
    %v638 = vmul.f32 %v632, %v141
    %v639 = vmul.f32 %v633, %v142
    %v640 = vmul.f32 %v634, %v143
    %641 = vst [vmem:[#allocation2 + $0x8] sm:$0xff] %v635
    %642 = vst [vmem:[#allocation2 + $0x10] sm:$0xff] %v636
    %643 = vst.msk [vmem:[#allocation2 + $0x18] sm:$0xff] %vm59, %v637
    %644 = vst [vmem:[#allocation2 + $0x28] sm:$0xff] %v638
    %645 = vst [vmem:[#allocation2 + $0x30] sm:$0xff] %v639
    %646 = vst.msk [vmem:[#allocation2 + $0x38] sm:$0xff] %vm59, %v640
    %s647 = scalar_lea.vmem [#allocation6], 48
    %v648 = vld [vmem:[%s647] sm:$0xf]
    %v649 = vld [vmem:[%s647 + $0x4] sm:$0xf]
    %v650 = vld [vmem:[#allocation2] sm:$0xff]
    %v651 = vld [vmem:[#allocation2 + $0x8] sm:$0xff]
    %v652 = vld [vmem:[#allocation2 + $0x10] sm:$0xff]
    %v653 = vld [vmem:[#allocation2 + $0x18] sm:$0xff]
    %v654 = vld [vmem:[#allocation2 + $0x20] sm:$0xff]
    %v655 = vld [vmem:[#allocation2 + $0x28] sm:$0xff]
    %v656 = vld [vmem:[#allocation2 + $0x30] sm:$0xff]
    %v657 = vld [vmem:[#allocation2 + $0x38] sm:$0xff]
    %v658 = vpack.c.bf16 %v654, %v650
    %v659 = vpack.c.bf16 %v655, %v651
    %v660 = vpack.c.bf16 %v656, %v652
    %v661 = vpack.c.bf16 %v657, %v653
    %s662 = scalar_lea.vmem [#allocation6], 56
    %v663 = vld [vmem:[%s662] sm:$0xf]
    %v664 = vld [vmem:[%s662 + $0x4] sm:$0xf]
    %v667 = vunpack.c.l.b16 %v663
    %v668 = vunpack.c.l.b16 %v664
    %v669 = vpack.c.b16 %v668, %v667
    %674 = vrot.lane.b32.xlu0 %v658, 1
    %v675 = vpop.permute.xlu0 %674
    %676 = vrot.lane.b32.xlu0 %v659, 1
    %v677 = vpop.permute.xlu0 %676
    %678 = vrot.lane.b32.xlu0 %v660, 1
    %v679 = vpop.permute.xlu0 %678
    %680 = vrot.lane.b32.xlu0 %v661, 1
    %v681 = vpop.permute.xlu0 %680
    %v682 = vsel %vm308, %v675, %v677
    %v683 = vsel %vm308, %v677, %v679
    %v684 = vsel %vm308, %v679, %v681
    %v689 = vsel %vm173, %v669, 0
    %691 = vmatprep.subr.bf16.mxu0 %v683
    %692 = vmatpush1.bf16.msra.mxu0 %v682
    %693 = vmatprep.subr.bf16.mxu0 0
    %694 = vmatpush1.bf16.msra.mxu0 0
    %695 = vmatprep.subr.bf16.mxu0 0
    %696 = vmatpush1.bf16.msra.mxu0 0
    %697 = vmatprep.subr.bf16.mxu0 0
    %698 = vmatpush1.bf16.msra.mxu0 0
    %699 = vmatprep.subr.bf16.mxu0 0
    %700 = vmatpush1.bf16.msra.mxu0 0
    %701 = vmatprep.subr.bf16.mxu0 0
    %702 = vmatpush1.bf16.msra.mxu0 0
    %703 = vmatprep.subr.bf16.mxu0 0
    %704 = vmatpush1.bf16.msra.mxu0 0
    %705 = vmatprep.subr.bf16.mxu0 0
    %706 = vmatpush1.bf16.msra.mxu0 0
    %707 = vmatprep.subr.bf16.mxu0 0
    %708 = vmatpush1.bf16.msra.mxu0 0
    %709 = vmatprep.subr.bf16.mxu0 0
    %710 = vmatpush1.bf16.msra.mxu0 0
    %711 = vmatprep.subr.bf16.mxu0 0
    %712 = vmatpush1.bf16.msra.mxu0 0
    %713 = vmatprep.subr.bf16.mxu0 0
    %714 = vmatpush1.bf16.msra.mxu0 0
    %715 = vmatprep.subr.bf16.mxu0 0
    %716 = vmatpush1.bf16.msra.mxu0 0
    %717 = vmatprep.subr.bf16.mxu0 0
    %718 = vmatpush1.bf16.msra.mxu0 0
    %719 = vmatprep.subr.bf16.mxu0 0
    %720 = vmatpush1.bf16.msra.mxu0 0
    %721 = vmatprep.subr.bf16.mxu0 0
    %722 = vmatpush1.bf16.msra.mxu0 0
    %723 = vmatprep.mubr.bf16.mxu0 0
    %724 = vmatmul.mubr.bf16.gmra.mrb[0].mxu0 %v689
    %v725 = vpop.f32.mrb[0].mxu0
    %v726 = vadd.f32 0.0, %v725
    %v727 = vpop.f32.mrb[0].mxu0
    %v728 = vadd.f32 0.0, %v727
    %v729 = vpop.f32.mrb[0].mxu0
    %v730 = vadd.f32 0.0, %v729
    %v731 = vpop.f32.mrb[0].mxu0
    %v732 = vadd.f32 0.0, %v731
    %733 = vdwg.mxu0
    %734 = vmatprep.subr.bf16.mxu0 0
    %735 = vmatpush1.bf16.msra.mxu0 %v684
    %736 = vmatprep.subr.bf16.mxu0 0
    %737 = vmatpush1.bf16.msra.mxu0 0
    %738 = vmatprep.subr.bf16.mxu0 0
    %739 = vmatpush1.bf16.msra.mxu0 0
    %740 = vmatprep.subr.bf16.mxu0 0
    %741 = vmatpush1.bf16.msra.mxu0 0
    %742 = vmatprep.subr.bf16.mxu0 0
    %743 = vmatpush1.bf16.msra.mxu0 0
    %744 = vmatprep.subr.bf16.mxu0 0
    %745 = vmatpush1.bf16.msra.mxu0 0
    %746 = vmatprep.subr.bf16.mxu0 0
    %747 = vmatpush1.bf16.msra.mxu0 0
    %748 = vmatprep.subr.bf16.mxu0 0
    %749 = vmatpush1.bf16.msra.mxu0 0
    %750 = vmatprep.subr.bf16.mxu0 0
    %751 = vmatpush1.bf16.msra.mxu0 0
    %752 = vmatprep.subr.bf16.mxu0 0
    %753 = vmatpush1.bf16.msra.mxu0 0
    %754 = vmatprep.subr.bf16.mxu0 0
    %755 = vmatpush1.bf16.msra.mxu0 0
    %756 = vmatprep.subr.bf16.mxu0 0
    %757 = vmatpush1.bf16.msra.mxu0 0
    %758 = vmatprep.subr.bf16.mxu0 0
    %759 = vmatpush1.bf16.msra.mxu0 0
    %760 = vmatprep.subr.bf16.mxu0 0
    %761 = vmatpush1.bf16.msra.mxu0 0
    %762 = vmatprep.subr.bf16.mxu0 0
    %763 = vmatpush1.bf16.msra.mxu0 0
    %764 = vmatprep.subr.bf16.mxu0 0
    %765 = vmatpush1.bf16.msra.mxu0 0
    %766 = vmatprep.mubr.bf16.mxu0 0
    %767 = vmatmul.mubr.bf16.gmra.mrb[0].mxu0 %v689
    %v768 = vpop.f32.mrb[0].mxu0
    %v769 = vadd.f32 0.0, %v768
    %v770 = vpop.f32.mrb[0].mxu0
    %v771 = vpop.f32.mrb[0].mxu0
    %v772 = vadd.f32 0.0, %v771
    %v773 = vpop.f32.mrb[0].mxu0
    %774 = vdwg.mxu0
    %v777 = vunpack.c.l.b16 %v648
    %v778 = vunpack.c.l.b16 %v649
    %v779 = vpack.c.b16 %v778, %v777
    %780 = vrot.lane.b32.xlu0 %v658, 2
    %v781 = vpop.permute.xlu0 %780
    %782 = vrot.lane.b32.xlu0 %v659, 2
    %v783 = vpop.permute.xlu0 %782
    %784 = vrot.lane.b32.xlu0 %v660, 2
    %v785 = vpop.permute.xlu0 %784
    %786 = vrot.lane.b32.xlu0 %v661, 2
    %v787 = vpop.permute.xlu0 %786
    %v788 = vsel %vm415, %v781, %v783
    %v789 = vsel %vm415, %v783, %v785
    %v790 = vsel %vm415, %v785, %v787
    %v795 = vsel %vm173, %v779, 0
    %797 = vmatprep.subr.bf16.mxu0 %v789
    %798 = vmatpush1.bf16.msra.mxu0 %v788
    %799 = vmatprep.subr.bf16.mxu0 0
    %800 = vmatpush1.bf16.msra.mxu0 0
    %801 = vmatprep.subr.bf16.mxu0 0
    %802 = vmatpush1.bf16.msra.mxu0 0
    %803 = vmatprep.subr.bf16.mxu0 0
    %804 = vmatpush1.bf16.msra.mxu0 0
    %805 = vmatprep.subr.bf16.mxu0 0
    %806 = vmatpush1.bf16.msra.mxu0 0
    %807 = vmatprep.subr.bf16.mxu0 0
    %808 = vmatpush1.bf16.msra.mxu0 0
    %809 = vmatprep.subr.bf16.mxu0 0
    %810 = vmatpush1.bf16.msra.mxu0 0
    %811 = vmatprep.subr.bf16.mxu0 0
    %812 = vmatpush1.bf16.msra.mxu0 0
    %813 = vmatprep.subr.bf16.mxu0 0
    %814 = vmatpush1.bf16.msra.mxu0 0
    %815 = vmatprep.subr.bf16.mxu0 0
    %816 = vmatpush1.bf16.msra.mxu0 0
    %817 = vmatprep.subr.bf16.mxu0 0
    %818 = vmatpush1.bf16.msra.mxu0 0
    %819 = vmatprep.subr.bf16.mxu0 0
    %820 = vmatpush1.bf16.msra.mxu0 0
    %821 = vmatprep.subr.bf16.mxu0 0
    %822 = vmatpush1.bf16.msra.mxu0 0
    %823 = vmatprep.subr.bf16.mxu0 0
    %824 = vmatpush1.bf16.msra.mxu0 0
    %825 = vmatprep.subr.bf16.mxu0 0
    %826 = vmatpush1.bf16.msra.mxu0 0
    %827 = vmatprep.subr.bf16.mxu0 0
    %828 = vmatpush1.bf16.msra.mxu0 0
    %829 = vmatprep.mubr.bf16.mxu0 0
    %830 = vmatmul.mubr.bf16.gmra.mrb[0].mxu0 %v795
    %v831 = vpop.f32.mrb[0].mxu0
    %v832 = vadd.f32 %v726, %v831
    %v833 = vpop.f32.mrb[0].mxu0
    %v834 = vadd.f32 %v728, %v833
    %v835 = vpop.f32.mrb[0].mxu0
    %v836 = vadd.f32 %v730, %v835
    %v837 = vpop.f32.mrb[0].mxu0
    %v838 = vadd.f32 %v732, %v837
    %839 = vdwg.mxu0
    %840 = vmatprep.subr.bf16.mxu0 0
    %841 = vmatpush1.bf16.msra.mxu0 %v790
    %842 = vmatprep.subr.bf16.mxu0 0
    %843 = vmatpush1.bf16.msra.mxu0 0
    %844 = vmatprep.subr.bf16.mxu0 0
    %845 = vmatpush1.bf16.msra.mxu0 0
    %846 = vmatprep.subr.bf16.mxu0 0
    %847 = vmatpush1.bf16.msra.mxu0 0
    %848 = vmatprep.subr.bf16.mxu0 0
    %849 = vmatpush1.bf16.msra.mxu0 0
    %850 = vmatprep.subr.bf16.mxu0 0
    %851 = vmatpush1.bf16.msra.mxu0 0
    %852 = vmatprep.subr.bf16.mxu0 0
    %853 = vmatpush1.bf16.msra.mxu0 0
    %854 = vmatprep.subr.bf16.mxu0 0
    %855 = vmatpush1.bf16.msra.mxu0 0
    %856 = vmatprep.subr.bf16.mxu0 0
    %857 = vmatpush1.bf16.msra.mxu0 0
    %858 = vmatprep.subr.bf16.mxu0 0
    %859 = vmatpush1.bf16.msra.mxu0 0
    %860 = vmatprep.subr.bf16.mxu0 0
    %861 = vmatpush1.bf16.msra.mxu0 0
    %862 = vmatprep.subr.bf16.mxu0 0
    %863 = vmatpush1.bf16.msra.mxu0 0
    %864 = vmatprep.subr.bf16.mxu0 0
    %865 = vmatpush1.bf16.msra.mxu0 0
    %866 = vmatprep.subr.bf16.mxu0 0
    %867 = vmatpush1.bf16.msra.mxu0 0
    %868 = vmatprep.subr.bf16.mxu0 0
    %869 = vmatpush1.bf16.msra.mxu0 0
    %870 = vmatprep.subr.bf16.mxu0 0
    %871 = vmatpush1.bf16.msra.mxu0 0
    %872 = vmatprep.mubr.bf16.mxu0 0
    %873 = vmatmul.mubr.bf16.gmra.mrb[0].mxu0 %v795
    %v874 = vpop.f32.mrb[0].mxu0
    %v875 = vadd.f32 %v769, %v874
    %v876 = vpop.f32.mrb[0].mxu0
    %v877 = vpop.f32.mrb[0].mxu0
    %v878 = vadd.f32 %v772, %v877
    %v879 = vpop.f32.mrb[0].mxu0
    %880 = vdwg.mxu0
    %s881 = scalar_lea.vmem [#allocation6], 64
    %v882 = vld [vmem:[%s881] sm:$0xf]
    %v883 = vld [vmem:[%s881 + $0x4] sm:$0xf]
    %v886 = vunpack.c.l.b16 %v882
    %v887 = vunpack.c.l.b16 %v883
    %v888 = vpack.c.b16 %v887, %v886
    %v890 = vsel %vm173, %v888, 0
    %892 = vmatprep.subr.bf16.mxu0 %v660
    %893 = vmatpush1.bf16.msra.mxu0 %v659
    %894 = vmatprep.subr.bf16.mxu0 0
    %895 = vmatpush1.bf16.msra.mxu0 0
    %896 = vmatprep.subr.bf16.mxu0 0
    %897 = vmatpush1.bf16.msra.mxu0 0
    %898 = vmatprep.subr.bf16.mxu0 0
    %899 = vmatpush1.bf16.msra.mxu0 0
    %900 = vmatprep.subr.bf16.mxu0 0
    %901 = vmatpush1.bf16.msra.mxu0 0
    %902 = vmatprep.subr.bf16.mxu0 0
    %903 = vmatpush1.bf16.msra.mxu0 0
    %904 = vmatprep.subr.bf16.mxu0 0
    %905 = vmatpush1.bf16.msra.mxu0 0
    %906 = vmatprep.subr.bf16.mxu0 0
    %907 = vmatpush1.bf16.msra.mxu0 0
    %908 = vmatprep.subr.bf16.mxu0 0
    %909 = vmatpush1.bf16.msra.mxu0 0
    %910 = vmatprep.subr.bf16.mxu0 0
    %911 = vmatpush1.bf16.msra.mxu0 0
    %912 = vmatprep.subr.bf16.mxu0 0
    %913 = vmatpush1.bf16.msra.mxu0 0
    %914 = vmatprep.subr.bf16.mxu0 0
    %915 = vmatpush1.bf16.msra.mxu0 0
    %916 = vmatprep.subr.bf16.mxu0 0
    %917 = vmatpush1.bf16.msra.mxu0 0
    %918 = vmatprep.subr.bf16.mxu0 0
    %919 = vmatpush1.bf16.msra.mxu0 0
    %920 = vmatprep.subr.bf16.mxu0 0
    %921 = vmatpush1.bf16.msra.mxu0 0
    %922 = vmatprep.subr.bf16.mxu0 0
    %923 = vmatpush1.bf16.msra.mxu0 0
    %924 = vmatprep.mubr.bf16.mxu0 0
    %925 = vmatmul.mubr.bf16.gmra.mrb[0].mxu0 %v890
    %v926 = vpop.f32.mrb[0].mxu0
    %v927 = vadd.f32 0.0, %v926
    %v928 = vpop.f32.mrb[0].mxu0
    %v929 = vadd.f32 0.0, %v928
    %v930 = vpop.f32.mrb[0].mxu0
    %v931 = vadd.f32 0.0, %v930
    %v932 = vpop.f32.mrb[0].mxu0
    %v933 = vadd.f32 0.0, %v932
    %934 = vdwg.mxu0
    %935 = vmatprep.subr.bf16.mxu0 0
    %936 = vmatpush1.bf16.msra.mxu0 %v661
    %937 = vmatprep.subr.bf16.mxu0 0
    %938 = vmatpush1.bf16.msra.mxu0 0
    %939 = vmatprep.subr.bf16.mxu0 0
    %940 = vmatpush1.bf16.msra.mxu0 0
    %941 = vmatprep.subr.bf16.mxu0 0
    %942 = vmatpush1.bf16.msra.mxu0 0
    %943 = vmatprep.subr.bf16.mxu0 0
    %944 = vmatpush1.bf16.msra.mxu0 0
    %945 = vmatprep.subr.bf16.mxu0 0
    %946 = vmatpush1.bf16.msra.mxu0 0
    %947 = vmatprep.subr.bf16.mxu0 0
    %948 = vmatpush1.bf16.msra.mxu0 0
    %949 = vmatprep.subr.bf16.mxu0 0
    %950 = vmatpush1.bf16.msra.mxu0 0
    %951 = vmatprep.subr.bf16.mxu0 0
    %952 = vmatpush1.bf16.msra.mxu0 0
    %953 = vmatprep.subr.bf16.mxu0 0
    %954 = vmatpush1.bf16.msra.mxu0 0
    %955 = vmatprep.subr.bf16.mxu0 0
    %956 = vmatpush1.bf16.msra.mxu0 0
    %957 = vmatprep.subr.bf16.mxu0 0
    %958 = vmatpush1.bf16.msra.mxu0 0
    %959 = vmatprep.subr.bf16.mxu0 0
    %960 = vmatpush1.bf16.msra.mxu0 0
    %961 = vmatprep.subr.bf16.mxu0 0
    %962 = vmatpush1.bf16.msra.mxu0 0
    %963 = vmatprep.subr.bf16.mxu0 0
    %964 = vmatpush1.bf16.msra.mxu0 0
    %965 = vmatprep.subr.bf16.mxu0 0
    %966 = vmatpush1.bf16.msra.mxu0 0
    %967 = vmatprep.mubr.bf16.mxu0 0
    %968 = vmatmul.mubr.bf16.gmra.mrb[0].mxu0 %v890
    %v969 = vpop.f32.mrb[0].mxu0
    %v970 = vadd.f32 0.0, %v969
    %v971 = vpop.f32.mrb[0].mxu0
    %v972 = vpop.f32.mrb[0].mxu0
    %v973 = vadd.f32 0.0, %v972
    %v974 = vpop.f32.mrb[0].mxu0
    %975 = vdwg.mxu0
    %v976 = vadd.f32 %v832, %v927
    %v977 = vadd.f32 %v834, %v929
    %v978 = vadd.f32 %v875, %v970
    %v979 = vadd.f32 %v836, %v931
    %v980 = vadd.f32 %v838, %v933
    %v981 = vadd.f32 %v878, %v973
    %s982 = scalar_lea.vmem [#allocation8], 32
    %v983 = vld [vmem:[%s982] sm:$0xff]
    %v984 = vld [vmem:[%s982 + $0x8] sm:$0xff]
    %986 = vset.pattern.permute.xlu0 0
    %987 = vperm.xlu0 %986, %v983
    %v988 = vpop.permute.xlu0 %987
    %991 = vset.pattern.permute.xlu0 0
    %992 = vperm.xlu0 %991, %v984
    %v993 = vpop.permute.xlu0 %992
    %v995 = vadd.f32 %v976, %v988
    %v996 = vadd.f32 %v977, %v988
    %v997 = vadd.f32 %v978, %v988
    %v998 = vadd.f32 %v979, %v993
    %v999 = vadd.f32 %v980, %v993
    %v1000 = vadd.f32 %v981, %v993
    %v1001 = vmax.f32 %v995, 0.0
    %v1002 = vmax.f32 %v996, 0.0
    %v1003 = vmax.f32 %v997, 0.0
    %v1004 = vmax.f32 %v998, 0.0
    %v1005 = vmax.f32 %v999, 0.0
    %v1006 = vmax.f32 %v1000, 0.0
    %v1007 = vmul.f32 %v1001, %v141
    %v1008 = vmul.f32 %v1002, %v142
    %v1009 = vmul.f32 %v1003, %v143
    %v1010 = vmul.f32 %v1004, %v141
    %v1011 = vmul.f32 %v1005, %v142
    %v1012 = vmul.f32 %v1006, %v143
    %v1013 = vld [vmem:[#allocation3] sm:$0xff]
    %v1014 = vld [vmem:[#allocation3 + $0x8] sm:$0xff]
    %v1015 = vld [vmem:[#allocation3 + $0x10] sm:$0xff]
    %v1016 = vld [vmem:[#allocation3 + $0x18] sm:$0xff]
    %v1017 = vld [vmem:[#allocation3 + $0x20] sm:$0xff]
    %v1018 = vld [vmem:[#allocation3 + $0x28] sm:$0xff]
    %v1019 = vadd.f32 %v1007, %v1013
    %v1020 = vadd.f32 %v1008, %v1014
    %v1021 = vadd.f32 %v1009, %v1015
    %v1022 = vadd.f32 %v1010, %v1016
    %v1023 = vadd.f32 %v1011, %v1017
    %v1024 = vadd.f32 %v1012, %v1018
    %v1025 = vmax.f32 %v1019, 0.0
    %v1026 = vmax.f32 %v1020, 0.0
    %v1027 = vmax.f32 %v1021, 0.0
    %v1028 = vmax.f32 %v1022, 0.0
    %v1029 = vmax.f32 %v1023, 0.0
    %v1030 = vmax.f32 %v1024, 0.0
    %1031 = vst [vmem:[#allocation2 + $0x8] sm:$0xff] %v1025
    %1032 = vst [vmem:[#allocation2 + $0x10] sm:$0xff] %v1026
    %1033 = vst.msk [vmem:[#allocation2 + $0x18] sm:$0xff] %vm59, %v1027
    %1034 = vst [vmem:[#allocation2 + $0x28] sm:$0xff] %v1028
    %1035 = vst [vmem:[#allocation2 + $0x30] sm:$0xff] %v1029
    %1036 = vst.msk [vmem:[#allocation2 + $0x38] sm:$0xff] %vm59, %v1030
    %v1037 = vld [vmem:[#allocation2 + $0x8] sm:$0xff]
    %v1038 = vld [vmem:[#allocation2 + $0x10] sm:$0xff]
    %v1039 = vld [vmem:[#allocation2 + $0x18] sm:$0xff]
    %v1040 = vld [vmem:[#allocation2 + $0x28] sm:$0xff]
    %v1041 = vld [vmem:[#allocation2 + $0x30] sm:$0xff]
    %v1042 = vld [vmem:[#allocation2 + $0x38] sm:$0xff]
    %1043 = vst [vmem:[#allocation3] sm:$0xff] %v1037
    %1044 = vst [vmem:[#allocation3 + $0x8] sm:$0xff] %v1038
    %1045 = vst.msk [vmem:[#allocation3 + $0x10] sm:$0xff] %vm59, %v1039
    %1046 = vst [vmem:[#allocation3 + $0x18] sm:$0xff] %v1040
    %1047 = vst [vmem:[#allocation3 + $0x20] sm:$0xff] %v1041
    %1048 = vst.msk [vmem:[#allocation3 + $0x28] sm:$0xff] %vm59, %v1042
    %s1049 = scalar_lea.vmem [#allocation6], 72
    %v1050 = vld [vmem:[%s1049] sm:$0xf]
    %v1051 = vld [vmem:[%s1049 + $0x4] sm:$0xf]
    %v1052 = vld [vmem:[#allocation2] sm:$0xff]
    %v1053 = vld [vmem:[#allocation2 + $0x8] sm:$0xff]
    %v1054 = vld [vmem:[#allocation2 + $0x10] sm:$0xff]
    %v1055 = vld [vmem:[#allocation2 + $0x18] sm:$0xff]
    %v1056 = vld [vmem:[#allocation2 + $0x20] sm:$0xff]
    %v1057 = vld [vmem:[#allocation2 + $0x28] sm:$0xff]
    %v1058 = vld [vmem:[#allocation2 + $0x30] sm:$0xff]
    %v1059 = vld [vmem:[#allocation2 + $0x38] sm:$0xff]
    %v1060 = vpack.c.bf16 %v1056, %v1052
    %v1061 = vpack.c.bf16 %v1057, %v1053
    %v1062 = vpack.c.bf16 %v1058, %v1054
    %v1063 = vpack.c.bf16 %v1059, %v1055
    %s1064 = scalar_lea.vmem [#allocation6], 80
    %v1065 = vld [vmem:[%s1064] sm:$0xf]
    %v1066 = vld [vmem:[%s1064 + $0x4] sm:$0xf]
    %v1069 = vunpack.c.l.b16 %v1065
    %v1070 = vunpack.c.l.b16 %v1066
    %v1071 = vpack.c.b16 %v1070, %v1069
    %1076 = vrot.lane.b32.xlu0 %v1060, 2
    %v1077 = vpop.permute.xlu0 %1076
    %1078 = vrot.lane.b32.xlu0 %v1061, 2
    %v1079 = vpop.permute.xlu0 %1078
    %1080 = vrot.lane.b32.xlu0 %v1062, 2
    %v1081 = vpop.permute.xlu0 %1080
    %1082 = vrot.lane.b32.xlu0 %v1063, 2
    %v1083 = vpop.permute.xlu0 %1082
    %v1084 = vsel %vm415, %v1077, %v1079
    %v1085 = vsel %vm415, %v1079, %v1081
    %v1086 = vsel %vm415, %v1081, %v1083
    %v1091 = vsel %vm173, %v1071, 0
    %1093 = vmatprep.subr.bf16.mxu0 %v1085
    %1094 = vmatpush1.bf16.msra.mxu0 %v1084
    %1095 = vmatprep.subr.bf16.mxu0 0
    %1096 = vmatpush1.bf16.msra.mxu0 0
    %1097 = vmatprep.subr.bf16.mxu0 0
    %1098 = vmatpush1.bf16.msra.mxu0 0
    %1099 = vmatprep.subr.bf16.mxu0 0
    %1100 = vmatpush1.bf16.msra.mxu0 0
    %1101 = vmatprep.subr.bf16.mxu0 0
    %1102 = vmatpush1.bf16.msra.mxu0 0
    %1103 = vmatprep.subr.bf16.mxu0 0
    %1104 = vmatpush1.bf16.msra.mxu0 0
    %1105 = vmatprep.subr.bf16.mxu0 0
    %1106 = vmatpush1.bf16.msra.mxu0 0
    %1107 = vmatprep.subr.bf16.mxu0 0
    %1108 = vmatpush1.bf16.msra.mxu0 0
    %1109 = vmatprep.subr.bf16.mxu0 0
    %1110 = vmatpush1.bf16.msra.mxu0 0
    %1111 = vmatprep.subr.bf16.mxu0 0
    %1112 = vmatpush1.bf16.msra.mxu0 0
    %1113 = vmatprep.subr.bf16.mxu0 0
    %1114 = vmatpush1.bf16.msra.mxu0 0
    %1115 = vmatprep.subr.bf16.mxu0 0
    %1116 = vmatpush1.bf16.msra.mxu0 0
    %1117 = vmatprep.subr.bf16.mxu0 0
    %1118 = vmatpush1.bf16.msra.mxu0 0
    %1119 = vmatprep.subr.bf16.mxu0 0
    %1120 = vmatpush1.bf16.msra.mxu0 0
    %1121 = vmatprep.subr.bf16.mxu0 0
    %1122 = vmatpush1.bf16.msra.mxu0 0
    %1123 = vmatprep.subr.bf16.mxu0 0
    %1124 = vmatpush1.bf16.msra.mxu0 0
    %1125 = vmatprep.mubr.bf16.mxu0 0
    %1126 = vmatmul.mubr.bf16.gmra.mrb[0].mxu0 %v1091
    %v1127 = vpop.f32.mrb[0].mxu0
    %v1128 = vadd.f32 0.0, %v1127
    %v1129 = vpop.f32.mrb[0].mxu0
    %v1130 = vadd.f32 0.0, %v1129
    %v1131 = vpop.f32.mrb[0].mxu0
    %v1132 = vadd.f32 0.0, %v1131
    %v1133 = vpop.f32.mrb[0].mxu0
    %v1134 = vadd.f32 0.0, %v1133
    %1135 = vdwg.mxu0
    %1136 = vmatprep.subr.bf16.mxu0 0
    %1137 = vmatpush1.bf16.msra.mxu0 %v1086
    %1138 = vmatprep.subr.bf16.mxu0 0
    %1139 = vmatpush1.bf16.msra.mxu0 0
    %1140 = vmatprep.subr.bf16.mxu0 0
    %1141 = vmatpush1.bf16.msra.mxu0 0
    %1142 = vmatprep.subr.bf16.mxu0 0
    %1143 = vmatpush1.bf16.msra.mxu0 0
    %1144 = vmatprep.subr.bf16.mxu0 0
    %1145 = vmatpush1.bf16.msra.mxu0 0
    %1146 = vmatprep.subr.bf16.mxu0 0
    %1147 = vmatpush1.bf16.msra.mxu0 0
    %1148 = vmatprep.subr.bf16.mxu0 0
    %1149 = vmatpush1.bf16.msra.mxu0 0
    %1150 = vmatprep.subr.bf16.mxu0 0
    %1151 = vmatpush1.bf16.msra.mxu0 0
    %1152 = vmatprep.subr.bf16.mxu0 0
    %1153 = vmatpush1.bf16.msra.mxu0 0
    %1154 = vmatprep.subr.bf16.mxu0 0
    %1155 = vmatpush1.bf16.msra.mxu0 0
    %1156 = vmatprep.subr.bf16.mxu0 0
    %1157 = vmatpush1.bf16.msra.mxu0 0
    %1158 = vmatprep.subr.bf16.mxu0 0
    %1159 = vmatpush1.bf16.msra.mxu0 0
    %1160 = vmatprep.subr.bf16.mxu0 0
    %1161 = vmatpush1.bf16.msra.mxu0 0
    %1162 = vmatprep.subr.bf16.mxu0 0
    %1163 = vmatpush1.bf16.msra.mxu0 0
    %1164 = vmatprep.subr.bf16.mxu0 0
    %1165 = vmatpush1.bf16.msra.mxu0 0
    %1166 = vmatprep.subr.bf16.mxu0 0
    %1167 = vmatpush1.bf16.msra.mxu0 0
    %1168 = vmatprep.mubr.bf16.mxu0 0
    %1169 = vmatmul.mubr.bf16.gmra.mrb[0].mxu0 %v1091
    %v1170 = vpop.f32.mrb[0].mxu0
    %v1171 = vadd.f32 0.0, %v1170
    %v1172 = vpop.f32.mrb[0].mxu0
    %v1173 = vpop.f32.mrb[0].mxu0
    %v1174 = vadd.f32 0.0, %v1173
    %v1175 = vpop.f32.mrb[0].mxu0
    %1176 = vdwg.mxu0
    %v1179 = vunpack.c.l.b16 %v1050
    %v1180 = vunpack.c.l.b16 %v1051
    %v1181 = vpack.c.b16 %v1180, %v1179
    %1182 = vrot.lane.b32.xlu0 %v1060, 4
    %v1183 = vpop.permute.xlu0 %1182
    %1184 = vrot.lane.b32.xlu0 %v1061, 4
    %v1185 = vpop.permute.xlu0 %1184
    %1186 = vrot.lane.b32.xlu0 %v1062, 4
    %v1187 = vpop.permute.xlu0 %1186
    %1188 = vrot.lane.b32.xlu0 %v1063, 4
    %v1189 = vpop.permute.xlu0 %1188
    %vm1190 = vcmask 31744
    %v1191 = vsel %vm1190, %v1183, %v1185
    %v1192 = vsel %vm1190, %v1185, %v1187
    %v1193 = vsel %vm1190, %v1187, %v1189
    %v1198 = vsel %vm173, %v1181, 0
    %1200 = vmatprep.subr.bf16.mxu0 %v1192
    %1201 = vmatpush1.bf16.msra.mxu0 %v1191
    %1202 = vmatprep.subr.bf16.mxu0 0
    %1203 = vmatpush1.bf16.msra.mxu0 0
    %1204 = vmatprep.subr.bf16.mxu0 0
    %1205 = vmatpush1.bf16.msra.mxu0 0
    %1206 = vmatprep.subr.bf16.mxu0 0
    %1207 = vmatpush1.bf16.msra.mxu0 0
    %1208 = vmatprep.subr.bf16.mxu0 0
    %1209 = vmatpush1.bf16.msra.mxu0 0
    %1210 = vmatprep.subr.bf16.mxu0 0
    %1211 = vmatpush1.bf16.msra.mxu0 0
    %1212 = vmatprep.subr.bf16.mxu0 0
    %1213 = vmatpush1.bf16.msra.mxu0 0
    %1214 = vmatprep.subr.bf16.mxu0 0
    %1215 = vmatpush1.bf16.msra.mxu0 0
    %1216 = vmatprep.subr.bf16.mxu0 0
    %1217 = vmatpush1.bf16.msra.mxu0 0
    %1218 = vmatprep.subr.bf16.mxu0 0
    %1219 = vmatpush1.bf16.msra.mxu0 0
    %1220 = vmatprep.subr.bf16.mxu0 0
    %1221 = vmatpush1.bf16.msra.mxu0 0
    %1222 = vmatprep.subr.bf16.mxu0 0
    %1223 = vmatpush1.bf16.msra.mxu0 0
    %1224 = vmatprep.subr.bf16.mxu0 0
    %1225 = vmatpush1.bf16.msra.mxu0 0
    %1226 = vmatprep.subr.bf16.mxu0 0
    %1227 = vmatpush1.bf16.msra.mxu0 0
    %1228 = vmatprep.subr.bf16.mxu0 0
    %1229 = vmatpush1.bf16.msra.mxu0 0
    %1230 = vmatprep.subr.bf16.mxu0 0
    %1231 = vmatpush1.bf16.msra.mxu0 0
    %1232 = vmatprep.mubr.bf16.mxu0 0
    %1233 = vmatmul.mubr.bf16.gmra.mrb[0].mxu0 %v1198
    %v1234 = vpop.f32.mrb[0].mxu0
    %v1235 = vadd.f32 %v1128, %v1234
    %v1236 = vpop.f32.mrb[0].mxu0
    %v1237 = vadd.f32 %v1130, %v1236
    %v1238 = vpop.f32.mrb[0].mxu0
    %v1239 = vadd.f32 %v1132, %v1238
    %v1240 = vpop.f32.mrb[0].mxu0
    %v1241 = vadd.f32 %v1134, %v1240
    %1242 = vdwg.mxu0
    %1243 = vmatprep.subr.bf16.mxu0 0
    %1244 = vmatpush1.bf16.msra.mxu0 %v1193
    %1245 = vmatprep.subr.bf16.mxu0 0
    %1246 = vmatpush1.bf16.msra.mxu0 0
    %1247 = vmatprep.subr.bf16.mxu0 0
    %1248 = vmatpush1.bf16.msra.mxu0 0
    %1249 = vmatprep.subr.bf16.mxu0 0
    %1250 = vmatpush1.bf16.msra.mxu0 0
    %1251 = vmatprep.subr.bf16.mxu0 0
    %1252 = vmatpush1.bf16.msra.mxu0 0
    %1253 = vmatprep.subr.bf16.mxu0 0
    %1254 = vmatpush1.bf16.msra.mxu0 0
    %1255 = vmatprep.subr.bf16.mxu0 0
    %1256 = vmatpush1.bf16.msra.mxu0 0
    %1257 = vmatprep.subr.bf16.mxu0 0
    %1258 = vmatpush1.bf16.msra.mxu0 0
    %1259 = vmatprep.subr.bf16.mxu0 0
    %1260 = vmatpush1.bf16.msra.mxu0 0
    %1261 = vmatprep.subr.bf16.mxu0 0
    %1262 = vmatpush1.bf16.msra.mxu0 0
    %1263 = vmatprep.subr.bf16.mxu0 0
    %1264 = vmatpush1.bf16.msra.mxu0 0
    %1265 = vmatprep.subr.bf16.mxu0 0
    %1266 = vmatpush1.bf16.msra.mxu0 0
    %1267 = vmatprep.subr.bf16.mxu0 0
    %1268 = vmatpush1.bf16.msra.mxu0 0
    %1269 = vmatprep.subr.bf16.mxu0 0
    %1270 = vmatpush1.bf16.msra.mxu0 0
    %1271 = vmatprep.subr.bf16.mxu0 0
    %1272 = vmatpush1.bf16.msra.mxu0 0
    %1273 = vmatprep.subr.bf16.mxu0 0
    %1274 = vmatpush1.bf16.msra.mxu0 0
    %1275 = vmatprep.mubr.bf16.mxu0 0
    %1276 = vmatmul.mubr.bf16.gmra.mrb[0].mxu0 %v1198
    %v1277 = vpop.f32.mrb[0].mxu0
    %v1278 = vadd.f32 %v1171, %v1277
    %v1279 = vpop.f32.mrb[0].mxu0
    %v1280 = vpop.f32.mrb[0].mxu0
    %v1281 = vadd.f32 %v1174, %v1280
    %v1282 = vpop.f32.mrb[0].mxu0
    %1283 = vdwg.mxu0
    %s1284 = scalar_lea.vmem [#allocation6], 88
    %v1285 = vld [vmem:[%s1284] sm:$0xf]
    %v1286 = vld [vmem:[%s1284 + $0x4] sm:$0xf]
    %v1289 = vunpack.c.l.b16 %v1285
    %v1290 = vunpack.c.l.b16 %v1286
    %v1291 = vpack.c.b16 %v1290, %v1289
    %v1293 = vsel %vm173, %v1291, 0
    %1295 = vmatprep.subr.bf16.mxu0 %v1062
    %1296 = vmatpush1.bf16.msra.mxu0 %v1061
    %1297 = vmatprep.subr.bf16.mxu0 0
    %1298 = vmatpush1.bf16.msra.mxu0 0
    %1299 = vmatprep.subr.bf16.mxu0 0
    %1300 = vmatpush1.bf16.msra.mxu0 0
    %1301 = vmatprep.subr.bf16.mxu0 0
    %1302 = vmatpush1.bf16.msra.mxu0 0
    %1303 = vmatprep.subr.bf16.mxu0 0
    %1304 = vmatpush1.bf16.msra.mxu0 0
    %1305 = vmatprep.subr.bf16.mxu0 0
    %1306 = vmatpush1.bf16.msra.mxu0 0
    %1307 = vmatprep.subr.bf16.mxu0 0
    %1308 = vmatpush1.bf16.msra.mxu0 0
    %1309 = vmatprep.subr.bf16.mxu0 0
    %1310 = vmatpush1.bf16.msra.mxu0 0
    %1311 = vmatprep.subr.bf16.mxu0 0
    %1312 = vmatpush1.bf16.msra.mxu0 0
    %1313 = vmatprep.subr.bf16.mxu0 0
    %1314 = vmatpush1.bf16.msra.mxu0 0
    %1315 = vmatprep.subr.bf16.mxu0 0
    %1316 = vmatpush1.bf16.msra.mxu0 0
    %1317 = vmatprep.subr.bf16.mxu0 0
    %1318 = vmatpush1.bf16.msra.mxu0 0
    %1319 = vmatprep.subr.bf16.mxu0 0
    %1320 = vmatpush1.bf16.msra.mxu0 0
    %1321 = vmatprep.subr.bf16.mxu0 0
    %1322 = vmatpush1.bf16.msra.mxu0 0
    %1323 = vmatprep.subr.bf16.mxu0 0
    %1324 = vmatpush1.bf16.msra.mxu0 0
    %1325 = vmatprep.subr.bf16.mxu0 0
    %1326 = vmatpush1.bf16.msra.mxu0 0
    %1327 = vmatprep.mubr.bf16.mxu0 0
    %1328 = vmatmul.mubr.bf16.gmra.mrb[0].mxu0 %v1293
    %v1329 = vpop.f32.mrb[0].mxu0
    %v1330 = vadd.f32 0.0, %v1329
    %v1331 = vpop.f32.mrb[0].mxu0
    %v1332 = vadd.f32 0.0, %v1331
    %v1333 = vpop.f32.mrb[0].mxu0
    %v1334 = vadd.f32 0.0, %v1333
    %v1335 = vpop.f32.mrb[0].mxu0
    %v1336 = vadd.f32 0.0, %v1335
    %1337 = vdwg.mxu0
    %1338 = vmatprep.subr.bf16.mxu0 0
    %1339 = vmatpush1.bf16.msra.mxu0 %v1063
    %1340 = vmatprep.subr.bf16.mxu0 0
    %1341 = vmatpush1.bf16.msra.mxu0 0
    %1342 = vmatprep.subr.bf16.mxu0 0
    %1343 = vmatpush1.bf16.msra.mxu0 0
    %1344 = vmatprep.subr.bf16.mxu0 0
    %1345 = vmatpush1.bf16.msra.mxu0 0
    %1346 = vmatprep.subr.bf16.mxu0 0
    %1347 = vmatpush1.bf16.msra.mxu0 0
    %1348 = vmatprep.subr.bf16.mxu0 0
    %1349 = vmatpush1.bf16.msra.mxu0 0
    %1350 = vmatprep.subr.bf16.mxu0 0
    %1351 = vmatpush1.bf16.msra.mxu0 0
    %1352 = vmatprep.subr.bf16.mxu0 0
    %1353 = vmatpush1.bf16.msra.mxu0 0
    %1354 = vmatprep.subr.bf16.mxu0 0
    %1355 = vmatpush1.bf16.msra.mxu0 0
    %1356 = vmatprep.subr.bf16.mxu0 0
    %1357 = vmatpush1.bf16.msra.mxu0 0
    %1358 = vmatprep.subr.bf16.mxu0 0
    %1359 = vmatpush1.bf16.msra.mxu0 0
    %1360 = vmatprep.subr.bf16.mxu0 0
    %1361 = vmatpush1.bf16.msra.mxu0 0
    %1362 = vmatprep.subr.bf16.mxu0 0
    %1363 = vmatpush1.bf16.msra.mxu0 0
    %1364 = vmatprep.subr.bf16.mxu0 0
    %1365 = vmatpush1.bf16.msra.mxu0 0
    %1366 = vmatprep.subr.bf16.mxu0 0
    %1367 = vmatpush1.bf16.msra.mxu0 0
    %1368 = vmatprep.subr.bf16.mxu0 0
    %1369 = vmatpush1.bf16.msra.mxu0 0
    %1370 = vmatprep.mubr.bf16.mxu0 0
    %1371 = vmatmul.mubr.bf16.gmra.mrb[0].mxu0 %v1293
    %v1372 = vpop.f32.mrb[0].mxu0
    %v1373 = vadd.f32 0.0, %v1372
    %v1374 = vpop.f32.mrb[0].mxu0
    %v1375 = vpop.f32.mrb[0].mxu0
    %v1376 = vadd.f32 0.0, %v1375
    %v1377 = vpop.f32.mrb[0].mxu0
    %1378 = vdwg.mxu0
    %v1379 = vadd.f32 %v1235, %v1330
    %v1380 = vadd.f32 %v1237, %v1332
    %v1381 = vadd.f32 %v1278, %v1373
    %v1382 = vadd.f32 %v1239, %v1334
    %v1383 = vadd.f32 %v1241, %v1336
    %v1384 = vadd.f32 %v1281, %v1376
    %s1385 = scalar_lea.vmem [#allocation8], 48
    %v1386 = vld [vmem:[%s1385] sm:$0xff]
    %v1387 = vld [vmem:[%s1385 + $0x8] sm:$0xff]
    %1389 = vset.pattern.permute.xlu0 0
    %1390 = vperm.xlu0 %1389, %v1386
    %v1391 = vpop.permute.xlu0 %1390
    %1394 = vset.pattern.permute.xlu0 0
    %1395 = vperm.xlu0 %1394, %v1387
    %v1396 = vpop.permute.xlu0 %1395
    %v1398 = vadd.f32 %v1379, %v1391
    %v1399 = vadd.f32 %v1380, %v1391
    %v1400 = vadd.f32 %v1381, %v1391
    %v1401 = vadd.f32 %v1382, %v1396
    %v1402 = vadd.f32 %v1383, %v1396
    %v1403 = vadd.f32 %v1384, %v1396
    %v1404 = vmax.f32 %v1398, 0.0
    %v1405 = vmax.f32 %v1399, 0.0
    %v1406 = vmax.f32 %v1400, 0.0
    %v1407 = vmax.f32 %v1401, 0.0
    %v1408 = vmax.f32 %v1402, 0.0
    %v1409 = vmax.f32 %v1403, 0.0
    %v1410 = vmul.f32 %v1404, %v141
    %v1411 = vmul.f32 %v1405, %v142
    %v1412 = vmul.f32 %v1406, %v143
    %v1413 = vmul.f32 %v1407, %v141
    %v1414 = vmul.f32 %v1408, %v142
    %v1415 = vmul.f32 %v1409, %v143
    %1416 = vst [vmem:[#allocation2 + $0x8] sm:$0xff] %v1410
    %1417 = vst [vmem:[#allocation2 + $0x10] sm:$0xff] %v1411
    %1418 = vst.msk [vmem:[#allocation2 + $0x18] sm:$0xff] %vm59, %v1412
    %1419 = vst [vmem:[#allocation2 + $0x28] sm:$0xff] %v1413
    %1420 = vst [vmem:[#allocation2 + $0x30] sm:$0xff] %v1414
    %1421 = vst.msk [vmem:[#allocation2 + $0x38] sm:$0xff] %vm59, %v1415
    %s1422 = scalar_lea.vmem [#allocation6], 96
    %v1423 = vld [vmem:[%s1422] sm:$0xf]
    %v1424 = vld [vmem:[%s1422 + $0x4] sm:$0xf]
    %v1425 = vld [vmem:[#allocation2] sm:$0xff]
    %v1426 = vld [vmem:[#allocation2 + $0x8] sm:$0xff]
    %v1427 = vld [vmem:[#allocation2 + $0x10] sm:$0xff]
    %v1428 = vld [vmem:[#allocation2 + $0x18] sm:$0xff]
    %v1429 = vld [vmem:[#allocation2 + $0x20] sm:$0xff]
    %v1430 = vld [vmem:[#allocation2 + $0x28] sm:$0xff]
    %v1431 = vld [vmem:[#allocation2 + $0x30] sm:$0xff]
    %v1432 = vld [vmem:[#allocation2 + $0x38] sm:$0xff]
    %v1433 = vpack.c.bf16 %v1429, %v1425
    %v1434 = vpack.c.bf16 %v1430, %v1426
    %v1435 = vpack.c.bf16 %v1431, %v1427
    %v1436 = vpack.c.bf16 %v1432, %v1428
    %s1437 = scalar_lea.vmem [#allocation6], 104
    %v1438 = vld [vmem:[%s1437] sm:$0xf]
    %v1439 = vld [vmem:[%s1437 + $0x4] sm:$0xf]
    %v1442 = vunpack.c.l.b16 %v1438
    %v1443 = vunpack.c.l.b16 %v1439
    %v1444 = vpack.c.b16 %v1443, %v1442
    %1449 = vrot.lane.b32.xlu0 %v1433, 2
    %v1450 = vpop.permute.xlu0 %1449
    %1451 = vrot.lane.b32.xlu0 %v1434, 2
    %v1452 = vpop.permute.xlu0 %1451
    %1453 = vrot.lane.b32.xlu0 %v1435, 2
    %v1454 = vpop.permute.xlu0 %1453
    %1455 = vrot.lane.b32.xlu0 %v1436, 2
    %v1456 = vpop.permute.xlu0 %1455
    %v1457 = vsel %vm415, %v1450, %v1452
    %v1458 = vsel %vm415, %v1452, %v1454
    %v1459 = vsel %vm415, %v1454, %v1456
    %v1464 = vsel %vm173, %v1444, 0
    %1466 = vmatprep.subr.bf16.mxu0 %v1458
    %1467 = vmatpush1.bf16.msra.mxu0 %v1457
    %1468 = vmatprep.subr.bf16.mxu0 0
    %1469 = vmatpush1.bf16.msra.mxu0 0
    %1470 = vmatprep.subr.bf16.mxu0 0
    %1471 = vmatpush1.bf16.msra.mxu0 0
    %1472 = vmatprep.subr.bf16.mxu0 0
    %1473 = vmatpush1.bf16.msra.mxu0 0
    %1474 = vmatprep.subr.bf16.mxu0 0
    %1475 = vmatpush1.bf16.msra.mxu0 0
    %1476 = vmatprep.subr.bf16.mxu0 0
    %1477 = vmatpush1.bf16.msra.mxu0 0
    %1478 = vmatprep.subr.bf16.mxu0 0
    %1479 = vmatpush1.bf16.msra.mxu0 0
    %1480 = vmatprep.subr.bf16.mxu0 0
    %1481 = vmatpush1.bf16.msra.mxu0 0
    %1482 = vmatprep.subr.bf16.mxu0 0
    %1483 = vmatpush1.bf16.msra.mxu0 0
    %1484 = vmatprep.subr.bf16.mxu0 0
    %1485 = vmatpush1.bf16.msra.mxu0 0
    %1486 = vmatprep.subr.bf16.mxu0 0
    %1487 = vmatpush1.bf16.msra.mxu0 0
    %1488 = vmatprep.subr.bf16.mxu0 0
    %1489 = vmatpush1.bf16.msra.mxu0 0
    %1490 = vmatprep.subr.bf16.mxu0 0
    %1491 = vmatpush1.bf16.msra.mxu0 0
    %1492 = vmatprep.subr.bf16.mxu0 0
    %1493 = vmatpush1.bf16.msra.mxu0 0
    %1494 = vmatprep.subr.bf16.mxu0 0
    %1495 = vmatpush1.bf16.msra.mxu0 0
    %1496 = vmatprep.subr.bf16.mxu0 0
    %1497 = vmatpush1.bf16.msra.mxu0 0
    %1498 = vmatprep.mubr.bf16.mxu0 0
    %1499 = vmatmul.mubr.bf16.gmra.mrb[0].mxu0 %v1464
    %v1500 = vpop.f32.mrb[0].mxu0
    %v1501 = vadd.f32 0.0, %v1500
    %v1502 = vpop.f32.mrb[0].mxu0
    %v1503 = vadd.f32 0.0, %v1502
    %v1504 = vpop.f32.mrb[0].mxu0
    %v1505 = vadd.f32 0.0, %v1504
    %v1506 = vpop.f32.mrb[0].mxu0
    %v1507 = vadd.f32 0.0, %v1506
    %1508 = vdwg.mxu0
    %1509 = vmatprep.subr.bf16.mxu0 0
    %1510 = vmatpush1.bf16.msra.mxu0 %v1459
    %1511 = vmatprep.subr.bf16.mxu0 0
    %1512 = vmatpush1.bf16.msra.mxu0 0
    %1513 = vmatprep.subr.bf16.mxu0 0
    %1514 = vmatpush1.bf16.msra.mxu0 0
    %1515 = vmatprep.subr.bf16.mxu0 0
    %1516 = vmatpush1.bf16.msra.mxu0 0
    %1517 = vmatprep.subr.bf16.mxu0 0
    %1518 = vmatpush1.bf16.msra.mxu0 0
    %1519 = vmatprep.subr.bf16.mxu0 0
    %1520 = vmatpush1.bf16.msra.mxu0 0
    %1521 = vmatprep.subr.bf16.mxu0 0
    %1522 = vmatpush1.bf16.msra.mxu0 0
    %1523 = vmatprep.subr.bf16.mxu0 0
    %1524 = vmatpush1.bf16.msra.mxu0 0
    %1525 = vmatprep.subr.bf16.mxu0 0
    %1526 = vmatpush1.bf16.msra.mxu0 0
    %1527 = vmatprep.subr.bf16.mxu0 0
    %1528 = vmatpush1.bf16.msra.mxu0 0
    %1529 = vmatprep.subr.bf16.mxu0 0
    %1530 = vmatpush1.bf16.msra.mxu0 0
    %1531 = vmatprep.subr.bf16.mxu0 0
    %1532 = vmatpush1.bf16.msra.mxu0 0
    %1533 = vmatprep.subr.bf16.mxu0 0
    %1534 = vmatpush1.bf16.msra.mxu0 0
    %1535 = vmatprep.subr.bf16.mxu0 0
    %1536 = vmatpush1.bf16.msra.mxu0 0
    %1537 = vmatprep.subr.bf16.mxu0 0
    %1538 = vmatpush1.bf16.msra.mxu0 0
    %1539 = vmatprep.subr.bf16.mxu0 0
    %1540 = vmatpush1.bf16.msra.mxu0 0
    %1541 = vmatprep.mubr.bf16.mxu0 0
    %1542 = vmatmul.mubr.bf16.gmra.mrb[0].mxu0 %v1464
    %v1543 = vpop.f32.mrb[0].mxu0
    %v1544 = vadd.f32 0.0, %v1543
    %v1545 = vpop.f32.mrb[0].mxu0
    %v1546 = vpop.f32.mrb[0].mxu0
    %v1547 = vadd.f32 0.0, %v1546
    %v1548 = vpop.f32.mrb[0].mxu0
    %1549 = vdwg.mxu0
    %v1552 = vunpack.c.l.b16 %v1423
    %v1553 = vunpack.c.l.b16 %v1424
    %v1554 = vpack.c.b16 %v1553, %v1552
    %1555 = vrot.lane.b32.xlu0 %v1433, 4
    %v1556 = vpop.permute.xlu0 %1555
    %1557 = vrot.lane.b32.xlu0 %v1434, 4
    %v1558 = vpop.permute.xlu0 %1557
    %1559 = vrot.lane.b32.xlu0 %v1435, 4
    %v1560 = vpop.permute.xlu0 %1559
    %1561 = vrot.lane.b32.xlu0 %v1436, 4
    %v1562 = vpop.permute.xlu0 %1561
    %v1563 = vsel %vm1190, %v1556, %v1558
    %v1564 = vsel %vm1190, %v1558, %v1560
    %v1565 = vsel %vm1190, %v1560, %v1562
    %v1570 = vsel %vm173, %v1554, 0
    %1572 = vmatprep.subr.bf16.mxu0 %v1564
    %1573 = vmatpush1.bf16.msra.mxu0 %v1563
    %1574 = vmatprep.subr.bf16.mxu0 0
    %1575 = vmatpush1.bf16.msra.mxu0 0
    %1576 = vmatprep.subr.bf16.mxu0 0
    %1577 = vmatpush1.bf16.msra.mxu0 0
    %1578 = vmatprep.subr.bf16.mxu0 0
    %1579 = vmatpush1.bf16.msra.mxu0 0
    %1580 = vmatprep.subr.bf16.mxu0 0
    %1581 = vmatpush1.bf16.msra.mxu0 0
    %1582 = vmatprep.subr.bf16.mxu0 0
    %1583 = vmatpush1.bf16.msra.mxu0 0
    %1584 = vmatprep.subr.bf16.mxu0 0
    %1585 = vmatpush1.bf16.msra.mxu0 0
    %1586 = vmatprep.subr.bf16.mxu0 0
    %1587 = vmatpush1.bf16.msra.mxu0 0
    %1588 = vmatprep.subr.bf16.mxu0 0
    %1589 = vmatpush1.bf16.msra.mxu0 0
    %1590 = vmatprep.subr.bf16.mxu0 0
    %1591 = vmatpush1.bf16.msra.mxu0 0
    %1592 = vmatprep.subr.bf16.mxu0 0
    %1593 = vmatpush1.bf16.msra.mxu0 0
    %1594 = vmatprep.subr.bf16.mxu0 0
    %1595 = vmatpush1.bf16.msra.mxu0 0
    %1596 = vmatprep.subr.bf16.mxu0 0
    %1597 = vmatpush1.bf16.msra.mxu0 0
    %1598 = vmatprep.subr.bf16.mxu0 0
    %1599 = vmatpush1.bf16.msra.mxu0 0
    %1600 = vmatprep.subr.bf16.mxu0 0
    %1601 = vmatpush1.bf16.msra.mxu0 0
    %1602 = vmatprep.subr.bf16.mxu0 0
    %1603 = vmatpush1.bf16.msra.mxu0 0
    %1604 = vmatprep.mubr.bf16.mxu0 0
    %1605 = vmatmul.mubr.bf16.gmra.mrb[0].mxu0 %v1570
    %v1606 = vpop.f32.mrb[0].mxu0
    %v1607 = vadd.f32 %v1501, %v1606
    %v1608 = vpop.f32.mrb[0].mxu0
    %v1609 = vadd.f32 %v1503, %v1608
    %v1610 = vpop.f32.mrb[0].mxu0
    %v1611 = vadd.f32 %v1505, %v1610
    %v1612 = vpop.f32.mrb[0].mxu0
    %v1613 = vadd.f32 %v1507, %v1612
    %1614 = vdwg.mxu0
    %1615 = vmatprep.subr.bf16.mxu0 0
    %1616 = vmatpush1.bf16.msra.mxu0 %v1565
    %1617 = vmatprep.subr.bf16.mxu0 0
    %1618 = vmatpush1.bf16.msra.mxu0 0
    %1619 = vmatprep.subr.bf16.mxu0 0
    %1620 = vmatpush1.bf16.msra.mxu0 0
    %1621 = vmatprep.subr.bf16.mxu0 0
    %1622 = vmatpush1.bf16.msra.mxu0 0
    %1623 = vmatprep.subr.bf16.mxu0 0
    %1624 = vmatpush1.bf16.msra.mxu0 0
    %1625 = vmatprep.subr.bf16.mxu0 0
    %1626 = vmatpush1.bf16.msra.mxu0 0
    %1627 = vmatprep.subr.bf16.mxu0 0
    %1628 = vmatpush1.bf16.msra.mxu0 0
    %1629 = vmatprep.subr.bf16.mxu0 0
    %1630 = vmatpush1.bf16.msra.mxu0 0
    %1631 = vmatprep.subr.bf16.mxu0 0
    %1632 = vmatpush1.bf16.msra.mxu0 0
    %1633 = vmatprep.subr.bf16.mxu0 0
    %1634 = vmatpush1.bf16.msra.mxu0 0
    %1635 = vmatprep.subr.bf16.mxu0 0
    %1636 = vmatpush1.bf16.msra.mxu0 0
    %1637 = vmatprep.subr.bf16.mxu0 0
    %1638 = vmatpush1.bf16.msra.mxu0 0
    %1639 = vmatprep.subr.bf16.mxu0 0
    %1640 = vmatpush1.bf16.msra.mxu0 0
    %1641 = vmatprep.subr.bf16.mxu0 0
    %1642 = vmatpush1.bf16.msra.mxu0 0
    %1643 = vmatprep.subr.bf16.mxu0 0
    %1644 = vmatpush1.bf16.msra.mxu0 0
    %1645 = vmatprep.subr.bf16.mxu0 0
    %1646 = vmatpush1.bf16.msra.mxu0 0
    %1647 = vmatprep.mubr.bf16.mxu0 0
    %1648 = vmatmul.mubr.bf16.gmra.mrb[0].mxu0 %v1570
    %v1649 = vpop.f32.mrb[0].mxu0
    %v1650 = vadd.f32 %v1544, %v1649
    %v1651 = vpop.f32.mrb[0].mxu0
    %v1652 = vpop.f32.mrb[0].mxu0
    %v1653 = vadd.f32 %v1547, %v1652
    %v1654 = vpop.f32.mrb[0].mxu0
    %1655 = vdwg.mxu0
    %s1656 = scalar_lea.vmem [#allocation6], 112
    %v1657 = vld [vmem:[%s1656] sm:$0xf]
    %v1658 = vld [vmem:[%s1656 + $0x4] sm:$0xf]
    %v1661 = vunpack.c.l.b16 %v1657
    %v1662 = vunpack.c.l.b16 %v1658
    %v1663 = vpack.c.b16 %v1662, %v1661
    %v1665 = vsel %vm173, %v1663, 0
    %1667 = vmatprep.subr.bf16.mxu0 %v1435
    %1668 = vmatpush1.bf16.msra.mxu0 %v1434
    %1669 = vmatprep.subr.bf16.mxu0 0
    %1670 = vmatpush1.bf16.msra.mxu0 0
    %1671 = vmatprep.subr.bf16.mxu0 0
    %1672 = vmatpush1.bf16.msra.mxu0 0
    %1673 = vmatprep.subr.bf16.mxu0 0
    %1674 = vmatpush1.bf16.msra.mxu0 0
    %1675 = vmatprep.subr.bf16.mxu0 0
    %1676 = vmatpush1.bf16.msra.mxu0 0
    %1677 = vmatprep.subr.bf16.mxu0 0
    %1678 = vmatpush1.bf16.msra.mxu0 0
    %1679 = vmatprep.subr.bf16.mxu0 0
    %1680 = vmatpush1.bf16.msra.mxu0 0
    %1681 = vmatprep.subr.bf16.mxu0 0
    %1682 = vmatpush1.bf16.msra.mxu0 0
    %1683 = vmatprep.subr.bf16.mxu0 0
    %1684 = vmatpush1.bf16.msra.mxu0 0
    %1685 = vmatprep.subr.bf16.mxu0 0
    %1686 = vmatpush1.bf16.msra.mxu0 0
    %1687 = vmatprep.subr.bf16.mxu0 0
    %1688 = vmatpush1.bf16.msra.mxu0 0
    %1689 = vmatprep.subr.bf16.mxu0 0
    %1690 = vmatpush1.bf16.msra.mxu0 0
    %1691 = vmatprep.subr.bf16.mxu0 0
    %1692 = vmatpush1.bf16.msra.mxu0 0
    %1693 = vmatprep.subr.bf16.mxu0 0
    %1694 = vmatpush1.bf16.msra.mxu0 0
    %1695 = vmatprep.subr.bf16.mxu0 0
    %1696 = vmatpush1.bf16.msra.mxu0 0
    %1697 = vmatprep.subr.bf16.mxu0 0
    %1698 = vmatpush1.bf16.msra.mxu0 0
    %1699 = vmatprep.mubr.bf16.mxu0 0
    %1700 = vmatmul.mubr.bf16.gmra.mrb[0].mxu0 %v1665
    %v1701 = vpop.f32.mrb[0].mxu0
    %v1702 = vadd.f32 0.0, %v1701
    %v1703 = vpop.f32.mrb[0].mxu0
    %v1704 = vadd.f32 0.0, %v1703
    %v1705 = vpop.f32.mrb[0].mxu0
    %v1706 = vadd.f32 0.0, %v1705
    %v1707 = vpop.f32.mrb[0].mxu0
    %v1708 = vadd.f32 0.0, %v1707
    %1709 = vdwg.mxu0
    %1710 = vmatprep.subr.bf16.mxu0 0
    %1711 = vmatpush1.bf16.msra.mxu0 %v1436
    %1712 = vmatprep.subr.bf16.mxu0 0
    %1713 = vmatpush1.bf16.msra.mxu0 0
    %1714 = vmatprep.subr.bf16.mxu0 0
    %1715 = vmatpush1.bf16.msra.mxu0 0
    %1716 = vmatprep.subr.bf16.mxu0 0
    %1717 = vmatpush1.bf16.msra.mxu0 0
    %1718 = vmatprep.subr.bf16.mxu0 0
    %1719 = vmatpush1.bf16.msra.mxu0 0
    %1720 = vmatprep.subr.bf16.mxu0 0
    %1721 = vmatpush1.bf16.msra.mxu0 0
    %1722 = vmatprep.subr.bf16.mxu0 0
    %1723 = vmatpush1.bf16.msra.mxu0 0
    %1724 = vmatprep.subr.bf16.mxu0 0
    %1725 = vmatpush1.bf16.msra.mxu0 0
    %1726 = vmatprep.subr.bf16.mxu0 0
    %1727 = vmatpush1.bf16.msra.mxu0 0
    %1728 = vmatprep.subr.bf16.mxu0 0
    %1729 = vmatpush1.bf16.msra.mxu0 0
    %1730 = vmatprep.subr.bf16.mxu0 0
    %1731 = vmatpush1.bf16.msra.mxu0 0
    %1732 = vmatprep.subr.bf16.mxu0 0
    %1733 = vmatpush1.bf16.msra.mxu0 0
    %1734 = vmatprep.subr.bf16.mxu0 0
    %1735 = vmatpush1.bf16.msra.mxu0 0
    %1736 = vmatprep.subr.bf16.mxu0 0
    %1737 = vmatpush1.bf16.msra.mxu0 0
    %1738 = vmatprep.subr.bf16.mxu0 0
    %1739 = vmatpush1.bf16.msra.mxu0 0
    %1740 = vmatprep.subr.bf16.mxu0 0
    %1741 = vmatpush1.bf16.msra.mxu0 0
    %1742 = vmatprep.mubr.bf16.mxu0 0
    %1743 = vmatmul.mubr.bf16.gmra.mrb[0].mxu0 %v1665
    %v1744 = vpop.f32.mrb[0].mxu0
    %v1745 = vadd.f32 0.0, %v1744
    %v1746 = vpop.f32.mrb[0].mxu0
    %v1747 = vpop.f32.mrb[0].mxu0
    %v1748 = vadd.f32 0.0, %v1747
    %v1749 = vpop.f32.mrb[0].mxu0
    %1750 = vdwg.mxu0
    %v1751 = vadd.f32 %v1607, %v1702
    %v1752 = vadd.f32 %v1609, %v1704
    %v1753 = vadd.f32 %v1650, %v1745
    %v1754 = vadd.f32 %v1611, %v1706
    %v1755 = vadd.f32 %v1613, %v1708
    %v1756 = vadd.f32 %v1653, %v1748
    %s1757 = scalar_lea.vmem [#allocation8], 64
    %v1758 = vld [vmem:[%s1757] sm:$0xff]
    %v1759 = vld [vmem:[%s1757 + $0x8] sm:$0xff]
    %1761 = vset.pattern.permute.xlu0 0
    %1762 = vperm.xlu0 %1761, %v1758
    %v1763 = vpop.permute.xlu0 %1762
    %1766 = vset.pattern.permute.xlu0 0
    %1767 = vperm.xlu0 %1766, %v1759
    %v1768 = vpop.permute.xlu0 %1767
    %v1770 = vadd.f32 %v1751, %v1763
    %v1771 = vadd.f32 %v1752, %v1763
    %v1772 = vadd.f32 %v1753, %v1763
    %v1773 = vadd.f32 %v1754, %v1768
    %v1774 = vadd.f32 %v1755, %v1768
    %v1775 = vadd.f32 %v1756, %v1768
    %v1776 = vmax.f32 %v1770, 0.0
    %v1777 = vmax.f32 %v1771, 0.0
    %v1778 = vmax.f32 %v1772, 0.0
    %v1779 = vmax.f32 %v1773, 0.0
    %v1780 = vmax.f32 %v1774, 0.0
    %v1781 = vmax.f32 %v1775, 0.0
    %v1782 = vmul.f32 %v1776, %v141
    %v1783 = vmul.f32 %v1777, %v142
    %v1784 = vmul.f32 %v1778, %v143
    %v1785 = vmul.f32 %v1779, %v141
    %v1786 = vmul.f32 %v1780, %v142
    %v1787 = vmul.f32 %v1781, %v143
    %v1788 = vld [vmem:[#allocation3] sm:$0xff]
    %v1789 = vld [vmem:[#allocation3 + $0x8] sm:$0xff]
    %v1790 = vld [vmem:[#allocation3 + $0x10] sm:$0xff]
    %v1791 = vld [vmem:[#allocation3 + $0x18] sm:$0xff]
    %v1792 = vld [vmem:[#allocation3 + $0x20] sm:$0xff]
    %v1793 = vld [vmem:[#allocation3 + $0x28] sm:$0xff]
    %v1794 = vadd.f32 %v1782, %v1788
    %v1795 = vadd.f32 %v1783, %v1789
    %v1796 = vadd.f32 %v1784, %v1790
    %v1797 = vadd.f32 %v1785, %v1791
    %v1798 = vadd.f32 %v1786, %v1792
    %v1799 = vadd.f32 %v1787, %v1793
    %v1800 = vmax.f32 %v1794, 0.0
    %v1801 = vmax.f32 %v1795, 0.0
    %v1802 = vmax.f32 %v1796, 0.0
    %v1803 = vmax.f32 %v1797, 0.0
    %v1804 = vmax.f32 %v1798, 0.0
    %v1805 = vmax.f32 %v1799, 0.0
    %1806 = vst [vmem:[#allocation2 + $0x8] sm:$0xff] %v1800
    %1807 = vst [vmem:[#allocation2 + $0x10] sm:$0xff] %v1801
    %1808 = vst.msk [vmem:[#allocation2 + $0x18] sm:$0xff] %vm59, %v1802
    %1809 = vst [vmem:[#allocation2 + $0x28] sm:$0xff] %v1803
    %1810 = vst [vmem:[#allocation2 + $0x30] sm:$0xff] %v1804
    %1811 = vst.msk [vmem:[#allocation2 + $0x38] sm:$0xff] %vm59, %v1805
    %s1812 = scalar_lea.vmem [#allocation6], 136
    %v1813 = vld [vmem:[%s1812] sm:$0xf]
    %v1814 = vld [vmem:[%s1812 + $0x4] sm:$0xf]
    %v1815 = vld [vmem:[#allocation2 + $0x8] sm:$0xff]
    %v1816 = vld [vmem:[#allocation2 + $0x10] sm:$0xff]
    %v1817 = vld [vmem:[#allocation2 + $0x18] sm:$0xff]
    %v1818 = vld [vmem:[#allocation2 + $0x28] sm:$0xff]
    %v1819 = vld [vmem:[#allocation2 + $0x30] sm:$0xff]
    %v1820 = vld [vmem:[#allocation2 + $0x38] sm:$0xff]
    %v1821 = vpack.c.bf16 %v1818, %v1815
    %v1822 = vpack.c.bf16 %v1819, %v1816
    %v1823 = vpack.c.bf16 %v1820, %v1817
    %s1824 = scalar_lea.vmem [#allocation8], 80
    %v1825 = vld [vmem:[%s1824] sm:$0xff]
    %v1826 = vld [vmem:[%s1824 + $0x8] sm:$0xff]
    %1828 = vset.pattern.permute.xlu0 0
    %1829 = vperm.xlu0 %1828, %v1825
    %v1830 = vpop.permute.xlu0 %1829
    %1833 = vset.pattern.permute.xlu0 0
    %1834 = vperm.xlu0 %1833, %v1826
    %v1835 = vpop.permute.xlu0 %1834
    %v1839 = vunpack.c.l.b16 %v1813
    %v1840 = vunpack.c.l.b16 %v1814
    %v1841 = vpack.c.b16 %v1840, %v1839
    %v1843 = vsel %vm173, %v1841, 0
    %1845 = vmatprep.subr.bf16.mxu0 %v1822
    %1846 = vmatpush1.bf16.msra.mxu0 %v1821
    %1847 = vmatprep.subr.bf16.mxu0 0
    %1848 = vmatpush1.bf16.msra.mxu0 0
    %1849 = vmatprep.subr.bf16.mxu0 0
    %1850 = vmatpush1.bf16.msra.mxu0 0
    %1851 = vmatprep.subr.bf16.mxu0 0
    %1852 = vmatpush1.bf16.msra.mxu0 0
    %1853 = vmatprep.subr.bf16.mxu0 0
    %1854 = vmatpush1.bf16.msra.mxu0 0
    %1855 = vmatprep.subr.bf16.mxu0 0
    %1856 = vmatpush1.bf16.msra.mxu0 0
    %1857 = vmatprep.subr.bf16.mxu0 0
    %1858 = vmatpush1.bf16.msra.mxu0 0
    %1859 = vmatprep.subr.bf16.mxu0 0
    %1860 = vmatpush1.bf16.msra.mxu0 0
    %1861 = vmatprep.subr.bf16.mxu0 0
    %1862 = vmatpush1.bf16.msra.mxu0 0
    %1863 = vmatprep.subr.bf16.mxu0 0
    %1864 = vmatpush1.bf16.msra.mxu0 0
    %1865 = vmatprep.subr.bf16.mxu0 0
    %1866 = vmatpush1.bf16.msra.mxu0 0
    %1867 = vmatprep.subr.bf16.mxu0 0
    %1868 = vmatpush1.bf16.msra.mxu0 0
    %1869 = vmatprep.subr.bf16.mxu0 0
    %1870 = vmatpush1.bf16.msra.mxu0 0
    %1871 = vmatprep.subr.bf16.mxu0 0
    %1872 = vmatpush1.bf16.msra.mxu0 0
    %1873 = vmatprep.subr.bf16.mxu0 0
    %1874 = vmatpush1.bf16.msra.mxu0 0
    %1875 = vmatprep.subr.bf16.mxu0 0
    %1876 = vmatpush1.bf16.msra.mxu0 0
    %1877 = vmatprep.mubr.bf16.mxu0 0
    %1878 = vmatmul.mubr.bf16.gmra.mrb[0].mxu0 %v1843
    %v1879 = vpop.f32.mrb[0].mxu0
    %v1880 = vadd.f32 %v1830, %v1879
    %v1881 = vpop.f32.mrb[0].mxu0
    %v1882 = vadd.f32 %v1830, %v1881
    %v1883 = vpop.f32.mrb[0].mxu0
    %v1884 = vadd.f32 %v1835, %v1883
    %v1885 = vpop.f32.mrb[0].mxu0
    %v1886 = vadd.f32 %v1835, %v1885
    %1887 = vdwg.mxu0
    %1888 = vmatprep.subr.bf16.mxu0 0
    %1889 = vmatpush1.bf16.msra.mxu0 %v1823
    %1890 = vmatprep.subr.bf16.mxu0 0
    %1891 = vmatpush1.bf16.msra.mxu0 0
    %1892 = vmatprep.subr.bf16.mxu0 0
    %1893 = vmatpush1.bf16.msra.mxu0 0
    %1894 = vmatprep.subr.bf16.mxu0 0
    %1895 = vmatpush1.bf16.msra.mxu0 0
    %1896 = vmatprep.subr.bf16.mxu0 0
    %1897 = vmatpush1.bf16.msra.mxu0 0
    %1898 = vmatprep.subr.bf16.mxu0 0
    %1899 = vmatpush1.bf16.msra.mxu0 0
    %1900 = vmatprep.subr.bf16.mxu0 0
    %1901 = vmatpush1.bf16.msra.mxu0 0
    %1902 = vmatprep.subr.bf16.mxu0 0
    %1903 = vmatpush1.bf16.msra.mxu0 0
    %1904 = vmatprep.subr.bf16.mxu0 0
    %1905 = vmatpush1.bf16.msra.mxu0 0
    %1906 = vmatprep.subr.bf16.mxu0 0
    %1907 = vmatpush1.bf16.msra.mxu0 0
    %1908 = vmatprep.subr.bf16.mxu0 0
    %1909 = vmatpush1.bf16.msra.mxu0 0
    %1910 = vmatprep.subr.bf16.mxu0 0
    %1911 = vmatpush1.bf16.msra.mxu0 0
    %1912 = vmatprep.subr.bf16.mxu0 0
    %1913 = vmatpush1.bf16.msra.mxu0 0
    %1914 = vmatprep.subr.bf16.mxu0 0
    %1915 = vmatpush1.bf16.msra.mxu0 0
    %1916 = vmatprep.subr.bf16.mxu0 0
    %1917 = vmatpush1.bf16.msra.mxu0 0
    %1918 = vmatprep.subr.bf16.mxu0 0
    %1919 = vmatpush1.bf16.msra.mxu0 0
    %1920 = vmatprep.mubr.bf16.mxu0 0
    %1921 = vmatmul.mubr.bf16.gmra.mrb[0].mxu0 %v1843
    %v1922 = vpop.f32.mrb[0].mxu0
    %v1923 = vadd.f32 %v1830, %v1922
    %v1924 = vpop.f32.mrb[0].mxu0
    %v1925 = vpop.f32.mrb[0].mxu0
    %v1926 = vadd.f32 %v1835, %v1925
    %v1927 = vpop.f32.mrb[0].mxu0
    %1928 = vdwg.mxu0
    %v1929 = vmul.f32 %v1880, %v141
    %v1930 = vmul.f32 %v1882, %v142
    %v1931 = vmul.f32 %v1923, %v143
    %v1932 = vmul.f32 %v1884, %v141
    %v1933 = vmul.f32 %v1886, %v142
    %v1934 = vmul.f32 %v1926, %v143
    %1935 = vst [vmem:[%s3] sm:$0xff] %v1929
    %1936 = vst [vmem:[%s3 + $0x8] sm:$0xff] %v1930
    %1937 = vst.msk [vmem:[%s3 + $0x10] sm:$0xff] %vm59, %v1931
    %1938 = vst [vmem:[#allocation2 + $0x8] sm:$0xff] %v1929
    %1939 = vst [vmem:[#allocation2 + $0x10] sm:$0xff] %v1930
    %1940 = vst.msk [vmem:[#allocation2 + $0x18] sm:$0xff] %vm59, %v1931
    %1941 = vst [vmem:[#allocation2 + $0x28] sm:$0xff] %v1932
    %1942 = vst [vmem:[#allocation2 + $0x30] sm:$0xff] %v1933
    %1943 = vst.msk [vmem:[#allocation2 + $0x38] sm:$0xff] %vm59, %v1934
    %s1944 = scalar_lea.vmem [#allocation6], 160
    %v1945 = vld [vmem:[%s1944] sm:$0xf]
    %v1946 = vld [vmem:[%s1944 + $0x4] sm:$0xf]
    %v1947 = vld [vmem:[#allocation2 + $0x8] sm:$0xff]
    %v1948 = vld [vmem:[#allocation2 + $0x10] sm:$0xff]
    %v1949 = vld [vmem:[#allocation2 + $0x18] sm:$0xff]
    %v1950 = vld [vmem:[#allocation2 + $0x28] sm:$0xff]
    %v1951 = vld [vmem:[#allocation2 + $0x30] sm:$0xff]
    %v1952 = vld [vmem:[#allocation2 + $0x38] sm:$0xff]
    %v1953 = vpack.c.bf16 %v1950, %v1947
    %v1954 = vpack.c.bf16 %v1951, %v1948
    %v1955 = vpack.c.bf16 %v1952, %v1949
    %s1956 = scalar_lea.vmem [#allocation8], 96
    %v1957 = vld [vmem:[%s1956] sm:$0xff]
    %v1958 = vld [vmem:[%s1956 + $0x8] sm:$0xff]
    %1960 = vset.pattern.permute.xlu0 0
    %1961 = vperm.xlu0 %1960, %v1957
    %v1962 = vpop.permute.xlu0 %1961
    %1965 = vset.pattern.permute.xlu0 0
    %1966 = vperm.xlu0 %1965, %v1958
    %v1967 = vpop.permute.xlu0 %1966
    %v1971 = vunpack.c.l.b16 %v1945
    %v1972 = vunpack.c.l.b16 %v1946
    %v1973 = vpack.c.b16 %v1972, %v1971
    %v1975 = vsel %vm173, %v1973, 0
    %1977 = vmatprep.subr.bf16.mxu0 %v1954
    %1978 = vmatpush1.bf16.msra.mxu0 %v1953
    %1979 = vmatprep.subr.bf16.mxu0 0
    %1980 = vmatpush1.bf16.msra.mxu0 0
    %1981 = vmatprep.subr.bf16.mxu0 0
    %1982 = vmatpush1.bf16.msra.mxu0 0
    %1983 = vmatprep.subr.bf16.mxu0 0
    %1984 = vmatpush1.bf16.msra.mxu0 0
    %1985 = vmatprep.subr.bf16.mxu0 0
    %1986 = vmatpush1.bf16.msra.mxu0 0
    %1987 = vmatprep.subr.bf16.mxu0 0
    %1988 = vmatpush1.bf16.msra.mxu0 0
    %1989 = vmatprep.subr.bf16.mxu0 0
    %1990 = vmatpush1.bf16.msra.mxu0 0
    %1991 = vmatprep.subr.bf16.mxu0 0
    %1992 = vmatpush1.bf16.msra.mxu0 0
    %1993 = vmatprep.subr.bf16.mxu0 0
    %1994 = vmatpush1.bf16.msra.mxu0 0
    %1995 = vmatprep.subr.bf16.mxu0 0
    %1996 = vmatpush1.bf16.msra.mxu0 0
    %1997 = vmatprep.subr.bf16.mxu0 0
    %1998 = vmatpush1.bf16.msra.mxu0 0
    %1999 = vmatprep.subr.bf16.mxu0 0
    %2000 = vmatpush1.bf16.msra.mxu0 0
    %2001 = vmatprep.subr.bf16.mxu0 0
    %2002 = vmatpush1.bf16.msra.mxu0 0
    %2003 = vmatprep.subr.bf16.mxu0 0
    %2004 = vmatpush1.bf16.msra.mxu0 0
    %2005 = vmatprep.subr.bf16.mxu0 0
    %2006 = vmatpush1.bf16.msra.mxu0 0
    %2007 = vmatprep.subr.bf16.mxu0 0
    %2008 = vmatpush1.bf16.msra.mxu0 0
    %2009 = vmatprep.mubr.bf16.mxu0 0
    %2010 = vmatmul.mubr.bf16.gmra.mrb[0].mxu0 %v1975
    %v2011 = vpop.f32.mrb[0].mxu0
    %v2012 = vadd.f32 %v1962, %v2011
    %v2013 = vpop.f32.mrb[0].mxu0
    %v2014 = vadd.f32 %v1962, %v2013
    %v2015 = vpop.f32.mrb[0].mxu0
    %v2016 = vadd.f32 %v1967, %v2015
    %v2017 = vpop.f32.mrb[0].mxu0
    %v2018 = vadd.f32 %v1967, %v2017
    %2019 = vdwg.mxu0
    %2020 = vmatprep.subr.bf16.mxu0 0
    %2021 = vmatpush1.bf16.msra.mxu0 %v1955
    %2022 = vmatprep.subr.bf16.mxu0 0
    %2023 = vmatpush1.bf16.msra.mxu0 0
    %2024 = vmatprep.subr.bf16.mxu0 0
    %2025 = vmatpush1.bf16.msra.mxu0 0
    %2026 = vmatprep.subr.bf16.mxu0 0
    %2027 = vmatpush1.bf16.msra.mxu0 0
    %2028 = vmatprep.subr.bf16.mxu0 0
    %2029 = vmatpush1.bf16.msra.mxu0 0
    %2030 = vmatprep.subr.bf16.mxu0 0
    %2031 = vmatpush1.bf16.msra.mxu0 0
    %2032 = vmatprep.subr.bf16.mxu0 0
    %2033 = vmatpush1.bf16.msra.mxu0 0
    %2034 = vmatprep.subr.bf16.mxu0 0
    %2035 = vmatpush1.bf16.msra.mxu0 0
    %2036 = vmatprep.subr.bf16.mxu0 0
    %2037 = vmatpush1.bf16.msra.mxu0 0
    %2038 = vmatprep.subr.bf16.mxu0 0
    %2039 = vmatpush1.bf16.msra.mxu0 0
    %2040 = vmatprep.subr.bf16.mxu0 0
    %2041 = vmatpush1.bf16.msra.mxu0 0
    %2042 = vmatprep.subr.bf16.mxu0 0
    %2043 = vmatpush1.bf16.msra.mxu0 0
    %2044 = vmatprep.subr.bf16.mxu0 0
    %2045 = vmatpush1.bf16.msra.mxu0 0
    %2046 = vmatprep.subr.bf16.mxu0 0
    %2047 = vmatpush1.bf16.msra.mxu0 0
    %2048 = vmatprep.subr.bf16.mxu0 0
    %2049 = vmatpush1.bf16.msra.mxu0 0
    %2050 = vmatprep.subr.bf16.mxu0 0
    %2051 = vmatpush1.bf16.msra.mxu0 0
    %2052 = vmatprep.mubr.bf16.mxu0 0
    %2053 = vmatmul.mubr.bf16.gmra.mrb[0].mxu0 %v1975
    %v2054 = vpop.f32.mrb[0].mxu0
    %v2055 = vadd.f32 %v1962, %v2054
    %v2056 = vpop.f32.mrb[0].mxu0
    %v2057 = vpop.f32.mrb[0].mxu0
    %v2058 = vadd.f32 %v1967, %v2057
    %v2059 = vpop.f32.mrb[0].mxu0
    %2060 = vdwg.mxu0
    %v2061 = vmul.f32 %v2012, %v141
    %v2062 = vmul.f32 %v2014, %v142
    %v2063 = vmul.f32 %v2055, %v143
    %v2064 = vmul.f32 %v2016, %v141
    %v2065 = vmul.f32 %v2018, %v142
    %v2066 = vmul.f32 %v2058, %v143
    %2067 = vst [vmem:[#allocation3] sm:$0xff] %v2061
    %2068 = vst [vmem:[#allocation3 + $0x8] sm:$0xff] %v2062
    %2069 = vst.msk [vmem:[#allocation3 + $0x10] sm:$0xff] %vm59, %v2063
    %2070 = vst [vmem:[#allocation3 + $0x18] sm:$0xff] %v2064
    %2071 = vst [vmem:[#allocation3 + $0x20] sm:$0xff] %v2065
    %2072 = vst.msk [vmem:[#allocation3 + $0x28] sm:$0xff] %vm59, %v2066
    %s2073 = scalar_lea.vmem [#allocation6], 168
    %v2074 = vld [vmem:[%s2073] sm:$0xf]
    %v2075 = vld [vmem:[%s2073 + $0x4] sm:$0xf]
    %v2076 = vld [vmem:[#allocation2] sm:$0xff]
    %v2077 = vld [vmem:[#allocation2 + $0x8] sm:$0xff]
    %v2078 = vld [vmem:[#allocation2 + $0x10] sm:$0xff]
    %v2079 = vld [vmem:[#allocation2 + $0x18] sm:$0xff]
    %v2080 = vld [vmem:[#allocation2 + $0x20] sm:$0xff]
    %v2081 = vld [vmem:[#allocation2 + $0x28] sm:$0xff]
    %v2082 = vld [vmem:[#allocation2 + $0x30] sm:$0xff]
    %v2083 = vld [vmem:[#allocation2 + $0x38] sm:$0xff]
    %v2084 = vpack.c.bf16 %v2080, %v2076
    %v2085 = vpack.c.bf16 %v2081, %v2077
    %v2086 = vpack.c.bf16 %v2082, %v2078
    %v2087 = vpack.c.bf16 %v2083, %v2079
    %s2088 = scalar_lea.vmem [#allocation6], 176
    %v2089 = vld [vmem:[%s2088] sm:$0xf]
    %v2090 = vld [vmem:[%s2088 + $0x4] sm:$0xf]
    %v2093 = vunpack.c.l.b16 %v2089
    %v2094 = vunpack.c.l.b16 %v2090
    %v2095 = vpack.c.b16 %v2094, %v2093
    %2100 = vrot.lane.b32.xlu0 %v2084, 1
    %v2101 = vpop.permute.xlu0 %2100
    %2102 = vrot.lane.b32.xlu0 %v2085, 1
    %v2103 = vpop.permute.xlu0 %2102
    %2104 = vrot.lane.b32.xlu0 %v2086, 1
    %v2105 = vpop.permute.xlu0 %2104
    %2106 = vrot.lane.b32.xlu0 %v2087, 1
    %v2107 = vpop.permute.xlu0 %2106
    %v2108 = vsel %vm308, %v2101, %v2103
    %v2109 = vsel %vm308, %v2103, %v2105
    %v2110 = vsel %vm308, %v2105, %v2107
    %v2115 = vsel %vm173, %v2095, 0
    %2117 = vmatprep.subr.bf16.mxu0 %v2109
    %2118 = vmatpush1.bf16.msra.mxu0 %v2108
    %2119 = vmatprep.subr.bf16.mxu0 0
    %2120 = vmatpush1.bf16.msra.mxu0 0
    %2121 = vmatprep.subr.bf16.mxu0 0
    %2122 = vmatpush1.bf16.msra.mxu0 0
    %2123 = vmatprep.subr.bf16.mxu0 0
    %2124 = vmatpush1.bf16.msra.mxu0 0
    %2125 = vmatprep.subr.bf16.mxu0 0
    %2126 = vmatpush1.bf16.msra.mxu0 0
    %2127 = vmatprep.subr.bf16.mxu0 0
    %2128 = vmatpush1.bf16.msra.mxu0 0
    %2129 = vmatprep.subr.bf16.mxu0 0
    %2130 = vmatpush1.bf16.msra.mxu0 0
    %2131 = vmatprep.subr.bf16.mxu0 0
    %2132 = vmatpush1.bf16.msra.mxu0 0
    %2133 = vmatprep.subr.bf16.mxu0 0
    %2134 = vmatpush1.bf16.msra.mxu0 0
    %2135 = vmatprep.subr.bf16.mxu0 0
    %2136 = vmatpush1.bf16.msra.mxu0 0
    %2137 = vmatprep.subr.bf16.mxu0 0
    %2138 = vmatpush1.bf16.msra.mxu0 0
    %2139 = vmatprep.subr.bf16.mxu0 0
    %2140 = vmatpush1.bf16.msra.mxu0 0
    %2141 = vmatprep.subr.bf16.mxu0 0
    %2142 = vmatpush1.bf16.msra.mxu0 0
    %2143 = vmatprep.subr.bf16.mxu0 0
    %2144 = vmatpush1.bf16.msra.mxu0 0
    %2145 = vmatprep.subr.bf16.mxu0 0
    %2146 = vmatpush1.bf16.msra.mxu0 0
    %2147 = vmatprep.subr.bf16.mxu0 0
    %2148 = vmatpush1.bf16.msra.mxu0 0
    %2149 = vmatprep.mubr.bf16.mxu0 0
    %2150 = vmatmul.mubr.bf16.gmra.mrb[0].mxu0 %v2115
    %v2151 = vpop.f32.mrb[0].mxu0
    %v2152 = vadd.f32 0.0, %v2151
    %v2153 = vpop.f32.mrb[0].mxu0
    %v2154 = vadd.f32 0.0, %v2153
    %v2155 = vpop.f32.mrb[0].mxu0
    %v2156 = vadd.f32 0.0, %v2155
    %v2157 = vpop.f32.mrb[0].mxu0
    %v2158 = vadd.f32 0.0, %v2157
    %2159 = vdwg.mxu0
    %2160 = vmatprep.subr.bf16.mxu0 0
    %2161 = vmatpush1.bf16.msra.mxu0 %v2110
    %2162 = vmatprep.subr.bf16.mxu0 0
    %2163 = vmatpush1.bf16.msra.mxu0 0
    %2164 = vmatprep.subr.bf16.mxu0 0
    %2165 = vmatpush1.bf16.msra.mxu0 0
    %2166 = vmatprep.subr.bf16.mxu0 0
    %2167 = vmatpush1.bf16.msra.mxu0 0
    %2168 = vmatprep.subr.bf16.mxu0 0
    %2169 = vmatpush1.bf16.msra.mxu0 0
    %2170 = vmatprep.subr.bf16.mxu0 0
    %2171 = vmatpush1.bf16.msra.mxu0 0
    %2172 = vmatprep.subr.bf16.mxu0 0
    %2173 = vmatpush1.bf16.msra.mxu0 0
    %2174 = vmatprep.subr.bf16.mxu0 0
    %2175 = vmatpush1.bf16.msra.mxu0 0
    %2176 = vmatprep.subr.bf16.mxu0 0
    %2177 = vmatpush1.bf16.msra.mxu0 0
    %2178 = vmatprep.subr.bf16.mxu0 0
    %2179 = vmatpush1.bf16.msra.mxu0 0
    %2180 = vmatprep.subr.bf16.mxu0 0
    %2181 = vmatpush1.bf16.msra.mxu0 0
    %2182 = vmatprep.subr.bf16.mxu0 0
    %2183 = vmatpush1.bf16.msra.mxu0 0
    %2184 = vmatprep.subr.bf16.mxu0 0
    %2185 = vmatpush1.bf16.msra.mxu0 0
    %2186 = vmatprep.subr.bf16.mxu0 0
    %2187 = vmatpush1.bf16.msra.mxu0 0
    %2188 = vmatprep.subr.bf16.mxu0 0
    %2189 = vmatpush1.bf16.msra.mxu0 0
    %2190 = vmatprep.subr.bf16.mxu0 0
    %2191 = vmatpush1.bf16.msra.mxu0 0
    %2192 = vmatprep.mubr.bf16.mxu0 0
    %2193 = vmatmul.mubr.bf16.gmra.mrb[0].mxu0 %v2115
    %v2194 = vpop.f32.mrb[0].mxu0
    %v2195 = vadd.f32 0.0, %v2194
    %v2196 = vpop.f32.mrb[0].mxu0
    %v2197 = vpop.f32.mrb[0].mxu0
    %v2198 = vadd.f32 0.0, %v2197
    %v2199 = vpop.f32.mrb[0].mxu0
    %2200 = vdwg.mxu0
    %v2203 = vunpack.c.l.b16 %v2074
    %v2204 = vunpack.c.l.b16 %v2075
    %v2205 = vpack.c.b16 %v2204, %v2203
    %2206 = vrot.lane.b32.xlu0 %v2084, 2
    %v2207 = vpop.permute.xlu0 %2206
    %2208 = vrot.lane.b32.xlu0 %v2085, 2
    %v2209 = vpop.permute.xlu0 %2208
    %2210 = vrot.lane.b32.xlu0 %v2086, 2
    %v2211 = vpop.permute.xlu0 %2210
    %2212 = vrot.lane.b32.xlu0 %v2087, 2
    %v2213 = vpop.permute.xlu0 %2212
    %v2214 = vsel %vm415, %v2207, %v2209
    %v2215 = vsel %vm415, %v2209, %v2211
    %v2216 = vsel %vm415, %v2211, %v2213
    %v2221 = vsel %vm173, %v2205, 0
    %2223 = vmatprep.subr.bf16.mxu0 %v2215
    %2224 = vmatpush1.bf16.msra.mxu0 %v2214
    %2225 = vmatprep.subr.bf16.mxu0 0
    %2226 = vmatpush1.bf16.msra.mxu0 0
    %2227 = vmatprep.subr.bf16.mxu0 0
    %2228 = vmatpush1.bf16.msra.mxu0 0
    %2229 = vmatprep.subr.bf16.mxu0 0
    %2230 = vmatpush1.bf16.msra.mxu0 0
    %2231 = vmatprep.subr.bf16.mxu0 0
    %2232 = vmatpush1.bf16.msra.mxu0 0
    %2233 = vmatprep.subr.bf16.mxu0 0
    %2234 = vmatpush1.bf16.msra.mxu0 0
    %2235 = vmatprep.subr.bf16.mxu0 0
    %2236 = vmatpush1.bf16.msra.mxu0 0
    %2237 = vmatprep.subr.bf16.mxu0 0
    %2238 = vmatpush1.bf16.msra.mxu0 0
    %2239 = vmatprep.subr.bf16.mxu0 0
    %2240 = vmatpush1.bf16.msra.mxu0 0
    %2241 = vmatprep.subr.bf16.mxu0 0
    %2242 = vmatpush1.bf16.msra.mxu0 0
    %2243 = vmatprep.subr.bf16.mxu0 0
    %2244 = vmatpush1.bf16.msra.mxu0 0
    %2245 = vmatprep.subr.bf16.mxu0 0
    %2246 = vmatpush1.bf16.msra.mxu0 0
    %2247 = vmatprep.subr.bf16.mxu0 0
    %2248 = vmatpush1.bf16.msra.mxu0 0
    %2249 = vmatprep.subr.bf16.mxu0 0
    %2250 = vmatpush1.bf16.msra.mxu0 0
    %2251 = vmatprep.subr.bf16.mxu0 0
    %2252 = vmatpush1.bf16.msra.mxu0 0
    %2253 = vmatprep.subr.bf16.mxu0 0
    %2254 = vmatpush1.bf16.msra.mxu0 0
    %2255 = vmatprep.mubr.bf16.mxu0 0
    %2256 = vmatmul.mubr.bf16.gmra.mrb[0].mxu0 %v2221
    %v2257 = vpop.f32.mrb[0].mxu0
    %v2258 = vadd.f32 %v2152, %v2257
    %v2259 = vpop.f32.mrb[0].mxu0
    %v2260 = vadd.f32 %v2154, %v2259
    %v2261 = vpop.f32.mrb[0].mxu0
    %v2262 = vadd.f32 %v2156, %v2261
    %v2263 = vpop.f32.mrb[0].mxu0
    %v2264 = vadd.f32 %v2158, %v2263
    %2265 = vdwg.mxu0
    %2266 = vmatprep.subr.bf16.mxu0 0
    %2267 = vmatpush1.bf16.msra.mxu0 %v2216
    %2268 = vmatprep.subr.bf16.mxu0 0
    %2269 = vmatpush1.bf16.msra.mxu0 0
    %2270 = vmatprep.subr.bf16.mxu0 0
    %2271 = vmatpush1.bf16.msra.mxu0 0
    %2272 = vmatprep.subr.bf16.mxu0 0
    %2273 = vmatpush1.bf16.msra.mxu0 0
    %2274 = vmatprep.subr.bf16.mxu0 0
    %2275 = vmatpush1.bf16.msra.mxu0 0
    %2276 = vmatprep.subr.bf16.mxu0 0
    %2277 = vmatpush1.bf16.msra.mxu0 0
    %2278 = vmatprep.subr.bf16.mxu0 0
    %2279 = vmatpush1.bf16.msra.mxu0 0
    %2280 = vmatprep.subr.bf16.mxu0 0
    %2281 = vmatpush1.bf16.msra.mxu0 0
    %2282 = vmatprep.subr.bf16.mxu0 0
    %2283 = vmatpush1.bf16.msra.mxu0 0
    %2284 = vmatprep.subr.bf16.mxu0 0
    %2285 = vmatpush1.bf16.msra.mxu0 0
    %2286 = vmatprep.subr.bf16.mxu0 0
    %2287 = vmatpush1.bf16.msra.mxu0 0
    %2288 = vmatprep.subr.bf16.mxu0 0
    %2289 = vmatpush1.bf16.msra.mxu0 0
    %2290 = vmatprep.subr.bf16.mxu0 0
    %2291 = vmatpush1.bf16.msra.mxu0 0
    %2292 = vmatprep.subr.bf16.mxu0 0
    %2293 = vmatpush1.bf16.msra.mxu0 0
    %2294 = vmatprep.subr.bf16.mxu0 0
    %2295 = vmatpush1.bf16.msra.mxu0 0
    %2296 = vmatprep.subr.bf16.mxu0 0
    %2297 = vmatpush1.bf16.msra.mxu0 0
    %2298 = vmatprep.mubr.bf16.mxu0 0
    %2299 = vmatmul.mubr.bf16.gmra.mrb[0].mxu0 %v2221
    %v2300 = vpop.f32.mrb[0].mxu0
    %v2301 = vadd.f32 %v2195, %v2300
    %v2302 = vpop.f32.mrb[0].mxu0
    %v2303 = vpop.f32.mrb[0].mxu0
    %v2304 = vadd.f32 %v2198, %v2303
    %v2305 = vpop.f32.mrb[0].mxu0
    %2306 = vdwg.mxu0
    %s2307 = scalar_lea.vmem [#allocation6], 184
    %v2308 = vld [vmem:[%s2307] sm:$0xf]
    %v2309 = vld [vmem:[%s2307 + $0x4] sm:$0xf]
    %v2312 = vunpack.c.l.b16 %v2308
    %v2313 = vunpack.c.l.b16 %v2309
    %v2314 = vpack.c.b16 %v2313, %v2312
    %v2316 = vsel %vm173, %v2314, 0
    %2318 = vmatprep.subr.bf16.mxu0 %v2086
    %2319 = vmatpush1.bf16.msra.mxu0 %v2085
    %2320 = vmatprep.subr.bf16.mxu0 0
    %2321 = vmatpush1.bf16.msra.mxu0 0
    %2322 = vmatprep.subr.bf16.mxu0 0
    %2323 = vmatpush1.bf16.msra.mxu0 0
    %2324 = vmatprep.subr.bf16.mxu0 0
    %2325 = vmatpush1.bf16.msra.mxu0 0
    %2326 = vmatprep.subr.bf16.mxu0 0
    %2327 = vmatpush1.bf16.msra.mxu0 0
    %2328 = vmatprep.subr.bf16.mxu0 0
    %2329 = vmatpush1.bf16.msra.mxu0 0
    %2330 = vmatprep.subr.bf16.mxu0 0
    %2331 = vmatpush1.bf16.msra.mxu0 0
    %2332 = vmatprep.subr.bf16.mxu0 0
    %2333 = vmatpush1.bf16.msra.mxu0 0
    %2334 = vmatprep.subr.bf16.mxu0 0
    %2335 = vmatpush1.bf16.msra.mxu0 0
    %2336 = vmatprep.subr.bf16.mxu0 0
    %2337 = vmatpush1.bf16.msra.mxu0 0
    %2338 = vmatprep.subr.bf16.mxu0 0
    %2339 = vmatpush1.bf16.msra.mxu0 0
    %2340 = vmatprep.subr.bf16.mxu0 0
    %2341 = vmatpush1.bf16.msra.mxu0 0
    %2342 = vmatprep.subr.bf16.mxu0 0
    %2343 = vmatpush1.bf16.msra.mxu0 0
    %2344 = vmatprep.subr.bf16.mxu0 0
    %2345 = vmatpush1.bf16.msra.mxu0 0
    %2346 = vmatprep.subr.bf16.mxu0 0
    %2347 = vmatpush1.bf16.msra.mxu0 0
    %2348 = vmatprep.subr.bf16.mxu0 0
    %2349 = vmatpush1.bf16.msra.mxu0 0
    %2350 = vmatprep.mubr.bf16.mxu0 0
    %2351 = vmatmul.mubr.bf16.gmra.mrb[0].mxu0 %v2316
    %v2352 = vpop.f32.mrb[0].mxu0
    %v2353 = vadd.f32 0.0, %v2352
    %v2354 = vpop.f32.mrb[0].mxu0
    %v2355 = vadd.f32 0.0, %v2354
    %v2356 = vpop.f32.mrb[0].mxu0
    %v2357 = vadd.f32 0.0, %v2356
    %v2358 = vpop.f32.mrb[0].mxu0
    %v2359 = vadd.f32 0.0, %v2358
    %2360 = vdwg.mxu0
    %2361 = vmatprep.subr.bf16.mxu0 0
    %2362 = vmatpush1.bf16.msra.mxu0 %v2087
    %2363 = vmatprep.subr.bf16.mxu0 0
    %2364 = vmatpush1.bf16.msra.mxu0 0
    %2365 = vmatprep.subr.bf16.mxu0 0
    %2366 = vmatpush1.bf16.msra.mxu0 0
    %2367 = vmatprep.subr.bf16.mxu0 0
    %2368 = vmatpush1.bf16.msra.mxu0 0
    %2369 = vmatprep.subr.bf16.mxu0 0
    %2370 = vmatpush1.bf16.msra.mxu0 0
    %2371 = vmatprep.subr.bf16.mxu0 0
    %2372 = vmatpush1.bf16.msra.mxu0 0
    %2373 = vmatprep.subr.bf16.mxu0 0
    %2374 = vmatpush1.bf16.msra.mxu0 0
    %2375 = vmatprep.subr.bf16.mxu0 0
    %2376 = vmatpush1.bf16.msra.mxu0 0
    %2377 = vmatprep.subr.bf16.mxu0 0
    %2378 = vmatpush1.bf16.msra.mxu0 0
    %2379 = vmatprep.subr.bf16.mxu0 0
    %2380 = vmatpush1.bf16.msra.mxu0 0
    %2381 = vmatprep.subr.bf16.mxu0 0
    %2382 = vmatpush1.bf16.msra.mxu0 0
    %2383 = vmatprep.subr.bf16.mxu0 0
    %2384 = vmatpush1.bf16.msra.mxu0 0
    %2385 = vmatprep.subr.bf16.mxu0 0
    %2386 = vmatpush1.bf16.msra.mxu0 0
    %2387 = vmatprep.subr.bf16.mxu0 0
    %2388 = vmatpush1.bf16.msra.mxu0 0
    %2389 = vmatprep.subr.bf16.mxu0 0
    %2390 = vmatpush1.bf16.msra.mxu0 0
    %2391 = vmatprep.subr.bf16.mxu0 0
    %2392 = vmatpush1.bf16.msra.mxu0 0
    %2393 = vmatprep.mubr.bf16.mxu0 0
    %2394 = vmatmul.mubr.bf16.gmra.mrb[0].mxu0 %v2316
    %v2395 = vpop.f32.mrb[0].mxu0
    %v2396 = vadd.f32 0.0, %v2395
    %v2397 = vpop.f32.mrb[0].mxu0
    %v2398 = vpop.f32.mrb[0].mxu0
    %v2399 = vadd.f32 0.0, %v2398
    %v2400 = vpop.f32.mrb[0].mxu0
    %2401 = vdwg.mxu0
    %v2402 = vadd.f32 %v2258, %v2353
    %v2403 = vadd.f32 %v2260, %v2355
    %v2404 = vadd.f32 %v2301, %v2396
    %v2405 = vadd.f32 %v2262, %v2357
    %v2406 = vadd.f32 %v2264, %v2359
    %v2407 = vadd.f32 %v2304, %v2399
    %s2408 = scalar_lea.vmem [#allocation8], 112
    %v2409 = vld [vmem:[%s2408] sm:$0xff]
    %v2410 = vld [vmem:[%s2408 + $0x8] sm:$0xff]
    %2412 = vset.pattern.permute.xlu0 0
    %2413 = vperm.xlu0 %2412, %v2409
    %v2414 = vpop.permute.xlu0 %2413
    %2417 = vset.pattern.permute.xlu0 0
    %2418 = vperm.xlu0 %2417, %v2410
    %v2419 = vpop.permute.xlu0 %2418
    %v2421 = vadd.f32 %v2402, %v2414
    %v2422 = vadd.f32 %v2403, %v2414
    %v2423 = vadd.f32 %v2404, %v2414
    %v2424 = vadd.f32 %v2405, %v2419
    %v2425 = vadd.f32 %v2406, %v2419
    %v2426 = vadd.f32 %v2407, %v2419
    %v2427 = vmax.f32 %v2421, 0.0
    %v2428 = vmax.f32 %v2422, 0.0
    %v2429 = vmax.f32 %v2423, 0.0
    %v2430 = vmax.f32 %v2424, 0.0
    %v2431 = vmax.f32 %v2425, 0.0
    %v2432 = vmax.f32 %v2426, 0.0
    %v2433 = vmul.f32 %v2427, %v141
    %v2434 = vmul.f32 %v2428, %v142
    %v2435 = vmul.f32 %v2429, %v143
    %v2436 = vmul.f32 %v2430, %v141
    %v2437 = vmul.f32 %v2431, %v142
    %v2438 = vmul.f32 %v2432, %v143
    %2439 = vst [vmem:[#allocation2 + $0x8] sm:$0xff] %v2433
    %2440 = vst [vmem:[#allocation2 + $0x10] sm:$0xff] %v2434
    %2441 = vst.msk [vmem:[#allocation2 + $0x18] sm:$0xff] %vm59, %v2435
    %2442 = vst [vmem:[#allocation2 + $0x28] sm:$0xff] %v2436
    %2443 = vst [vmem:[#allocation2 + $0x30] sm:$0xff] %v2437
    %2444 = vst.msk [vmem:[#allocation2 + $0x38] sm:$0xff] %vm59, %v2438
    %s2445 = scalar_lea.vmem [#allocation6], 192
    %v2446 = vld [vmem:[%s2445] sm:$0xf]
    %v2447 = vld [vmem:[%s2445 + $0x4] sm:$0xf]
    %v2448 = vld [vmem:[#allocation2] sm:$0xff]
    %v2449 = vld [vmem:[#allocation2 + $0x8] sm:$0xff]
    %v2450 = vld [vmem:[#allocation2 + $0x10] sm:$0xff]
    %v2451 = vld [vmem:[#allocation2 + $0x18] sm:$0xff]
    %v2452 = vld [vmem:[#allocation2 + $0x20] sm:$0xff]
    %v2453 = vld [vmem:[#allocation2 + $0x28] sm:$0xff]
    %v2454 = vld [vmem:[#allocation2 + $0x30] sm:$0xff]
    %v2455 = vld [vmem:[#allocation2 + $0x38] sm:$0xff]
    %v2456 = vpack.c.bf16 %v2452, %v2448
    %v2457 = vpack.c.bf16 %v2453, %v2449
    %v2458 = vpack.c.bf16 %v2454, %v2450
    %v2459 = vpack.c.bf16 %v2455, %v2451
    %s2460 = scalar_lea.vmem [#allocation6], 200
    %v2461 = vld [vmem:[%s2460] sm:$0xf]
    %v2462 = vld [vmem:[%s2460 + $0x4] sm:$0xf]
    %v2465 = vunpack.c.l.b16 %v2461
    %v2466 = vunpack.c.l.b16 %v2462
    %v2467 = vpack.c.b16 %v2466, %v2465
    %2472 = vrot.lane.b32.xlu0 %v2456, 1
    %v2473 = vpop.permute.xlu0 %2472
    %2474 = vrot.lane.b32.xlu0 %v2457, 1
    %v2475 = vpop.permute.xlu0 %2474
    %2476 = vrot.lane.b32.xlu0 %v2458, 1
    %v2477 = vpop.permute.xlu0 %2476
    %2478 = vrot.lane.b32.xlu0 %v2459, 1
    %v2479 = vpop.permute.xlu0 %2478
    %v2480 = vsel %vm308, %v2473, %v2475
    %v2481 = vsel %vm308, %v2475, %v2477
    %v2482 = vsel %vm308, %v2477, %v2479
    %v2487 = vsel %vm173, %v2467, 0
    %2489 = vmatprep.subr.bf16.mxu0 %v2481
    %2490 = vmatpush1.bf16.msra.mxu0 %v2480
    %2491 = vmatprep.subr.bf16.mxu0 0
    %2492 = vmatpush1.bf16.msra.mxu0 0
    %2493 = vmatprep.subr.bf16.mxu0 0
    %2494 = vmatpush1.bf16.msra.mxu0 0
    %2495 = vmatprep.subr.bf16.mxu0 0
    %2496 = vmatpush1.bf16.msra.mxu0 0
    %2497 = vmatprep.subr.bf16.mxu0 0
    %2498 = vmatpush1.bf16.msra.mxu0 0
    %2499 = vmatprep.subr.bf16.mxu0 0
    %2500 = vmatpush1.bf16.msra.mxu0 0
    %2501 = vmatprep.subr.bf16.mxu0 0
    %2502 = vmatpush1.bf16.msra.mxu0 0
    %2503 = vmatprep.subr.bf16.mxu0 0
    %2504 = vmatpush1.bf16.msra.mxu0 0
    %2505 = vmatprep.subr.bf16.mxu0 0
    %2506 = vmatpush1.bf16.msra.mxu0 0
    %2507 = vmatprep.subr.bf16.mxu0 0
    %2508 = vmatpush1.bf16.msra.mxu0 0
    %2509 = vmatprep.subr.bf16.mxu0 0
    %2510 = vmatpush1.bf16.msra.mxu0 0
    %2511 = vmatprep.subr.bf16.mxu0 0
    %2512 = vmatpush1.bf16.msra.mxu0 0
    %2513 = vmatprep.subr.bf16.mxu0 0
    %2514 = vmatpush1.bf16.msra.mxu0 0
    %2515 = vmatprep.subr.bf16.mxu0 0
    %2516 = vmatpush1.bf16.msra.mxu0 0
    %2517 = vmatprep.subr.bf16.mxu0 0
    %2518 = vmatpush1.bf16.msra.mxu0 0
    %2519 = vmatprep.subr.bf16.mxu0 0
    %2520 = vmatpush1.bf16.msra.mxu0 0
    %2521 = vmatprep.mubr.bf16.mxu0 0
    %2522 = vmatmul.mubr.bf16.gmra.mrb[0].mxu0 %v2487
    %v2523 = vpop.f32.mrb[0].mxu0
    %v2524 = vadd.f32 0.0, %v2523
    %v2525 = vpop.f32.mrb[0].mxu0
    %v2526 = vadd.f32 0.0, %v2525
    %v2527 = vpop.f32.mrb[0].mxu0
    %v2528 = vadd.f32 0.0, %v2527
    %v2529 = vpop.f32.mrb[0].mxu0
    %v2530 = vadd.f32 0.0, %v2529
    %2531 = vdwg.mxu0
    %2532 = vmatprep.subr.bf16.mxu0 0
    %2533 = vmatpush1.bf16.msra.mxu0 %v2482
    %2534 = vmatprep.subr.bf16.mxu0 0
    %2535 = vmatpush1.bf16.msra.mxu0 0
    %2536 = vmatprep.subr.bf16.mxu0 0
    %2537 = vmatpush1.bf16.msra.mxu0 0
    %2538 = vmatprep.subr.bf16.mxu0 0
    %2539 = vmatpush1.bf16.msra.mxu0 0
    %2540 = vmatprep.subr.bf16.mxu0 0
    %2541 = vmatpush1.bf16.msra.mxu0 0
    %2542 = vmatprep.subr.bf16.mxu0 0
    %2543 = vmatpush1.bf16.msra.mxu0 0
    %2544 = vmatprep.subr.bf16.mxu0 0
    %2545 = vmatpush1.bf16.msra.mxu0 0
    %2546 = vmatprep.subr.bf16.mxu0 0
    %2547 = vmatpush1.bf16.msra.mxu0 0
    %2548 = vmatprep.subr.bf16.mxu0 0
    %2549 = vmatpush1.bf16.msra.mxu0 0
    %2550 = vmatprep.subr.bf16.mxu0 0
    %2551 = vmatpush1.bf16.msra.mxu0 0
    %2552 = vmatprep.subr.bf16.mxu0 0
    %2553 = vmatpush1.bf16.msra.mxu0 0
    %2554 = vmatprep.subr.bf16.mxu0 0
    %2555 = vmatpush1.bf16.msra.mxu0 0
    %2556 = vmatprep.subr.bf16.mxu0 0
    %2557 = vmatpush1.bf16.msra.mxu0 0
    %2558 = vmatprep.subr.bf16.mxu0 0
    %2559 = vmatpush1.bf16.msra.mxu0 0
    %2560 = vmatprep.subr.bf16.mxu0 0
    %2561 = vmatpush1.bf16.msra.mxu0 0
    %2562 = vmatprep.subr.bf16.mxu0 0
    %2563 = vmatpush1.bf16.msra.mxu0 0
    %2564 = vmatprep.mubr.bf16.mxu0 0
    %2565 = vmatmul.mubr.bf16.gmra.mrb[0].mxu0 %v2487
    %v2566 = vpop.f32.mrb[0].mxu0
    %v2567 = vadd.f32 0.0, %v2566
    %v2568 = vpop.f32.mrb[0].mxu0
    %v2569 = vpop.f32.mrb[0].mxu0
    %v2570 = vadd.f32 0.0, %v2569
    %v2571 = vpop.f32.mrb[0].mxu0
    %2572 = vdwg.mxu0
    %v2575 = vunpack.c.l.b16 %v2446
    %v2576 = vunpack.c.l.b16 %v2447
    %v2577 = vpack.c.b16 %v2576, %v2575
    %2578 = vrot.lane.b32.xlu0 %v2456, 2
    %v2579 = vpop.permute.xlu0 %2578
    %2580 = vrot.lane.b32.xlu0 %v2457, 2
    %v2581 = vpop.permute.xlu0 %2580
    %2582 = vrot.lane.b32.xlu0 %v2458, 2
    %v2583 = vpop.permute.xlu0 %2582
    %2584 = vrot.lane.b32.xlu0 %v2459, 2
    %v2585 = vpop.permute.xlu0 %2584
    %v2586 = vsel %vm415, %v2579, %v2581
    %v2587 = vsel %vm415, %v2581, %v2583
    %v2588 = vsel %vm415, %v2583, %v2585
    %v2593 = vsel %vm173, %v2577, 0
    %2595 = vmatprep.subr.bf16.mxu0 %v2587
    %2596 = vmatpush1.bf16.msra.mxu0 %v2586
    %2597 = vmatprep.subr.bf16.mxu0 0
    %2598 = vmatpush1.bf16.msra.mxu0 0
    %2599 = vmatprep.subr.bf16.mxu0 0
    %2600 = vmatpush1.bf16.msra.mxu0 0
    %2601 = vmatprep.subr.bf16.mxu0 0
    %2602 = vmatpush1.bf16.msra.mxu0 0
    %2603 = vmatprep.subr.bf16.mxu0 0
    %2604 = vmatpush1.bf16.msra.mxu0 0
    %2605 = vmatprep.subr.bf16.mxu0 0
    %2606 = vmatpush1.bf16.msra.mxu0 0
    %2607 = vmatprep.subr.bf16.mxu0 0
    %2608 = vmatpush1.bf16.msra.mxu0 0
    %2609 = vmatprep.subr.bf16.mxu0 0
    %2610 = vmatpush1.bf16.msra.mxu0 0
    %2611 = vmatprep.subr.bf16.mxu0 0
    %2612 = vmatpush1.bf16.msra.mxu0 0
    %2613 = vmatprep.subr.bf16.mxu0 0
    %2614 = vmatpush1.bf16.msra.mxu0 0
    %2615 = vmatprep.subr.bf16.mxu0 0
    %2616 = vmatpush1.bf16.msra.mxu0 0
    %2617 = vmatprep.subr.bf16.mxu0 0
    %2618 = vmatpush1.bf16.msra.mxu0 0
    %2619 = vmatprep.subr.bf16.mxu0 0
    %2620 = vmatpush1.bf16.msra.mxu0 0
    %2621 = vmatprep.subr.bf16.mxu0 0
    %2622 = vmatpush1.bf16.msra.mxu0 0
    %2623 = vmatprep.subr.bf16.mxu0 0
    %2624 = vmatpush1.bf16.msra.mxu0 0
    %2625 = vmatprep.subr.bf16.mxu0 0
    %2626 = vmatpush1.bf16.msra.mxu0 0
    %2627 = vmatprep.mubr.bf16.mxu0 0
    %2628 = vmatmul.mubr.bf16.gmra.mrb[0].mxu0 %v2593
    %v2629 = vpop.f32.mrb[0].mxu0
    %v2630 = vadd.f32 %v2524, %v2629
    %v2631 = vpop.f32.mrb[0].mxu0
    %v2632 = vadd.f32 %v2526, %v2631
    %v2633 = vpop.f32.mrb[0].mxu0
    %v2634 = vadd.f32 %v2528, %v2633
    %v2635 = vpop.f32.mrb[0].mxu0
    %v2636 = vadd.f32 %v2530, %v2635
    %2637 = vdwg.mxu0
    %2638 = vmatprep.subr.bf16.mxu0 0
    %2639 = vmatpush1.bf16.msra.mxu0 %v2588
    %2640 = vmatprep.subr.bf16.mxu0 0
    %2641 = vmatpush1.bf16.msra.mxu0 0
    %2642 = vmatprep.subr.bf16.mxu0 0
    %2643 = vmatpush1.bf16.msra.mxu0 0
    %2644 = vmatprep.subr.bf16.mxu0 0
    %2645 = vmatpush1.bf16.msra.mxu0 0
    %2646 = vmatprep.subr.bf16.mxu0 0
    %2647 = vmatpush1.bf16.msra.mxu0 0
    %2648 = vmatprep.subr.bf16.mxu0 0
    %2649 = vmatpush1.bf16.msra.mxu0 0
    %2650 = vmatprep.subr.bf16.mxu0 0
    %2651 = vmatpush1.bf16.msra.mxu0 0
    %2652 = vmatprep.subr.bf16.mxu0 0
    %2653 = vmatpush1.bf16.msra.mxu0 0
    %2654 = vmatprep.subr.bf16.mxu0 0
    %2655 = vmatpush1.bf16.msra.mxu0 0
    %2656 = vmatprep.subr.bf16.mxu0 0
    %2657 = vmatpush1.bf16.msra.mxu0 0
    %2658 = vmatprep.subr.bf16.mxu0 0
    %2659 = vmatpush1.bf16.msra.mxu0 0
    %2660 = vmatprep.subr.bf16.mxu0 0
    %2661 = vmatpush1.bf16.msra.mxu0 0
    %2662 = vmatprep.subr.bf16.mxu0 0
    %2663 = vmatpush1.bf16.msra.mxu0 0
    %2664 = vmatprep.subr.bf16.mxu0 0
    %2665 = vmatpush1.bf16.msra.mxu0 0
    %2666 = vmatprep.subr.bf16.mxu0 0
    %2667 = vmatpush1.bf16.msra.mxu0 0
    %2668 = vmatprep.subr.bf16.mxu0 0
    %2669 = vmatpush1.bf16.msra.mxu0 0
    %2670 = vmatprep.mubr.bf16.mxu0 0
    %2671 = vmatmul.mubr.bf16.gmra.mrb[0].mxu0 %v2593
    %v2672 = vpop.f32.mrb[0].mxu0
    %v2673 = vadd.f32 %v2567, %v2672
    %v2674 = vpop.f32.mrb[0].mxu0
    %v2675 = vpop.f32.mrb[0].mxu0
    %v2676 = vadd.f32 %v2570, %v2675
    %v2677 = vpop.f32.mrb[0].mxu0
    %2678 = vdwg.mxu0
    %s2679 = scalar_lea.vmem [#allocation6], 208
    %v2680 = vld [vmem:[%s2679] sm:$0xf]
    %v2681 = vld [vmem:[%s2679 + $0x4] sm:$0xf]
    %v2684 = vunpack.c.l.b16 %v2680
    %v2685 = vunpack.c.l.b16 %v2681
    %v2686 = vpack.c.b16 %v2685, %v2684
    %v2688 = vsel %vm173, %v2686, 0
    %2690 = vmatprep.subr.bf16.mxu0 %v2458
    %2691 = vmatpush1.bf16.msra.mxu0 %v2457
    %2692 = vmatprep.subr.bf16.mxu0 0
    %2693 = vmatpush1.bf16.msra.mxu0 0
    %2694 = vmatprep.subr.bf16.mxu0 0
    %2695 = vmatpush1.bf16.msra.mxu0 0
    %2696 = vmatprep.subr.bf16.mxu0 0
    %2697 = vmatpush1.bf16.msra.mxu0 0
    %2698 = vmatprep.subr.bf16.mxu0 0
    %2699 = vmatpush1.bf16.msra.mxu0 0
    %2700 = vmatprep.subr.bf16.mxu0 0
    %2701 = vmatpush1.bf16.msra.mxu0 0
    %2702 = vmatprep.subr.bf16.mxu0 0
    %2703 = vmatpush1.bf16.msra.mxu0 0
    %2704 = vmatprep.subr.bf16.mxu0 0
    %2705 = vmatpush1.bf16.msra.mxu0 0
    %2706 = vmatprep.subr.bf16.mxu0 0
    %2707 = vmatpush1.bf16.msra.mxu0 0
    %2708 = vmatprep.subr.bf16.mxu0 0
    %2709 = vmatpush1.bf16.msra.mxu0 0
    %2710 = vmatprep.subr.bf16.mxu0 0
    %2711 = vmatpush1.bf16.msra.mxu0 0
    %2712 = vmatprep.subr.bf16.mxu0 0
    %2713 = vmatpush1.bf16.msra.mxu0 0
    %2714 = vmatprep.subr.bf16.mxu0 0
    %2715 = vmatpush1.bf16.msra.mxu0 0
    %2716 = vmatprep.subr.bf16.mxu0 0
    %2717 = vmatpush1.bf16.msra.mxu0 0
    %2718 = vmatprep.subr.bf16.mxu0 0
    %2719 = vmatpush1.bf16.msra.mxu0 0
    %2720 = vmatprep.subr.bf16.mxu0 0
    %2721 = vmatpush1.bf16.msra.mxu0 0
    %2722 = vmatprep.mubr.bf16.mxu0 0
    %2723 = vmatmul.mubr.bf16.gmra.mrb[0].mxu0 %v2688
    %v2724 = vpop.f32.mrb[0].mxu0
    %v2725 = vadd.f32 0.0, %v2724
    %v2726 = vpop.f32.mrb[0].mxu0
    %v2727 = vadd.f32 0.0, %v2726
    %v2728 = vpop.f32.mrb[0].mxu0
    %v2729 = vadd.f32 0.0, %v2728
    %v2730 = vpop.f32.mrb[0].mxu0
    %v2731 = vadd.f32 0.0, %v2730
    %2732 = vdwg.mxu0
    %2733 = vmatprep.subr.bf16.mxu0 0
    %2734 = vmatpush1.bf16.msra.mxu0 %v2459
    %2735 = vmatprep.subr.bf16.mxu0 0
    %2736 = vmatpush1.bf16.msra.mxu0 0
    %2737 = vmatprep.subr.bf16.mxu0 0
    %2738 = vmatpush1.bf16.msra.mxu0 0
    %2739 = vmatprep.subr.bf16.mxu0 0
    %2740 = vmatpush1.bf16.msra.mxu0 0
    %2741 = vmatprep.subr.bf16.mxu0 0
    %2742 = vmatpush1.bf16.msra.mxu0 0
    %2743 = vmatprep.subr.bf16.mxu0 0
    %2744 = vmatpush1.bf16.msra.mxu0 0
    %2745 = vmatprep.subr.bf16.mxu0 0
    %2746 = vmatpush1.bf16.msra.mxu0 0
    %2747 = vmatprep.subr.bf16.mxu0 0
    %2748 = vmatpush1.bf16.msra.mxu0 0
    %2749 = vmatprep.subr.bf16.mxu0 0
    %2750 = vmatpush1.bf16.msra.mxu0 0
    %2751 = vmatprep.subr.bf16.mxu0 0
    %2752 = vmatpush1.bf16.msra.mxu0 0
    %2753 = vmatprep.subr.bf16.mxu0 0
    %2754 = vmatpush1.bf16.msra.mxu0 0
    %2755 = vmatprep.subr.bf16.mxu0 0
    %2756 = vmatpush1.bf16.msra.mxu0 0
    %2757 = vmatprep.subr.bf16.mxu0 0
    %2758 = vmatpush1.bf16.msra.mxu0 0
    %2759 = vmatprep.subr.bf16.mxu0 0
    %2760 = vmatpush1.bf16.msra.mxu0 0
    %2761 = vmatprep.subr.bf16.mxu0 0
    %2762 = vmatpush1.bf16.msra.mxu0 0
    %2763 = vmatprep.subr.bf16.mxu0 0
    %2764 = vmatpush1.bf16.msra.mxu0 0
    %2765 = vmatprep.mubr.bf16.mxu0 0
    %2766 = vmatmul.mubr.bf16.gmra.mrb[0].mxu0 %v2688
    %v2767 = vpop.f32.mrb[0].mxu0
    %v2768 = vadd.f32 0.0, %v2767
    %v2769 = vpop.f32.mrb[0].mxu0
    %v2770 = vpop.f32.mrb[0].mxu0
    %v2771 = vadd.f32 0.0, %v2770
    %v2772 = vpop.f32.mrb[0].mxu0
    %2773 = vdwg.mxu0
    %v2774 = vadd.f32 %v2630, %v2725
    %v2775 = vadd.f32 %v2632, %v2727
    %v2776 = vadd.f32 %v2673, %v2768
    %v2777 = vadd.f32 %v2634, %v2729
    %v2778 = vadd.f32 %v2636, %v2731
    %v2779 = vadd.f32 %v2676, %v2771
    %s2780 = scalar_lea.vmem [#allocation8], 128
    %v2781 = vld [vmem:[%s2780] sm:$0xff]
    %v2782 = vld [vmem:[%s2780 + $0x8] sm:$0xff]
    %2784 = vset.pattern.permute.xlu0 0
    %2785 = vperm.xlu0 %2784, %v2781
    %v2786 = vpop.permute.xlu0 %2785
    %2789 = vset.pattern.permute.xlu0 0
    %2790 = vperm.xlu0 %2789, %v2782
    %v2791 = vpop.permute.xlu0 %2790
    %v2793 = vadd.f32 %v2774, %v2786
    %v2794 = vadd.f32 %v2775, %v2786
    %v2795 = vadd.f32 %v2776, %v2786
    %v2796 = vadd.f32 %v2777, %v2791
    %v2797 = vadd.f32 %v2778, %v2791
    %v2798 = vadd.f32 %v2779, %v2791
    %v2799 = vmax.f32 %v2793, 0.0
    %v2800 = vmax.f32 %v2794, 0.0
    %v2801 = vmax.f32 %v2795, 0.0
    %v2802 = vmax.f32 %v2796, 0.0
    %v2803 = vmax.f32 %v2797, 0.0
    %v2804 = vmax.f32 %v2798, 0.0
    %v2805 = vmul.f32 %v2799, %v141
    %v2806 = vmul.f32 %v2800, %v142
    %v2807 = vmul.f32 %v2801, %v143
    %v2808 = vmul.f32 %v2802, %v141
    %v2809 = vmul.f32 %v2803, %v142
    %v2810 = vmul.f32 %v2804, %v143
    %v2811 = vld [vmem:[#allocation3] sm:$0xff]
    %v2812 = vld [vmem:[#allocation3 + $0x8] sm:$0xff]
    %v2813 = vld [vmem:[#allocation3 + $0x10] sm:$0xff]
    %v2814 = vld [vmem:[#allocation3 + $0x18] sm:$0xff]
    %v2815 = vld [vmem:[#allocation3 + $0x20] sm:$0xff]
    %v2816 = vld [vmem:[#allocation3 + $0x28] sm:$0xff]
    %v2817 = vadd.f32 %v2805, %v2811
    %v2818 = vadd.f32 %v2806, %v2812
    %v2819 = vadd.f32 %v2807, %v2813
    %v2820 = vadd.f32 %v2808, %v2814
    %v2821 = vadd.f32 %v2809, %v2815
    %v2822 = vadd.f32 %v2810, %v2816
    %v2823 = vmax.f32 %v2817, 0.0
    %v2824 = vmax.f32 %v2818, 0.0
    %v2825 = vmax.f32 %v2819, 0.0
    %v2826 = vmax.f32 %v2820, 0.0
    %v2827 = vmax.f32 %v2821, 0.0
    %v2828 = vmax.f32 %v2822, 0.0
    %2829 = vst [vmem:[#allocation2 + $0x8] sm:$0xff] %v2823
    %2830 = vst [vmem:[#allocation2 + $0x10] sm:$0xff] %v2824
    %2831 = vst.msk [vmem:[#allocation2 + $0x18] sm:$0xff] %vm59, %v2825
    %2832 = vst [vmem:[#allocation2 + $0x28] sm:$0xff] %v2826
    %2833 = vst [vmem:[#allocation2 + $0x30] sm:$0xff] %v2827
    %2834 = vst.msk [vmem:[#allocation2 + $0x38] sm:$0xff] %vm59, %v2828
    %v2835 = vld [vmem:[#allocation2 + $0x8] sm:$0xff]
    %v2836 = vld [vmem:[#allocation2 + $0x10] sm:$0xff]
    %v2837 = vld [vmem:[#allocation2 + $0x18] sm:$0xff]
    %v2838 = vld [vmem:[#allocation2 + $0x28] sm:$0xff]
    %v2839 = vld [vmem:[#allocation2 + $0x30] sm:$0xff]
    %v2840 = vld [vmem:[#allocation2 + $0x38] sm:$0xff]
    %2841 = vst [vmem:[#allocation3] sm:$0xff] %v2835
    %2842 = vst [vmem:[#allocation3 + $0x8] sm:$0xff] %v2836
    %2843 = vst.msk [vmem:[#allocation3 + $0x10] sm:$0xff] %vm59, %v2837
    %2844 = vst [vmem:[#allocation3 + $0x18] sm:$0xff] %v2838
    %2845 = vst [vmem:[#allocation3 + $0x20] sm:$0xff] %v2839
    %2846 = vst.msk [vmem:[#allocation3 + $0x28] sm:$0xff] %vm59, %v2840
    %s2847 = scalar_lea.vmem [#allocation6], 216
    %v2848 = vld [vmem:[%s2847] sm:$0xf]
    %v2849 = vld [vmem:[%s2847 + $0x4] sm:$0xf]
    %v2850 = vld [vmem:[#allocation2] sm:$0xff]
    %v2851 = vld [vmem:[#allocation2 + $0x8] sm:$0xff]
    %v2852 = vld [vmem:[#allocation2 + $0x10] sm:$0xff]
    %v2853 = vld [vmem:[#allocation2 + $0x18] sm:$0xff]
    %v2854 = vld [vmem:[#allocation2 + $0x20] sm:$0xff]
    %v2855 = vld [vmem:[#allocation2 + $0x28] sm:$0xff]
    %v2856 = vld [vmem:[#allocation2 + $0x30] sm:$0xff]
    %v2857 = vld [vmem:[#allocation2 + $0x38] sm:$0xff]
    %v2858 = vpack.c.bf16 %v2854, %v2850
    %v2859 = vpack.c.bf16 %v2855, %v2851
    %v2860 = vpack.c.bf16 %v2856, %v2852
    %v2861 = vpack.c.bf16 %v2857, %v2853
    %s2862 = scalar_lea.vmem [#allocation6], 224
    %v2863 = vld [vmem:[%s2862] sm:$0xf]
    %v2864 = vld [vmem:[%s2862 + $0x4] sm:$0xf]
    %v2867 = vunpack.c.l.b16 %v2863
    %v2868 = vunpack.c.l.b16 %v2864
    %v2869 = vpack.c.b16 %v2868, %v2867
    %2874 = vrot.lane.b32.xlu0 %v2858, 2
    %v2875 = vpop.permute.xlu0 %2874
    %2876 = vrot.lane.b32.xlu0 %v2859, 2
    %v2877 = vpop.permute.xlu0 %2876
    %2878 = vrot.lane.b32.xlu0 %v2860, 2
    %v2879 = vpop.permute.xlu0 %2878
    %2880 = vrot.lane.b32.xlu0 %v2861, 2
    %v2881 = vpop.permute.xlu0 %2880
    %v2882 = vsel %vm415, %v2875, %v2877
    %v2883 = vsel %vm415, %v2877, %v2879
    %v2884 = vsel %vm415, %v2879, %v2881
    %v2889 = vsel %vm173, %v2869, 0
    %2891 = vmatprep.subr.bf16.mxu0 %v2883
    %2892 = vmatpush1.bf16.msra.mxu0 %v2882
    %2893 = vmatprep.subr.bf16.mxu0 0
    %2894 = vmatpush1.bf16.msra.mxu0 0
    %2895 = vmatprep.subr.bf16.mxu0 0
    %2896 = vmatpush1.bf16.msra.mxu0 0
    %2897 = vmatprep.subr.bf16.mxu0 0
    %2898 = vmatpush1.bf16.msra.mxu0 0
    %2899 = vmatprep.subr.bf16.mxu0 0
    %2900 = vmatpush1.bf16.msra.mxu0 0
    %2901 = vmatprep.subr.bf16.mxu0 0
    %2902 = vmatpush1.bf16.msra.mxu0 0
    %2903 = vmatprep.subr.bf16.mxu0 0
    %2904 = vmatpush1.bf16.msra.mxu0 0
    %2905 = vmatprep.subr.bf16.mxu0 0
    %2906 = vmatpush1.bf16.msra.mxu0 0
    %2907 = vmatprep.subr.bf16.mxu0 0
    %2908 = vmatpush1.bf16.msra.mxu0 0
    %2909 = vmatprep.subr.bf16.mxu0 0
    %2910 = vmatpush1.bf16.msra.mxu0 0
    %2911 = vmatprep.subr.bf16.mxu0 0
    %2912 = vmatpush1.bf16.msra.mxu0 0
    %2913 = vmatprep.subr.bf16.mxu0 0
    %2914 = vmatpush1.bf16.msra.mxu0 0
    %2915 = vmatprep.subr.bf16.mxu0 0
    %2916 = vmatpush1.bf16.msra.mxu0 0
    %2917 = vmatprep.subr.bf16.mxu0 0
    %2918 = vmatpush1.bf16.msra.mxu0 0
    %2919 = vmatprep.subr.bf16.mxu0 0
    %2920 = vmatpush1.bf16.msra.mxu0 0
    %2921 = vmatprep.subr.bf16.mxu0 0
    %2922 = vmatpush1.bf16.msra.mxu0 0
    %2923 = vmatprep.mubr.bf16.mxu0 0
    %2924 = vmatmul.mubr.bf16.gmra.mrb[0].mxu0 %v2889
    %v2925 = vpop.f32.mrb[0].mxu0
    %v2926 = vadd.f32 0.0, %v2925
    %v2927 = vpop.f32.mrb[0].mxu0
    %v2928 = vadd.f32 0.0, %v2927
    %v2929 = vpop.f32.mrb[0].mxu0
    %v2930 = vadd.f32 0.0, %v2929
    %v2931 = vpop.f32.mrb[0].mxu0
    %v2932 = vadd.f32 0.0, %v2931
    %2933 = vdwg.mxu0
    %2934 = vmatprep.subr.bf16.mxu0 0
    %2935 = vmatpush1.bf16.msra.mxu0 %v2884
    %2936 = vmatprep.subr.bf16.mxu0 0
    %2937 = vmatpush1.bf16.msra.mxu0 0
    %2938 = vmatprep.subr.bf16.mxu0 0
    %2939 = vmatpush1.bf16.msra.mxu0 0
    %2940 = vmatprep.subr.bf16.mxu0 0
    %2941 = vmatpush1.bf16.msra.mxu0 0
    %2942 = vmatprep.subr.bf16.mxu0 0
    %2943 = vmatpush1.bf16.msra.mxu0 0
    %2944 = vmatprep.subr.bf16.mxu0 0
    %2945 = vmatpush1.bf16.msra.mxu0 0
    %2946 = vmatprep.subr.bf16.mxu0 0
    %2947 = vmatpush1.bf16.msra.mxu0 0
    %2948 = vmatprep.subr.bf16.mxu0 0
    %2949 = vmatpush1.bf16.msra.mxu0 0
    %2950 = vmatprep.subr.bf16.mxu0 0
    %2951 = vmatpush1.bf16.msra.mxu0 0
    %2952 = vmatprep.subr.bf16.mxu0 0
    %2953 = vmatpush1.bf16.msra.mxu0 0
    %2954 = vmatprep.subr.bf16.mxu0 0
    %2955 = vmatpush1.bf16.msra.mxu0 0
    %2956 = vmatprep.subr.bf16.mxu0 0
    %2957 = vmatpush1.bf16.msra.mxu0 0
    %2958 = vmatprep.subr.bf16.mxu0 0
    %2959 = vmatpush1.bf16.msra.mxu0 0
    %2960 = vmatprep.subr.bf16.mxu0 0
    %2961 = vmatpush1.bf16.msra.mxu0 0
    %2962 = vmatprep.subr.bf16.mxu0 0
    %2963 = vmatpush1.bf16.msra.mxu0 0
    %2964 = vmatprep.subr.bf16.mxu0 0
    %2965 = vmatpush1.bf16.msra.mxu0 0
    %2966 = vmatprep.mubr.bf16.mxu0 0
    %2967 = vmatmul.mubr.bf16.gmra.mrb[0].mxu0 %v2889
    %v2968 = vpop.f32.mrb[0].mxu0
    %v2969 = vadd.f32 0.0, %v2968
    %v2970 = vpop.f32.mrb[0].mxu0
    %v2971 = vpop.f32.mrb[0].mxu0
    %v2972 = vadd.f32 0.0, %v2971
    %v2973 = vpop.f32.mrb[0].mxu0
    %2974 = vdwg.mxu0
    %v2977 = vunpack.c.l.b16 %v2848
    %v2978 = vunpack.c.l.b16 %v2849
    %v2979 = vpack.c.b16 %v2978, %v2977
    %2980 = vrot.lane.b32.xlu0 %v2858, 4
    %v2981 = vpop.permute.xlu0 %2980
    %2982 = vrot.lane.b32.xlu0 %v2859, 4
    %v2983 = vpop.permute.xlu0 %2982
    %2984 = vrot.lane.b32.xlu0 %v2860, 4
    %v2985 = vpop.permute.xlu0 %2984
    %2986 = vrot.lane.b32.xlu0 %v2861, 4
    %v2987 = vpop.permute.xlu0 %2986
    %v2988 = vsel %vm1190, %v2981, %v2983
    %v2989 = vsel %vm1190, %v2983, %v2985
    %v2990 = vsel %vm1190, %v2985, %v2987
    %v2995 = vsel %vm173, %v2979, 0
    %2997 = vmatprep.subr.bf16.mxu0 %v2989
    %2998 = vmatpush1.bf16.msra.mxu0 %v2988
    %2999 = vmatprep.subr.bf16.mxu0 0
    %3000 = vmatpush1.bf16.msra.mxu0 0
    %3001 = vmatprep.subr.bf16.mxu0 0
    %3002 = vmatpush1.bf16.msra.mxu0 0
    %3003 = vmatprep.subr.bf16.mxu0 0
    %3004 = vmatpush1.bf16.msra.mxu0 0
    %3005 = vmatprep.subr.bf16.mxu0 0
    %3006 = vmatpush1.bf16.msra.mxu0 0
    %3007 = vmatprep.subr.bf16.mxu0 0
    %3008 = vmatpush1.bf16.msra.mxu0 0
    %3009 = vmatprep.subr.bf16.mxu0 0
    %3010 = vmatpush1.bf16.msra.mxu0 0
    %3011 = vmatprep.subr.bf16.mxu0 0
    %3012 = vmatpush1.bf16.msra.mxu0 0
    %3013 = vmatprep.subr.bf16.mxu0 0
    %3014 = vmatpush1.bf16.msra.mxu0 0
    %3015 = vmatprep.subr.bf16.mxu0 0
    %3016 = vmatpush1.bf16.msra.mxu0 0
    %3017 = vmatprep.subr.bf16.mxu0 0
    %3018 = vmatpush1.bf16.msra.mxu0 0
    %3019 = vmatprep.subr.bf16.mxu0 0
    %3020 = vmatpush1.bf16.msra.mxu0 0
    %3021 = vmatprep.subr.bf16.mxu0 0
    %3022 = vmatpush1.bf16.msra.mxu0 0
    %3023 = vmatprep.subr.bf16.mxu0 0
    %3024 = vmatpush1.bf16.msra.mxu0 0
    %3025 = vmatprep.subr.bf16.mxu0 0
    %3026 = vmatpush1.bf16.msra.mxu0 0
    %3027 = vmatprep.subr.bf16.mxu0 0
    %3028 = vmatpush1.bf16.msra.mxu0 0
    %3029 = vmatprep.mubr.bf16.mxu0 0
    %3030 = vmatmul.mubr.bf16.gmra.mrb[0].mxu0 %v2995
    %v3031 = vpop.f32.mrb[0].mxu0
    %v3032 = vadd.f32 %v2926, %v3031
    %v3033 = vpop.f32.mrb[0].mxu0
    %v3034 = vadd.f32 %v2928, %v3033
    %v3035 = vpop.f32.mrb[0].mxu0
    %v3036 = vadd.f32 %v2930, %v3035
    %v3037 = vpop.f32.mrb[0].mxu0
    %v3038 = vadd.f32 %v2932, %v3037
    %3039 = vdwg.mxu0
    %3040 = vmatprep.subr.bf16.mxu0 0
    %3041 = vmatpush1.bf16.msra.mxu0 %v2990
    %3042 = vmatprep.subr.bf16.mxu0 0
    %3043 = vmatpush1.bf16.msra.mxu0 0
    %3044 = vmatprep.subr.bf16.mxu0 0
    %3045 = vmatpush1.bf16.msra.mxu0 0
    %3046 = vmatprep.subr.bf16.mxu0 0
    %3047 = vmatpush1.bf16.msra.mxu0 0
    %3048 = vmatprep.subr.bf16.mxu0 0
    %3049 = vmatpush1.bf16.msra.mxu0 0
    %3050 = vmatprep.subr.bf16.mxu0 0
    %3051 = vmatpush1.bf16.msra.mxu0 0
    %3052 = vmatprep.subr.bf16.mxu0 0
    %3053 = vmatpush1.bf16.msra.mxu0 0
    %3054 = vmatprep.subr.bf16.mxu0 0
    %3055 = vmatpush1.bf16.msra.mxu0 0
    %3056 = vmatprep.subr.bf16.mxu0 0
    %3057 = vmatpush1.bf16.msra.mxu0 0
    %3058 = vmatprep.subr.bf16.mxu0 0
    %3059 = vmatpush1.bf16.msra.mxu0 0
    %3060 = vmatprep.subr.bf16.mxu0 0
    %3061 = vmatpush1.bf16.msra.mxu0 0
    %3062 = vmatprep.subr.bf16.mxu0 0
    %3063 = vmatpush1.bf16.msra.mxu0 0
    %3064 = vmatprep.subr.bf16.mxu0 0
    %3065 = vmatpush1.bf16.msra.mxu0 0
    %3066 = vmatprep.subr.bf16.mxu0 0
    %3067 = vmatpush1.bf16.msra.mxu0 0
    %3068 = vmatprep.subr.bf16.mxu0 0
    %3069 = vmatpush1.bf16.msra.mxu0 0
    %3070 = vmatprep.subr.bf16.mxu0 0
    %3071 = vmatpush1.bf16.msra.mxu0 0
    %3072 = vmatprep.mubr.bf16.mxu0 0
    %3073 = vmatmul.mubr.bf16.gmra.mrb[0].mxu0 %v2995
    %v3074 = vpop.f32.mrb[0].mxu0
    %v3075 = vadd.f32 %v2969, %v3074
    %v3076 = vpop.f32.mrb[0].mxu0
    %v3077 = vpop.f32.mrb[0].mxu0
    %v3078 = vadd.f32 %v2972, %v3077
    %v3079 = vpop.f32.mrb[0].mxu0
    %3080 = vdwg.mxu0
    %s3081 = scalar_lea.vmem [#allocation6], 232
    %v3082 = vld [vmem:[%s3081] sm:$0xf]
    %v3083 = vld [vmem:[%s3081 + $0x4] sm:$0xf]
    %v3086 = vunpack.c.l.b16 %v3082
    %v3087 = vunpack.c.l.b16 %v3083
    %v3088 = vpack.c.b16 %v3087, %v3086
    %v3090 = vsel %vm173, %v3088, 0
    %3092 = vmatprep.subr.bf16.mxu0 %v2860
    %3093 = vmatpush1.bf16.msra.mxu0 %v2859
    %3094 = vmatprep.subr.bf16.mxu0 0
    %3095 = vmatpush1.bf16.msra.mxu0 0
    %3096 = vmatprep.subr.bf16.mxu0 0
    %3097 = vmatpush1.bf16.msra.mxu0 0
    %3098 = vmatprep.subr.bf16.mxu0 0
    %3099 = vmatpush1.bf16.msra.mxu0 0
    %3100 = vmatprep.subr.bf16.mxu0 0
    %3101 = vmatpush1.bf16.msra.mxu0 0
    %3102 = vmatprep.subr.bf16.mxu0 0
    %3103 = vmatpush1.bf16.msra.mxu0 0
    %3104 = vmatprep.subr.bf16.mxu0 0
    %3105 = vmatpush1.bf16.msra.mxu0 0
    %3106 = vmatprep.subr.bf16.mxu0 0
    %3107 = vmatpush1.bf16.msra.mxu0 0
    %3108 = vmatprep.subr.bf16.mxu0 0
    %3109 = vmatpush1.bf16.msra.mxu0 0
    %3110 = vmatprep.subr.bf16.mxu0 0
    %3111 = vmatpush1.bf16.msra.mxu0 0
    %3112 = vmatprep.subr.bf16.mxu0 0
    %3113 = vmatpush1.bf16.msra.mxu0 0
    %3114 = vmatprep.subr.bf16.mxu0 0
    %3115 = vmatpush1.bf16.msra.mxu0 0
    %3116 = vmatprep.subr.bf16.mxu0 0
    %3117 = vmatpush1.bf16.msra.mxu0 0
    %3118 = vmatprep.subr.bf16.mxu0 0
    %3119 = vmatpush1.bf16.msra.mxu0 0
    %3120 = vmatprep.subr.bf16.mxu0 0
    %3121 = vmatpush1.bf16.msra.mxu0 0
    %3122 = vmatprep.subr.bf16.mxu0 0
    %3123 = vmatpush1.bf16.msra.mxu0 0
    %3124 = vmatprep.mubr.bf16.mxu0 0
    %3125 = vmatmul.mubr.bf16.gmra.mrb[0].mxu0 %v3090
    %v3126 = vpop.f32.mrb[0].mxu0
    %v3127 = vadd.f32 0.0, %v3126
    %v3128 = vpop.f32.mrb[0].mxu0
    %v3129 = vadd.f32 0.0, %v3128
    %v3130 = vpop.f32.mrb[0].mxu0
    %v3131 = vadd.f32 0.0, %v3130
    %v3132 = vpop.f32.mrb[0].mxu0
    %v3133 = vadd.f32 0.0, %v3132
    %3134 = vdwg.mxu0
    %3135 = vmatprep.subr.bf16.mxu0 0
    %3136 = vmatpush1.bf16.msra.mxu0 %v2861
    %3137 = vmatprep.subr.bf16.mxu0 0
    %3138 = vmatpush1.bf16.msra.mxu0 0
    %3139 = vmatprep.subr.bf16.mxu0 0
    %3140 = vmatpush1.bf16.msra.mxu0 0
    %3141 = vmatprep.subr.bf16.mxu0 0
    %3142 = vmatpush1.bf16.msra.mxu0 0
    %3143 = vmatprep.subr.bf16.mxu0 0
    %3144 = vmatpush1.bf16.msra.mxu0 0
    %3145 = vmatprep.subr.bf16.mxu0 0
    %3146 = vmatpush1.bf16.msra.mxu0 0
    %3147 = vmatprep.subr.bf16.mxu0 0
    %3148 = vmatpush1.bf16.msra.mxu0 0
    %3149 = vmatprep.subr.bf16.mxu0 0
    %3150 = vmatpush1.bf16.msra.mxu0 0
    %3151 = vmatprep.subr.bf16.mxu0 0
    %3152 = vmatpush1.bf16.msra.mxu0 0
    %3153 = vmatprep.subr.bf16.mxu0 0
    %3154 = vmatpush1.bf16.msra.mxu0 0
    %3155 = vmatprep.subr.bf16.mxu0 0
    %3156 = vmatpush1.bf16.msra.mxu0 0
    %3157 = vmatprep.subr.bf16.mxu0 0
    %3158 = vmatpush1.bf16.msra.mxu0 0
    %3159 = vmatprep.subr.bf16.mxu0 0
    %3160 = vmatpush1.bf16.msra.mxu0 0
    %3161 = vmatprep.subr.bf16.mxu0 0
    %3162 = vmatpush1.bf16.msra.mxu0 0
    %3163 = vmatprep.subr.bf16.mxu0 0
    %3164 = vmatpush1.bf16.msra.mxu0 0
    %3165 = vmatprep.subr.bf16.mxu0 0
    %3166 = vmatpush1.bf16.msra.mxu0 0
    %3167 = vmatprep.mubr.bf16.mxu0 0
    %3168 = vmatmul.mubr.bf16.gmra.mrb[0].mxu0 %v3090
    %v3169 = vpop.f32.mrb[0].mxu0
    %v3170 = vadd.f32 0.0, %v3169
    %v3171 = vpop.f32.mrb[0].mxu0
    %v3172 = vpop.f32.mrb[0].mxu0
    %v3173 = vadd.f32 0.0, %v3172
    %v3174 = vpop.f32.mrb[0].mxu0
    %3175 = vdwg.mxu0
    %v3176 = vadd.f32 %v3032, %v3127
    %v3177 = vadd.f32 %v3034, %v3129
    %v3178 = vadd.f32 %v3075, %v3170
    %v3179 = vadd.f32 %v3036, %v3131
    %v3180 = vadd.f32 %v3038, %v3133
    %v3181 = vadd.f32 %v3078, %v3173
    %s3182 = scalar_lea.vmem [#allocation8], 144
    %v3183 = vld [vmem:[%s3182] sm:$0xff]
    %v3184 = vld [vmem:[%s3182 + $0x8] sm:$0xff]
    %3186 = vset.pattern.permute.xlu0 0
    %3187 = vperm.xlu0 %3186, %v3183
    %v3188 = vpop.permute.xlu0 %3187
    %3191 = vset.pattern.permute.xlu0 0
    %3192 = vperm.xlu0 %3191, %v3184
    %v3193 = vpop.permute.xlu0 %3192
    %v3195 = vadd.f32 %v3176, %v3188
    %v3196 = vadd.f32 %v3177, %v3188
    %v3197 = vadd.f32 %v3178, %v3188
    %v3198 = vadd.f32 %v3179, %v3193
    %v3199 = vadd.f32 %v3180, %v3193
    %v3200 = vadd.f32 %v3181, %v3193
    %v3201 = vmax.f32 %v3195, 0.0
    %v3202 = vmax.f32 %v3196, 0.0
    %v3203 = vmax.f32 %v3197, 0.0
    %v3204 = vmax.f32 %v3198, 0.0
    %v3205 = vmax.f32 %v3199, 0.0
    %v3206 = vmax.f32 %v3200, 0.0
    %v3207 = vmul.f32 %v3201, %v141
    %v3208 = vmul.f32 %v3202, %v142
    %v3209 = vmul.f32 %v3203, %v143
    %v3210 = vmul.f32 %v3204, %v141
    %v3211 = vmul.f32 %v3205, %v142
    %v3212 = vmul.f32 %v3206, %v143
    %3213 = vst [vmem:[#allocation2 + $0x8] sm:$0xff] %v3207
    %3214 = vst [vmem:[#allocation2 + $0x10] sm:$0xff] %v3208
    %3215 = vst.msk [vmem:[#allocation2 + $0x18] sm:$0xff] %vm59, %v3209
    %3216 = vst [vmem:[#allocation2 + $0x28] sm:$0xff] %v3210
    %3217 = vst [vmem:[#allocation2 + $0x30] sm:$0xff] %v3211
    %3218 = vst.msk [vmem:[#allocation2 + $0x38] sm:$0xff] %vm59, %v3212
    %s3219 = scalar_lea.vmem [#allocation6], 240
    %v3220 = vld [vmem:[%s3219] sm:$0xf]
    %v3221 = vld [vmem:[%s3219 + $0x4] sm:$0xf]
    %v3222 = vld [vmem:[#allocation2] sm:$0xff]
    %v3223 = vld [vmem:[#allocation2 + $0x8] sm:$0xff]
    %v3224 = vld [vmem:[#allocation2 + $0x10] sm:$0xff]
    %v3225 = vld [vmem:[#allocation2 + $0x18] sm:$0xff]
    %v3226 = vld [vmem:[#allocation2 + $0x20] sm:$0xff]
    %v3227 = vld [vmem:[#allocation2 + $0x28] sm:$0xff]
    %v3228 = vld [vmem:[#allocation2 + $0x30] sm:$0xff]
    %v3229 = vld [vmem:[#allocation2 + $0x38] sm:$0xff]
    %v3230 = vpack.c.bf16 %v3226, %v3222
    %v3231 = vpack.c.bf16 %v3227, %v3223
    %v3232 = vpack.c.bf16 %v3228, %v3224
    %v3233 = vpack.c.bf16 %v3229, %v3225
    %s3234 = scalar_lea.vmem [#allocation6], 248
    %v3235 = vld [vmem:[%s3234] sm:$0xf]
    %v3236 = vld [vmem:[%s3234 + $0x4] sm:$0xf]
    %v3239 = vunpack.c.l.b16 %v3235
    %v3240 = vunpack.c.l.b16 %v3236
    %v3241 = vpack.c.b16 %v3240, %v3239
    %3246 = vrot.lane.b32.xlu0 %v3230, 2
    %v3247 = vpop.permute.xlu0 %3246
    %3248 = vrot.lane.b32.xlu0 %v3231, 2
    %v3249 = vpop.permute.xlu0 %3248
    %3250 = vrot.lane.b32.xlu0 %v3232, 2
    %v3251 = vpop.permute.xlu0 %3250
    %3252 = vrot.lane.b32.xlu0 %v3233, 2
    %v3253 = vpop.permute.xlu0 %3252
    %v3254 = vsel %vm415, %v3247, %v3249
    %v3255 = vsel %vm415, %v3249, %v3251
    %v3256 = vsel %vm415, %v3251, %v3253
    %v3261 = vsel %vm173, %v3241, 0
    %3263 = vmatprep.subr.bf16.mxu0 %v3255
    %3264 = vmatpush1.bf16.msra.mxu0 %v3254
    %3265 = vmatprep.subr.bf16.mxu0 0
    %3266 = vmatpush1.bf16.msra.mxu0 0
    %3267 = vmatprep.subr.bf16.mxu0 0
    %3268 = vmatpush1.bf16.msra.mxu0 0
    %3269 = vmatprep.subr.bf16.mxu0 0
    %3270 = vmatpush1.bf16.msra.mxu0 0
    %3271 = vmatprep.subr.bf16.mxu0 0
    %3272 = vmatpush1.bf16.msra.mxu0 0
    %3273 = vmatprep.subr.bf16.mxu0 0
    %3274 = vmatpush1.bf16.msra.mxu0 0
    %3275 = vmatprep.subr.bf16.mxu0 0
    %3276 = vmatpush1.bf16.msra.mxu0 0
    %3277 = vmatprep.subr.bf16.mxu0 0
    %3278 = vmatpush1.bf16.msra.mxu0 0
    %3279 = vmatprep.subr.bf16.mxu0 0
    %3280 = vmatpush1.bf16.msra.mxu0 0
    %3281 = vmatprep.subr.bf16.mxu0 0
    %3282 = vmatpush1.bf16.msra.mxu0 0
    %3283 = vmatprep.subr.bf16.mxu0 0
    %3284 = vmatpush1.bf16.msra.mxu0 0
    %3285 = vmatprep.subr.bf16.mxu0 0
    %3286 = vmatpush1.bf16.msra.mxu0 0
    %3287 = vmatprep.subr.bf16.mxu0 0
    %3288 = vmatpush1.bf16.msra.mxu0 0
    %3289 = vmatprep.subr.bf16.mxu0 0
    %3290 = vmatpush1.bf16.msra.mxu0 0
    %3291 = vmatprep.subr.bf16.mxu0 0
    %3292 = vmatpush1.bf16.msra.mxu0 0
    %3293 = vmatprep.subr.bf16.mxu0 0
    %3294 = vmatpush1.bf16.msra.mxu0 0
    %3295 = vmatprep.mubr.bf16.mxu0 0
    %3296 = vmatmul.mubr.bf16.gmra.mrb[0].mxu0 %v3261
    %v3297 = vpop.f32.mrb[0].mxu0
    %v3298 = vadd.f32 0.0, %v3297
    %v3299 = vpop.f32.mrb[0].mxu0
    %v3300 = vadd.f32 0.0, %v3299
    %v3301 = vpop.f32.mrb[0].mxu0
    %v3302 = vadd.f32 0.0, %v3301
    %v3303 = vpop.f32.mrb[0].mxu0
    %v3304 = vadd.f32 0.0, %v3303
    %3305 = vdwg.mxu0
    %3306 = vmatprep.subr.bf16.mxu0 0
    %3307 = vmatpush1.bf16.msra.mxu0 %v3256
    %3308 = vmatprep.subr.bf16.mxu0 0
    %3309 = vmatpush1.bf16.msra.mxu0 0
    %3310 = vmatprep.subr.bf16.mxu0 0
    %3311 = vmatpush1.bf16.msra.mxu0 0
    %3312 = vmatprep.subr.bf16.mxu0 0
    %3313 = vmatpush1.bf16.msra.mxu0 0
    %3314 = vmatprep.subr.bf16.mxu0 0
    %3315 = vmatpush1.bf16.msra.mxu0 0
    %3316 = vmatprep.subr.bf16.mxu0 0
    %3317 = vmatpush1.bf16.msra.mxu0 0
    %3318 = vmatprep.subr.bf16.mxu0 0
    %3319 = vmatpush1.bf16.msra.mxu0 0
    %3320 = vmatprep.subr.bf16.mxu0 0
    %3321 = vmatpush1.bf16.msra.mxu0 0
    %3322 = vmatprep.subr.bf16.mxu0 0
    %3323 = vmatpush1.bf16.msra.mxu0 0
    %3324 = vmatprep.subr.bf16.mxu0 0
    %3325 = vmatpush1.bf16.msra.mxu0 0
    %3326 = vmatprep.subr.bf16.mxu0 0
    %3327 = vmatpush1.bf16.msra.mxu0 0
    %3328 = vmatprep.subr.bf16.mxu0 0
    %3329 = vmatpush1.bf16.msra.mxu0 0
    %3330 = vmatprep.subr.bf16.mxu0 0
    %3331 = vmatpush1.bf16.msra.mxu0 0
    %3332 = vmatprep.subr.bf16.mxu0 0
    %3333 = vmatpush1.bf16.msra.mxu0 0
    %3334 = vmatprep.subr.bf16.mxu0 0
    %3335 = vmatpush1.bf16.msra.mxu0 0
    %3336 = vmatprep.subr.bf16.mxu0 0
    %3337 = vmatpush1.bf16.msra.mxu0 0
    %3338 = vmatprep.mubr.bf16.mxu0 0
    %3339 = vmatmul.mubr.bf16.gmra.mrb[0].mxu0 %v3261
    %v3340 = vpop.f32.mrb[0].mxu0
    %v3341 = vadd.f32 0.0, %v3340
    %v3342 = vpop.f32.mrb[0].mxu0
    %v3343 = vpop.f32.mrb[0].mxu0
    %v3344 = vadd.f32 0.0, %v3343
    %v3345 = vpop.f32.mrb[0].mxu0
    %3346 = vdwg.mxu0
    %v3349 = vunpack.c.l.b16 %v3220
    %v3350 = vunpack.c.l.b16 %v3221
    %v3351 = vpack.c.b16 %v3350, %v3349
    %3352 = vrot.lane.b32.xlu0 %v3230, 4
    %v3353 = vpop.permute.xlu0 %3352
    %3354 = vrot.lane.b32.xlu0 %v3231, 4
    %v3355 = vpop.permute.xlu0 %3354
    %3356 = vrot.lane.b32.xlu0 %v3232, 4
    %v3357 = vpop.permute.xlu0 %3356
    %3358 = vrot.lane.b32.xlu0 %v3233, 4
    %v3359 = vpop.permute.xlu0 %3358
    %v3360 = vsel %vm1190, %v3353, %v3355
    %v3361 = vsel %vm1190, %v3355, %v3357
    %v3362 = vsel %vm1190, %v3357, %v3359
    %v3367 = vsel %vm173, %v3351, 0
    %3369 = vmatprep.subr.bf16.mxu0 %v3361
    %3370 = vmatpush1.bf16.msra.mxu0 %v3360
    %3371 = vmatprep.subr.bf16.mxu0 0
    %3372 = vmatpush1.bf16.msra.mxu0 0
    %3373 = vmatprep.subr.bf16.mxu0 0
    %3374 = vmatpush1.bf16.msra.mxu0 0
    %3375 = vmatprep.subr.bf16.mxu0 0
    %3376 = vmatpush1.bf16.msra.mxu0 0
    %3377 = vmatprep.subr.bf16.mxu0 0
    %3378 = vmatpush1.bf16.msra.mxu0 0
    %3379 = vmatprep.subr.bf16.mxu0 0
    %3380 = vmatpush1.bf16.msra.mxu0 0
    %3381 = vmatprep.subr.bf16.mxu0 0
    %3382 = vmatpush1.bf16.msra.mxu0 0
    %3383 = vmatprep.subr.bf16.mxu0 0
    %3384 = vmatpush1.bf16.msra.mxu0 0
    %3385 = vmatprep.subr.bf16.mxu0 0
    %3386 = vmatpush1.bf16.msra.mxu0 0
    %3387 = vmatprep.subr.bf16.mxu0 0
    %3388 = vmatpush1.bf16.msra.mxu0 0
    %3389 = vmatprep.subr.bf16.mxu0 0
    %3390 = vmatpush1.bf16.msra.mxu0 0
    %3391 = vmatprep.subr.bf16.mxu0 0
    %3392 = vmatpush1.bf16.msra.mxu0 0
    %3393 = vmatprep.subr.bf16.mxu0 0
    %3394 = vmatpush1.bf16.msra.mxu0 0
    %3395 = vmatprep.subr.bf16.mxu0 0
    %3396 = vmatpush1.bf16.msra.mxu0 0
    %3397 = vmatprep.subr.bf16.mxu0 0
    %3398 = vmatpush1.bf16.msra.mxu0 0
    %3399 = vmatprep.subr.bf16.mxu0 0
    %3400 = vmatpush1.bf16.msra.mxu0 0
    %3401 = vmatprep.mubr.bf16.mxu0 0
    %3402 = vmatmul.mubr.bf16.gmra.mrb[0].mxu0 %v3367
    %v3403 = vpop.f32.mrb[0].mxu0
    %v3404 = vadd.f32 %v3298, %v3403
    %v3405 = vpop.f32.mrb[0].mxu0
    %v3406 = vadd.f32 %v3300, %v3405
    %v3407 = vpop.f32.mrb[0].mxu0
    %v3408 = vadd.f32 %v3302, %v3407
    %v3409 = vpop.f32.mrb[0].mxu0
    %v3410 = vadd.f32 %v3304, %v3409
    %3411 = vdwg.mxu0
    %3412 = vmatprep.subr.bf16.mxu0 0
    %3413 = vmatpush1.bf16.msra.mxu0 %v3362
    %3414 = vmatprep.subr.bf16.mxu0 0
    %3415 = vmatpush1.bf16.msra.mxu0 0
    %3416 = vmatprep.subr.bf16.mxu0 0
    %3417 = vmatpush1.bf16.msra.mxu0 0
    %3418 = vmatprep.subr.bf16.mxu0 0
    %3419 = vmatpush1.bf16.msra.mxu0 0
    %3420 = vmatprep.subr.bf16.mxu0 0
    %3421 = vmatpush1.bf16.msra.mxu0 0
    %3422 = vmatprep.subr.bf16.mxu0 0
    %3423 = vmatpush1.bf16.msra.mxu0 0
    %3424 = vmatprep.subr.bf16.mxu0 0
    %3425 = vmatpush1.bf16.msra.mxu0 0
    %3426 = vmatprep.subr.bf16.mxu0 0
    %3427 = vmatpush1.bf16.msra.mxu0 0
    %3428 = vmatprep.subr.bf16.mxu0 0
    %3429 = vmatpush1.bf16.msra.mxu0 0
    %3430 = vmatprep.subr.bf16.mxu0 0
    %3431 = vmatpush1.bf16.msra.mxu0 0
    %3432 = vmatprep.subr.bf16.mxu0 0
    %3433 = vmatpush1.bf16.msra.mxu0 0
    %3434 = vmatprep.subr.bf16.mxu0 0
    %3435 = vmatpush1.bf16.msra.mxu0 0
    %3436 = vmatprep.subr.bf16.mxu0 0
    %3437 = vmatpush1.bf16.msra.mxu0 0
    %3438 = vmatprep.subr.bf16.mxu0 0
    %3439 = vmatpush1.bf16.msra.mxu0 0
    %3440 = vmatprep.subr.bf16.mxu0 0
    %3441 = vmatpush1.bf16.msra.mxu0 0
    %3442 = vmatprep.subr.bf16.mxu0 0
    %3443 = vmatpush1.bf16.msra.mxu0 0
    %3444 = vmatprep.mubr.bf16.mxu0 0
    %3445 = vmatmul.mubr.bf16.gmra.mrb[0].mxu0 %v3367
    %v3446 = vpop.f32.mrb[0].mxu0
    %v3447 = vadd.f32 %v3341, %v3446
    %v3448 = vpop.f32.mrb[0].mxu0
    %v3449 = vpop.f32.mrb[0].mxu0
    %v3450 = vadd.f32 %v3344, %v3449
    %v3451 = vpop.f32.mrb[0].mxu0
    %3452 = vdwg.mxu0
    %s3453 = scalar_lea.vmem [#allocation6], 256
    %v3454 = vld [vmem:[%s3453] sm:$0xf]
    %v3455 = vld [vmem:[%s3453 + $0x4] sm:$0xf]
    %v3458 = vunpack.c.l.b16 %v3454
    %v3459 = vunpack.c.l.b16 %v3455
    %v3460 = vpack.c.b16 %v3459, %v3458
    %v3462 = vsel %vm173, %v3460, 0
    %3464 = vmatprep.subr.bf16.mxu0 %v3232
    %3465 = vmatpush1.bf16.msra.mxu0 %v3231
    %3466 = vmatprep.subr.bf16.mxu0 0
    %3467 = vmatpush1.bf16.msra.mxu0 0
    %3468 = vmatprep.subr.bf16.mxu0 0
    %3469 = vmatpush1.bf16.msra.mxu0 0
    %3470 = vmatprep.subr.bf16.mxu0 0
    %3471 = vmatpush1.bf16.msra.mxu0 0
    %3472 = vmatprep.subr.bf16.mxu0 0
    %3473 = vmatpush1.bf16.msra.mxu0 0
    %3474 = vmatprep.subr.bf16.mxu0 0
    %3475 = vmatpush1.bf16.msra.mxu0 0
    %3476 = vmatprep.subr.bf16.mxu0 0
    %3477 = vmatpush1.bf16.msra.mxu0 0
    %3478 = vmatprep.subr.bf16.mxu0 0
    %3479 = vmatpush1.bf16.msra.mxu0 0
    %3480 = vmatprep.subr.bf16.mxu0 0
    %3481 = vmatpush1.bf16.msra.mxu0 0
    %3482 = vmatprep.subr.bf16.mxu0 0
    %3483 = vmatpush1.bf16.msra.mxu0 0
    %3484 = vmatprep.subr.bf16.mxu0 0
    %3485 = vmatpush1.bf16.msra.mxu0 0
    %3486 = vmatprep.subr.bf16.mxu0 0
    %3487 = vmatpush1.bf16.msra.mxu0 0
    %3488 = vmatprep.subr.bf16.mxu0 0
    %3489 = vmatpush1.bf16.msra.mxu0 0
    %3490 = vmatprep.subr.bf16.mxu0 0
    %3491 = vmatpush1.bf16.msra.mxu0 0
    %3492 = vmatprep.subr.bf16.mxu0 0
    %3493 = vmatpush1.bf16.msra.mxu0 0
    %3494 = vmatprep.subr.bf16.mxu0 0
    %3495 = vmatpush1.bf16.msra.mxu0 0
    %3496 = vmatprep.mubr.bf16.mxu0 0
    %3497 = vmatmul.mubr.bf16.gmra.mrb[0].mxu0 %v3462
    %v3498 = vpop.f32.mrb[0].mxu0
    %v3499 = vadd.f32 0.0, %v3498
    %v3500 = vpop.f32.mrb[0].mxu0
    %v3501 = vadd.f32 0.0, %v3500
    %v3502 = vpop.f32.mrb[0].mxu0
    %v3503 = vadd.f32 0.0, %v3502
    %v3504 = vpop.f32.mrb[0].mxu0
    %v3505 = vadd.f32 0.0, %v3504
    %3506 = vdwg.mxu0
    %3507 = vmatprep.subr.bf16.mxu0 0
    %3508 = vmatpush1.bf16.msra.mxu0 %v3233
    %3509 = vmatprep.subr.bf16.mxu0 0
    %3510 = vmatpush1.bf16.msra.mxu0 0
    %3511 = vmatprep.subr.bf16.mxu0 0
    %3512 = vmatpush1.bf16.msra.mxu0 0
    %3513 = vmatprep.subr.bf16.mxu0 0
    %3514 = vmatpush1.bf16.msra.mxu0 0
    %3515 = vmatprep.subr.bf16.mxu0 0
    %3516 = vmatpush1.bf16.msra.mxu0 0
    %3517 = vmatprep.subr.bf16.mxu0 0
    %3518 = vmatpush1.bf16.msra.mxu0 0
    %3519 = vmatprep.subr.bf16.mxu0 0
    %3520 = vmatpush1.bf16.msra.mxu0 0
    %3521 = vmatprep.subr.bf16.mxu0 0
    %3522 = vmatpush1.bf16.msra.mxu0 0
    %3523 = vmatprep.subr.bf16.mxu0 0
    %3524 = vmatpush1.bf16.msra.mxu0 0
    %3525 = vmatprep.subr.bf16.mxu0 0
    %3526 = vmatpush1.bf16.msra.mxu0 0
    %3527 = vmatprep.subr.bf16.mxu0 0
    %3528 = vmatpush1.bf16.msra.mxu0 0
    %3529 = vmatprep.subr.bf16.mxu0 0
    %3530 = vmatpush1.bf16.msra.mxu0 0
    %3531 = vmatprep.subr.bf16.mxu0 0
    %3532 = vmatpush1.bf16.msra.mxu0 0
    %3533 = vmatprep.subr.bf16.mxu0 0
    %3534 = vmatpush1.bf16.msra.mxu0 0
    %3535 = vmatprep.subr.bf16.mxu0 0
    %3536 = vmatpush1.bf16.msra.mxu0 0
    %3537 = vmatprep.subr.bf16.mxu0 0
    %3538 = vmatpush1.bf16.msra.mxu0 0
    %3539 = vmatprep.mubr.bf16.mxu0 0
    %3540 = vmatmul.mubr.bf16.gmra.mrb[0].mxu0 %v3462
    %v3541 = vpop.f32.mrb[0].mxu0
    %v3542 = vadd.f32 0.0, %v3541
    %v3543 = vpop.f32.mrb[0].mxu0
    %v3544 = vpop.f32.mrb[0].mxu0
    %v3545 = vadd.f32 0.0, %v3544
    %v3546 = vpop.f32.mrb[0].mxu0
    %3547 = vdwg.mxu0
    %v3548 = vadd.f32 %v3404, %v3499
    %v3549 = vadd.f32 %v3406, %v3501
    %v3550 = vadd.f32 %v3447, %v3542
    %v3551 = vadd.f32 %v3408, %v3503
    %v3552 = vadd.f32 %v3410, %v3505
    %v3553 = vadd.f32 %v3450, %v3545
    %s3554 = scalar_lea.vmem [#allocation8], 160
    %v3555 = vld [vmem:[%s3554] sm:$0xff]
    %v3556 = vld [vmem:[%s3554 + $0x8] sm:$0xff]
    %3558 = vset.pattern.permute.xlu0 0
    %3559 = vperm.xlu0 %3558, %v3555
    %v3560 = vpop.permute.xlu0 %3559
    %3563 = vset.pattern.permute.xlu0 0
    %3564 = vperm.xlu0 %3563, %v3556
    %v3565 = vpop.permute.xlu0 %3564
    %v3567 = vadd.f32 %v3548, %v3560
    %v3568 = vadd.f32 %v3549, %v3560
    %v3569 = vadd.f32 %v3550, %v3560
    %v3570 = vadd.f32 %v3551, %v3565
    %v3571 = vadd.f32 %v3552, %v3565
    %v3572 = vadd.f32 %v3553, %v3565
    %v3573 = vmax.f32 %v3567, 0.0
    %v3574 = vmax.f32 %v3568, 0.0
    %v3575 = vmax.f32 %v3569, 0.0
    %v3576 = vmax.f32 %v3570, 0.0
    %v3577 = vmax.f32 %v3571, 0.0
    %v3578 = vmax.f32 %v3572, 0.0
    %v3579 = vmul.f32 %v3573, %v141
    %v3580 = vmul.f32 %v3574, %v142
    %v3581 = vmul.f32 %v3575, %v143
    %v3582 = vmul.f32 %v3576, %v141
    %v3583 = vmul.f32 %v3577, %v142
    %v3584 = vmul.f32 %v3578, %v143
    %v3585 = vld [vmem:[#allocation3] sm:$0xff]
    %v3586 = vld [vmem:[#allocation3 + $0x8] sm:$0xff]
    %v3587 = vld [vmem:[#allocation3 + $0x10] sm:$0xff]
    %v3588 = vld [vmem:[#allocation3 + $0x18] sm:$0xff]
    %v3589 = vld [vmem:[#allocation3 + $0x20] sm:$0xff]
    %v3590 = vld [vmem:[#allocation3 + $0x28] sm:$0xff]
    %v3591 = vadd.f32 %v3579, %v3585
    %v3592 = vadd.f32 %v3580, %v3586
    %v3593 = vadd.f32 %v3581, %v3587
    %v3594 = vadd.f32 %v3582, %v3588
    %v3595 = vadd.f32 %v3583, %v3589
    %v3596 = vadd.f32 %v3584, %v3590
    %v3597 = vmax.f32 %v3591, 0.0
    %v3598 = vmax.f32 %v3592, 0.0
    %v3599 = vmax.f32 %v3593, 0.0
    %v3600 = vmax.f32 %v3594, 0.0
    %v3601 = vmax.f32 %v3595, 0.0
    %v3602 = vmax.f32 %v3596, 0.0
    %3603 = vst [vmem:[#allocation2 + $0x8] sm:$0xff] %v3597
    %3604 = vst [vmem:[#allocation2 + $0x10] sm:$0xff] %v3598
    %3605 = vst.msk [vmem:[#allocation2 + $0x18] sm:$0xff] %vm59, %v3599
    %3606 = vst [vmem:[#allocation2 + $0x28] sm:$0xff] %v3600
    %3607 = vst [vmem:[#allocation2 + $0x30] sm:$0xff] %v3601
    %3608 = vst.msk [vmem:[#allocation2 + $0x38] sm:$0xff] %vm59, %v3602
    %s3609 = scalar_lea.vmem [#allocation6], 280
    %v3610 = vld [vmem:[%s3609] sm:$0xf]
    %v3611 = vld [vmem:[%s3609 + $0x4] sm:$0xf]
    %v3612 = vld [vmem:[#allocation2 + $0x8] sm:$0xff]
    %v3613 = vld [vmem:[#allocation2 + $0x10] sm:$0xff]
    %v3614 = vld [vmem:[#allocation2 + $0x18] sm:$0xff]
    %v3615 = vld [vmem:[#allocation2 + $0x28] sm:$0xff]
    %v3616 = vld [vmem:[#allocation2 + $0x30] sm:$0xff]
    %v3617 = vld [vmem:[#allocation2 + $0x38] sm:$0xff]
    %v3618 = vpack.c.bf16 %v3615, %v3612
    %v3619 = vpack.c.bf16 %v3616, %v3613
    %v3620 = vpack.c.bf16 %v3617, %v3614
    %s3621 = scalar_lea.vmem [#allocation8], 176
    %v3622 = vld [vmem:[%s3621] sm:$0xff]
    %v3623 = vld [vmem:[%s3621 + $0x8] sm:$0xff]
    %3625 = vset.pattern.permute.xlu0 0
    %3626 = vperm.xlu0 %3625, %v3622
    %v3627 = vpop.permute.xlu0 %3626
    %3630 = vset.pattern.permute.xlu0 0
    %3631 = vperm.xlu0 %3630, %v3623
    %v3632 = vpop.permute.xlu0 %3631
    %v3636 = vunpack.c.l.b16 %v3610
    %v3637 = vunpack.c.l.b16 %v3611
    %v3638 = vpack.c.b16 %v3637, %v3636
    %v3640 = vsel %vm173, %v3638, 0
    %3642 = vmatprep.subr.bf16.mxu0 %v3619
    %3643 = vmatpush1.bf16.msra.mxu0 %v3618
    %3644 = vmatprep.subr.bf16.mxu0 0
    %3645 = vmatpush1.bf16.msra.mxu0 0
    %3646 = vmatprep.subr.bf16.mxu0 0
    %3647 = vmatpush1.bf16.msra.mxu0 0
    %3648 = vmatprep.subr.bf16.mxu0 0
    %3649 = vmatpush1.bf16.msra.mxu0 0
    %3650 = vmatprep.subr.bf16.mxu0 0
    %3651 = vmatpush1.bf16.msra.mxu0 0
    %3652 = vmatprep.subr.bf16.mxu0 0
    %3653 = vmatpush1.bf16.msra.mxu0 0
    %3654 = vmatprep.subr.bf16.mxu0 0
    %3655 = vmatpush1.bf16.msra.mxu0 0
    %3656 = vmatprep.subr.bf16.mxu0 0
    %3657 = vmatpush1.bf16.msra.mxu0 0
    %3658 = vmatprep.subr.bf16.mxu0 0
    %3659 = vmatpush1.bf16.msra.mxu0 0
    %3660 = vmatprep.subr.bf16.mxu0 0
    %3661 = vmatpush1.bf16.msra.mxu0 0
    %3662 = vmatprep.subr.bf16.mxu0 0
    %3663 = vmatpush1.bf16.msra.mxu0 0
    %3664 = vmatprep.subr.bf16.mxu0 0
    %3665 = vmatpush1.bf16.msra.mxu0 0
    %3666 = vmatprep.subr.bf16.mxu0 0
    %3667 = vmatpush1.bf16.msra.mxu0 0
    %3668 = vmatprep.subr.bf16.mxu0 0
    %3669 = vmatpush1.bf16.msra.mxu0 0
    %3670 = vmatprep.subr.bf16.mxu0 0
    %3671 = vmatpush1.bf16.msra.mxu0 0
    %3672 = vmatprep.subr.bf16.mxu0 0
    %3673 = vmatpush1.bf16.msra.mxu0 0
    %3674 = vmatprep.mubr.bf16.mxu0 0
    %3675 = vmatmul.mubr.bf16.gmra.mrb[0].mxu0 %v3640
    %v3676 = vpop.f32.mrb[0].mxu0
    %v3677 = vadd.f32 %v3627, %v3676
    %v3678 = vpop.f32.mrb[0].mxu0
    %v3679 = vadd.f32 %v3627, %v3678
    %v3680 = vpop.f32.mrb[0].mxu0
    %v3681 = vadd.f32 %v3632, %v3680
    %v3682 = vpop.f32.mrb[0].mxu0
    %v3683 = vadd.f32 %v3632, %v3682
    %3684 = vdwg.mxu0
    %3685 = vmatprep.subr.bf16.mxu0 0
    %3686 = vmatpush1.bf16.msra.mxu0 %v3620
    %3687 = vmatprep.subr.bf16.mxu0 0
    %3688 = vmatpush1.bf16.msra.mxu0 0
    %3689 = vmatprep.subr.bf16.mxu0 0
    %3690 = vmatpush1.bf16.msra.mxu0 0
    %3691 = vmatprep.subr.bf16.mxu0 0
    %3692 = vmatpush1.bf16.msra.mxu0 0
    %3693 = vmatprep.subr.bf16.mxu0 0
    %3694 = vmatpush1.bf16.msra.mxu0 0
    %3695 = vmatprep.subr.bf16.mxu0 0
    %3696 = vmatpush1.bf16.msra.mxu0 0
    %3697 = vmatprep.subr.bf16.mxu0 0
    %3698 = vmatpush1.bf16.msra.mxu0 0
    %3699 = vmatprep.subr.bf16.mxu0 0
    %3700 = vmatpush1.bf16.msra.mxu0 0
    %3701 = vmatprep.subr.bf16.mxu0 0
    %3702 = vmatpush1.bf16.msra.mxu0 0
    %3703 = vmatprep.subr.bf16.mxu0 0
    %3704 = vmatpush1.bf16.msra.mxu0 0
    %3705 = vmatprep.subr.bf16.mxu0 0
    %3706 = vmatpush1.bf16.msra.mxu0 0
    %3707 = vmatprep.subr.bf16.mxu0 0
    %3708 = vmatpush1.bf16.msra.mxu0 0
    %3709 = vmatprep.subr.bf16.mxu0 0
    %3710 = vmatpush1.bf16.msra.mxu0 0
    %3711 = vmatprep.subr.bf16.mxu0 0
    %3712 = vmatpush1.bf16.msra.mxu0 0
    %3713 = vmatprep.subr.bf16.mxu0 0
    %3714 = vmatpush1.bf16.msra.mxu0 0
    %3715 = vmatprep.subr.bf16.mxu0 0
    %3716 = vmatpush1.bf16.msra.mxu0 0
    %3717 = vmatprep.mubr.bf16.mxu0 0
    %3718 = vmatmul.mubr.bf16.gmra.mrb[0].mxu0 %v3640
    %v3719 = vpop.f32.mrb[0].mxu0
    %v3720 = vadd.f32 %v3627, %v3719
    %v3721 = vpop.f32.mrb[0].mxu0
    %v3722 = vpop.f32.mrb[0].mxu0
    %v3723 = vadd.f32 %v3632, %v3722
    %v3724 = vpop.f32.mrb[0].mxu0
    %3725 = vdwg.mxu0
    %v3726 = vmul.f32 %v3677, %v141
    %v3727 = vmul.f32 %v3679, %v142
    %v3728 = vmul.f32 %v3720, %v143
    %v3729 = vmul.f32 %v3681, %v141
    %v3730 = vmul.f32 %v3683, %v142
    %v3731 = vmul.f32 %v3723, %v143
    %s3732 = scalar_lea.vmem %s3, 24
    %3733 = vst [vmem:[%s3732] sm:$0xff] %v3726
    %3734 = vst [vmem:[%s3732 + $0x8] sm:$0xff] %v3727
    %3735 = vst.msk [vmem:[%s3732 + $0x10] sm:$0xff] %vm59, %v3728
    %3736 = vst [vmem:[#allocation2 + $0x8] sm:$0xff] %v3726
    %3737 = vst [vmem:[#allocation2 + $0x10] sm:$0xff] %v3727
    %3738 = vst.msk [vmem:[#allocation2 + $0x18] sm:$0xff] %vm59, %v3728
    %3739 = vst [vmem:[#allocation2 + $0x28] sm:$0xff] %v3729
    %3740 = vst [vmem:[#allocation2 + $0x30] sm:$0xff] %v3730
    %3741 = vst.msk [vmem:[#allocation2 + $0x38] sm:$0xff] %vm59, %v3731
    %s3742 = scalar_lea.vmem [#allocation6], 304
    %v3743 = vld [vmem:[%s3742] sm:$0xf]
    %v3744 = vld [vmem:[%s3742 + $0x4] sm:$0xf]
    %v3745 = vld [vmem:[#allocation2 + $0x8] sm:$0xff]
    %v3746 = vld [vmem:[#allocation2 + $0x10] sm:$0xff]
    %v3747 = vld [vmem:[#allocation2 + $0x18] sm:$0xff]
    %v3748 = vld [vmem:[#allocation2 + $0x28] sm:$0xff]
    %v3749 = vld [vmem:[#allocation2 + $0x30] sm:$0xff]
    %v3750 = vld [vmem:[#allocation2 + $0x38] sm:$0xff]
    %v3751 = vpack.c.bf16 %v3748, %v3745
    %v3752 = vpack.c.bf16 %v3749, %v3746
    %v3753 = vpack.c.bf16 %v3750, %v3747
    %s3754 = scalar_lea.vmem [#allocation8], 192
    %v3755 = vld [vmem:[%s3754] sm:$0xff]
    %v3756 = vld [vmem:[%s3754 + $0x8] sm:$0xff]
    %3758 = vset.pattern.permute.xlu0 0
    %3759 = vperm.xlu0 %3758, %v3755
    %v3760 = vpop.permute.xlu0 %3759
    %3763 = vset.pattern.permute.xlu0 0
    %3764 = vperm.xlu0 %3763, %v3756
    %v3765 = vpop.permute.xlu0 %3764
    %v3769 = vunpack.c.l.b16 %v3743
    %v3770 = vunpack.c.l.b16 %v3744
    %v3771 = vpack.c.b16 %v3770, %v3769
    %v3773 = vsel %vm173, %v3771, 0
    %3775 = vmatprep.subr.bf16.mxu0 %v3752
    %3776 = vmatpush1.bf16.msra.mxu0 %v3751
    %3777 = vmatprep.subr.bf16.mxu0 0
    %3778 = vmatpush1.bf16.msra.mxu0 0
    %3779 = vmatprep.subr.bf16.mxu0 0
    %3780 = vmatpush1.bf16.msra.mxu0 0
    %3781 = vmatprep.subr.bf16.mxu0 0
    %3782 = vmatpush1.bf16.msra.mxu0 0
    %3783 = vmatprep.subr.bf16.mxu0 0
    %3784 = vmatpush1.bf16.msra.mxu0 0
    %3785 = vmatprep.subr.bf16.mxu0 0
    %3786 = vmatpush1.bf16.msra.mxu0 0
    %3787 = vmatprep.subr.bf16.mxu0 0
    %3788 = vmatpush1.bf16.msra.mxu0 0
    %3789 = vmatprep.subr.bf16.mxu0 0
    %3790 = vmatpush1.bf16.msra.mxu0 0
    %3791 = vmatprep.subr.bf16.mxu0 0
    %3792 = vmatpush1.bf16.msra.mxu0 0
    %3793 = vmatprep.subr.bf16.mxu0 0
    %3794 = vmatpush1.bf16.msra.mxu0 0
    %3795 = vmatprep.subr.bf16.mxu0 0
    %3796 = vmatpush1.bf16.msra.mxu0 0
    %3797 = vmatprep.subr.bf16.mxu0 0
    %3798 = vmatpush1.bf16.msra.mxu0 0
    %3799 = vmatprep.subr.bf16.mxu0 0
    %3800 = vmatpush1.bf16.msra.mxu0 0
    %3801 = vmatprep.subr.bf16.mxu0 0
    %3802 = vmatpush1.bf16.msra.mxu0 0
    %3803 = vmatprep.subr.bf16.mxu0 0
    %3804 = vmatpush1.bf16.msra.mxu0 0
    %3805 = vmatprep.subr.bf16.mxu0 0
    %3806 = vmatpush1.bf16.msra.mxu0 0
    %3807 = vmatprep.mubr.bf16.mxu0 0
    %3808 = vmatmul.mubr.bf16.gmra.mrb[0].mxu0 %v3773
    %v3809 = vpop.f32.mrb[0].mxu0
    %v3810 = vadd.f32 %v3760, %v3809
    %v3811 = vpop.f32.mrb[0].mxu0
    %v3812 = vadd.f32 %v3760, %v3811
    %v3813 = vpop.f32.mrb[0].mxu0
    %v3814 = vadd.f32 %v3765, %v3813
    %v3815 = vpop.f32.mrb[0].mxu0
    %v3816 = vadd.f32 %v3765, %v3815
    %3817 = vdwg.mxu0
    %3818 = vmatprep.subr.bf16.mxu0 0
    %3819 = vmatpush1.bf16.msra.mxu0 %v3753
    %3820 = vmatprep.subr.bf16.mxu0 0
    %3821 = vmatpush1.bf16.msra.mxu0 0
    %3822 = vmatprep.subr.bf16.mxu0 0
    %3823 = vmatpush1.bf16.msra.mxu0 0
    %3824 = vmatprep.subr.bf16.mxu0 0
    %3825 = vmatpush1.bf16.msra.mxu0 0
    %3826 = vmatprep.subr.bf16.mxu0 0
    %3827 = vmatpush1.bf16.msra.mxu0 0
    %3828 = vmatprep.subr.bf16.mxu0 0
    %3829 = vmatpush1.bf16.msra.mxu0 0
    %3830 = vmatprep.subr.bf16.mxu0 0
    %3831 = vmatpush1.bf16.msra.mxu0 0
    %3832 = vmatprep.subr.bf16.mxu0 0
    %3833 = vmatpush1.bf16.msra.mxu0 0
    %3834 = vmatprep.subr.bf16.mxu0 0
    %3835 = vmatpush1.bf16.msra.mxu0 0
    %3836 = vmatprep.subr.bf16.mxu0 0
    %3837 = vmatpush1.bf16.msra.mxu0 0
    %3838 = vmatprep.subr.bf16.mxu0 0
    %3839 = vmatpush1.bf16.msra.mxu0 0
    %3840 = vmatprep.subr.bf16.mxu0 0
    %3841 = vmatpush1.bf16.msra.mxu0 0
    %3842 = vmatprep.subr.bf16.mxu0 0
    %3843 = vmatpush1.bf16.msra.mxu0 0
    %3844 = vmatprep.subr.bf16.mxu0 0
    %3845 = vmatpush1.bf16.msra.mxu0 0
    %3846 = vmatprep.subr.bf16.mxu0 0
    %3847 = vmatpush1.bf16.msra.mxu0 0
    %3848 = vmatprep.subr.bf16.mxu0 0
    %3849 = vmatpush1.bf16.msra.mxu0 0
    %3850 = vmatprep.mubr.bf16.mxu0 0
    %3851 = vmatmul.mubr.bf16.gmra.mrb[0].mxu0 %v3773
    %v3852 = vpop.f32.mrb[0].mxu0
    %v3853 = vadd.f32 %v3760, %v3852
    %v3854 = vpop.f32.mrb[0].mxu0
    %v3855 = vpop.f32.mrb[0].mxu0
    %v3856 = vadd.f32 %v3765, %v3855
    %v3857 = vpop.f32.mrb[0].mxu0
    %3858 = vdwg.mxu0
    %v3859 = vmul.f32 %v3810, %v141
    %v3860 = vmul.f32 %v3812, %v142
    %v3861 = vmul.f32 %v3853, %v143
    %v3862 = vmul.f32 %v3814, %v141
    %v3863 = vmul.f32 %v3816, %v142
    %v3864 = vmul.f32 %v3856, %v143
    %3865 = vst [vmem:[#allocation3] sm:$0xff] %v3859
    %3866 = vst [vmem:[#allocation3 + $0x8] sm:$0xff] %v3860
    %3867 = vst.msk [vmem:[#allocation3 + $0x10] sm:$0xff] %vm59, %v3861
    %3868 = vst [vmem:[#allocation3 + $0x18] sm:$0xff] %v3862
    %3869 = vst [vmem:[#allocation3 + $0x20] sm:$0xff] %v3863
    %3870 = vst.msk [vmem:[#allocation3 + $0x28] sm:$0xff] %vm59, %v3864
    %s3871 = scalar_lea.vmem [#allocation6], 312
    %v3872 = vld [vmem:[%s3871] sm:$0xf]
    %v3873 = vld [vmem:[%s3871 + $0x4] sm:$0xf]
    %v3874 = vld [vmem:[#allocation2] sm:$0xff]
    %v3875 = vld [vmem:[#allocation2 + $0x8] sm:$0xff]
    %v3876 = vld [vmem:[#allocation2 + $0x10] sm:$0xff]
    %v3877 = vld [vmem:[#allocation2 + $0x18] sm:$0xff]
    %v3878 = vld [vmem:[#allocation2 + $0x20] sm:$0xff]
    %v3879 = vld [vmem:[#allocation2 + $0x28] sm:$0xff]
    %v3880 = vld [vmem:[#allocation2 + $0x30] sm:$0xff]
    %v3881 = vld [vmem:[#allocation2 + $0x38] sm:$0xff]
    %v3882 = vpack.c.bf16 %v3878, %v3874
    %v3883 = vpack.c.bf16 %v3879, %v3875
    %v3884 = vpack.c.bf16 %v3880, %v3876
    %v3885 = vpack.c.bf16 %v3881, %v3877
    %s3886 = scalar_lea.vmem [#allocation6], 320
    %v3887 = vld [vmem:[%s3886] sm:$0xf]
    %v3888 = vld [vmem:[%s3886 + $0x4] sm:$0xf]
    %v3891 = vunpack.c.l.b16 %v3887
    %v3892 = vunpack.c.l.b16 %v3888
    %v3893 = vpack.c.b16 %v3892, %v3891
    %3898 = vrot.lane.b32.xlu0 %v3882, 1
    %v3899 = vpop.permute.xlu0 %3898
    %3900 = vrot.lane.b32.xlu0 %v3883, 1
    %v3901 = vpop.permute.xlu0 %3900
    %3902 = vrot.lane.b32.xlu0 %v3884, 1
    %v3903 = vpop.permute.xlu0 %3902
    %3904 = vrot.lane.b32.xlu0 %v3885, 1
    %v3905 = vpop.permute.xlu0 %3904
    %v3906 = vsel %vm308, %v3899, %v3901
    %v3907 = vsel %vm308, %v3901, %v3903
    %v3908 = vsel %vm308, %v3903, %v3905
    %v3913 = vsel %vm173, %v3893, 0
    %3915 = vmatprep.subr.bf16.mxu0 %v3907
    %3916 = vmatpush1.bf16.msra.mxu0 %v3906
    %3917 = vmatprep.subr.bf16.mxu0 0
    %3918 = vmatpush1.bf16.msra.mxu0 0
    %3919 = vmatprep.subr.bf16.mxu0 0
    %3920 = vmatpush1.bf16.msra.mxu0 0
    %3921 = vmatprep.subr.bf16.mxu0 0
    %3922 = vmatpush1.bf16.msra.mxu0 0
    %3923 = vmatprep.subr.bf16.mxu0 0
    %3924 = vmatpush1.bf16.msra.mxu0 0
    %3925 = vmatprep.subr.bf16.mxu0 0
    %3926 = vmatpush1.bf16.msra.mxu0 0
    %3927 = vmatprep.subr.bf16.mxu0 0
    %3928 = vmatpush1.bf16.msra.mxu0 0
    %3929 = vmatprep.subr.bf16.mxu0 0
    %3930 = vmatpush1.bf16.msra.mxu0 0
    %3931 = vmatprep.subr.bf16.mxu0 0
    %3932 = vmatpush1.bf16.msra.mxu0 0
    %3933 = vmatprep.subr.bf16.mxu0 0
    %3934 = vmatpush1.bf16.msra.mxu0 0
    %3935 = vmatprep.subr.bf16.mxu0 0
    %3936 = vmatpush1.bf16.msra.mxu0 0
    %3937 = vmatprep.subr.bf16.mxu0 0
    %3938 = vmatpush1.bf16.msra.mxu0 0
    %3939 = vmatprep.subr.bf16.mxu0 0
    %3940 = vmatpush1.bf16.msra.mxu0 0
    %3941 = vmatprep.subr.bf16.mxu0 0
    %3942 = vmatpush1.bf16.msra.mxu0 0
    %3943 = vmatprep.subr.bf16.mxu0 0
    %3944 = vmatpush1.bf16.msra.mxu0 0
    %3945 = vmatprep.subr.bf16.mxu0 0
    %3946 = vmatpush1.bf16.msra.mxu0 0
    %3947 = vmatprep.mubr.bf16.mxu0 0
    %3948 = vmatmul.mubr.bf16.gmra.mrb[0].mxu0 %v3913
    %v3949 = vpop.f32.mrb[0].mxu0
    %v3950 = vadd.f32 0.0, %v3949
    %v3951 = vpop.f32.mrb[0].mxu0
    %v3952 = vadd.f32 0.0, %v3951
    %v3953 = vpop.f32.mrb[0].mxu0
    %v3954 = vadd.f32 0.0, %v3953
    %v3955 = vpop.f32.mrb[0].mxu0
    %v3956 = vadd.f32 0.0, %v3955
    %3957 = vdwg.mxu0
    %3958 = vmatprep.subr.bf16.mxu0 0
    %3959 = vmatpush1.bf16.msra.mxu0 %v3908
    %3960 = vmatprep.subr.bf16.mxu0 0
    %3961 = vmatpush1.bf16.msra.mxu0 0
    %3962 = vmatprep.subr.bf16.mxu0 0
    %3963 = vmatpush1.bf16.msra.mxu0 0
    %3964 = vmatprep.subr.bf16.mxu0 0
    %3965 = vmatpush1.bf16.msra.mxu0 0
    %3966 = vmatprep.subr.bf16.mxu0 0
    %3967 = vmatpush1.bf16.msra.mxu0 0
    %3968 = vmatprep.subr.bf16.mxu0 0
    %3969 = vmatpush1.bf16.msra.mxu0 0
    %3970 = vmatprep.subr.bf16.mxu0 0
    %3971 = vmatpush1.bf16.msra.mxu0 0
    %3972 = vmatprep.subr.bf16.mxu0 0
    %3973 = vmatpush1.bf16.msra.mxu0 0
    %3974 = vmatprep.subr.bf16.mxu0 0
    %3975 = vmatpush1.bf16.msra.mxu0 0
    %3976 = vmatprep.subr.bf16.mxu0 0
    %3977 = vmatpush1.bf16.msra.mxu0 0
    %3978 = vmatprep.subr.bf16.mxu0 0
    %3979 = vmatpush1.bf16.msra.mxu0 0
    %3980 = vmatprep.subr.bf16.mxu0 0
    %3981 = vmatpush1.bf16.msra.mxu0 0
    %3982 = vmatprep.subr.bf16.mxu0 0
    %3983 = vmatpush1.bf16.msra.mxu0 0
    %3984 = vmatprep.subr.bf16.mxu0 0
    %3985 = vmatpush1.bf16.msra.mxu0 0
    %3986 = vmatprep.subr.bf16.mxu0 0
    %3987 = vmatpush1.bf16.msra.mxu0 0
    %3988 = vmatprep.subr.bf16.mxu0 0
    %3989 = vmatpush1.bf16.msra.mxu0 0
    %3990 = vmatprep.mubr.bf16.mxu0 0
    %3991 = vmatmul.mubr.bf16.gmra.mrb[0].mxu0 %v3913
    %v3992 = vpop.f32.mrb[0].mxu0
    %v3993 = vadd.f32 0.0, %v3992
    %v3994 = vpop.f32.mrb[0].mxu0
    %v3995 = vpop.f32.mrb[0].mxu0
    %v3996 = vadd.f32 0.0, %v3995
    %v3997 = vpop.f32.mrb[0].mxu0
    %3998 = vdwg.mxu0
    %v4001 = vunpack.c.l.b16 %v3872
    %v4002 = vunpack.c.l.b16 %v3873
    %v4003 = vpack.c.b16 %v4002, %v4001
    %4004 = vrot.lane.b32.xlu0 %v3882, 2
    %v4005 = vpop.permute.xlu0 %4004
    %4006 = vrot.lane.b32.xlu0 %v3883, 2
    %v4007 = vpop.permute.xlu0 %4006
    %4008 = vrot.lane.b32.xlu0 %v3884, 2
    %v4009 = vpop.permute.xlu0 %4008
    %4010 = vrot.lane.b32.xlu0 %v3885, 2
    %v4011 = vpop.permute.xlu0 %4010
    %v4012 = vsel %vm415, %v4005, %v4007
    %v4013 = vsel %vm415, %v4007, %v4009
    %v4014 = vsel %vm415, %v4009, %v4011
    %v4019 = vsel %vm173, %v4003, 0
    %4021 = vmatprep.subr.bf16.mxu0 %v4013
    %4022 = vmatpush1.bf16.msra.mxu0 %v4012
    %4023 = vmatprep.subr.bf16.mxu0 0
    %4024 = vmatpush1.bf16.msra.mxu0 0
    %4025 = vmatprep.subr.bf16.mxu0 0
    %4026 = vmatpush1.bf16.msra.mxu0 0
    %4027 = vmatprep.subr.bf16.mxu0 0
    %4028 = vmatpush1.bf16.msra.mxu0 0
    %4029 = vmatprep.subr.bf16.mxu0 0
    %4030 = vmatpush1.bf16.msra.mxu0 0
    %4031 = vmatprep.subr.bf16.mxu0 0
    %4032 = vmatpush1.bf16.msra.mxu0 0
    %4033 = vmatprep.subr.bf16.mxu0 0
    %4034 = vmatpush1.bf16.msra.mxu0 0
    %4035 = vmatprep.subr.bf16.mxu0 0
    %4036 = vmatpush1.bf16.msra.mxu0 0
    %4037 = vmatprep.subr.bf16.mxu0 0
    %4038 = vmatpush1.bf16.msra.mxu0 0
    %4039 = vmatprep.subr.bf16.mxu0 0
    %4040 = vmatpush1.bf16.msra.mxu0 0
    %4041 = vmatprep.subr.bf16.mxu0 0
    %4042 = vmatpush1.bf16.msra.mxu0 0
    %4043 = vmatprep.subr.bf16.mxu0 0
    %4044 = vmatpush1.bf16.msra.mxu0 0
    %4045 = vmatprep.subr.bf16.mxu0 0
    %4046 = vmatpush1.bf16.msra.mxu0 0
    %4047 = vmatprep.subr.bf16.mxu0 0
    %4048 = vmatpush1.bf16.msra.mxu0 0
    %4049 = vmatprep.subr.bf16.mxu0 0
    %4050 = vmatpush1.bf16.msra.mxu0 0
    %4051 = vmatprep.subr.bf16.mxu0 0
    %4052 = vmatpush1.bf16.msra.mxu0 0
    %4053 = vmatprep.mubr.bf16.mxu0 0
    %4054 = vmatmul.mubr.bf16.gmra.mrb[0].mxu0 %v4019
    %v4055 = vpop.f32.mrb[0].mxu0
    %v4056 = vadd.f32 %v3950, %v4055
    %v4057 = vpop.f32.mrb[0].mxu0
    %v4058 = vadd.f32 %v3952, %v4057
    %v4059 = vpop.f32.mrb[0].mxu0
    %v4060 = vadd.f32 %v3954, %v4059
    %v4061 = vpop.f32.mrb[0].mxu0
    %v4062 = vadd.f32 %v3956, %v4061
    %4063 = vdwg.mxu0
    %4064 = vmatprep.subr.bf16.mxu0 0
    %4065 = vmatpush1.bf16.msra.mxu0 %v4014
    %4066 = vmatprep.subr.bf16.mxu0 0
    %4067 = vmatpush1.bf16.msra.mxu0 0
    %4068 = vmatprep.subr.bf16.mxu0 0
    %4069 = vmatpush1.bf16.msra.mxu0 0
    %4070 = vmatprep.subr.bf16.mxu0 0
    %4071 = vmatpush1.bf16.msra.mxu0 0
    %4072 = vmatprep.subr.bf16.mxu0 0
    %4073 = vmatpush1.bf16.msra.mxu0 0
    %4074 = vmatprep.subr.bf16.mxu0 0
    %4075 = vmatpush1.bf16.msra.mxu0 0
    %4076 = vmatprep.subr.bf16.mxu0 0
    %4077 = vmatpush1.bf16.msra.mxu0 0
    %4078 = vmatprep.subr.bf16.mxu0 0
    %4079 = vmatpush1.bf16.msra.mxu0 0
    %4080 = vmatprep.subr.bf16.mxu0 0
    %4081 = vmatpush1.bf16.msra.mxu0 0
    %4082 = vmatprep.subr.bf16.mxu0 0
    %4083 = vmatpush1.bf16.msra.mxu0 0
    %4084 = vmatprep.subr.bf16.mxu0 0
    %4085 = vmatpush1.bf16.msra.mxu0 0
    %4086 = vmatprep.subr.bf16.mxu0 0
    %4087 = vmatpush1.bf16.msra.mxu0 0
    %4088 = vmatprep.subr.bf16.mxu0 0
    %4089 = vmatpush1.bf16.msra.mxu0 0
    %4090 = vmatprep.subr.bf16.mxu0 0
    %4091 = vmatpush1.bf16.msra.mxu0 0
    %4092 = vmatprep.subr.bf16.mxu0 0
    %4093 = vmatpush1.bf16.msra.mxu0 0
    %4094 = vmatprep.subr.bf16.mxu0 0
    %4095 = vmatpush1.bf16.msra.mxu0 0
    %4096 = vmatprep.mubr.bf16.mxu0 0
    %4097 = vmatmul.mubr.bf16.gmra.mrb[0].mxu0 %v4019
    %v4098 = vpop.f32.mrb[0].mxu0
    %v4099 = vadd.f32 %v3993, %v4098
    %v4100 = vpop.f32.mrb[0].mxu0
    %v4101 = vpop.f32.mrb[0].mxu0
    %v4102 = vadd.f32 %v3996, %v4101
    %v4103 = vpop.f32.mrb[0].mxu0
    %4104 = vdwg.mxu0
    %s4105 = scalar_lea.vmem [#allocation6], 328
    %v4106 = vld [vmem:[%s4105] sm:$0xf]
    %v4107 = vld [vmem:[%s4105 + $0x4] sm:$0xf]
    %v4110 = vunpack.c.l.b16 %v4106
    %v4111 = vunpack.c.l.b16 %v4107
    %v4112 = vpack.c.b16 %v4111, %v4110
    %v4114 = vsel %vm173, %v4112, 0
    %4116 = vmatprep.subr.bf16.mxu0 %v3884
    %4117 = vmatpush1.bf16.msra.mxu0 %v3883
    %4118 = vmatprep.subr.bf16.mxu0 0
    %4119 = vmatpush1.bf16.msra.mxu0 0
    %4120 = vmatprep.subr.bf16.mxu0 0
    %4121 = vmatpush1.bf16.msra.mxu0 0
    %4122 = vmatprep.subr.bf16.mxu0 0
    %4123 = vmatpush1.bf16.msra.mxu0 0
    %4124 = vmatprep.subr.bf16.mxu0 0
    %4125 = vmatpush1.bf16.msra.mxu0 0
    %4126 = vmatprep.subr.bf16.mxu0 0
    %4127 = vmatpush1.bf16.msra.mxu0 0
    %4128 = vmatprep.subr.bf16.mxu0 0
    %4129 = vmatpush1.bf16.msra.mxu0 0
    %4130 = vmatprep.subr.bf16.mxu0 0
    %4131 = vmatpush1.bf16.msra.mxu0 0
    %4132 = vmatprep.subr.bf16.mxu0 0
    %4133 = vmatpush1.bf16.msra.mxu0 0
    %4134 = vmatprep.subr.bf16.mxu0 0
    %4135 = vmatpush1.bf16.msra.mxu0 0
    %4136 = vmatprep.subr.bf16.mxu0 0
    %4137 = vmatpush1.bf16.msra.mxu0 0
    %4138 = vmatprep.subr.bf16.mxu0 0
    %4139 = vmatpush1.bf16.msra.mxu0 0
    %4140 = vmatprep.subr.bf16.mxu0 0
    %4141 = vmatpush1.bf16.msra.mxu0 0
    %4142 = vmatprep.subr.bf16.mxu0 0
    %4143 = vmatpush1.bf16.msra.mxu0 0
    %4144 = vmatprep.subr.bf16.mxu0 0
    %4145 = vmatpush1.bf16.msra.mxu0 0
    %4146 = vmatprep.subr.bf16.mxu0 0
    %4147 = vmatpush1.bf16.msra.mxu0 0
    %4148 = vmatprep.mubr.bf16.mxu0 0
    %4149 = vmatmul.mubr.bf16.gmra.mrb[0].mxu0 %v4114
    %v4150 = vpop.f32.mrb[0].mxu0
    %v4151 = vadd.f32 0.0, %v4150
    %v4152 = vpop.f32.mrb[0].mxu0
    %v4153 = vadd.f32 0.0, %v4152
    %v4154 = vpop.f32.mrb[0].mxu0
    %v4155 = vadd.f32 0.0, %v4154
    %v4156 = vpop.f32.mrb[0].mxu0
    %v4157 = vadd.f32 0.0, %v4156
    %4158 = vdwg.mxu0
    %4159 = vmatprep.subr.bf16.mxu0 0
    %4160 = vmatpush1.bf16.msra.mxu0 %v3885
    %4161 = vmatprep.subr.bf16.mxu0 0
    %4162 = vmatpush1.bf16.msra.mxu0 0
    %4163 = vmatprep.subr.bf16.mxu0 0
    %4164 = vmatpush1.bf16.msra.mxu0 0
    %4165 = vmatprep.subr.bf16.mxu0 0
    %4166 = vmatpush1.bf16.msra.mxu0 0
    %4167 = vmatprep.subr.bf16.mxu0 0
    %4168 = vmatpush1.bf16.msra.mxu0 0
    %4169 = vmatprep.subr.bf16.mxu0 0
    %4170 = vmatpush1.bf16.msra.mxu0 0
    %4171 = vmatprep.subr.bf16.mxu0 0
    %4172 = vmatpush1.bf16.msra.mxu0 0
    %4173 = vmatprep.subr.bf16.mxu0 0
    %4174 = vmatpush1.bf16.msra.mxu0 0
    %4175 = vmatprep.subr.bf16.mxu0 0
    %4176 = vmatpush1.bf16.msra.mxu0 0
    %4177 = vmatprep.subr.bf16.mxu0 0
    %4178 = vmatpush1.bf16.msra.mxu0 0
    %4179 = vmatprep.subr.bf16.mxu0 0
    %4180 = vmatpush1.bf16.msra.mxu0 0
    %4181 = vmatprep.subr.bf16.mxu0 0
    %4182 = vmatpush1.bf16.msra.mxu0 0
    %4183 = vmatprep.subr.bf16.mxu0 0
    %4184 = vmatpush1.bf16.msra.mxu0 0
    %4185 = vmatprep.subr.bf16.mxu0 0
    %4186 = vmatpush1.bf16.msra.mxu0 0
    %4187 = vmatprep.subr.bf16.mxu0 0
    %4188 = vmatpush1.bf16.msra.mxu0 0
    %4189 = vmatprep.subr.bf16.mxu0 0
    %4190 = vmatpush1.bf16.msra.mxu0 0
    %4191 = vmatprep.mubr.bf16.mxu0 0
    %4192 = vmatmul.mubr.bf16.gmra.mrb[0].mxu0 %v4114
    %v4193 = vpop.f32.mrb[0].mxu0
    %v4194 = vadd.f32 0.0, %v4193
    %v4195 = vpop.f32.mrb[0].mxu0
    %v4196 = vpop.f32.mrb[0].mxu0
    %v4197 = vadd.f32 0.0, %v4196
    %v4198 = vpop.f32.mrb[0].mxu0
    %4199 = vdwg.mxu0
    %v4200 = vadd.f32 %v4056, %v4151
    %v4201 = vadd.f32 %v4058, %v4153
    %v4202 = vadd.f32 %v4099, %v4194
    %v4203 = vadd.f32 %v4060, %v4155
    %v4204 = vadd.f32 %v4062, %v4157
    %v4205 = vadd.f32 %v4102, %v4197
    %s4206 = scalar_lea.vmem [#allocation8], 208
    %v4207 = vld [vmem:[%s4206] sm:$0xff]
    %v4208 = vld [vmem:[%s4206 + $0x8] sm:$0xff]
    %4210 = vset.pattern.permute.xlu0 0
    %4211 = vperm.xlu0 %4210, %v4207
    %v4212 = vpop.permute.xlu0 %4211
    %4215 = vset.pattern.permute.xlu0 0
    %4216 = vperm.xlu0 %4215, %v4208
    %v4217 = vpop.permute.xlu0 %4216
    %v4219 = vadd.f32 %v4200, %v4212
    %v4220 = vadd.f32 %v4201, %v4212
    %v4221 = vadd.f32 %v4202, %v4212
    %v4222 = vadd.f32 %v4203, %v4217
    %v4223 = vadd.f32 %v4204, %v4217
    %v4224 = vadd.f32 %v4205, %v4217
    %v4225 = vmax.f32 %v4219, 0.0
    %v4226 = vmax.f32 %v4220, 0.0
    %v4227 = vmax.f32 %v4221, 0.0
    %v4228 = vmax.f32 %v4222, 0.0
    %v4229 = vmax.f32 %v4223, 0.0
    %v4230 = vmax.f32 %v4224, 0.0
    %v4231 = vmul.f32 %v4225, %v141
    %v4232 = vmul.f32 %v4226, %v142
    %v4233 = vmul.f32 %v4227, %v143
    %v4234 = vmul.f32 %v4228, %v141
    %v4235 = vmul.f32 %v4229, %v142
    %v4236 = vmul.f32 %v4230, %v143
    %4237 = vst [vmem:[#allocation2 + $0x8] sm:$0xff] %v4231
    %4238 = vst [vmem:[#allocation2 + $0x10] sm:$0xff] %v4232
    %4239 = vst.msk [vmem:[#allocation2 + $0x18] sm:$0xff] %vm59, %v4233
    %4240 = vst [vmem:[#allocation2 + $0x28] sm:$0xff] %v4234
    %4241 = vst [vmem:[#allocation2 + $0x30] sm:$0xff] %v4235
    %4242 = vst.msk [vmem:[#allocation2 + $0x38] sm:$0xff] %vm59, %v4236
    %s4243 = scalar_lea.vmem [#allocation6], 336
    %v4244 = vld [vmem:[%s4243] sm:$0xf]
    %v4245 = vld [vmem:[%s4243 + $0x4] sm:$0xf]
    %v4246 = vld [vmem:[#allocation2] sm:$0xff]
    %v4247 = vld [vmem:[#allocation2 + $0x8] sm:$0xff]
    %v4248 = vld [vmem:[#allocation2 + $0x10] sm:$0xff]
    %v4249 = vld [vmem:[#allocation2 + $0x18] sm:$0xff]
    %v4250 = vld [vmem:[#allocation2 + $0x20] sm:$0xff]
    %v4251 = vld [vmem:[#allocation2 + $0x28] sm:$0xff]
    %v4252 = vld [vmem:[#allocation2 + $0x30] sm:$0xff]
    %v4253 = vld [vmem:[#allocation2 + $0x38] sm:$0xff]
    %v4254 = vpack.c.bf16 %v4250, %v4246
    %v4255 = vpack.c.bf16 %v4251, %v4247
    %v4256 = vpack.c.bf16 %v4252, %v4248
    %v4257 = vpack.c.bf16 %v4253, %v4249
    %s4258 = scalar_lea.vmem [#allocation6], 344
    %v4259 = vld [vmem:[%s4258] sm:$0xf]
    %v4260 = vld [vmem:[%s4258 + $0x4] sm:$0xf]
    %v4263 = vunpack.c.l.b16 %v4259
    %v4264 = vunpack.c.l.b16 %v4260
    %v4265 = vpack.c.b16 %v4264, %v4263
    %4270 = vrot.lane.b32.xlu0 %v4254, 1
    %v4271 = vpop.permute.xlu0 %4270
    %4272 = vrot.lane.b32.xlu0 %v4255, 1
    %v4273 = vpop.permute.xlu0 %4272
    %4274 = vrot.lane.b32.xlu0 %v4256, 1
    %v4275 = vpop.permute.xlu0 %4274
    %4276 = vrot.lane.b32.xlu0 %v4257, 1
    %v4277 = vpop.permute.xlu0 %4276
    %v4278 = vsel %vm308, %v4271, %v4273
    %v4279 = vsel %vm308, %v4273, %v4275
    %v4280 = vsel %vm308, %v4275, %v4277
    %v4285 = vsel %vm173, %v4265, 0
    %4287 = vmatprep.subr.bf16.mxu0 %v4279
    %4288 = vmatpush1.bf16.msra.mxu0 %v4278
    %4289 = vmatprep.subr.bf16.mxu0 0
    %4290 = vmatpush1.bf16.msra.mxu0 0
    %4291 = vmatprep.subr.bf16.mxu0 0
    %4292 = vmatpush1.bf16.msra.mxu0 0
    %4293 = vmatprep.subr.bf16.mxu0 0
    %4294 = vmatpush1.bf16.msra.mxu0 0
    %4295 = vmatprep.subr.bf16.mxu0 0
    %4296 = vmatpush1.bf16.msra.mxu0 0
    %4297 = vmatprep.subr.bf16.mxu0 0
    %4298 = vmatpush1.bf16.msra.mxu0 0
    %4299 = vmatprep.subr.bf16.mxu0 0
    %4300 = vmatpush1.bf16.msra.mxu0 0
    %4301 = vmatprep.subr.bf16.mxu0 0
    %4302 = vmatpush1.bf16.msra.mxu0 0
    %4303 = vmatprep.subr.bf16.mxu0 0
    %4304 = vmatpush1.bf16.msra.mxu0 0
    %4305 = vmatprep.subr.bf16.mxu0 0
    %4306 = vmatpush1.bf16.msra.mxu0 0
    %4307 = vmatprep.subr.bf16.mxu0 0
    %4308 = vmatpush1.bf16.msra.mxu0 0
    %4309 = vmatprep.subr.bf16.mxu0 0
    %4310 = vmatpush1.bf16.msra.mxu0 0
    %4311 = vmatprep.subr.bf16.mxu0 0
    %4312 = vmatpush1.bf16.msra.mxu0 0
    %4313 = vmatprep.subr.bf16.mxu0 0
    %4314 = vmatpush1.bf16.msra.mxu0 0
    %4315 = vmatprep.subr.bf16.mxu0 0
    %4316 = vmatpush1.bf16.msra.mxu0 0
    %4317 = vmatprep.subr.bf16.mxu0 0
    %4318 = vmatpush1.bf16.msra.mxu0 0
    %4319 = vmatprep.mubr.bf16.mxu0 0
    %4320 = vmatmul.mubr.bf16.gmra.mrb[0].mxu0 %v4285
    %v4321 = vpop.f32.mrb[0].mxu0
    %v4322 = vadd.f32 0.0, %v4321
    %v4323 = vpop.f32.mrb[0].mxu0
    %v4324 = vadd.f32 0.0, %v4323
    %v4325 = vpop.f32.mrb[0].mxu0
    %v4326 = vadd.f32 0.0, %v4325
    %v4327 = vpop.f32.mrb[0].mxu0
    %v4328 = vadd.f32 0.0, %v4327
    %4329 = vdwg.mxu0
    %4330 = vmatprep.subr.bf16.mxu0 0
    %4331 = vmatpush1.bf16.msra.mxu0 %v4280
    %4332 = vmatprep.subr.bf16.mxu0 0
    %4333 = vmatpush1.bf16.msra.mxu0 0
    %4334 = vmatprep.subr.bf16.mxu0 0
    %4335 = vmatpush1.bf16.msra.mxu0 0
    %4336 = vmatprep.subr.bf16.mxu0 0
    %4337 = vmatpush1.bf16.msra.mxu0 0
    %4338 = vmatprep.subr.bf16.mxu0 0
    %4339 = vmatpush1.bf16.msra.mxu0 0
    %4340 = vmatprep.subr.bf16.mxu0 0
    %4341 = vmatpush1.bf16.msra.mxu0 0
    %4342 = vmatprep.subr.bf16.mxu0 0
    %4343 = vmatpush1.bf16.msra.mxu0 0
    %4344 = vmatprep.subr.bf16.mxu0 0
    %4345 = vmatpush1.bf16.msra.mxu0 0
    %4346 = vmatprep.subr.bf16.mxu0 0
    %4347 = vmatpush1.bf16.msra.mxu0 0
    %4348 = vmatprep.subr.bf16.mxu0 0
    %4349 = vmatpush1.bf16.msra.mxu0 0
    %4350 = vmatprep.subr.bf16.mxu0 0
    %4351 = vmatpush1.bf16.msra.mxu0 0
    %4352 = vmatprep.subr.bf16.mxu0 0
    %4353 = vmatpush1.bf16.msra.mxu0 0
    %4354 = vmatprep.subr.bf16.mxu0 0
    %4355 = vmatpush1.bf16.msra.mxu0 0
    %4356 = vmatprep.subr.bf16.mxu0 0
    %4357 = vmatpush1.bf16.msra.mxu0 0
    %4358 = vmatprep.subr.bf16.mxu0 0
    %4359 = vmatpush1.bf16.msra.mxu0 0
    %4360 = vmatprep.subr.bf16.mxu0 0
    %4361 = vmatpush1.bf16.msra.mxu0 0
    %4362 = vmatprep.mubr.bf16.mxu0 0
    %4363 = vmatmul.mubr.bf16.gmra.mrb[0].mxu0 %v4285
    %v4364 = vpop.f32.mrb[0].mxu0
    %v4365 = vadd.f32 0.0, %v4364
    %v4366 = vpop.f32.mrb[0].mxu0
    %v4367 = vpop.f32.mrb[0].mxu0
    %v4368 = vadd.f32 0.0, %v4367
    %v4369 = vpop.f32.mrb[0].mxu0
    %4370 = vdwg.mxu0
    %v4373 = vunpack.c.l.b16 %v4244
    %v4374 = vunpack.c.l.b16 %v4245
    %v4375 = vpack.c.b16 %v4374, %v4373
    %4376 = vrot.lane.b32.xlu0 %v4254, 2
    %v4377 = vpop.permute.xlu0 %4376
    %4378 = vrot.lane.b32.xlu0 %v4255, 2
    %v4379 = vpop.permute.xlu0 %4378
    %4380 = vrot.lane.b32.xlu0 %v4256, 2
    %v4381 = vpop.permute.xlu0 %4380
    %4382 = vrot.lane.b32.xlu0 %v4257, 2
    %v4383 = vpop.permute.xlu0 %4382
    %v4384 = vsel %vm415, %v4377, %v4379
    %v4385 = vsel %vm415, %v4379, %v4381
    %v4386 = vsel %vm415, %v4381, %v4383
    %v4391 = vsel %vm173, %v4375, 0
    %4393 = vmatprep.subr.bf16.mxu0 %v4385
    %4394 = vmatpush1.bf16.msra.mxu0 %v4384
    %4395 = vmatprep.subr.bf16.mxu0 0
    %4396 = vmatpush1.bf16.msra.mxu0 0
    %4397 = vmatprep.subr.bf16.mxu0 0
    %4398 = vmatpush1.bf16.msra.mxu0 0
    %4399 = vmatprep.subr.bf16.mxu0 0
    %4400 = vmatpush1.bf16.msra.mxu0 0
    %4401 = vmatprep.subr.bf16.mxu0 0
    %4402 = vmatpush1.bf16.msra.mxu0 0
    %4403 = vmatprep.subr.bf16.mxu0 0
    %4404 = vmatpush1.bf16.msra.mxu0 0
    %4405 = vmatprep.subr.bf16.mxu0 0
    %4406 = vmatpush1.bf16.msra.mxu0 0
    %4407 = vmatprep.subr.bf16.mxu0 0
    %4408 = vmatpush1.bf16.msra.mxu0 0
    %4409 = vmatprep.subr.bf16.mxu0 0
    %4410 = vmatpush1.bf16.msra.mxu0 0
    %4411 = vmatprep.subr.bf16.mxu0 0
    %4412 = vmatpush1.bf16.msra.mxu0 0
    %4413 = vmatprep.subr.bf16.mxu0 0
    %4414 = vmatpush1.bf16.msra.mxu0 0
    %4415 = vmatprep.subr.bf16.mxu0 0
    %4416 = vmatpush1.bf16.msra.mxu0 0
    %4417 = vmatprep.subr.bf16.mxu0 0
    %4418 = vmatpush1.bf16.msra.mxu0 0
    %4419 = vmatprep.subr.bf16.mxu0 0
    %4420 = vmatpush1.bf16.msra.mxu0 0
    %4421 = vmatprep.subr.bf16.mxu0 0
    %4422 = vmatpush1.bf16.msra.mxu0 0
    %4423 = vmatprep.subr.bf16.mxu0 0
    %4424 = vmatpush1.bf16.msra.mxu0 0
    %4425 = vmatprep.mubr.bf16.mxu0 0
    %4426 = vmatmul.mubr.bf16.gmra.mrb[0].mxu0 %v4391
    %v4427 = vpop.f32.mrb[0].mxu0
    %v4428 = vadd.f32 %v4322, %v4427
    %v4429 = vpop.f32.mrb[0].mxu0
    %v4430 = vadd.f32 %v4324, %v4429
    %v4431 = vpop.f32.mrb[0].mxu0
    %v4432 = vadd.f32 %v4326, %v4431
    %v4433 = vpop.f32.mrb[0].mxu0
    %v4434 = vadd.f32 %v4328, %v4433
    %4435 = vdwg.mxu0
    %4436 = vmatprep.subr.bf16.mxu0 0
    %4437 = vmatpush1.bf16.msra.mxu0 %v4386
    %4438 = vmatprep.subr.bf16.mxu0 0
    %4439 = vmatpush1.bf16.msra.mxu0 0
    %4440 = vmatprep.subr.bf16.mxu0 0
    %4441 = vmatpush1.bf16.msra.mxu0 0
    %4442 = vmatprep.subr.bf16.mxu0 0
    %4443 = vmatpush1.bf16.msra.mxu0 0
    %4444 = vmatprep.subr.bf16.mxu0 0
    %4445 = vmatpush1.bf16.msra.mxu0 0
    %4446 = vmatprep.subr.bf16.mxu0 0
    %4447 = vmatpush1.bf16.msra.mxu0 0
    %4448 = vmatprep.subr.bf16.mxu0 0
    %4449 = vmatpush1.bf16.msra.mxu0 0
    %4450 = vmatprep.subr.bf16.mxu0 0
    %4451 = vmatpush1.bf16.msra.mxu0 0
    %4452 = vmatprep.subr.bf16.mxu0 0
    %4453 = vmatpush1.bf16.msra.mxu0 0
    %4454 = vmatprep.subr.bf16.mxu0 0
    %4455 = vmatpush1.bf16.msra.mxu0 0
    %4456 = vmatprep.subr.bf16.mxu0 0
    %4457 = vmatpush1.bf16.msra.mxu0 0
    %4458 = vmatprep.subr.bf16.mxu0 0
    %4459 = vmatpush1.bf16.msra.mxu0 0
    %4460 = vmatprep.subr.bf16.mxu0 0
    %4461 = vmatpush1.bf16.msra.mxu0 0
    %4462 = vmatprep.subr.bf16.mxu0 0
    %4463 = vmatpush1.bf16.msra.mxu0 0
    %4464 = vmatprep.subr.bf16.mxu0 0
    %4465 = vmatpush1.bf16.msra.mxu0 0
    %4466 = vmatprep.subr.bf16.mxu0 0
    %4467 = vmatpush1.bf16.msra.mxu0 0
    %4468 = vmatprep.mubr.bf16.mxu0 0
    %4469 = vmatmul.mubr.bf16.gmra.mrb[0].mxu0 %v4391
    %v4470 = vpop.f32.mrb[0].mxu0
    %v4471 = vadd.f32 %v4365, %v4470
    %v4472 = vpop.f32.mrb[0].mxu0
    %v4473 = vpop.f32.mrb[0].mxu0
    %v4474 = vadd.f32 %v4368, %v4473
    %v4475 = vpop.f32.mrb[0].mxu0
    %4476 = vdwg.mxu0
    %s4477 = scalar_lea.vmem [#allocation6], 352
    %v4478 = vld [vmem:[%s4477] sm:$0xf]
    %v4479 = vld [vmem:[%s4477 + $0x4] sm:$0xf]
    %v4482 = vunpack.c.l.b16 %v4478
    %v4483 = vunpack.c.l.b16 %v4479
    %v4484 = vpack.c.b16 %v4483, %v4482
    %v4486 = vsel %vm173, %v4484, 0
    %4488 = vmatprep.subr.bf16.mxu0 %v4256
    %4489 = vmatpush1.bf16.msra.mxu0 %v4255
    %4490 = vmatprep.subr.bf16.mxu0 0
    %4491 = vmatpush1.bf16.msra.mxu0 0
    %4492 = vmatprep.subr.bf16.mxu0 0
    %4493 = vmatpush1.bf16.msra.mxu0 0
    %4494 = vmatprep.subr.bf16.mxu0 0
    %4495 = vmatpush1.bf16.msra.mxu0 0
    %4496 = vmatprep.subr.bf16.mxu0 0
    %4497 = vmatpush1.bf16.msra.mxu0 0
    %4498 = vmatprep.subr.bf16.mxu0 0
    %4499 = vmatpush1.bf16.msra.mxu0 0
    %4500 = vmatprep.subr.bf16.mxu0 0
    %4501 = vmatpush1.bf16.msra.mxu0 0
    %4502 = vmatprep.subr.bf16.mxu0 0
    %4503 = vmatpush1.bf16.msra.mxu0 0
    %4504 = vmatprep.subr.bf16.mxu0 0
    %4505 = vmatpush1.bf16.msra.mxu0 0
    %4506 = vmatprep.subr.bf16.mxu0 0
    %4507 = vmatpush1.bf16.msra.mxu0 0
    %4508 = vmatprep.subr.bf16.mxu0 0
    %4509 = vmatpush1.bf16.msra.mxu0 0
    %4510 = vmatprep.subr.bf16.mxu0 0
    %4511 = vmatpush1.bf16.msra.mxu0 0
    %4512 = vmatprep.subr.bf16.mxu0 0
    %4513 = vmatpush1.bf16.msra.mxu0 0
    %4514 = vmatprep.subr.bf16.mxu0 0
    %4515 = vmatpush1.bf16.msra.mxu0 0
    %4516 = vmatprep.subr.bf16.mxu0 0
    %4517 = vmatpush1.bf16.msra.mxu0 0
    %4518 = vmatprep.subr.bf16.mxu0 0
    %4519 = vmatpush1.bf16.msra.mxu0 0
    %4520 = vmatprep.mubr.bf16.mxu0 0
    %4521 = vmatmul.mubr.bf16.gmra.mrb[0].mxu0 %v4486
    %v4522 = vpop.f32.mrb[0].mxu0
    %v4523 = vadd.f32 0.0, %v4522
    %v4524 = vpop.f32.mrb[0].mxu0
    %v4525 = vadd.f32 0.0, %v4524
    %v4526 = vpop.f32.mrb[0].mxu0
    %v4527 = vadd.f32 0.0, %v4526
    %v4528 = vpop.f32.mrb[0].mxu0
    %v4529 = vadd.f32 0.0, %v4528
    %4530 = vdwg.mxu0
    %4531 = vmatprep.subr.bf16.mxu0 0
    %4532 = vmatpush1.bf16.msra.mxu0 %v4257
    %4533 = vmatprep.subr.bf16.mxu0 0
    %4534 = vmatpush1.bf16.msra.mxu0 0
    %4535 = vmatprep.subr.bf16.mxu0 0
    %4536 = vmatpush1.bf16.msra.mxu0 0
    %4537 = vmatprep.subr.bf16.mxu0 0
    %4538 = vmatpush1.bf16.msra.mxu0 0
    %4539 = vmatprep.subr.bf16.mxu0 0
    %4540 = vmatpush1.bf16.msra.mxu0 0
    %4541 = vmatprep.subr.bf16.mxu0 0
    %4542 = vmatpush1.bf16.msra.mxu0 0
    %4543 = vmatprep.subr.bf16.mxu0 0
    %4544 = vmatpush1.bf16.msra.mxu0 0
    %4545 = vmatprep.subr.bf16.mxu0 0
    %4546 = vmatpush1.bf16.msra.mxu0 0
    %4547 = vmatprep.subr.bf16.mxu0 0
    %4548 = vmatpush1.bf16.msra.mxu0 0
    %4549 = vmatprep.subr.bf16.mxu0 0
    %4550 = vmatpush1.bf16.msra.mxu0 0
    %4551 = vmatprep.subr.bf16.mxu0 0
    %4552 = vmatpush1.bf16.msra.mxu0 0
    %4553 = vmatprep.subr.bf16.mxu0 0
    %4554 = vmatpush1.bf16.msra.mxu0 0
    %4555 = vmatprep.subr.bf16.mxu0 0
    %4556 = vmatpush1.bf16.msra.mxu0 0
    %4557 = vmatprep.subr.bf16.mxu0 0
    %4558 = vmatpush1.bf16.msra.mxu0 0
    %4559 = vmatprep.subr.bf16.mxu0 0
    %4560 = vmatpush1.bf16.msra.mxu0 0
    %4561 = vmatprep.subr.bf16.mxu0 0
    %4562 = vmatpush1.bf16.msra.mxu0 0
    %4563 = vmatprep.mubr.bf16.mxu0 0
    %4564 = vmatmul.mubr.bf16.gmra.mrb[0].mxu0 %v4486
    %v4565 = vpop.f32.mrb[0].mxu0
    %v4566 = vadd.f32 0.0, %v4565
    %v4567 = vpop.f32.mrb[0].mxu0
    %v4568 = vpop.f32.mrb[0].mxu0
    %v4569 = vadd.f32 0.0, %v4568
    %v4570 = vpop.f32.mrb[0].mxu0
    %4571 = vdwg.mxu0
    %v4572 = vadd.f32 %v4428, %v4523
    %v4573 = vadd.f32 %v4430, %v4525
    %v4574 = vadd.f32 %v4471, %v4566
    %v4575 = vadd.f32 %v4432, %v4527
    %v4576 = vadd.f32 %v4434, %v4529
    %v4577 = vadd.f32 %v4474, %v4569
    %s4578 = scalar_lea.vmem [#allocation8], 224
    %v4579 = vld [vmem:[%s4578] sm:$0xff]
    %v4580 = vld [vmem:[%s4578 + $0x8] sm:$0xff]
    %4582 = vset.pattern.permute.xlu0 0
    %4583 = vperm.xlu0 %4582, %v4579
    %v4584 = vpop.permute.xlu0 %4583
    %4587 = vset.pattern.permute.xlu0 0
    %4588 = vperm.xlu0 %4587, %v4580
    %v4589 = vpop.permute.xlu0 %4588
    %v4591 = vadd.f32 %v4572, %v4584
    %v4592 = vadd.f32 %v4573, %v4584
    %v4593 = vadd.f32 %v4574, %v4584
    %v4594 = vadd.f32 %v4575, %v4589
    %v4595 = vadd.f32 %v4576, %v4589
    %v4596 = vadd.f32 %v4577, %v4589
    %v4597 = vmax.f32 %v4591, 0.0
    %v4598 = vmax.f32 %v4592, 0.0
    %v4599 = vmax.f32 %v4593, 0.0
    %v4600 = vmax.f32 %v4594, 0.0
    %v4601 = vmax.f32 %v4595, 0.0
    %v4602 = vmax.f32 %v4596, 0.0
    %v4603 = vmul.f32 %v4597, %v141
    %v4604 = vmul.f32 %v4598, %v142
    %v4605 = vmul.f32 %v4599, %v143
    %v4606 = vmul.f32 %v4600, %v141
    %v4607 = vmul.f32 %v4601, %v142
    %v4608 = vmul.f32 %v4602, %v143
    %v4609 = vld [vmem:[#allocation3] sm:$0xff]
    %v4610 = vld [vmem:[#allocation3 + $0x8] sm:$0xff]
    %v4611 = vld [vmem:[#allocation3 + $0x10] sm:$0xff]
    %v4612 = vld [vmem:[#allocation3 + $0x18] sm:$0xff]
    %v4613 = vld [vmem:[#allocation3 + $0x20] sm:$0xff]
    %v4614 = vld [vmem:[#allocation3 + $0x28] sm:$0xff]
    %v4615 = vadd.f32 %v4603, %v4609
    %v4616 = vadd.f32 %v4604, %v4610
    %v4617 = vadd.f32 %v4605, %v4611
    %v4618 = vadd.f32 %v4606, %v4612
    %v4619 = vadd.f32 %v4607, %v4613
    %v4620 = vadd.f32 %v4608, %v4614
    %v4621 = vmax.f32 %v4615, 0.0
    %v4622 = vmax.f32 %v4616, 0.0
    %v4623 = vmax.f32 %v4617, 0.0
    %v4624 = vmax.f32 %v4618, 0.0
    %v4625 = vmax.f32 %v4619, 0.0
    %v4626 = vmax.f32 %v4620, 0.0
    %4627 = vst [vmem:[#allocation2 + $0x8] sm:$0xff] %v4621
    %4628 = vst [vmem:[#allocation2 + $0x10] sm:$0xff] %v4622
    %4629 = vst.msk [vmem:[#allocation2 + $0x18] sm:$0xff] %vm59, %v4623
    %4630 = vst [vmem:[#allocation2 + $0x28] sm:$0xff] %v4624
    %4631 = vst [vmem:[#allocation2 + $0x30] sm:$0xff] %v4625
    %4632 = vst.msk [vmem:[#allocation2 + $0x38] sm:$0xff] %vm59, %v4626
    %v4633 = vld [vmem:[#allocation2 + $0x8] sm:$0xff]
    %v4634 = vld [vmem:[#allocation2 + $0x10] sm:$0xff]
    %v4635 = vld [vmem:[#allocation2 + $0x18] sm:$0xff]
    %v4636 = vld [vmem:[#allocation2 + $0x28] sm:$0xff]
    %v4637 = vld [vmem:[#allocation2 + $0x30] sm:$0xff]
    %v4638 = vld [vmem:[#allocation2 + $0x38] sm:$0xff]
    %4639 = vst [vmem:[#allocation3] sm:$0xff] %v4633
    %4640 = vst [vmem:[#allocation3 + $0x8] sm:$0xff] %v4634
    %4641 = vst.msk [vmem:[#allocation3 + $0x10] sm:$0xff] %vm59, %v4635
    %4642 = vst [vmem:[#allocation3 + $0x18] sm:$0xff] %v4636
    %4643 = vst [vmem:[#allocation3 + $0x20] sm:$0xff] %v4637
    %4644 = vst.msk [vmem:[#allocation3 + $0x28] sm:$0xff] %vm59, %v4638
    %s4645 = scalar_lea.vmem [#allocation6], 360
    %v4646 = vld [vmem:[%s4645] sm:$0xf]
    %v4647 = vld [vmem:[%s4645 + $0x4] sm:$0xf]
    %v4648 = vld [vmem:[#allocation2] sm:$0xff]
    %v4649 = vld [vmem:[#allocation2 + $0x8] sm:$0xff]
    %v4650 = vld [vmem:[#allocation2 + $0x10] sm:$0xff]
    %v4651 = vld [vmem:[#allocation2 + $0x18] sm:$0xff]
    %v4652 = vld [vmem:[#allocation2 + $0x20] sm:$0xff]
    %v4653 = vld [vmem:[#allocation2 + $0x28] sm:$0xff]
    %v4654 = vld [vmem:[#allocation2 + $0x30] sm:$0xff]
    %v4655 = vld [vmem:[#allocation2 + $0x38] sm:$0xff]
    %v4656 = vpack.c.bf16 %v4652, %v4648
    %v4657 = vpack.c.bf16 %v4653, %v4649
    %v4658 = vpack.c.bf16 %v4654, %v4650
    %v4659 = vpack.c.bf16 %v4655, %v4651
    %s4660 = scalar_lea.vmem [#allocation6], 368
    %v4661 = vld [vmem:[%s4660] sm:$0xf]
    %v4662 = vld [vmem:[%s4660 + $0x4] sm:$0xf]
    %v4665 = vunpack.c.l.b16 %v4661
    %v4666 = vunpack.c.l.b16 %v4662
    %v4667 = vpack.c.b16 %v4666, %v4665
    %4672 = vrot.lane.b32.xlu0 %v4656, 2
    %v4673 = vpop.permute.xlu0 %4672
    %4674 = vrot.lane.b32.xlu0 %v4657, 2
    %v4675 = vpop.permute.xlu0 %4674
    %4676 = vrot.lane.b32.xlu0 %v4658, 2
    %v4677 = vpop.permute.xlu0 %4676
    %4678 = vrot.lane.b32.xlu0 %v4659, 2
    %v4679 = vpop.permute.xlu0 %4678
    %v4680 = vsel %vm415, %v4673, %v4675
    %v4681 = vsel %vm415, %v4675, %v4677
    %v4682 = vsel %vm415, %v4677, %v4679
    %v4687 = vsel %vm173, %v4667, 0
    %4689 = vmatprep.subr.bf16.mxu0 %v4681
    %4690 = vmatpush1.bf16.msra.mxu0 %v4680
    %4691 = vmatprep.subr.bf16.mxu0 0
    %4692 = vmatpush1.bf16.msra.mxu0 0
    %4693 = vmatprep.subr.bf16.mxu0 0
    %4694 = vmatpush1.bf16.msra.mxu0 0
    %4695 = vmatprep.subr.bf16.mxu0 0
    %4696 = vmatpush1.bf16.msra.mxu0 0
    %4697 = vmatprep.subr.bf16.mxu0 0
    %4698 = vmatpush1.bf16.msra.mxu0 0
    %4699 = vmatprep.subr.bf16.mxu0 0
    %4700 = vmatpush1.bf16.msra.mxu0 0
    %4701 = vmatprep.subr.bf16.mxu0 0
    %4702 = vmatpush1.bf16.msra.mxu0 0
    %4703 = vmatprep.subr.bf16.mxu0 0
    %4704 = vmatpush1.bf16.msra.mxu0 0
    %4705 = vmatprep.subr.bf16.mxu0 0
    %4706 = vmatpush1.bf16.msra.mxu0 0
    %4707 = vmatprep.subr.bf16.mxu0 0
    %4708 = vmatpush1.bf16.msra.mxu0 0
    %4709 = vmatprep.subr.bf16.mxu0 0
    %4710 = vmatpush1.bf16.msra.mxu0 0
    %4711 = vmatprep.subr.bf16.mxu0 0
    %4712 = vmatpush1.bf16.msra.mxu0 0
    %4713 = vmatprep.subr.bf16.mxu0 0
    %4714 = vmatpush1.bf16.msra.mxu0 0
    %4715 = vmatprep.subr.bf16.mxu0 0
    %4716 = vmatpush1.bf16.msra.mxu0 0
    %4717 = vmatprep.subr.bf16.mxu0 0
    %4718 = vmatpush1.bf16.msra.mxu0 0
    %4719 = vmatprep.subr.bf16.mxu0 0
    %4720 = vmatpush1.bf16.msra.mxu0 0
    %4721 = vmatprep.mubr.bf16.mxu0 0
    %4722 = vmatmul.mubr.bf16.gmra.mrb[0].mxu0 %v4687
    %v4723 = vpop.f32.mrb[0].mxu0
    %v4724 = vadd.f32 0.0, %v4723
    %v4725 = vpop.f32.mrb[0].mxu0
    %v4726 = vadd.f32 0.0, %v4725
    %v4727 = vpop.f32.mrb[0].mxu0
    %v4728 = vadd.f32 0.0, %v4727
    %v4729 = vpop.f32.mrb[0].mxu0
    %v4730 = vadd.f32 0.0, %v4729
    %4731 = vdwg.mxu0
    %4732 = vmatprep.subr.bf16.mxu0 0
    %4733 = vmatpush1.bf16.msra.mxu0 %v4682
    %4734 = vmatprep.subr.bf16.mxu0 0
    %4735 = vmatpush1.bf16.msra.mxu0 0
    %4736 = vmatprep.subr.bf16.mxu0 0
    %4737 = vmatpush1.bf16.msra.mxu0 0
    %4738 = vmatprep.subr.bf16.mxu0 0
    %4739 = vmatpush1.bf16.msra.mxu0 0
    %4740 = vmatprep.subr.bf16.mxu0 0
    %4741 = vmatpush1.bf16.msra.mxu0 0
    %4742 = vmatprep.subr.bf16.mxu0 0
    %4743 = vmatpush1.bf16.msra.mxu0 0
    %4744 = vmatprep.subr.bf16.mxu0 0
    %4745 = vmatpush1.bf16.msra.mxu0 0
    %4746 = vmatprep.subr.bf16.mxu0 0
    %4747 = vmatpush1.bf16.msra.mxu0 0
    %4748 = vmatprep.subr.bf16.mxu0 0
    %4749 = vmatpush1.bf16.msra.mxu0 0
    %4750 = vmatprep.subr.bf16.mxu0 0
    %4751 = vmatpush1.bf16.msra.mxu0 0
    %4752 = vmatprep.subr.bf16.mxu0 0
    %4753 = vmatpush1.bf16.msra.mxu0 0
    %4754 = vmatprep.subr.bf16.mxu0 0
    %4755 = vmatpush1.bf16.msra.mxu0 0
    %4756 = vmatprep.subr.bf16.mxu0 0
    %4757 = vmatpush1.bf16.msra.mxu0 0
    %4758 = vmatprep.subr.bf16.mxu0 0
    %4759 = vmatpush1.bf16.msra.mxu0 0
    %4760 = vmatprep.subr.bf16.mxu0 0
    %4761 = vmatpush1.bf16.msra.mxu0 0
    %4762 = vmatprep.subr.bf16.mxu0 0
    %4763 = vmatpush1.bf16.msra.mxu0 0
    %4764 = vmatprep.mubr.bf16.mxu0 0
    %4765 = vmatmul.mubr.bf16.gmra.mrb[0].mxu0 %v4687
    %v4766 = vpop.f32.mrb[0].mxu0
    %v4767 = vadd.f32 0.0, %v4766
    %v4768 = vpop.f32.mrb[0].mxu0
    %v4769 = vpop.f32.mrb[0].mxu0
    %v4770 = vadd.f32 0.0, %v4769
    %v4771 = vpop.f32.mrb[0].mxu0
    %4772 = vdwg.mxu0
    %v4775 = vunpack.c.l.b16 %v4646
    %v4776 = vunpack.c.l.b16 %v4647
    %v4777 = vpack.c.b16 %v4776, %v4775
    %4778 = vrot.lane.b32.xlu0 %v4656, 4
    %v4779 = vpop.permute.xlu0 %4778
    %4780 = vrot.lane.b32.xlu0 %v4657, 4
    %v4781 = vpop.permute.xlu0 %4780
    %4782 = vrot.lane.b32.xlu0 %v4658, 4
    %v4783 = vpop.permute.xlu0 %4782
    %4784 = vrot.lane.b32.xlu0 %v4659, 4
    %v4785 = vpop.permute.xlu0 %4784
    %v4786 = vsel %vm1190, %v4779, %v4781
    %v4787 = vsel %vm1190, %v4781, %v4783
    %v4788 = vsel %vm1190, %v4783, %v4785
    %v4793 = vsel %vm173, %v4777, 0
    %4795 = vmatprep.subr.bf16.mxu0 %v4787
    %4796 = vmatpush1.bf16.msra.mxu0 %v4786
    %4797 = vmatprep.subr.bf16.mxu0 0
    %4798 = vmatpush1.bf16.msra.mxu0 0
    %4799 = vmatprep.subr.bf16.mxu0 0
    %4800 = vmatpush1.bf16.msra.mxu0 0
    %4801 = vmatprep.subr.bf16.mxu0 0
    %4802 = vmatpush1.bf16.msra.mxu0 0
    %4803 = vmatprep.subr.bf16.mxu0 0
    %4804 = vmatpush1.bf16.msra.mxu0 0
    %4805 = vmatprep.subr.bf16.mxu0 0
    %4806 = vmatpush1.bf16.msra.mxu0 0
    %4807 = vmatprep.subr.bf16.mxu0 0
    %4808 = vmatpush1.bf16.msra.mxu0 0
    %4809 = vmatprep.subr.bf16.mxu0 0
    %4810 = vmatpush1.bf16.msra.mxu0 0
    %4811 = vmatprep.subr.bf16.mxu0 0
    %4812 = vmatpush1.bf16.msra.mxu0 0
    %4813 = vmatprep.subr.bf16.mxu0 0
    %4814 = vmatpush1.bf16.msra.mxu0 0
    %4815 = vmatprep.subr.bf16.mxu0 0
    %4816 = vmatpush1.bf16.msra.mxu0 0
    %4817 = vmatprep.subr.bf16.mxu0 0
    %4818 = vmatpush1.bf16.msra.mxu0 0
    %4819 = vmatprep.subr.bf16.mxu0 0
    %4820 = vmatpush1.bf16.msra.mxu0 0
    %4821 = vmatprep.subr.bf16.mxu0 0
    %4822 = vmatpush1.bf16.msra.mxu0 0
    %4823 = vmatprep.subr.bf16.mxu0 0
    %4824 = vmatpush1.bf16.msra.mxu0 0
    %4825 = vmatprep.subr.bf16.mxu0 0
    %4826 = vmatpush1.bf16.msra.mxu0 0
    %4827 = vmatprep.mubr.bf16.mxu0 0
    %4828 = vmatmul.mubr.bf16.gmra.mrb[0].mxu0 %v4793
    %v4829 = vpop.f32.mrb[0].mxu0
    %v4830 = vadd.f32 %v4724, %v4829
    %v4831 = vpop.f32.mrb[0].mxu0
    %v4832 = vadd.f32 %v4726, %v4831
    %v4833 = vpop.f32.mrb[0].mxu0
    %v4834 = vadd.f32 %v4728, %v4833
    %v4835 = vpop.f32.mrb[0].mxu0
    %v4836 = vadd.f32 %v4730, %v4835
    %4837 = vdwg.mxu0
    %4838 = vmatprep.subr.bf16.mxu0 0
    %4839 = vmatpush1.bf16.msra.mxu0 %v4788
    %4840 = vmatprep.subr.bf16.mxu0 0
    %4841 = vmatpush1.bf16.msra.mxu0 0
    %4842 = vmatprep.subr.bf16.mxu0 0
    %4843 = vmatpush1.bf16.msra.mxu0 0
    %4844 = vmatprep.subr.bf16.mxu0 0
    %4845 = vmatpush1.bf16.msra.mxu0 0
    %4846 = vmatprep.subr.bf16.mxu0 0
    %4847 = vmatpush1.bf16.msra.mxu0 0
    %4848 = vmatprep.subr.bf16.mxu0 0
    %4849 = vmatpush1.bf16.msra.mxu0 0
    %4850 = vmatprep.subr.bf16.mxu0 0
    %4851 = vmatpush1.bf16.msra.mxu0 0
    %4852 = vmatprep.subr.bf16.mxu0 0
    %4853 = vmatpush1.bf16.msra.mxu0 0
    %4854 = vmatprep.subr.bf16.mxu0 0
    %4855 = vmatpush1.bf16.msra.mxu0 0
    %4856 = vmatprep.subr.bf16.mxu0 0
    %4857 = vmatpush1.bf16.msra.mxu0 0
    %4858 = vmatprep.subr.bf16.mxu0 0
    %4859 = vmatpush1.bf16.msra.mxu0 0
    %4860 = vmatprep.subr.bf16.mxu0 0
    %4861 = vmatpush1.bf16.msra.mxu0 0
    %4862 = vmatprep.subr.bf16.mxu0 0
    %4863 = vmatpush1.bf16.msra.mxu0 0
    %4864 = vmatprep.subr.bf16.mxu0 0
    %4865 = vmatpush1.bf16.msra.mxu0 0
    %4866 = vmatprep.subr.bf16.mxu0 0
    %4867 = vmatpush1.bf16.msra.mxu0 0
    %4868 = vmatprep.subr.bf16.mxu0 0
    %4869 = vmatpush1.bf16.msra.mxu0 0
    %4870 = vmatprep.mubr.bf16.mxu0 0
    %4871 = vmatmul.mubr.bf16.gmra.mrb[0].mxu0 %v4793
    %v4872 = vpop.f32.mrb[0].mxu0
    %v4873 = vadd.f32 %v4767, %v4872
    %v4874 = vpop.f32.mrb[0].mxu0
    %v4875 = vpop.f32.mrb[0].mxu0
    %v4876 = vadd.f32 %v4770, %v4875
    %v4877 = vpop.f32.mrb[0].mxu0
    %4878 = vdwg.mxu0
    %s4879 = scalar_lea.vmem [#allocation6], 376
    %v4880 = vld [vmem:[%s4879] sm:$0xf]
    %v4881 = vld [vmem:[%s4879 + $0x4] sm:$0xf]
    %v4884 = vunpack.c.l.b16 %v4880
    %v4885 = vunpack.c.l.b16 %v4881
    %v4886 = vpack.c.b16 %v4885, %v4884
    %v4888 = vsel %vm173, %v4886, 0
    %4890 = vmatprep.subr.bf16.mxu0 %v4658
    %4891 = vmatpush1.bf16.msra.mxu0 %v4657
    %4892 = vmatprep.subr.bf16.mxu0 0
    %4893 = vmatpush1.bf16.msra.mxu0 0
    %4894 = vmatprep.subr.bf16.mxu0 0
    %4895 = vmatpush1.bf16.msra.mxu0 0
    %4896 = vmatprep.subr.bf16.mxu0 0
    %4897 = vmatpush1.bf16.msra.mxu0 0
    %4898 = vmatprep.subr.bf16.mxu0 0
    %4899 = vmatpush1.bf16.msra.mxu0 0
    %4900 = vmatprep.subr.bf16.mxu0 0
    %4901 = vmatpush1.bf16.msra.mxu0 0
    %4902 = vmatprep.subr.bf16.mxu0 0
    %4903 = vmatpush1.bf16.msra.mxu0 0
    %4904 = vmatprep.subr.bf16.mxu0 0
    %4905 = vmatpush1.bf16.msra.mxu0 0
    %4906 = vmatprep.subr.bf16.mxu0 0
    %4907 = vmatpush1.bf16.msra.mxu0 0
    %4908 = vmatprep.subr.bf16.mxu0 0
    %4909 = vmatpush1.bf16.msra.mxu0 0
    %4910 = vmatprep.subr.bf16.mxu0 0
    %4911 = vmatpush1.bf16.msra.mxu0 0
    %4912 = vmatprep.subr.bf16.mxu0 0
    %4913 = vmatpush1.bf16.msra.mxu0 0
    %4914 = vmatprep.subr.bf16.mxu0 0
    %4915 = vmatpush1.bf16.msra.mxu0 0
    %4916 = vmatprep.subr.bf16.mxu0 0
    %4917 = vmatpush1.bf16.msra.mxu0 0
    %4918 = vmatprep.subr.bf16.mxu0 0
    %4919 = vmatpush1.bf16.msra.mxu0 0
    %4920 = vmatprep.subr.bf16.mxu0 0
    %4921 = vmatpush1.bf16.msra.mxu0 0
    %4922 = vmatprep.mubr.bf16.mxu0 0
    %4923 = vmatmul.mubr.bf16.gmra.mrb[0].mxu0 %v4888
    %v4924 = vpop.f32.mrb[0].mxu0
    %v4925 = vadd.f32 0.0, %v4924
    %v4926 = vpop.f32.mrb[0].mxu0
    %v4927 = vadd.f32 0.0, %v4926
    %v4928 = vpop.f32.mrb[0].mxu0
    %v4929 = vadd.f32 0.0, %v4928
    %v4930 = vpop.f32.mrb[0].mxu0
    %v4931 = vadd.f32 0.0, %v4930
    %4932 = vdwg.mxu0
    %4933 = vmatprep.subr.bf16.mxu0 0
    %4934 = vmatpush1.bf16.msra.mxu0 %v4659
    %4935 = vmatprep.subr.bf16.mxu0 0
    %4936 = vmatpush1.bf16.msra.mxu0 0
    %4937 = vmatprep.subr.bf16.mxu0 0
    %4938 = vmatpush1.bf16.msra.mxu0 0
    %4939 = vmatprep.subr.bf16.mxu0 0
    %4940 = vmatpush1.bf16.msra.mxu0 0
    %4941 = vmatprep.subr.bf16.mxu0 0
    %4942 = vmatpush1.bf16.msra.mxu0 0
    %4943 = vmatprep.subr.bf16.mxu0 0
    %4944 = vmatpush1.bf16.msra.mxu0 0
    %4945 = vmatprep.subr.bf16.mxu0 0
    %4946 = vmatpush1.bf16.msra.mxu0 0
    %4947 = vmatprep.subr.bf16.mxu0 0
    %4948 = vmatpush1.bf16.msra.mxu0 0
    %4949 = vmatprep.subr.bf16.mxu0 0
    %4950 = vmatpush1.bf16.msra.mxu0 0
    %4951 = vmatprep.subr.bf16.mxu0 0
    %4952 = vmatpush1.bf16.msra.mxu0 0
    %4953 = vmatprep.subr.bf16.mxu0 0
    %4954 = vmatpush1.bf16.msra.mxu0 0
    %4955 = vmatprep.subr.bf16.mxu0 0
    %4956 = vmatpush1.bf16.msra.mxu0 0
    %4957 = vmatprep.subr.bf16.mxu0 0
    %4958 = vmatpush1.bf16.msra.mxu0 0
    %4959 = vmatprep.subr.bf16.mxu0 0
    %4960 = vmatpush1.bf16.msra.mxu0 0
    %4961 = vmatprep.subr.bf16.mxu0 0
    %4962 = vmatpush1.bf16.msra.mxu0 0
    %4963 = vmatprep.subr.bf16.mxu0 0
    %4964 = vmatpush1.bf16.msra.mxu0 0
    %4965 = vmatprep.mubr.bf16.mxu0 0
    %4966 = vmatmul.mubr.bf16.gmra.mrb[0].mxu0 %v4888
    %v4967 = vpop.f32.mrb[0].mxu0
    %v4968 = vadd.f32 0.0, %v4967
    %v4969 = vpop.f32.mrb[0].mxu0
    %v4970 = vpop.f32.mrb[0].mxu0
    %v4971 = vadd.f32 0.0, %v4970
    %v4972 = vpop.f32.mrb[0].mxu0
    %4973 = vdwg.mxu0
    %v4974 = vadd.f32 %v4830, %v4925
    %v4975 = vadd.f32 %v4832, %v4927
    %v4976 = vadd.f32 %v4873, %v4968
    %v4977 = vadd.f32 %v4834, %v4929
    %v4978 = vadd.f32 %v4836, %v4931
    %v4979 = vadd.f32 %v4876, %v4971
    %s4980 = scalar_lea.vmem [#allocation8], 240
    %v4981 = vld [vmem:[%s4980] sm:$0xff]
    %v4982 = vld [vmem:[%s4980 + $0x8] sm:$0xff]
    %4984 = vset.pattern.permute.xlu0 0
    %4985 = vperm.xlu0 %4984, %v4981
    %v4986 = vpop.permute.xlu0 %4985
    %4989 = vset.pattern.permute.xlu0 0
    %4990 = vperm.xlu0 %4989, %v4982
    %v4991 = vpop.permute.xlu0 %4990
    %v4993 = vadd.f32 %v4974, %v4986
    %v4994 = vadd.f32 %v4975, %v4986
    %v4995 = vadd.f32 %v4976, %v4986
    %v4996 = vadd.f32 %v4977, %v4991
    %v4997 = vadd.f32 %v4978, %v4991
    %v4998 = vadd.f32 %v4979, %v4991
    %v4999 = vmax.f32 %v4993, 0.0
    %v5000 = vmax.f32 %v4994, 0.0
    %v5001 = vmax.f32 %v4995, 0.0
    %v5002 = vmax.f32 %v4996, 0.0
    %v5003 = vmax.f32 %v4997, 0.0
    %v5004 = vmax.f32 %v4998, 0.0
    %v5005 = vmul.f32 %v4999, %v141
    %v5006 = vmul.f32 %v5000, %v142
    %v5007 = vmul.f32 %v5001, %v143
    %v5008 = vmul.f32 %v5002, %v141
    %v5009 = vmul.f32 %v5003, %v142
    %v5010 = vmul.f32 %v5004, %v143
    %5011 = vst [vmem:[#allocation2 + $0x8] sm:$0xff] %v5005
    %5012 = vst [vmem:[#allocation2 + $0x10] sm:$0xff] %v5006
    %5013 = vst.msk [vmem:[#allocation2 + $0x18] sm:$0xff] %vm59, %v5007
    %5014 = vst [vmem:[#allocation2 + $0x28] sm:$0xff] %v5008
    %5015 = vst [vmem:[#allocation2 + $0x30] sm:$0xff] %v5009
    %5016 = vst.msk [vmem:[#allocation2 + $0x38] sm:$0xff] %vm59, %v5010
    %s5017 = scalar_lea.vmem [#allocation6], 384
    %v5018 = vld [vmem:[%s5017] sm:$0xf]
    %v5019 = vld [vmem:[%s5017 + $0x4] sm:$0xf]
    %v5020 = vld [vmem:[#allocation2] sm:$0xff]
    %v5021 = vld [vmem:[#allocation2 + $0x8] sm:$0xff]
    %v5022 = vld [vmem:[#allocation2 + $0x10] sm:$0xff]
    %v5023 = vld [vmem:[#allocation2 + $0x18] sm:$0xff]
    %v5024 = vld [vmem:[#allocation2 + $0x20] sm:$0xff]
    %v5025 = vld [vmem:[#allocation2 + $0x28] sm:$0xff]
    %v5026 = vld [vmem:[#allocation2 + $0x30] sm:$0xff]
    %v5027 = vld [vmem:[#allocation2 + $0x38] sm:$0xff]
    %v5028 = vpack.c.bf16 %v5024, %v5020
    %v5029 = vpack.c.bf16 %v5025, %v5021
    %v5030 = vpack.c.bf16 %v5026, %v5022
    %v5031 = vpack.c.bf16 %v5027, %v5023
    %s5032 = scalar_lea.vmem [#allocation6], 392
    %v5033 = vld [vmem:[%s5032] sm:$0xf]
    %v5034 = vld [vmem:[%s5032 + $0x4] sm:$0xf]
    %v5037 = vunpack.c.l.b16 %v5033
    %v5038 = vunpack.c.l.b16 %v5034
    %v5039 = vpack.c.b16 %v5038, %v5037
    %5044 = vrot.lane.b32.xlu0 %v5028, 2
    %v5045 = vpop.permute.xlu0 %5044
    %5046 = vrot.lane.b32.xlu0 %v5029, 2
    %v5047 = vpop.permute.xlu0 %5046
    %5048 = vrot.lane.b32.xlu0 %v5030, 2
    %v5049 = vpop.permute.xlu0 %5048
    %5050 = vrot.lane.b32.xlu0 %v5031, 2
    %v5051 = vpop.permute.xlu0 %5050
    %v5052 = vsel %vm415, %v5045, %v5047
    %v5053 = vsel %vm415, %v5047, %v5049
    %v5054 = vsel %vm415, %v5049, %v5051
    %v5059 = vsel %vm173, %v5039, 0
    %5061 = vmatprep.subr.bf16.mxu0 %v5053
    %5062 = vmatpush1.bf16.msra.mxu0 %v5052
    %5063 = vmatprep.subr.bf16.mxu0 0
    %5064 = vmatpush1.bf16.msra.mxu0 0
    %5065 = vmatprep.subr.bf16.mxu0 0
    %5066 = vmatpush1.bf16.msra.mxu0 0
    %5067 = vmatprep.subr.bf16.mxu0 0
    %5068 = vmatpush1.bf16.msra.mxu0 0
    %5069 = vmatprep.subr.bf16.mxu0 0
    %5070 = vmatpush1.bf16.msra.mxu0 0
    %5071 = vmatprep.subr.bf16.mxu0 0
    %5072 = vmatpush1.bf16.msra.mxu0 0
    %5073 = vmatprep.subr.bf16.mxu0 0
    %5074 = vmatpush1.bf16.msra.mxu0 0
    %5075 = vmatprep.subr.bf16.mxu0 0
    %5076 = vmatpush1.bf16.msra.mxu0 0
    %5077 = vmatprep.subr.bf16.mxu0 0
    %5078 = vmatpush1.bf16.msra.mxu0 0
    %5079 = vmatprep.subr.bf16.mxu0 0
    %5080 = vmatpush1.bf16.msra.mxu0 0
    %5081 = vmatprep.subr.bf16.mxu0 0
    %5082 = vmatpush1.bf16.msra.mxu0 0
    %5083 = vmatprep.subr.bf16.mxu0 0
    %5084 = vmatpush1.bf16.msra.mxu0 0
    %5085 = vmatprep.subr.bf16.mxu0 0
    %5086 = vmatpush1.bf16.msra.mxu0 0
    %5087 = vmatprep.subr.bf16.mxu0 0
    %5088 = vmatpush1.bf16.msra.mxu0 0
    %5089 = vmatprep.subr.bf16.mxu0 0
    %5090 = vmatpush1.bf16.msra.mxu0 0
    %5091 = vmatprep.subr.bf16.mxu0 0
    %5092 = vmatpush1.bf16.msra.mxu0 0
    %5093 = vmatprep.mubr.bf16.mxu0 0
    %5094 = vmatmul.mubr.bf16.gmra.mrb[0].mxu0 %v5059
    %v5095 = vpop.f32.mrb[0].mxu0
    %v5096 = vadd.f32 0.0, %v5095
    %v5097 = vpop.f32.mrb[0].mxu0
    %v5098 = vadd.f32 0.0, %v5097
    %v5099 = vpop.f32.mrb[0].mxu0
    %v5100 = vadd.f32 0.0, %v5099
    %v5101 = vpop.f32.mrb[0].mxu0
    %v5102 = vadd.f32 0.0, %v5101
    %5103 = vdwg.mxu0
    %5104 = vmatprep.subr.bf16.mxu0 0
    %5105 = vmatpush1.bf16.msra.mxu0 %v5054
    %5106 = vmatprep.subr.bf16.mxu0 0
    %5107 = vmatpush1.bf16.msra.mxu0 0
    %5108 = vmatprep.subr.bf16.mxu0 0
    %5109 = vmatpush1.bf16.msra.mxu0 0
    %5110 = vmatprep.subr.bf16.mxu0 0
    %5111 = vmatpush1.bf16.msra.mxu0 0
    %5112 = vmatprep.subr.bf16.mxu0 0
    %5113 = vmatpush1.bf16.msra.mxu0 0
    %5114 = vmatprep.subr.bf16.mxu0 0
    %5115 = vmatpush1.bf16.msra.mxu0 0
    %5116 = vmatprep.subr.bf16.mxu0 0
    %5117 = vmatpush1.bf16.msra.mxu0 0
    %5118 = vmatprep.subr.bf16.mxu0 0
    %5119 = vmatpush1.bf16.msra.mxu0 0
    %5120 = vmatprep.subr.bf16.mxu0 0
    %5121 = vmatpush1.bf16.msra.mxu0 0
    %5122 = vmatprep.subr.bf16.mxu0 0
    %5123 = vmatpush1.bf16.msra.mxu0 0
    %5124 = vmatprep.subr.bf16.mxu0 0
    %5125 = vmatpush1.bf16.msra.mxu0 0
    %5126 = vmatprep.subr.bf16.mxu0 0
    %5127 = vmatpush1.bf16.msra.mxu0 0
    %5128 = vmatprep.subr.bf16.mxu0 0
    %5129 = vmatpush1.bf16.msra.mxu0 0
    %5130 = vmatprep.subr.bf16.mxu0 0
    %5131 = vmatpush1.bf16.msra.mxu0 0
    %5132 = vmatprep.subr.bf16.mxu0 0
    %5133 = vmatpush1.bf16.msra.mxu0 0
    %5134 = vmatprep.subr.bf16.mxu0 0
    %5135 = vmatpush1.bf16.msra.mxu0 0
    %5136 = vmatprep.mubr.bf16.mxu0 0
    %5137 = vmatmul.mubr.bf16.gmra.mrb[0].mxu0 %v5059
    %v5138 = vpop.f32.mrb[0].mxu0
    %v5139 = vadd.f32 0.0, %v5138
    %v5140 = vpop.f32.mrb[0].mxu0
    %v5141 = vpop.f32.mrb[0].mxu0
    %v5142 = vadd.f32 0.0, %v5141
    %v5143 = vpop.f32.mrb[0].mxu0
    %5144 = vdwg.mxu0
    %v5147 = vunpack.c.l.b16 %v5018
    %v5148 = vunpack.c.l.b16 %v5019
    %v5149 = vpack.c.b16 %v5148, %v5147
    %5150 = vrot.lane.b32.xlu0 %v5028, 4
    %v5151 = vpop.permute.xlu0 %5150
    %5152 = vrot.lane.b32.xlu0 %v5029, 4
    %v5153 = vpop.permute.xlu0 %5152
    %5154 = vrot.lane.b32.xlu0 %v5030, 4
    %v5155 = vpop.permute.xlu0 %5154
    %5156 = vrot.lane.b32.xlu0 %v5031, 4
    %v5157 = vpop.permute.xlu0 %5156
    %v5158 = vsel %vm1190, %v5151, %v5153
    %v5159 = vsel %vm1190, %v5153, %v5155
    %v5160 = vsel %vm1190, %v5155, %v5157
    %v5165 = vsel %vm173, %v5149, 0
    %5167 = vmatprep.subr.bf16.mxu0 %v5159
    %5168 = vmatpush1.bf16.msra.mxu0 %v5158
    %5169 = vmatprep.subr.bf16.mxu0 0
    %5170 = vmatpush1.bf16.msra.mxu0 0
    %5171 = vmatprep.subr.bf16.mxu0 0
    %5172 = vmatpush1.bf16.msra.mxu0 0
    %5173 = vmatprep.subr.bf16.mxu0 0
    %5174 = vmatpush1.bf16.msra.mxu0 0
    %5175 = vmatprep.subr.bf16.mxu0 0
    %5176 = vmatpush1.bf16.msra.mxu0 0
    %5177 = vmatprep.subr.bf16.mxu0 0
    %5178 = vmatpush1.bf16.msra.mxu0 0
    %5179 = vmatprep.subr.bf16.mxu0 0
    %5180 = vmatpush1.bf16.msra.mxu0 0
    %5181 = vmatprep.subr.bf16.mxu0 0
    %5182 = vmatpush1.bf16.msra.mxu0 0
    %5183 = vmatprep.subr.bf16.mxu0 0
    %5184 = vmatpush1.bf16.msra.mxu0 0
    %5185 = vmatprep.subr.bf16.mxu0 0
    %5186 = vmatpush1.bf16.msra.mxu0 0
    %5187 = vmatprep.subr.bf16.mxu0 0
    %5188 = vmatpush1.bf16.msra.mxu0 0
    %5189 = vmatprep.subr.bf16.mxu0 0
    %5190 = vmatpush1.bf16.msra.mxu0 0
    %5191 = vmatprep.subr.bf16.mxu0 0
    %5192 = vmatpush1.bf16.msra.mxu0 0
    %5193 = vmatprep.subr.bf16.mxu0 0
    %5194 = vmatpush1.bf16.msra.mxu0 0
    %5195 = vmatprep.subr.bf16.mxu0 0
    %5196 = vmatpush1.bf16.msra.mxu0 0
    %5197 = vmatprep.subr.bf16.mxu0 0
    %5198 = vmatpush1.bf16.msra.mxu0 0
    %5199 = vmatprep.mubr.bf16.mxu0 0
    %5200 = vmatmul.mubr.bf16.gmra.mrb[0].mxu0 %v5165
    %v5201 = vpop.f32.mrb[0].mxu0
    %v5202 = vadd.f32 %v5096, %v5201
    %v5203 = vpop.f32.mrb[0].mxu0
    %v5204 = vadd.f32 %v5098, %v5203
    %v5205 = vpop.f32.mrb[0].mxu0
    %v5206 = vadd.f32 %v5100, %v5205
    %v5207 = vpop.f32.mrb[0].mxu0
    %v5208 = vadd.f32 %v5102, %v5207
    %5209 = vdwg.mxu0
    %5210 = vmatprep.subr.bf16.mxu0 0
    %5211 = vmatpush1.bf16.msra.mxu0 %v5160
    %5212 = vmatprep.subr.bf16.mxu0 0
    %5213 = vmatpush1.bf16.msra.mxu0 0
    %5214 = vmatprep.subr.bf16.mxu0 0
    %5215 = vmatpush1.bf16.msra.mxu0 0
    %5216 = vmatprep.subr.bf16.mxu0 0
    %5217 = vmatpush1.bf16.msra.mxu0 0
    %5218 = vmatprep.subr.bf16.mxu0 0
    %5219 = vmatpush1.bf16.msra.mxu0 0
    %5220 = vmatprep.subr.bf16.mxu0 0
    %5221 = vmatpush1.bf16.msra.mxu0 0
    %5222 = vmatprep.subr.bf16.mxu0 0
    %5223 = vmatpush1.bf16.msra.mxu0 0
    %5224 = vmatprep.subr.bf16.mxu0 0
    %5225 = vmatpush1.bf16.msra.mxu0 0
    %5226 = vmatprep.subr.bf16.mxu0 0
    %5227 = vmatpush1.bf16.msra.mxu0 0
    %5228 = vmatprep.subr.bf16.mxu0 0
    %5229 = vmatpush1.bf16.msra.mxu0 0
    %5230 = vmatprep.subr.bf16.mxu0 0
    %5231 = vmatpush1.bf16.msra.mxu0 0
    %5232 = vmatprep.subr.bf16.mxu0 0
    %5233 = vmatpush1.bf16.msra.mxu0 0
    %5234 = vmatprep.subr.bf16.mxu0 0
    %5235 = vmatpush1.bf16.msra.mxu0 0
    %5236 = vmatprep.subr.bf16.mxu0 0
    %5237 = vmatpush1.bf16.msra.mxu0 0
    %5238 = vmatprep.subr.bf16.mxu0 0
    %5239 = vmatpush1.bf16.msra.mxu0 0
    %5240 = vmatprep.subr.bf16.mxu0 0
    %5241 = vmatpush1.bf16.msra.mxu0 0
    %5242 = vmatprep.mubr.bf16.mxu0 0
    %5243 = vmatmul.mubr.bf16.gmra.mrb[0].mxu0 %v5165
    %v5244 = vpop.f32.mrb[0].mxu0
    %v5245 = vadd.f32 %v5139, %v5244
    %v5246 = vpop.f32.mrb[0].mxu0
    %v5247 = vpop.f32.mrb[0].mxu0
    %v5248 = vadd.f32 %v5142, %v5247
    %v5249 = vpop.f32.mrb[0].mxu0
    %5250 = vdwg.mxu0
    %s5251 = scalar_lea.vmem [#allocation6], 400
    %v5252 = vld [vmem:[%s5251] sm:$0xf]
    %v5253 = vld [vmem:[%s5251 + $0x4] sm:$0xf]
    %v5256 = vunpack.c.l.b16 %v5252
    %v5257 = vunpack.c.l.b16 %v5253
    %v5258 = vpack.c.b16 %v5257, %v5256
    %v5260 = vsel %vm173, %v5258, 0
    %5262 = vmatprep.subr.bf16.mxu0 %v5030
    %5263 = vmatpush1.bf16.msra.mxu0 %v5029
    %5264 = vmatprep.subr.bf16.mxu0 0
    %5265 = vmatpush1.bf16.msra.mxu0 0
    %5266 = vmatprep.subr.bf16.mxu0 0
    %5267 = vmatpush1.bf16.msra.mxu0 0
    %5268 = vmatprep.subr.bf16.mxu0 0
    %5269 = vmatpush1.bf16.msra.mxu0 0
    %5270 = vmatprep.subr.bf16.mxu0 0
    %5271 = vmatpush1.bf16.msra.mxu0 0
    %5272 = vmatprep.subr.bf16.mxu0 0
    %5273 = vmatpush1.bf16.msra.mxu0 0
    %5274 = vmatprep.subr.bf16.mxu0 0
    %5275 = vmatpush1.bf16.msra.mxu0 0
    %5276 = vmatprep.subr.bf16.mxu0 0
    %5277 = vmatpush1.bf16.msra.mxu0 0
    %5278 = vmatprep.subr.bf16.mxu0 0
    %5279 = vmatpush1.bf16.msra.mxu0 0
    %5280 = vmatprep.subr.bf16.mxu0 0
    %5281 = vmatpush1.bf16.msra.mxu0 0
    %5282 = vmatprep.subr.bf16.mxu0 0
    %5283 = vmatpush1.bf16.msra.mxu0 0
    %5284 = vmatprep.subr.bf16.mxu0 0
    %5285 = vmatpush1.bf16.msra.mxu0 0
    %5286 = vmatprep.subr.bf16.mxu0 0
    %5287 = vmatpush1.bf16.msra.mxu0 0
    %5288 = vmatprep.subr.bf16.mxu0 0
    %5289 = vmatpush1.bf16.msra.mxu0 0
    %5290 = vmatprep.subr.bf16.mxu0 0
    %5291 = vmatpush1.bf16.msra.mxu0 0
    %5292 = vmatprep.subr.bf16.mxu0 0
    %5293 = vmatpush1.bf16.msra.mxu0 0
    %5294 = vmatprep.mubr.bf16.mxu0 0
    %5295 = vmatmul.mubr.bf16.gmra.mrb[0].mxu0 %v5260
    %v5296 = vpop.f32.mrb[0].mxu0
    %v5297 = vadd.f32 0.0, %v5296
    %v5298 = vpop.f32.mrb[0].mxu0
    %v5299 = vadd.f32 0.0, %v5298
    %v5300 = vpop.f32.mrb[0].mxu0
    %v5301 = vadd.f32 0.0, %v5300
    %v5302 = vpop.f32.mrb[0].mxu0
    %v5303 = vadd.f32 0.0, %v5302
    %5304 = vdwg.mxu0
    %5305 = vmatprep.subr.bf16.mxu0 0
    %5306 = vmatpush1.bf16.msra.mxu0 %v5031
    %5307 = vmatprep.subr.bf16.mxu0 0
    %5308 = vmatpush1.bf16.msra.mxu0 0
    %5309 = vmatprep.subr.bf16.mxu0 0
    %5310 = vmatpush1.bf16.msra.mxu0 0
    %5311 = vmatprep.subr.bf16.mxu0 0
    %5312 = vmatpush1.bf16.msra.mxu0 0
    %5313 = vmatprep.subr.bf16.mxu0 0
    %5314 = vmatpush1.bf16.msra.mxu0 0
    %5315 = vmatprep.subr.bf16.mxu0 0
    %5316 = vmatpush1.bf16.msra.mxu0 0
    %5317 = vmatprep.subr.bf16.mxu0 0
    %5318 = vmatpush1.bf16.msra.mxu0 0
    %5319 = vmatprep.subr.bf16.mxu0 0
    %5320 = vmatpush1.bf16.msra.mxu0 0
    %5321 = vmatprep.subr.bf16.mxu0 0
    %5322 = vmatpush1.bf16.msra.mxu0 0
    %5323 = vmatprep.subr.bf16.mxu0 0
    %5324 = vmatpush1.bf16.msra.mxu0 0
    %5325 = vmatprep.subr.bf16.mxu0 0
    %5326 = vmatpush1.bf16.msra.mxu0 0
    %5327 = vmatprep.subr.bf16.mxu0 0
    %5328 = vmatpush1.bf16.msra.mxu0 0
    %5329 = vmatprep.subr.bf16.mxu0 0
    %5330 = vmatpush1.bf16.msra.mxu0 0
    %5331 = vmatprep.subr.bf16.mxu0 0
    %5332 = vmatpush1.bf16.msra.mxu0 0
    %5333 = vmatprep.subr.bf16.mxu0 0
    %5334 = vmatpush1.bf16.msra.mxu0 0
    %5335 = vmatprep.subr.bf16.mxu0 0
    %5336 = vmatpush1.bf16.msra.mxu0 0
    %5337 = vmatprep.mubr.bf16.mxu0 0
    %5338 = vmatmul.mubr.bf16.gmra.mrb[0].mxu0 %v5260
    %v5339 = vpop.f32.mrb[0].mxu0
    %v5340 = vadd.f32 0.0, %v5339
    %v5341 = vpop.f32.mrb[0].mxu0
    %v5342 = vpop.f32.mrb[0].mxu0
    %v5343 = vadd.f32 0.0, %v5342
    %v5344 = vpop.f32.mrb[0].mxu0
    %5345 = vdwg.mxu0
    %v5346 = vadd.f32 %v5202, %v5297
    %v5347 = vadd.f32 %v5204, %v5299
    %v5348 = vadd.f32 %v5245, %v5340
    %v5349 = vadd.f32 %v5206, %v5301
    %v5350 = vadd.f32 %v5208, %v5303
    %v5351 = vadd.f32 %v5248, %v5343
    %s5352 = scalar_lea.vmem [#allocation8], 256
    %v5353 = vld [vmem:[%s5352] sm:$0xff]
    %v5354 = vld [vmem:[%s5352 + $0x8] sm:$0xff]
    %5356 = vset.pattern.permute.xlu0 0
    %5357 = vperm.xlu0 %5356, %v5353
    %v5358 = vpop.permute.xlu0 %5357
    %5361 = vset.pattern.permute.xlu0 0
    %5362 = vperm.xlu0 %5361, %v5354
    %v5363 = vpop.permute.xlu0 %5362
    %v5365 = vadd.f32 %v5346, %v5358
    %v5366 = vadd.f32 %v5347, %v5358
    %v5367 = vadd.f32 %v5348, %v5358
    %v5368 = vadd.f32 %v5349, %v5363
    %v5369 = vadd.f32 %v5350, %v5363
    %v5370 = vadd.f32 %v5351, %v5363
    %v5371 = vmax.f32 %v5365, 0.0
    %v5372 = vmax.f32 %v5366, 0.0
    %v5373 = vmax.f32 %v5367, 0.0
    %v5374 = vmax.f32 %v5368, 0.0
    %v5375 = vmax.f32 %v5369, 0.0
    %v5376 = vmax.f32 %v5370, 0.0
    %v5377 = vmul.f32 %v5371, %v141
    %v5378 = vmul.f32 %v5372, %v142
    %v5379 = vmul.f32 %v5373, %v143
    %v5380 = vmul.f32 %v5374, %v141
    %v5381 = vmul.f32 %v5375, %v142
    %v5382 = vmul.f32 %v5376, %v143
    %v5383 = vld [vmem:[#allocation3] sm:$0xff]
    %v5384 = vld [vmem:[#allocation3 + $0x8] sm:$0xff]
    %v5385 = vld [vmem:[#allocation3 + $0x10] sm:$0xff]
    %v5386 = vld [vmem:[#allocation3 + $0x18] sm:$0xff]
    %v5387 = vld [vmem:[#allocation3 + $0x20] sm:$0xff]
    %v5388 = vld [vmem:[#allocation3 + $0x28] sm:$0xff]
    %v5389 = vadd.f32 %v5377, %v5383
    %v5390 = vadd.f32 %v5378, %v5384
    %v5391 = vadd.f32 %v5379, %v5385
    %v5392 = vadd.f32 %v5380, %v5386
    %v5393 = vadd.f32 %v5381, %v5387
    %v5394 = vadd.f32 %v5382, %v5388
    %v5395 = vmax.f32 %v5389, 0.0
    %v5396 = vmax.f32 %v5390, 0.0
    %v5397 = vmax.f32 %v5391, 0.0
    %v5398 = vmax.f32 %v5392, 0.0
    %v5399 = vmax.f32 %v5393, 0.0
    %v5400 = vmax.f32 %v5394, 0.0
    %5401 = vst [vmem:[#allocation2 + $0x8] sm:$0xff] %v5395
    %5402 = vst [vmem:[#allocation2 + $0x10] sm:$0xff] %v5396
    %5403 = vst.msk [vmem:[#allocation2 + $0x18] sm:$0xff] %vm59, %v5397
    %5404 = vst [vmem:[#allocation2 + $0x28] sm:$0xff] %v5398
    %5405 = vst [vmem:[#allocation2 + $0x30] sm:$0xff] %v5399
    %5406 = vst.msk [vmem:[#allocation2 + $0x38] sm:$0xff] %vm59, %v5400
    %s5407 = scalar_lea.vmem [#allocation6], 424
    %v5408 = vld [vmem:[%s5407] sm:$0xf]
    %v5409 = vld [vmem:[%s5407 + $0x4] sm:$0xf]
    %v5410 = vld [vmem:[#allocation2 + $0x8] sm:$0xff]
    %v5411 = vld [vmem:[#allocation2 + $0x10] sm:$0xff]
    %v5412 = vld [vmem:[#allocation2 + $0x18] sm:$0xff]
    %v5413 = vld [vmem:[#allocation2 + $0x28] sm:$0xff]
    %v5414 = vld [vmem:[#allocation2 + $0x30] sm:$0xff]
    %v5415 = vld [vmem:[#allocation2 + $0x38] sm:$0xff]
    %v5416 = vpack.c.bf16 %v5413, %v5410
    %v5417 = vpack.c.bf16 %v5414, %v5411
    %v5418 = vpack.c.bf16 %v5415, %v5412
    %s5419 = scalar_lea.vmem [#allocation8], 272
    %v5420 = vld [vmem:[%s5419] sm:$0xff]
    %v5421 = vld [vmem:[%s5419 + $0x8] sm:$0xff]
    %5423 = vset.pattern.permute.xlu0 0
    %5424 = vperm.xlu0 %5423, %v5420
    %v5425 = vpop.permute.xlu0 %5424
    %5428 = vset.pattern.permute.xlu0 0
    %5429 = vperm.xlu0 %5428, %v5421
    %v5430 = vpop.permute.xlu0 %5429
    %v5433 = vunpack.c.l.b16 %v5408
    %v5434 = vunpack.c.l.b16 %v5409
    %v5435 = vpack.c.b16 %v5434, %v5433
    %v5437 = vsel %vm173, %v5435, 0
    %5439 = vmatprep.subr.bf16.mxu0 %v5417
    %5440 = vmatpush1.bf16.msra.mxu0 %v5416
    %5441 = vmatprep.subr.bf16.mxu0 0
    %5442 = vmatpush1.bf16.msra.mxu0 0
    %5443 = vmatprep.subr.bf16.mxu0 0
    %5444 = vmatpush1.bf16.msra.mxu0 0
    %5445 = vmatprep.subr.bf16.mxu0 0
    %5446 = vmatpush1.bf16.msra.mxu0 0
    %5447 = vmatprep.subr.bf16.mxu0 0
    %5448 = vmatpush1.bf16.msra.mxu0 0
    %5449 = vmatprep.subr.bf16.mxu0 0
    %5450 = vmatpush1.bf16.msra.mxu0 0
    %5451 = vmatprep.subr.bf16.mxu0 0
    %5452 = vmatpush1.bf16.msra.mxu0 0
    %5453 = vmatprep.subr.bf16.mxu0 0
    %5454 = vmatpush1.bf16.msra.mxu0 0
    %5455 = vmatprep.subr.bf16.mxu0 0
    %5456 = vmatpush1.bf16.msra.mxu0 0
    %5457 = vmatprep.subr.bf16.mxu0 0
    %5458 = vmatpush1.bf16.msra.mxu0 0
    %5459 = vmatprep.subr.bf16.mxu0 0
    %5460 = vmatpush1.bf16.msra.mxu0 0
    %5461 = vmatprep.subr.bf16.mxu0 0
    %5462 = vmatpush1.bf16.msra.mxu0 0
    %5463 = vmatprep.subr.bf16.mxu0 0
    %5464 = vmatpush1.bf16.msra.mxu0 0
    %5465 = vmatprep.subr.bf16.mxu0 0
    %5466 = vmatpush1.bf16.msra.mxu0 0
    %5467 = vmatprep.subr.bf16.mxu0 0
    %5468 = vmatpush1.bf16.msra.mxu0 0
    %5469 = vmatprep.subr.bf16.mxu0 0
    %5470 = vmatpush1.bf16.msra.mxu0 0
    %5471 = vmatprep.mubr.bf16.mxu0 0
    %5472 = vmatmul.mubr.bf16.gmra.mrb[0].mxu0 %v5437
    %v5473 = vpop.f32.mrb[0].mxu0
    %v5474 = vadd.f32 %v5425, %v5473
    %v5475 = vpop.f32.mrb[0].mxu0
    %v5476 = vadd.f32 %v5425, %v5475
    %v5477 = vpop.f32.mrb[0].mxu0
    %v5478 = vpop.f32.mrb[0].mxu0
    %5479 = vdwg.mxu0
    %5480 = vmatprep.subr.bf16.mxu0 0
    %5481 = vmatpush1.bf16.msra.mxu0 %v5418
    %5482 = vmatprep.subr.bf16.mxu0 0
    %5483 = vmatpush1.bf16.msra.mxu0 0
    %5484 = vmatprep.subr.bf16.mxu0 0
    %5485 = vmatpush1.bf16.msra.mxu0 0
    %5486 = vmatprep.subr.bf16.mxu0 0
    %5487 = vmatpush1.bf16.msra.mxu0 0
    %5488 = vmatprep.subr.bf16.mxu0 0
    %5489 = vmatpush1.bf16.msra.mxu0 0
    %5490 = vmatprep.subr.bf16.mxu0 0
    %5491 = vmatpush1.bf16.msra.mxu0 0
    %5492 = vmatprep.subr.bf16.mxu0 0
    %5493 = vmatpush1.bf16.msra.mxu0 0
    %5494 = vmatprep.subr.bf16.mxu0 0
    %5495 = vmatpush1.bf16.msra.mxu0 0
    %5496 = vmatprep.subr.bf16.mxu0 0
    %5497 = vmatpush1.bf16.msra.mxu0 0
    %5498 = vmatprep.subr.bf16.mxu0 0
    %5499 = vmatpush1.bf16.msra.mxu0 0
    %5500 = vmatprep.subr.bf16.mxu0 0
    %5501 = vmatpush1.bf16.msra.mxu0 0
    %5502 = vmatprep.subr.bf16.mxu0 0
    %5503 = vmatpush1.bf16.msra.mxu0 0
    %5504 = vmatprep.subr.bf16.mxu0 0
    %5505 = vmatpush1.bf16.msra.mxu0 0
    %5506 = vmatprep.subr.bf16.mxu0 0
    %5507 = vmatpush1.bf16.msra.mxu0 0
    %5508 = vmatprep.subr.bf16.mxu0 0
    %5509 = vmatpush1.bf16.msra.mxu0 0
    %5510 = vmatprep.subr.bf16.mxu0 0
    %5511 = vmatpush1.bf16.msra.mxu0 0
    %5512 = vmatprep.mubr.bf16.mxu0 0
    %5513 = vmatmul.mubr.bf16.gmra.mrb[0].mxu0 %v5437
    %v5514 = vpop.f32.mrb[0].mxu0
    %v5515 = vadd.f32 %v5425, %v5514
    %v5516 = vpop.f32.mrb[0].mxu0
    %v5517 = vpop.f32.mrb[0].mxu0
    %v5518 = vpop.f32.mrb[0].mxu0
    %5519 = vdwg.mxu0
    %v5520 = vmul.f32 %v5474, %v141
    %v5521 = vmul.f32 %v5476, %v142
    %v5522 = vmul.f32 %v5515, %v143
    %s5523 = scalar_lea.vmem %s3, 48
    %5524 = vst [vmem:[%s5523] sm:$0xff] %v5520
    %5525 = vst [vmem:[%s5523 + $0x8] sm:$0xff] %v5521
    %5526 = vst.msk [vmem:[%s5523 + $0x10] sm:$0xff] %vm59, %v5522
    // Predicated region
    $region26: #{forward.1} parent=1 // pred_check
      _
    $region27: #{forward.1} parent=1 // pred_check_branch
      %5528 = sbr.rel (0) target = $region29
    $region28: #{forward.1} parent=1 // pred_region
      _
    $region29: #{forward.1} parent=1 // pred_fallthru
      _
    // Predicated region
    $region30: #{forward.1} parent=1 // pred_check
      _
    $region31: #{forward.1} parent=1 // pred_check_branch
      %5530 = sbr.rel (0) target = $region33
    $region32: #{forward.1} parent=1 // pred_region
      _
    $region33: #{forward.1} parent=1 // pred_fallthru
      _
    %5531 = vsyncpa [#allocation5], 1
    %5532 = vsyncpa [#allocation7], 1

</llo_original>
